<compile_context>
chip_gen: v7x
topology: tpu7x:2x2x1
jax: 0.10.0
libtpu: 0.0.40
codegen_flags: <defaults>
</compile_context>

<pallas_src>
import functools

import jax
import jax.numpy as jnp
from jax.experimental import pallas as pl
from jax.experimental.pallas import tpu as pltpu


def _pq_codebook_kernel(z_ref, cb_ref, csq_ref, zq_ref, prob_ref, idx_ref,
                        sse_ref, *, inv_ts):
    """One grid step = one (PQ codebook, spatial tile) pair.

    Ref shapes (after BlockSpec squeezing), with D = pq_dim, T = tile_hw,
    N = b * T, K = codebook size:
      z_ref   : (b, D, T)   input block straight out of the NCHW tensor
      cb_ref  : (K, D)      codebook of this PQ chunk (resident across hw tiles)
      csq_ref : (1, K)      precomputed ||c_k||^2
      zq_ref  : (b, D, T)   quantized output, NCHW layout
      prob_ref: (b, T, K)   softmax(-d / jsd_ts)
      idx_ref : (b, T)      argmin indices (lane-dense rows)
      sse_ref : (8, 128)    per-tile sum of squared errors (broadcast scalar)
    """
    cb = cb_ref[...].astype(jnp.float32)            # (K, D)
    c_sq = csq_ref[...].astype(jnp.float32)         # (1, K)
    bsz, dd, t = z_ref.shape
    kk = cb.shape[0]
    n = bsz * t

    # NCHW -> (N, D): one in-kernel transpose (XLU) + free leading-dim merge.
    z_btd = jnp.transpose(z_ref[...].astype(jnp.float32), (0, 2, 1))   # (b, T, D)
    z_nd = z_btd.reshape(n, dd)                                        # (N, D)

    # Full squared distance (||c||^2 hoisted to the wrapper; ||z||^2 kept so
    # that f32 rounding / argmin tie-breaking matches the torch formula).
    z_sq = jnp.sum(z_nd * z_nd, axis=1, keepdims=True)                 # (N, 1)
    cross = jax.lax.dot_general(z_nd, cb, (((1,), (1,)), ((), ())),
                                preferred_element_type=jnp.float32)    # (N, K)
    d = z_sq + c_sq - 2.0 * cross                                      # (N, K)

    # argmin over K with first-occurrence tie-break (torch.argmin semantics).
    lane_iota = jax.lax.broadcasted_iota(jnp.int32, (n, kk), 1)
    d_min = jnp.min(d, axis=1, keepdims=True)                          # (N, 1)
    cand = jnp.where(d == d_min, lane_iota, kk)                        # (N, K)
    idx_n1 = jnp.min(cand, axis=1, keepdims=True)                      # (N, 1)

    # distance_prob = softmax(-d / jsd_ts) for the whole (N, K) slab at once.
    logits = d * (-inv_ts)
    m = jnp.max(logits, axis=1, keepdims=True)
    e = jnp.exp(logits - m)
    prob = e / jnp.sum(e, axis=1, keepdims=True)
    prob_ref[...] = prob.reshape(bsz, t, kk).astype(prob_ref.dtype)

    # z_q = codebook[idx] via one one-hot matmul (MXU gather), stored in NCHW.
    one_hot = (idx_n1 == lane_iota).astype(jnp.float32)                # (N, K)
    zq_nd = jnp.dot(one_hot, cb, preferred_element_type=jnp.float32)   # (N, D)
    zq_ref[...] = jnp.transpose(zq_nd.reshape(bsz, t, dd),
                                (0, 2, 1)).astype(zq_ref.dtype)

    # Lane-dense index rows: one tile_hw-wide store per batch element
    # (small static b, unrolled; reduce of an aligned sublane slice of `cand`).
    for bi in range(bsz):
        idx_ref[bi] = jnp.min(cand[bi * t:(bi + 1) * t, :],
                              axis=1).astype(jnp.int32)

    # Per-tile partial SSE (summed in the wrapper) so both grid axes stay
    # 'parallel' (lets v7x shard the grid across its two TensorCores).
    diff = zq_nd - z_nd
    sse_ref[...] = jnp.zeros_like(sse_ref) + jnp.sum(diff * diff)


def _choose_tile_hw(hw, max_tile=2048):
    """Largest legal spatial tile: full HW when small, else an aligned divisor."""
    if hw <= max_tile:
        return hw
    t = (max_tile // 128) * 128
    while t >= 128:
        if hw % t == 0:
            return t
        t -= 128
    # TODO(synk): ragged / masked last tile for HW with no 128-aligned divisor.
    return hw


def product_quantizer_forward(z, codebooks, *, beta=0.25, jsd_ts=1.0,
                              max_tile_hw=2048):
    """Pallas forward of ProductQuantizerWrapper (eval mode, normalize='none').

    z:         (b, embed_dim, h, w)  NCHW
    codebooks: (num_pq, K, pq_dim)   with embed_dim == num_pq * pq_dim
    Returns (z_quantized, outputs, distance_prob, pseudo_labels) like torch.
    """
    b, c, h, w = z.shape
    num_pq, k, pq_dim = codebooks.shape
    if c != num_pq * pq_dim:
        raise ValueError("embed_dim must equal num_pq * pq_dim")
    # prob blocks are written K lanes at a time at lane offset p*K.
    assert k % 128 == 0 or num_pq == 1, "K must be a multiple of 128 when num_pq > 1"

    hw = h * w
    tile_hw = _choose_tile_hw(hw, max_tile_hw)
    num_tiles = hw // tile_hw

    # Free reshape of the NCHW input; the NCHW<->(N, D) layout change happens
    # inside the kernel (no extra wrapper-side HBM pass).
    z4 = z.reshape(b, num_pq, pq_dim, hw)
    c_sq = jnp.sum(codebooks.astype(jnp.float32) ** 2, axis=-1)[:, None, :]  # (num_pq,1,K)

    out_shapes = (
        jax.ShapeDtypeStruct((b, num_pq, pq_dim, hw), jnp.float32),      # z_q (NCHW)
        # TODO(synk): bf16 would halve the dominant HBM write if the consumer
        # tolerates it; kept f32 to preserve the reference tolerances.
        jax.ShapeDtypeStruct((b, hw, num_pq * k), jnp.float32),          # distance_prob
        jax.ShapeDtypeStruct((num_pq, b, hw), jnp.int32),                # indices
        jax.ShapeDtypeStruct((num_pq, num_tiles, 8, 128), jnp.float32),  # SSE partials
    )

    grid_spec = pltpu.PrefetchScalarGridSpec(
        num_scalar_prefetch=0,
        grid=(num_pq, num_tiles),
        in_specs=[
            # z: (b, pq_dim, tile_hw) slab of the NCHW tensor.
            pl.BlockSpec((b, None, pq_dim, tile_hw), lambda p, j: (0, p, 0, j)),
            # Codebook of chunk p: block index is constant in j, so the pipeline
            # only re-issues its DMA when p changes (no per-tile refetch).
            pl.BlockSpec((None, k, pq_dim), lambda p, j: (p, 0, 0)),
            pl.BlockSpec((None, 1, k), lambda p, j: (p, 0, 0)),
        ],
        out_specs=[
            pl.BlockSpec((b, None, pq_dim, tile_hw), lambda p, j: (0, p, 0, j)),
            pl.BlockSpec((b, tile_hw, k), lambda p, j: (0, j, p)),
            pl.BlockSpec((None, b, tile_hw), lambda p, j: (p, 0, j)),
            pl.BlockSpec((None, None, 8, 128), lambda p, j: (p, j, 0, 0)),
        ],
    )

    kernel = functools.partial(_pq_codebook_kernel, inv_ts=1.0 / float(jsd_ts))
    zq4, prob_flat, idx_pq, sse_part = pl.pallas_call(
        kernel,
        out_shape=out_shapes,
        grid_spec=grid_spec,
        compiler_params=pltpu.CompilerParams(
            dimension_semantics=("parallel", "parallel"),
            vmem_limit_bytes=32 * 1024 * 1024,
        ),
    )(z4, codebooks, c_sq)

    z_q = zq4.reshape(b, c, h, w)                           # already NCHW: free reshape
    distance_prob = prob_flat.reshape(b, h, w, num_pq * k)
    pseudo_labels = [idx_pq[p].reshape(-1) for p in range(num_pq)]

    sse_total = jnp.sum(sse_part[:, :, 0, 0])
    # mean over PQ chunks of (codebook_loss + beta * commitment_loss)
    #   = (1 + beta) * SSE_total / (num_pq * N * pq_dim)
    vq_loss = (1.0 + beta) * sse_total / float(num_pq * b * hw * pq_dim)
    outputs = {"vq-loss": vq_loss}

    # TODO(synk): straight-through gradient (z + (z_q - z).detach()), training-only
    # branches (kmeans/rand init, restart/split, vq_count + all_reduce usage stats),
    # pq_dropout and the l2/z_norm/z_trainable normalize modes are not implemented.
    return z_q, outputs, distance_prob, pseudo_labels


def _reference_forward(z, codebooks, *, beta=0.25, jsd_ts=1.0):
    """Pure-JAX port of ProductQuantizerWrapper.forward (eval mode)."""
    b, c, h, w = z.shape
    num_pq, k, d = codebooks.shape
    zq_chunks, prob_chunks, labels = [], [], []
    loss = jnp.float32(0.0)
    for p in range(num_pq):
        zp = z[:, p * d:(p + 1) * d]
        z_flat = jnp.transpose(zp, (0, 2, 3, 1)).reshape(-1, d)
        cb = codebooks[p]
        dist = (jnp.sum(z_flat ** 2, axis=1, keepdims=True)
                + jnp.sum(cb ** 2, axis=1)
                - 2.0 * z_flat @ cb.T)
        idx = jnp.argmin(dist, axis=1)
        prob = jax.nn.softmax(-dist / jsd_ts, axis=1)
        z_q = cb[idx]
        mse = jnp.mean((z_q - z_flat) ** 2)
        loss = loss + (1.0 + beta) * mse
        zq_chunks.append(jnp.transpose(z_q.reshape(b, h, w, d), (0, 3, 1, 2)))
        prob_chunks.append(prob.reshape(b, h, w, k))
        labels.append(idx.astype(jnp.int32))
    z_q = jnp.concatenate(zq_chunks, axis=1)
    prob = jnp.concatenate(prob_chunks, axis=-1)
    return z_q, loss / num_pq, prob, labels


if __name__ == "__main__":
    key = jax.random.PRNGKey(0)
    k_cb, k_z = jax.random.split(key)

    num_pq = 4
    num_codebook = 128
    embed_dim = 32
    pq_dim = embed_dim // num_pq
    b, h, w = 2, 16, 16
    beta, jsd_ts = 0.25, 1.0

    # nn.Embedding(K, pq_dim).weight.data.uniform_(-1/K, 1/K) per sub-quantizer.
    codebooks = jax.random.uniform(
        k_cb, (num_pq, num_codebook, pq_dim),
        minval=-1.0 / num_codebook, maxval=1.0 / num_codebook, dtype=jnp.float32)
    z = jax.random.normal(k_z, (b, embed_dim, h, w), dtype=jnp.float32)

    z_q, outputs, dist_prob, pseudo_labels = product_quantizer_forward(
        z, codebooks, beta=beta, jsd_ts=jsd_ts)
    jax.block_until_ready((z_q, outputs["vq-loss"], dist_prob, pseudo_labels))

    # Sanity check against a pure-JAX reference of the torch forward.
    zq_exp, loss_exp, prob_exp, labels_exp = _reference_forward(
        z, codebooks, beta=beta, jsd_ts=jsd_ts)

    assert z_q.shape == (b, embed_dim, h, w)
    assert dist_prob.shape == (b, h, w, num_pq * num_codebook)
    assert len(pseudo_labels) == num_pq
    assert pseudo_labels[0].shape == (b * h * w,)
    assert jnp.allclose(z_q, zq_exp, rtol=1e-5, atol=1e-6)
    assert jnp.allclose(dist_prob, prob_exp, rtol=1e-4, atol=1e-6)
    assert jnp.allclose(outputs["vq-loss"], loss_exp, rtol=1e-5, atol=1e-6)
    for p in range(num_pq):
        assert jnp.array_equal(pseudo_labels[p], labels_exp[p])

    print("KERNEL_OK")
</pallas_src>

<mosaic_0001>
module attributes {stable_mosaic.version = 11 : i64} {
  func.func @_pq_codebook_kernel(%arg0: i32, %arg1: i32, %arg2: memref<2x1x8x256xf32, #tpu.memory_space<vmem>>, %arg3: memref<1x128x8xf32, #tpu.memory_space<vmem>>, %arg4: memref<1x1x128xf32, #tpu.memory_space<vmem>>, %arg5: memref<2x1x8x256xf32, #tpu.memory_space<vmem>>, %arg6: memref<2x256x128xf32, #tpu.memory_space<vmem>>, %arg7: memref<1x2x256xi32, #tpu.memory_space<vmem>>, %arg8: memref<1x1x8x128xf32, #tpu.memory_space<vmem>>) attributes {dimension_semantics = [#tpu.dimension_semantics<parallel>, #tpu.dimension_semantics<parallel>], iteration_bounds = array<i64: 4, 1>, scalar_prefetch = 0 : i64, scratch_operands = 0 : i64, tpu.core_type = #tpu.core_type<tc>, window_params = [{transform_indices = @transform_0, window_bounds = array<i64: 2, 1, 8, 256>}, {transform_indices = @transform_1, window_bounds = array<i64: 1, 128, 8>}, {transform_indices = @transform_2, window_bounds = array<i64: 1, 1, 128>}, {transform_indices = @transform_3, window_bounds = array<i64: 2, 1, 8, 256>}, {transform_indices = @transform_4, window_bounds = array<i64: 2, 256, 128>}, {transform_indices = @transform_5, window_bounds = array<i64: 1, 2, 256>}, {transform_indices = @transform_6, window_bounds = array<i64: 1, 1, 8, 128>}]} {
    %c0 = arith.constant 0 : index
    %c0_0 = arith.constant 0 : index
    %c0_1 = arith.constant 0 : index
    %0 = vector.load %arg3[%c0, %c0_0, %c0_1] : memref<1x128x8xf32, #tpu.memory_space<vmem>>, vector<1x128x8xf32>
    %1 = vector.shape_cast %0 : vector<1x128x8xf32> to vector<128x8xf32>
    %c0_2 = arith.constant 0 : index
    %c0_3 = arith.constant 0 : index
    %c0_4 = arith.constant 0 : index
    %2 = vector.load %arg4[%c0_2, %c0_3, %c0_4] : memref<1x1x128xf32, #tpu.memory_space<vmem>>, vector<1x1x128xf32>
    %3 = vector.shape_cast %2 : vector<1x1x128xf32> to vector<1x128xf32>
    %c0_5 = arith.constant 0 : index
    %c0_6 = arith.constant 0 : index
    %c0_7 = arith.constant 0 : index
    %c0_8 = arith.constant 0 : index
    %4 = vector.load %arg2[%c0_5, %c0_6, %c0_7, %c0_8] : memref<2x1x8x256xf32, #tpu.memory_space<vmem>>, vector<2x1x8x256xf32>
    %5 = vector.shape_cast %4 : vector<2x1x8x256xf32> to vector<2x8x256xf32>
    %6 = tpu.transpose %5, [0, 2, 1] : vector<2x8x256xf32> -> vector<2x256x8xf32>
    %7 = vector.shape_cast %6 : vector<2x256x8xf32> to vector<512x8xf32>
    %8 = arith.mulf %7, %7 : vector<512x8xf32>
    %cst = arith.constant dense<0.000000e+00> : vector<512xf32>
    %9 = vector.multi_reduction <add>, %8, %cst [1] : vector<512x8xf32> to vector<512xf32>
    %10 = vector.shape_cast %9 : vector<512xf32> to vector<512x1xf32>
    %cst_9 = arith.constant dense<0.000000e+00> : vector<512x128xf32>
    %11 = tpu.matmul %7, %1, %cst_9 {dimension_numbers = #tpu.dot_dimension_numbers<[1], [1], [0], [0], [0, 0, 1, 0], [], []>} : vector<512x8xf32>, vector<128x8xf32>, vector<512x128xf32> -> vector<512x128xf32>
    %12 = vector.broadcast %10 : vector<512x1xf32> to vector<512x128xf32>
    %13 = vector.broadcast %3 : vector<1x128xf32> to vector<512x128xf32>
    %14 = arith.addf %12, %13 : vector<512x128xf32>
    %cst_10 = arith.constant 2.000000e+00 : f32
    %15 = vector.broadcast %cst_10 : f32 to vector<512x128xf32>
    %16 = arith.mulf %15, %11 : vector<512x128xf32>
    %17 = arith.subf %14, %16 : vector<512x128xf32>
    %18 = tpu.iota {dimensions = array<i32: 1>} : vector<512x128xi32>
    %cst_11 = arith.constant dense<0x7F800000> : vector<512xf32>
    %19 = vector.multi_reduction <minimumf>, %17, %cst_11 [1] : vector<512x128xf32> to vector<512xf32>
    %20 = vector.shape_cast %19 : vector<512xf32> to vector<512x1xf32>
    %21 = vector.broadcast %20 : vector<512x1xf32> to vector<512x128xf32>
    %22 = arith.cmpf oeq, %17, %21 : vector<512x128xf32>
    %c128_i32 = arith.constant 128 : i32
    %23 = vector.broadcast %c128_i32 : i32 to vector<512x128xi32>
    %24 = arith.select %22, %18, %23 : vector<512x128xi1>, vector<512x128xi32>
    %cst_12 = arith.constant dense<2147483647> : vector<512xi32>
    %25 = vector.multi_reduction <minsi>, %24, %cst_12 [1] : vector<512x128xi32> to vector<512xi32>
    %26 = vector.shape_cast %25 : vector<512xi32> to vector<512x1xi32>
    %cst_13 = arith.constant -1.000000e+00 : f32
    %27 = vector.broadcast %cst_13 : f32 to vector<512x128xf32>
    %28 = arith.mulf %17, %27 : vector<512x128xf32>
    %cst_14 = arith.constant dense<0xFF800000> : vector<512xf32>
    %29 = vector.multi_reduction <maximumf>, %28, %cst_14 [1] : vector<512x128xf32> to vector<512xf32>
    %30 = vector.shape_cast %29 : vector<512xf32> to vector<512x1xf32>
    %31 = vector.broadcast %30 : vector<512x1xf32> to vector<512x128xf32>
    %32 = arith.subf %28, %31 : vector<512x128xf32>
    %33 = math.exp %32 : vector<512x128xf32>
    %cst_15 = arith.constant dense<0.000000e+00> : vector<512xf32>
    %34 = vector.multi_reduction <add>, %33, %cst_15 [1] : vector<512x128xf32> to vector<512xf32>
    %35 = vector.shape_cast %34 : vector<512xf32> to vector<512x1xf32>
    %36 = vector.broadcast %35 : vector<512x1xf32> to vector<512x128xf32>
    %37 = arith.divf %33, %36 : vector<512x128xf32>
    %38 = vector.shape_cast %37 : vector<512x128xf32> to vector<2x256x128xf32>
    %c0_16 = arith.constant 0 : index
    %c0_17 = arith.constant 0 : index
    %c0_18 = arith.constant 0 : index
    %39 = vector.load %arg6[%c0_16, %c0_17, %c0_18] : memref<2x256x128xf32, #tpu.memory_space<vmem>>, vector<2x256x128xf32>
    tpu.vector_store %arg6[%c0_16, %c0_17, %c0_18], %38 {strides = array<i32>} : memref<2x256x128xf32, #tpu.memory_space<vmem>>, vector<2x256x128xf32>,
    %40 = vector.broadcast %26 : vector<512x1xi32> to vector<512x128xi32>
    %41 = arith.cmpi eq, %40, %18 : vector<512x128xi32>
    %42 = arith.extui %41 : vector<512x128xi1> to vector<512x128xi32>
    %43 = arith.sitofp %42 : vector<512x128xi32> to vector<512x128xf32>
    %cst_19 = arith.constant dense<0.000000e+00> : vector<512x8xf32>
    %44 = tpu.matmul %43, %1, %cst_19 {dimension_numbers = #tpu.dot_dimension_numbers<[1], [0], [0], [1], [0, 0, 1, 1], [], []>} : vector<512x128xf32>, vector<128x8xf32>, vector<512x8xf32> -> vector<512x8xf32>
    %45 = vector.shape_cast %44 : vector<512x8xf32> to vector<2x256x8xf32>
    %46 = tpu.transpose %45, [0, 2, 1] : vector<2x256x8xf32> -> vector<2x8x256xf32>
    %c0_20 = arith.constant 0 : index
    %c0_21 = arith.constant 0 : index
    %c0_22 = arith.constant 0 : index
    %c0_23 = arith.constant 0 : index
    %47 = vector.load %arg5[%c0_20, %c0_21, %c0_22, %c0_23] : memref<2x1x8x256xf32, #tpu.memory_space<vmem>>, vector<2x1x8x256xf32>
    %48 = vector.shape_cast %47 : vector<2x1x8x256xf32> to vector<2x8x256xf32>
    %49 = vector.shape_cast %46 : vector<2x8x256xf32> to vector<2x1x8x256xf32>
    tpu.vector_store %arg5[%c0_20, %c0_21, %c0_22, %c0_23], %49 {strides = array<i32>} : memref<2x1x8x256xf32, #tpu.memory_space<vmem>>, vector<2x1x8x256xf32>,
    %50 = vector.extract_strided_slice %24 {offsets = [0, 0], sizes = [256, 128], strides = [1, 1]} : vector<512x128xi32> to vector<256x128xi32>
    %cst_24 = arith.constant dense<2147483647> : vector<256xi32>
    %51 = vector.multi_reduction <minsi>, %50, %cst_24 [1] : vector<256x128xi32> to vector<256xi32>
    %c0_25 = arith.constant 0 : index
    %c0_26 = arith.constant 0 : index
    %c0_27 = arith.constant 0 : index
    %52 = vector.load %arg7[%c0_25, %c0_26, %c0_27] : memref<1x2x256xi32, #tpu.memory_space<vmem>>, vector<1x1x256xi32>
    %53 = vector.shape_cast %52 : vector<1x1x256xi32> to vector<256xi32>
    %54 = vector.shape_cast %51 : vector<256xi32> to vector<1x1x256xi32>
    tpu.vector_store %arg7[%c0_25, %c0_26, %c0_27], %54 {strides = array<i32>} : memref<1x2x256xi32, #tpu.memory_space<vmem>>, vector<1x1x256xi32>,
    %55 = vector.extract_strided_slice %24 {offsets = [256, 0], sizes = [256, 128], strides = [1, 1]} : vector<512x128xi32> to vector<256x128xi32>
    %cst_28 = arith.constant dense<2147483647> : vector<256xi32>
    %56 = vector.multi_reduction <minsi>, %55, %cst_28 [1] : vector<256x128xi32> to vector<256xi32>
    %c0_29 = arith.constant 0 : index
    %c1 = arith.constant 1 : index
    %c0_30 = arith.constant 0 : index
    %57 = vector.load %arg7[%c0_29, %c1, %c0_30] : memref<1x2x256xi32, #tpu.memory_space<vmem>>, vector<1x1x256xi32>
    %58 = vector.shape_cast %57 : vector<1x1x256xi32> to vector<256xi32>
    %59 = vector.shape_cast %56 : vector<256xi32> to vector<1x1x256xi32>
    tpu.vector_store %arg7[%c0_29, %c1, %c0_30], %59 {strides = array<i32>} : memref<1x2x256xi32, #tpu.memory_space<vmem>>, vector<1x1x256xi32>,
    %60 = arith.subf %44, %7 : vector<512x8xf32>
    %cst_31 = arith.constant 0.000000e+00 : f32
    %61 = vector.broadcast %cst_31 : f32 to vector<8x128xf32>
    %62 = arith.mulf %60, %60 : vector<512x8xf32>
    %63 = vector.shape_cast %62 : vector<512x8xf32> to vector<1x512x8xf32>
    %cst_32 = arith.constant dense<0.000000e+00> : vector<1xf32>
    %64 = vector.multi_reduction <add>, %63, %cst_32 [1, 2] : vector<1x512x8xf32> to vector<1xf32>
    %65 = vector.shape_cast %64 : vector<1xf32> to vector<1x1x1xf32>
    %66 = vector.extract %65[0, 0, 0] : f32 from vector<1x1x1xf32>
    %67 = vector.broadcast %66 : f32 to vector<8x128xf32>
    %68 = arith.addf %61, %67 : vector<8x128xf32>
    %c0_33 = arith.constant 0 : index
    %c0_34 = arith.constant 0 : index
    %c0_35 = arith.constant 0 : index
    %c0_36 = arith.constant 0 : index
    %69 = vector.load %arg8[%c0_33, %c0_34, %c0_35, %c0_36] : memref<1x1x8x128xf32, #tpu.memory_space<vmem>>, vector<1x1x8x128xf32>
    %70 = vector.shape_cast %69 : vector<1x1x8x128xf32> to vector<8x128xf32>
    %71 = vector.shape_cast %68 : vector<8x128xf32> to vector<1x1x8x128xf32>
    tpu.vector_store %arg8[%c0_33, %c0_34, %c0_35, %c0_36], %71 {strides = array<i32>} : memref<1x1x8x128xf32, #tpu.memory_space<vmem>>, vector<1x1x8x128xf32>,
    return
  }
  func.func @transform_0(%arg0: i32, %arg1: i32) -> (i32, i32, i32, i32) {
    %c0_i32 = arith.constant 0 : i32
    %c0_i32_0 = arith.constant 0 : i32
    %c0_i32_1 = arith.constant 0 : i32
    return %c0_i32, %arg0, %c0_i32_0, %arg1 : i32, i32, i32, i32
  }
  func.func @transform_1(%arg0: i32, %arg1: i32) -> (i32, i32, i32) {
    %c0_i32 = arith.constant 0 : i32
    %c0_i32_0 = arith.constant 0 : i32
    %c0_i32_1 = arith.constant 0 : i32
    return %arg0, %c0_i32, %c0_i32_0 : i32, i32, i32
  }
  func.func @transform_2(%arg0: i32, %arg1: i32) -> (i32, i32, i32) {
    %c0_i32 = arith.constant 0 : i32
    %c0_i32_0 = arith.constant 0 : i32
    %c0_i32_1 = arith.constant 0 : i32
    return %arg0, %c0_i32, %c0_i32_0 : i32, i32, i32
  }
  func.func @transform_3(%arg0: i32, %arg1: i32) -> (i32, i32, i32, i32) {
    %c0_i32 = arith.constant 0 : i32
    %c0_i32_0 = arith.constant 0 : i32
    %c0_i32_1 = arith.constant 0 : i32
    return %c0_i32, %arg0, %c0_i32_0, %arg1 : i32, i32, i32, i32
  }
  func.func @transform_4(%arg0: i32, %arg1: i32) -> (i32, i32, i32) {
    %c0_i32 = arith.constant 0 : i32
    %c0_i32_0 = arith.constant 0 : i32
    return %c0_i32, %arg1, %arg0 : i32, i32, i32
  }
  func.func @transform_5(%arg0: i32, %arg1: i32) -> (i32, i32, i32) {
    %c0_i32 = arith.constant 0 : i32
    %c0_i32_0 = arith.constant 0 : i32
    return %arg0, %c0_i32, %arg1 : i32, i32, i32
  }
  func.func @transform_6(%arg0: i32, %arg1: i32) -> (i32, i32, i32, i32) {
    %c0_i32 = arith.constant 0 : i32
    %c0_i32_0 = arith.constant 0 : i32
    %c0_i32_1 = arith.constant 0 : i32
    return %arg0, %arg1, %c0_i32, %c0_i32_0 : i32, i32, i32, i32
  }
}

</mosaic_0001>

<llo_original>
// kernel: tpu_custom_call.1
$region0: #{tpu_custom_call.1}
  #allocation0 [shape = 'u32[]', space=smem, size = 0x4, offset = 0x4, fixed_abs, tag = 'smem constant byte address 0x4 - core index']
  #allocation1 [shape = 'u32[144,128]{1,0:T(1,128)}', space=vmem, size = 0x12000, scoped, tag = 'internal scratch']
  %s0 = inlined_call_operand.vmem [shape: f32[2,4,8,256], index: 0, kind: input, shape index: {}]
  %s1 = inlined_call_operand.vmem [shape: f32[4,128,8], index: 1, kind: input, shape index: {}]
  %s2 = inlined_call_operand.vmem [shape: f32[4,1,128], index: 2, kind: input, shape index: {}]
  %s3 = inlined_call_operand.hbm [shape: f32[2,4,8,256], index: 3, kind: output, shape index: {0}]
  %s4 = inlined_call_operand.hbm [shape: f32[2,256,512], index: 4, kind: output, shape index: {1}]
  %s5 = inlined_call_operand.hbm [shape: s32[4,2,256], index: 5, kind: output, shape index: {2}]
  %s6 = inlined_call_operand.hbm [shape: f32[4,1,8,128], index: 6, kind: output, shape index: {3}]
  %7 = xla_tuple %s3, %s4, %s5, %s6
  %s8 = sld [smem:[#allocation0]]
  $region92: #{tpu_custom_call.1} parent=0
    _
  %s10 = ssub.s32 1, %s8
  %s11 = scalar_select 0, %s10, %s8
  $region1: #{tpu_custom_call.1} parent=0
    #allocation2 [shape = 'u8[32768]{0}', space=vmem, size = 0x8000, scoped, tag = 'input window, operand 0']
    #allocation3 [shape = 'u8[32768]{0}', space=vmem, size = 0x8000, scoped, tag = 'output window, operand 0']
    #allocation4 [shape = 's32[2]{0}', space=sflag, size = 0x8, scoped, tag = 'scoped memory for tpu_custom_call.1']
    #allocation5 [shape = 'u8[524288]{0}', space=vmem, size = 0x80000, scoped, tag = 'output window, operand 1']
    #allocation6 [shape = 's32[2]{0}', space=sflag, size = 0x8, scoped, tag = 'scoped memory for tpu_custom_call.1']
    #allocation7 [shape = 'u8[4096]{0}', space=vmem, size = 0x1000, scoped, tag = 'output window, operand 2']
    #allocation8 [shape = 'u8[8192]{0}', space=vmem, size = 0x2000, scoped, tag = 'output window, operand 3']
    #allocation9 [shape = 's32[2]{0}', space=sflag, size = 0x8, scoped, tag = 'scoped memory for tpu_custom_call.1']
    %12 = vsyncpa [#allocation4], 0
    %s13 = scalar_lea.sflag [#allocation4], 1
    %14 = vsyncpa %s13, 0
    %15 = vsyncpa [#allocation6], 0
    %s16 = scalar_lea.sflag [#allocation6], 1
    %17 = vsyncpa %s16, 0
    %18 = vsyncpa [#allocation9], 0
    %s19 = scalar_lea.sflag [#allocation9], 1
    %20 = vsyncpa %s19, 0
    loop: start=0, step=1, limit=6
    $region2: #{tpu_custom_call.1} parent=1 // loop_pre_header
      _
    $region3: #{tpu_custom_call.1} parent=1 // loop_header
      %s22 = sphi 0, %s26
      %p23 = scmp.ge.s32.totalorder %s22, 6
      %s29 = sphi 0, %s41
      %s30 = sphi 0, %s37
      %s31 = sphi 0, %s29
      %s32 = sphi 0, %s30
      %s33 = sphi 0, %s31
      %s34 = sphi 0, %s32
      %s46 = sphi 0, %s48
      %s49 = sphi 0, %s46
      %s50 = sphi 0, %s49
      %s66 = sphi 0, %s50
      %s72 = sphi 0, %s74
      %s75 = sphi 0, %s72
      %s76 = sphi 0, %s75
      %s92 = sphi 0, %s76
      %s98 = sphi 0, %s100
      %s101 = sphi 0, %s98
      %s102 = sphi 0, %s101
      %s118 = sphi 0, %s102
      %s126 = sphi 0, %s128
      %s129 = sphi 0, %s126
      %s130 = sphi 0, %s129
      %s146 = sphi 0, %s130
      %s154 = sphi 0, %s156
      %s157 = sphi 0, %s154
      %s158 = sphi 0, %s157
      %s174 = sphi 0, %s158
      %s182 = sphi 0, %s184
      %s185 = sphi 0, %s182
      %s186 = sphi 0, %s185
      %s202 = sphi 0, %s186
      %s210 = sphi 0, %s212
      %s213 = sphi 0, %s210
      %s214 = sphi 0, %s213
      %s230 = sphi 0, %s214
    $region4: #{tpu_custom_call.1} parent=1 // loop_header_branch
      %25 = sbr.rel (%p23) target = $region8
    $region5: #{tpu_custom_call.1} parent=1 // loop_body
      %s27 = ssub.s32 %s22, 1
      %s28 = ssub.s32 %s22, 2
      %s35 = sadd.s32 1, %s30
      %p36 = scmp.ge.s32.totalorder %s35, 1
      %s37 = scalar_select %p36, 0, %s35
      %s38 = sadd.s32 1, %s29
      %s39 = scalar_select %p36, %s38, %s29
      %p40 = scmp.ge.s32.totalorder %s39, 4
      %s41 = scalar_select %p40, 0, %s39
      %s42 = ssub.s32 %s29, %s41
      %s43 = ssub.s32 %s30, %s37
      %s44 = sor.u32 %s42, %s43
      %p45 = scmp.eq.s32.totalorder %s44, 0
      %s47 = sadd.s32 %s46, 1
      %s48 = scalar_select %p45, %s46, %s47
      %p51 = pneg %p45
      %p52 = scmp.eq.s32.totalorder %s22, 3
      %p53 = por %p51, %p52
      %p54 = scmp.ne.s32.totalorder %s46, %s49
      %p55 = scmp.eq.s32.totalorder %s22, 0
      %p56 = por %p54, %p55
      %p57 = scmp.ne.s32.totalorder %s46, %s49
      %p58 = scmp.eq.s32.totalorder %s27, 3
      %p59 = por %p57, %p58
      %p60 = scmp.ne.s32.totalorder %s49, %s50
      %p61 = scmp.eq.s32.totalorder %s27, 0
      %p62 = por %p60, %p61
      %p63 = scmp.ne.s32.totalorder %s49, %s50
      %p64 = scmp.eq.s32.totalorder %s28, 3
      %p65 = por %p63, %p64
      %p67 = scmp.ne.s32.totalorder %s50, %s66
      %p68 = scmp.eq.s32.totalorder %s28, 0
      %p69 = por %p67, %p68
      %s70 = ssub.s32 %s29, %s41
      %p71 = scmp.eq.s32.totalorder %s70, 0
      %s73 = sadd.s32 %s72, 1
      %s74 = scalar_select %p71, %s72, %s73
      %p77 = pneg %p71
      %p78 = scmp.eq.s32.totalorder %s22, 3
      %p79 = por %p77, %p78
      %p80 = scmp.ne.s32.totalorder %s72, %s75
      %p81 = scmp.eq.s32.totalorder %s22, 0
      %p82 = por %p80, %p81
      %p83 = scmp.ne.s32.totalorder %s72, %s75
      %p84 = scmp.eq.s32.totalorder %s27, 3
      %p85 = por %p83, %p84
      %p86 = scmp.ne.s32.totalorder %s75, %s76
      %p87 = scmp.eq.s32.totalorder %s27, 0
      %p88 = por %p86, %p87
      %p89 = scmp.ne.s32.totalorder %s75, %s76
      %p90 = scmp.eq.s32.totalorder %s28, 3
      %p91 = por %p89, %p90
      %p93 = scmp.ne.s32.totalorder %s76, %s92
      %p94 = scmp.eq.s32.totalorder %s28, 0
      %p95 = por %p93, %p94
      %s96 = ssub.s32 %s29, %s41
      %p97 = scmp.eq.s32.totalorder %s96, 0
      %s99 = sadd.s32 %s98, 1
      %s100 = scalar_select %p97, %s98, %s99
      %p103 = pneg %p97
      %p104 = scmp.eq.s32.totalorder %s22, 3
      %p105 = por %p103, %p104
      %p106 = scmp.ne.s32.totalorder %s98, %s101
      %p107 = scmp.eq.s32.totalorder %s22, 0
      %p108 = por %p106, %p107
      %p109 = scmp.ne.s32.totalorder %s98, %s101
      %p110 = scmp.eq.s32.totalorder %s27, 3
      %p111 = por %p109, %p110
      %p112 = scmp.ne.s32.totalorder %s101, %s102
      %p113 = scmp.eq.s32.totalorder %s27, 0
      %p114 = por %p112, %p113
      %p115 = scmp.ne.s32.totalorder %s101, %s102
      %p116 = scmp.eq.s32.totalorder %s28, 3
      %p117 = por %p115, %p116
      %p119 = scmp.ne.s32.totalorder %s102, %s118
      %p120 = scmp.eq.s32.totalorder %s28, 0
      %p121 = por %p119, %p120
      %s122 = ssub.s32 %s29, %s41
      %s123 = ssub.s32 %s30, %s37
      %s124 = sor.u32 %s122, %s123
      %p125 = scmp.eq.s32.totalorder %s124, 0
      %s127 = sadd.s32 %s126, 1
      %s128 = scalar_select %p125, %s126, %s127
      %p131 = pneg %p125
      %p132 = scmp.eq.s32.totalorder %s22, 3
      %p133 = por %p131, %p132
      %p134 = scmp.ne.s32.totalorder %s126, %s129
      %p135 = scmp.eq.s32.totalorder %s22, 0
      %p136 = por %p134, %p135
      %p137 = scmp.ne.s32.totalorder %s126, %s129
      %p138 = scmp.eq.s32.totalorder %s27, 3
      %p139 = por %p137, %p138
      %p140 = scmp.ne.s32.totalorder %s129, %s130
      %p141 = scmp.eq.s32.totalorder %s27, 0
      %p142 = por %p140, %p141
      %p143 = scmp.ne.s32.totalorder %s129, %s130
      %p144 = scmp.eq.s32.totalorder %s28, 3
      %p145 = por %p143, %p144
      %p147 = scmp.ne.s32.totalorder %s130, %s146
      %p148 = scmp.eq.s32.totalorder %s28, 0
      %p149 = por %p147, %p148
      %s150 = ssub.s32 %s30, %s37
      %s151 = ssub.s32 %s29, %s41
      %s152 = sor.u32 %s150, %s151
      %p153 = scmp.eq.s32.totalorder %s152, 0
      %s155 = sadd.s32 %s154, 1
      %s156 = scalar_select %p153, %s154, %s155
      %p159 = pneg %p153
      %p160 = scmp.eq.s32.totalorder %s22, 3
      %p161 = por %p159, %p160
      %p162 = scmp.ne.s32.totalorder %s154, %s157
      %p163 = scmp.eq.s32.totalorder %s22, 0
      %p164 = por %p162, %p163
      %p165 = scmp.ne.s32.totalorder %s154, %s157
      %p166 = scmp.eq.s32.totalorder %s27, 3
      %p167 = por %p165, %p166
      %p168 = scmp.ne.s32.totalorder %s157, %s158
      %p169 = scmp.eq.s32.totalorder %s27, 0
      %p170 = por %p168, %p169
      %p171 = scmp.ne.s32.totalorder %s157, %s158
      %p172 = scmp.eq.s32.totalorder %s28, 3
      %p173 = por %p171, %p172
      %p175 = scmp.ne.s32.totalorder %s158, %s174
      %p176 = scmp.eq.s32.totalorder %s28, 0
      %p177 = por %p175, %p176
      %s178 = ssub.s32 %s29, %s41
      %s179 = ssub.s32 %s30, %s37
      %s180 = sor.u32 %s178, %s179
      %p181 = scmp.eq.s32.totalorder %s180, 0
      %s183 = sadd.s32 %s182, 1
      %s184 = scalar_select %p181, %s182, %s183
      %p187 = pneg %p181
      %p188 = scmp.eq.s32.totalorder %s22, 3
      %p189 = por %p187, %p188
      %p190 = scmp.ne.s32.totalorder %s182, %s185
      %p191 = scmp.eq.s32.totalorder %s22, 0
      %p192 = por %p190, %p191
      %p193 = scmp.ne.s32.totalorder %s182, %s185
      %p194 = scmp.eq.s32.totalorder %s27, 3
      %p195 = por %p193, %p194
      %p196 = scmp.ne.s32.totalorder %s185, %s186
      %p197 = scmp.eq.s32.totalorder %s27, 0
      %p198 = por %p196, %p197
      %p199 = scmp.ne.s32.totalorder %s185, %s186
      %p200 = scmp.eq.s32.totalorder %s28, 3
      %p201 = por %p199, %p200
      %p203 = scmp.ne.s32.totalorder %s186, %s202
      %p204 = scmp.eq.s32.totalorder %s28, 0
      %p205 = por %p203, %p204
      %s206 = ssub.s32 %s29, %s41
      %s207 = ssub.s32 %s30, %s37
      %s208 = sor.u32 %s206, %s207
      %p209 = scmp.eq.s32.totalorder %s208, 0
      %s211 = sadd.s32 %s210, 1
      %s212 = scalar_select %p209, %s210, %s211
      %p215 = pneg %p209
      %p216 = scmp.eq.s32.totalorder %s22, 3
      %p217 = por %p215, %p216
      %p218 = scmp.ne.s32.totalorder %s210, %s213
      %p219 = scmp.eq.s32.totalorder %s22, 0
      %p220 = por %p218, %p219
      %p221 = scmp.ne.s32.totalorder %s210, %s213
      %p222 = scmp.eq.s32.totalorder %s27, 3
      %p223 = por %p221, %p222
      %p224 = scmp.ne.s32.totalorder %s213, %s214
      %p225 = scmp.eq.s32.totalorder %s27, 0
      %p226 = por %p224, %p225
      %p227 = scmp.ne.s32.totalorder %s213, %s214
      %p228 = scmp.eq.s32.totalorder %s28, 3
      %p229 = por %p227, %p228
      %p231 = scmp.ne.s32.totalorder %s214, %s230
      %p232 = scmp.eq.s32.totalorder %s28, 0
      %p233 = por %p231, %p232
      %p234 = scmp.le.s32.totalorder 1, %s22
      %p235 = scmp.lt.s32.totalorder %s22, 5
      %p236 = pnand %p234, %p235
      %p237 = pneg %p236
      // Predicated region
      $region9: #{tpu_custom_call.1} parent=5 // pred_check
        _
      $region10: #{tpu_custom_call.1} parent=5 // pred_check_branch
        %239 = sbr.rel (%p236) target = $region12
      $region11: #{tpu_custom_call.1} parent=5 // pred_region
        %s240 = ssub.s32 %s22, 1
      $region12: #{tpu_custom_call.1} parent=5 // pred_fallthru
        _
      %p241 = scmp.lt.s32.totalorder %s22, 4
      // Predicated region
      $region13: #{tpu_custom_call.1} parent=5 // pred_check
        %p242 = pneg %p241
      $region14: #{tpu_custom_call.1} parent=5 // pred_check_branch
        %244 = sbr.rel (%p242) target = $region16
      $region15: #{tpu_custom_call.1} parent=5 // pred_region
        // Predicated region
        $region17: #{tpu_custom_call.1} parent=15 // pred_check
          %p245 = pneg %p56
        $region18: #{tpu_custom_call.1} parent=15 // pred_check_branch
          %247 = sbr.rel (%p245) target = $region20
        $region19: #{tpu_custom_call.1} parent=15 // pred_region
          %s248 = sand.u32 %s46, 1
          %s249 = sand.u32 %s46, 1
          %s250 = smul.addr %s249, 32
          %s251 = scalar_lea.vmem [#allocation2], %s250
          %s252 = smul.u32 2, %s30
          %s253 = smul.addr %s29, 2
          %s254 = sadd.s32 %s252, %s253
          %s255 = smul.addr %s254, 8
          %s256 = scalar_lea.vmem %s0, %s255
          // Predicated region
          $region21: #{tpu_custom_call.1} parent=19 // pred_check
            _
          $region22: #{tpu_custom_call.1} parent=19 // pred_check_branch
            %258 = sbr.rel (0) target = $region24
          $region23: #{tpu_custom_call.1} parent=19 // pred_region
            // Predicated region
            $region25: #{tpu_custom_call.1} parent=23 // pred_check
              _
            $region26: #{tpu_custom_call.1} parent=23 // pred_check_branch
              %260 = sbr.rel (0) target = $region28
            $region27: #{tpu_custom_call.1} parent=23 // pred_region
              loop: start=0, step=1, limit=1
              $region29: #{tpu_custom_call.1} parent=27 // loop_pre_header
                _
              $region30: #{tpu_custom_call.1} parent=27 // loop_header
                %s262 = sphi 0, %s266
                %p263 = scmp.ge.s32.totalorder %s262, 1
                %s267 = sphi %s256, %s256
                %s268 = sphi %s251, %s251
              $region31: #{tpu_custom_call.1} parent=27 // loop_header_branch
                %265 = sbr.rel (%p263) target = $region35
              $region32: #{tpu_custom_call.1} parent=27 // loop_body
                %v269 = vld [vmem:[%s267] sm:$0xff]
                %270 = vst [vmem:[%s268] sm:$0xff] %v269
                %v271 = vld [vmem:[%s267 + $0x8] sm:$0xff]
                %272 = vst [vmem:[%s268 + $0x8] sm:$0xff] %v271
                %v273 = vld [vmem:[%s267 + $0x40] sm:$0xff]
                %274 = vst [vmem:[%s268 + $0x10] sm:$0xff] %v273
                %v275 = vld [vmem:[%s267 + $0x48] sm:$0xff]
                %276 = vst [vmem:[%s268 + $0x18] sm:$0xff] %v275
              $region33: #{tpu_custom_call.1} parent=27 // loop_footer
                %s266 = sadd.s32 1, %s262
              $region34: #{tpu_custom_call.1} parent=27 // loop_footer_branch
                %261 = sbr.rel target = $region30
              $region35: #{tpu_custom_call.1} parent=27 // loop_exit
                _
            $region28: #{tpu_custom_call.1} parent=23 // pred_fallthru
              _
            // Predicated region
            $region36: #{tpu_custom_call.1} parent=23 // pred_check
              _
            $region37: #{tpu_custom_call.1} parent=23 // pred_check_branch
              %278 = sbr.rel target = $region39
            $region38: #{tpu_custom_call.1} parent=23 // pred_region
              _
            $region39: #{tpu_custom_call.1} parent=23 // pred_fallthru
              _
          $region24: #{tpu_custom_call.1} parent=19 // pred_fallthru
            _
          %279 = vnop
        $region20: #{tpu_custom_call.1} parent=15 // pred_fallthru
          _
        // Predicated region
        $region40: #{tpu_custom_call.1} parent=15 // pred_check
          %p280 = pneg %p82
        $region41: #{tpu_custom_call.1} parent=15 // pred_check_branch
          %282 = sbr.rel (%p280) target = $region43
        $region42: #{tpu_custom_call.1} parent=15 // pred_region
          %p283 = scmp.lt.s32.totalorder %s29, 3
          %s284 = scalar_select %p283, %s29, 3
          %s285 = smul.addr %s284, 16
          %s286 = smul.addr %s285, 8
          %s287 = scalar_lea.vmem %s1, %s286
        $region43: #{tpu_custom_call.1} parent=15 // pred_fallthru
          _
        // Predicated region
        $region44: #{tpu_custom_call.1} parent=15 // pred_check
          %p288 = pneg %p108
        $region45: #{tpu_custom_call.1} parent=15 // pred_check_branch
          %290 = sbr.rel (%p288) target = $region47
        $region46: #{tpu_custom_call.1} parent=15 // pred_region
          %p291 = scmp.lt.s32.totalorder %s29, 3
          %s292 = scalar_select %p291, %s29, 3
          %s293 = scalar_lea.vmem %s2, %s292
        $region47: #{tpu_custom_call.1} parent=15 // pred_fallthru
          _
      $region16: #{tpu_custom_call.1} parent=5 // pred_fallthru
        _
      %p294 = scmp.le.s32.totalorder 1, %s22
      %p295 = scmp.lt.s32.totalorder %s22, 5
      %p296 = pnand %p294, %p295
      %p297 = pneg %p296
      // Predicated region
      $region48: #{tpu_custom_call.1} parent=5 // pred_check
        _
      $region49: #{tpu_custom_call.1} parent=5 // pred_check_branch
        %299 = sbr.rel (%p296) target = $region51
      $region50: #{tpu_custom_call.1} parent=5 // pred_region
        %s300 = ssub.s32 %s22, 1
        %s301 = sand.u32 %s49, 1
        %s302 = sand.u32 %s49, 1
        %s303 = smul.addr %s302, 32
        %s304 = scalar_lea.vmem [#allocation2], %s303
        // Predicated region
        $region52: #{tpu_custom_call.1} parent=50 // pred_check
          %p305 = pneg %p62
        $region53: #{tpu_custom_call.1} parent=50 // pred_check_branch
          %307 = sbr.rel (%p305) target = $region55
        $region54: #{tpu_custom_call.1} parent=50 // pred_region
          _
        $region55: #{tpu_custom_call.1} parent=50 // pred_fallthru
          _
        %s308 = sand.u32 %s49, 1
        %s309 = sand.u32 %s49, 1
        %s310 = smul.addr %s309, 32
        %s311 = scalar_lea.vmem [#allocation2], %s310
        %p312 = pneg %p62
        %p313 = pneg %p59
        %p314 = scmp.lt.s32.totalorder %s31, 3
        %s315 = scalar_select %p314, %s31, 3
        %s316 = smul.addr %s315, 16
        %s317 = smul.addr %s316, 8
        %s318 = scalar_lea.vmem %s1, %s317
        %p319 = pneg %p88
        %p320 = pneg %p85
        %p321 = scmp.lt.s32.totalorder %s31, 3
        %s322 = scalar_select %p321, %s31, 3
        %s323 = scalar_lea.vmem %s2, %s322
        %p324 = pneg %p114
        %p325 = pneg %p111
        %p326 = pneg %p142
        %p327 = pneg %p139
        %s328 = sand.u32 %s129, 1
        %s329 = scalar_lea.sflag [#allocation4], %s328
        %s330 = sand.u32 %s129, 1
        %s331 = smul.addr %s330, 32
        %s332 = scalar_lea.vmem [#allocation3], %s331
        %p333 = pneg %p170
        %p334 = pneg %p167
        %s335 = sand.u32 %s27, 1
        %s336 = scalar_lea.sflag [#allocation6], %s335
        %s337 = sand.u32 %s157, 1
        %s338 = smul.addr %s337, 512
        %s339 = scalar_lea.vmem [#allocation5], %s338
        %p340 = pneg %p198
        %p341 = pneg %p195
        %s342 = sand.u32 %s27, 1
        %s343 = scalar_lea.sflag [#allocation6], %s342
        %s344 = sand.u32 %s185, 1
        %s345 = smul.addr %s344, 4
        %s346 = scalar_lea.vmem [#allocation7], %s345
        %p347 = pneg %p226
        %p348 = pneg %p223
        %s349 = sand.u32 %s213, 1
        %s350 = scalar_lea.sflag [#allocation9], %s349
        %s351 = sand.u32 %s213, 1
        %s352 = smul.addr %s351, 8
        %s353 = scalar_lea.vmem [#allocation8], %s352
        %s354 = smul.u32 2, %s32
        %p355 = scmp.lt.s32.totalorder %s31, 3
        %s356 = scalar_select %p355, %s31, 3
        %s357 = smul.addr %s356, 16
        %s358 = smul.addr %s357, 8
        %s359 = scalar_lea.vmem %s1, %s358
        %p360 = scmp.lt.s32.totalorder %s31, 3
        %s361 = scalar_select %p360, %s31, 3
        %s362 = scalar_lea.vmem %s2, %s361
        %s363 = smul.u32 2, %s32
        %s364 = smul.u32 32, %s32
        %s365 = smul.u32 2, %s32
        %v366 = vld [vmem:[%s359] sm:$0xff]
        %v367 = vld [vmem:[%s359 + $0x8] sm:$0xff]
        %v368 = vld [vmem:[%s359 + $0x10] sm:$0xff]
        %v369 = vld [vmem:[%s359 + $0x18] sm:$0xff]
        %v370 = vld [vmem:[%s359 + $0x20] sm:$0xff]
        %v371 = vld [vmem:[%s359 + $0x28] sm:$0xff]
        %v372 = vld [vmem:[%s359 + $0x30] sm:$0xff]
        %v373 = vld [vmem:[%s359 + $0x38] sm:$0xff]
        %v374 = vld [vmem:[%s359 + $0x40] sm:$0xff]
        %v375 = vld [vmem:[%s359 + $0x48] sm:$0xff]
        %v376 = vld [vmem:[%s359 + $0x50] sm:$0xff]
        %v377 = vld [vmem:[%s359 + $0x58] sm:$0xff]
        %v378 = vld [vmem:[%s359 + $0x60] sm:$0xff]
        %v379 = vld [vmem:[%s359 + $0x68] sm:$0xff]
        %v380 = vld [vmem:[%s359 + $0x70] sm:$0xff]
        %v381 = vld [vmem:[%s359 + $0x78] sm:$0xff]
        %v382 = vld [vmem:[%s362] sm:$0x1]
        %v383 = vld [vmem:[%s304] sm:$0xff]
        %v384 = vld [vmem:[%s304 + $0x8] sm:$0xff]
        %v385 = vld [vmem:[%s304 + $0x10] sm:$0xff]
        %v386 = vld [vmem:[%s304 + $0x18] sm:$0xff]
        %387 = vxpose.xlu0.b32.start [1/16] %v383, 128
        %388 = vxpose.xlu0.b32.cont [2/16] 0.0, 128
        %389 = vxpose.xlu0.b32.cont [3/16] 0.0, 128
        %390 = vxpose.xlu0.b32.cont [4/16] 0.0, 128
        %391 = vxpose.xlu0.b32.cont [5/16] 0.0, 128
        %392 = vxpose.xlu0.b32.cont [6/16] 0.0, 128
        %393 = vxpose.xlu0.b32.cont [7/16] 0.0, 128
        %394 = vxpose.xlu0.b32.cont [8/16] 0.0, 128
        %395 = vxpose.xlu0.b32.cont [9/16] 0.0, 128
        %396 = vxpose.xlu0.b32.cont [10/16] 0.0, 128
        %397 = vxpose.xlu0.b32.cont [11/16] 0.0, 128
        %398 = vxpose.xlu0.b32.cont [12/16] 0.0, 128
        %399 = vxpose.xlu0.b32.cont [13/16] 0.0, 128
        %400 = vxpose.xlu0.b32.cont [14/16] 0.0, 128
        %401 = vxpose.xlu0.b32.cont [15/16] 0.0, 128
        %402 = vxpose.xlu0.b32.end [16/16] 0.0, 128
        %v403 = vpop.trf.xlu0
        %v404 = vpop.trf.xlu0
        %v405 = vpop.trf.xlu0
        %v406 = vpop.trf.xlu0
        %v407 = vpop.trf.xlu0
        %v408 = vpop.trf.xlu0
        %v409 = vpop.trf.xlu0
        %v410 = vpop.trf.xlu0
        %v411 = vpop.trf.xlu0
        %v412 = vpop.trf.xlu0
        %v413 = vpop.trf.xlu0
        %v414 = vpop.trf.xlu0
        %v415 = vpop.trf.xlu0
        %v416 = vpop.trf.xlu0
        %v417 = vpop.trf.xlu0
        %v418 = vpop.trf.xlu0
        %419 = vxpose.xlu0.b32.start [1/16] %v384, 128
        %420 = vxpose.xlu0.b32.cont [2/16] 0.0, 128
        %421 = vxpose.xlu0.b32.cont [3/16] 0.0, 128
        %422 = vxpose.xlu0.b32.cont [4/16] 0.0, 128
        %423 = vxpose.xlu0.b32.cont [5/16] 0.0, 128
        %424 = vxpose.xlu0.b32.cont [6/16] 0.0, 128
        %425 = vxpose.xlu0.b32.cont [7/16] 0.0, 128
        %426 = vxpose.xlu0.b32.cont [8/16] 0.0, 128
        %427 = vxpose.xlu0.b32.cont [9/16] 0.0, 128
        %428 = vxpose.xlu0.b32.cont [10/16] 0.0, 128
        %429 = vxpose.xlu0.b32.cont [11/16] 0.0, 128
        %430 = vxpose.xlu0.b32.cont [12/16] 0.0, 128
        %431 = vxpose.xlu0.b32.cont [13/16] 0.0, 128
        %432 = vxpose.xlu0.b32.cont [14/16] 0.0, 128
        %433 = vxpose.xlu0.b32.cont [15/16] 0.0, 128
        %434 = vxpose.xlu0.b32.end [16/16] 0.0, 128
        %v435 = vpop.trf.xlu0
        %v436 = vpop.trf.xlu0
        %v437 = vpop.trf.xlu0
        %v438 = vpop.trf.xlu0
        %v439 = vpop.trf.xlu0
        %v440 = vpop.trf.xlu0
        %v441 = vpop.trf.xlu0
        %v442 = vpop.trf.xlu0
        %v443 = vpop.trf.xlu0
        %v444 = vpop.trf.xlu0
        %v445 = vpop.trf.xlu0
        %v446 = vpop.trf.xlu0
        %v447 = vpop.trf.xlu0
        %v448 = vpop.trf.xlu0
        %v449 = vpop.trf.xlu0
        %v450 = vpop.trf.xlu0
        %451 = vxpose.xlu0.b32.start [1/16] %v385, 128
        %452 = vxpose.xlu0.b32.cont [2/16] 0.0, 128
        %453 = vxpose.xlu0.b32.cont [3/16] 0.0, 128
        %454 = vxpose.xlu0.b32.cont [4/16] 0.0, 128
        %455 = vxpose.xlu0.b32.cont [5/16] 0.0, 128
        %456 = vxpose.xlu0.b32.cont [6/16] 0.0, 128
        %457 = vxpose.xlu0.b32.cont [7/16] 0.0, 128
        %458 = vxpose.xlu0.b32.cont [8/16] 0.0, 128
        %459 = vxpose.xlu0.b32.cont [9/16] 0.0, 128
        %460 = vxpose.xlu0.b32.cont [10/16] 0.0, 128
        %461 = vxpose.xlu0.b32.cont [11/16] 0.0, 128
        %462 = vxpose.xlu0.b32.cont [12/16] 0.0, 128
        %463 = vxpose.xlu0.b32.cont [13/16] 0.0, 128
        %464 = vxpose.xlu0.b32.cont [14/16] 0.0, 128
        %465 = vxpose.xlu0.b32.cont [15/16] 0.0, 128
        %466 = vxpose.xlu0.b32.end [16/16] 0.0, 128
        %v467 = vpop.trf.xlu0
        %v468 = vpop.trf.xlu0
        %v469 = vpop.trf.xlu0
        %v470 = vpop.trf.xlu0
        %v471 = vpop.trf.xlu0
        %v472 = vpop.trf.xlu0
        %v473 = vpop.trf.xlu0
        %v474 = vpop.trf.xlu0
        %v475 = vpop.trf.xlu0
        %v476 = vpop.trf.xlu0
        %v477 = vpop.trf.xlu0
        %v478 = vpop.trf.xlu0
        %v479 = vpop.trf.xlu0
        %v480 = vpop.trf.xlu0
        %v481 = vpop.trf.xlu0
        %v482 = vpop.trf.xlu0
        %483 = vxpose.xlu0.b32.start [1/16] %v386, 128
        %484 = vxpose.xlu0.b32.cont [2/16] 0.0, 128
        %485 = vxpose.xlu0.b32.cont [3/16] 0.0, 128
        %486 = vxpose.xlu0.b32.cont [4/16] 0.0, 128
        %487 = vxpose.xlu0.b32.cont [5/16] 0.0, 128
        %488 = vxpose.xlu0.b32.cont [6/16] 0.0, 128
        %489 = vxpose.xlu0.b32.cont [7/16] 0.0, 128
        %490 = vxpose.xlu0.b32.cont [8/16] 0.0, 128
        %491 = vxpose.xlu0.b32.cont [9/16] 0.0, 128
        %492 = vxpose.xlu0.b32.cont [10/16] 0.0, 128
        %493 = vxpose.xlu0.b32.cont [11/16] 0.0, 128
        %494 = vxpose.xlu0.b32.cont [12/16] 0.0, 128
        %495 = vxpose.xlu0.b32.cont [13/16] 0.0, 128
        %496 = vxpose.xlu0.b32.cont [14/16] 0.0, 128
        %497 = vxpose.xlu0.b32.cont [15/16] 0.0, 128
        %498 = vxpose.xlu0.b32.end [16/16] 0.0, 128
        %v499 = vpop.trf.xlu0
        %v500 = vpop.trf.xlu0
        %v501 = vpop.trf.xlu0
        %v502 = vpop.trf.xlu0
        %v503 = vpop.trf.xlu0
        %v504 = vpop.trf.xlu0
        %v505 = vpop.trf.xlu0
        %v506 = vpop.trf.xlu0
        %v507 = vpop.trf.xlu0
        %v508 = vpop.trf.xlu0
        %v509 = vpop.trf.xlu0
        %v510 = vpop.trf.xlu0
        %v511 = vpop.trf.xlu0
        %v512 = vpop.trf.xlu0
        %v513 = vpop.trf.xlu0
        %v514 = vpop.trf.xlu0
        %v515 = vmul.f32 %v403, %v403
        %v516 = vmul.f32 %v404, %v404
        %v517 = vmul.f32 %v405, %v405
        %v518 = vmul.f32 %v406, %v406
        %v519 = vmul.f32 %v407, %v407
        %v520 = vmul.f32 %v408, %v408
        %v521 = vmul.f32 %v409, %v409
        %v522 = vmul.f32 %v410, %v410
        %v523 = vmul.f32 %v411, %v411
        %v524 = vmul.f32 %v412, %v412
        %v525 = vmul.f32 %v413, %v413
        %v526 = vmul.f32 %v414, %v414
        %v527 = vmul.f32 %v415, %v415
        %v528 = vmul.f32 %v416, %v416
        %v529 = vmul.f32 %v417, %v417
        %v530 = vmul.f32 %v418, %v418
        %v531 = vmul.f32 %v435, %v435
        %v532 = vmul.f32 %v436, %v436
        %v533 = vmul.f32 %v437, %v437
        %v534 = vmul.f32 %v438, %v438
        %v535 = vmul.f32 %v439, %v439
        %v536 = vmul.f32 %v440, %v440
        %v537 = vmul.f32 %v441, %v441
        %v538 = vmul.f32 %v442, %v442
        %v539 = vmul.f32 %v443, %v443
        %v540 = vmul.f32 %v444, %v444
        %v541 = vmul.f32 %v445, %v445
        %v542 = vmul.f32 %v446, %v446
        %v543 = vmul.f32 %v447, %v447
        %v544 = vmul.f32 %v448, %v448
        %v545 = vmul.f32 %v449, %v449
        %v546 = vmul.f32 %v450, %v450
        %v547 = vmul.f32 %v467, %v467
        %v548 = vmul.f32 %v468, %v468
        %v549 = vmul.f32 %v469, %v469
        %v550 = vmul.f32 %v470, %v470
        %v551 = vmul.f32 %v471, %v471
        %v552 = vmul.f32 %v472, %v472
        %v553 = vmul.f32 %v473, %v473
        %v554 = vmul.f32 %v474, %v474
        %v555 = vmul.f32 %v475, %v475
        %v556 = vmul.f32 %v476, %v476
        %v557 = vmul.f32 %v477, %v477
        %v558 = vmul.f32 %v478, %v478
        %v559 = vmul.f32 %v479, %v479
        %v560 = vmul.f32 %v480, %v480
        %v561 = vmul.f32 %v481, %v481
        %v562 = vmul.f32 %v482, %v482
        %v563 = vmul.f32 %v499, %v499
        %v564 = vmul.f32 %v500, %v500
        %v565 = vmul.f32 %v501, %v501
        %v566 = vmul.f32 %v502, %v502
        %v567 = vmul.f32 %v503, %v503
        %v568 = vmul.f32 %v504, %v504
        %v569 = vmul.f32 %v505, %v505
        %v570 = vmul.f32 %v506, %v506
        %v571 = vmul.f32 %v507, %v507
        %v572 = vmul.f32 %v508, %v508
        %v573 = vmul.f32 %v509, %v509
        %v574 = vmul.f32 %v510, %v510
        %v575 = vmul.f32 %v511, %v511
        %v576 = vmul.f32 %v512, %v512
        %v577 = vmul.f32 %v513, %v513
        %v578 = vmul.f32 %v514, %v514
        %vm579 = vcmask 64512
        %v580 = vsel %vm579, %v515, 0.0
        %581 = vadd.xlane.f32.xlu0 %v580
        %v582 = vpop.xlane.xlu0 %581
        %v583 = vsel %vm579, %v516, 0.0
        %584 = vadd.xlane.f32.xlu0 %v583
        %v585 = vpop.xlane.xlu0 %584
        %v586 = vsel %vm579, %v517, 0.0
        %587 = vadd.xlane.f32.xlu0 %v586
        %v588 = vpop.xlane.xlu0 %587
        %v589 = vsel %vm579, %v518, 0.0
        %590 = vadd.xlane.f32.xlu0 %v589
        %v591 = vpop.xlane.xlu0 %590
        %v592 = vsel %vm579, %v519, 0.0
        %593 = vadd.xlane.f32.xlu0 %v592
        %v594 = vpop.xlane.xlu0 %593
        %v595 = vsel %vm579, %v520, 0.0
        %596 = vadd.xlane.f32.xlu0 %v595
        %v597 = vpop.xlane.xlu0 %596
        %v598 = vsel %vm579, %v521, 0.0
        %599 = vadd.xlane.f32.xlu0 %v598
        %v600 = vpop.xlane.xlu0 %599
        %v601 = vsel %vm579, %v522, 0.0
        %602 = vadd.xlane.f32.xlu0 %v601
        %v603 = vpop.xlane.xlu0 %602
        %v604 = vsel %vm579, %v523, 0.0
        %605 = vadd.xlane.f32.xlu0 %v604
        %v606 = vpop.xlane.xlu0 %605
        %v607 = vsel %vm579, %v524, 0.0
        %608 = vadd.xlane.f32.xlu0 %v607
        %v609 = vpop.xlane.xlu0 %608
        %v610 = vsel %vm579, %v525, 0.0
        %611 = vadd.xlane.f32.xlu0 %v610
        %v612 = vpop.xlane.xlu0 %611
        %v613 = vsel %vm579, %v526, 0.0
        %614 = vadd.xlane.f32.xlu0 %v613
        %v615 = vpop.xlane.xlu0 %614
        %v616 = vsel %vm579, %v527, 0.0
        %617 = vadd.xlane.f32.xlu0 %v616
        %v618 = vpop.xlane.xlu0 %617
        %v619 = vsel %vm579, %v528, 0.0
        %620 = vadd.xlane.f32.xlu0 %v619
        %v621 = vpop.xlane.xlu0 %620
        %v622 = vsel %vm579, %v529, 0.0
        %623 = vadd.xlane.f32.xlu0 %v622
        %v624 = vpop.xlane.xlu0 %623
        %v625 = vsel %vm579, %v530, 0.0
        %626 = vadd.xlane.f32.xlu0 %v625
        %v627 = vpop.xlane.xlu0 %626
        %v628 = vsel %vm579, %v531, 0.0
        %629 = vadd.xlane.f32.xlu0 %v628
        %v630 = vpop.xlane.xlu0 %629
        %v631 = vsel %vm579, %v532, 0.0
        %632 = vadd.xlane.f32.xlu0 %v631
        %v633 = vpop.xlane.xlu0 %632
        %v634 = vsel %vm579, %v533, 0.0
        %635 = vadd.xlane.f32.xlu0 %v634
        %v636 = vpop.xlane.xlu0 %635
        %v637 = vsel %vm579, %v534, 0.0
        %638 = vadd.xlane.f32.xlu0 %v637
        %v639 = vpop.xlane.xlu0 %638
        %v640 = vsel %vm579, %v535, 0.0
        %641 = vadd.xlane.f32.xlu0 %v640
        %v642 = vpop.xlane.xlu0 %641
        %v643 = vsel %vm579, %v536, 0.0
        %644 = vadd.xlane.f32.xlu0 %v643
        %v645 = vpop.xlane.xlu0 %644
        %v646 = vsel %vm579, %v537, 0.0
        %647 = vadd.xlane.f32.xlu0 %v646
        %v648 = vpop.xlane.xlu0 %647
        %v649 = vsel %vm579, %v538, 0.0
        %650 = vadd.xlane.f32.xlu0 %v649
        %v651 = vpop.xlane.xlu0 %650
        %v652 = vsel %vm579, %v539, 0.0
        %653 = vadd.xlane.f32.xlu0 %v652
        %v654 = vpop.xlane.xlu0 %653
        %v655 = vsel %vm579, %v540, 0.0
        %656 = vadd.xlane.f32.xlu0 %v655
        %v657 = vpop.xlane.xlu0 %656
        %v658 = vsel %vm579, %v541, 0.0
        %659 = vadd.xlane.f32.xlu0 %v658
        %v660 = vpop.xlane.xlu0 %659
        %v661 = vsel %vm579, %v542, 0.0
        %662 = vadd.xlane.f32.xlu0 %v661
        %v663 = vpop.xlane.xlu0 %662
        %v664 = vsel %vm579, %v543, 0.0
        %665 = vadd.xlane.f32.xlu0 %v664
        %v666 = vpop.xlane.xlu0 %665
        %v667 = vsel %vm579, %v544, 0.0
        %668 = vadd.xlane.f32.xlu0 %v667
        %v669 = vpop.xlane.xlu0 %668
        %v670 = vsel %vm579, %v545, 0.0
        %671 = vadd.xlane.f32.xlu0 %v670
        %v672 = vpop.xlane.xlu0 %671
        %v673 = vsel %vm579, %v546, 0.0
        %674 = vadd.xlane.f32.xlu0 %v673
        %v675 = vpop.xlane.xlu0 %674
        %v676 = vsel %vm579, %v547, 0.0
        %677 = vadd.xlane.f32.xlu0 %v676
        %v678 = vpop.xlane.xlu0 %677
        %v679 = vsel %vm579, %v548, 0.0
        %680 = vadd.xlane.f32.xlu0 %v679
        %v681 = vpop.xlane.xlu0 %680
        %v682 = vsel %vm579, %v549, 0.0
        %683 = vadd.xlane.f32.xlu0 %v682
        %v684 = vpop.xlane.xlu0 %683
        %v685 = vsel %vm579, %v550, 0.0
        %686 = vadd.xlane.f32.xlu0 %v685
        %v687 = vpop.xlane.xlu0 %686
        %v688 = vsel %vm579, %v551, 0.0
        %689 = vadd.xlane.f32.xlu0 %v688
        %v690 = vpop.xlane.xlu0 %689
        %v691 = vsel %vm579, %v552, 0.0
        %692 = vadd.xlane.f32.xlu0 %v691
        %v693 = vpop.xlane.xlu0 %692
        %v694 = vsel %vm579, %v553, 0.0
        %695 = vadd.xlane.f32.xlu0 %v694
        %v696 = vpop.xlane.xlu0 %695
        %v697 = vsel %vm579, %v554, 0.0
        %698 = vadd.xlane.f32.xlu0 %v697
        %v699 = vpop.xlane.xlu0 %698
        %v700 = vsel %vm579, %v555, 0.0
        %701 = vadd.xlane.f32.xlu0 %v700
        %v702 = vpop.xlane.xlu0 %701
        %v703 = vsel %vm579, %v556, 0.0
        %704 = vadd.xlane.f32.xlu0 %v703
        %v705 = vpop.xlane.xlu0 %704
        %v706 = vsel %vm579, %v557, 0.0
        %707 = vadd.xlane.f32.xlu0 %v706
        %v708 = vpop.xlane.xlu0 %707
        %v709 = vsel %vm579, %v558, 0.0
        %710 = vadd.xlane.f32.xlu0 %v709
        %v711 = vpop.xlane.xlu0 %710
        %v712 = vsel %vm579, %v559, 0.0
        %713 = vadd.xlane.f32.xlu0 %v712
        %v714 = vpop.xlane.xlu0 %713
        %v715 = vsel %vm579, %v560, 0.0
        %716 = vadd.xlane.f32.xlu0 %v715
        %v717 = vpop.xlane.xlu0 %716
        %v718 = vsel %vm579, %v561, 0.0
        %719 = vadd.xlane.f32.xlu0 %v718
        %v720 = vpop.xlane.xlu0 %719
        %v721 = vsel %vm579, %v562, 0.0
        %722 = vadd.xlane.f32.xlu0 %v721
        %v723 = vpop.xlane.xlu0 %722
        %v724 = vsel %vm579, %v563, 0.0
        %725 = vadd.xlane.f32.xlu0 %v724
        %v726 = vpop.xlane.xlu0 %725
        %v727 = vsel %vm579, %v564, 0.0
        %728 = vadd.xlane.f32.xlu0 %v727
        %v729 = vpop.xlane.xlu0 %728
        %v730 = vsel %vm579, %v565, 0.0
        %731 = vadd.xlane.f32.xlu0 %v730
        %v732 = vpop.xlane.xlu0 %731
        %v733 = vsel %vm579, %v566, 0.0
        %734 = vadd.xlane.f32.xlu0 %v733
        %v735 = vpop.xlane.xlu0 %734
        %v736 = vsel %vm579, %v567, 0.0
        %737 = vadd.xlane.f32.xlu0 %v736
        %v738 = vpop.xlane.xlu0 %737
        %v739 = vsel %vm579, %v568, 0.0
        %740 = vadd.xlane.f32.xlu0 %v739
        %v741 = vpop.xlane.xlu0 %740
        %v742 = vsel %vm579, %v569, 0.0
        %743 = vadd.xlane.f32.xlu0 %v742
        %v744 = vpop.xlane.xlu0 %743
        %v745 = vsel %vm579, %v570, 0.0
        %746 = vadd.xlane.f32.xlu0 %v745
        %v747 = vpop.xlane.xlu0 %746
        %v748 = vsel %vm579, %v571, 0.0
        %749 = vadd.xlane.f32.xlu0 %v748
        %v750 = vpop.xlane.xlu0 %749
        %v751 = vsel %vm579, %v572, 0.0
        %752 = vadd.xlane.f32.xlu0 %v751
        %v753 = vpop.xlane.xlu0 %752
        %v754 = vsel %vm579, %v573, 0.0
        %755 = vadd.xlane.f32.xlu0 %v754
        %v756 = vpop.xlane.xlu0 %755
        %v757 = vsel %vm579, %v574, 0.0
        %758 = vadd.xlane.f32.xlu0 %v757
        %v759 = vpop.xlane.xlu0 %758
        %v760 = vsel %vm579, %v575, 0.0
        %761 = vadd.xlane.f32.xlu0 %v760
        %v762 = vpop.xlane.xlu0 %761
        %v763 = vsel %vm579, %v576, 0.0
        %764 = vadd.xlane.f32.xlu0 %v763
        %v765 = vpop.xlane.xlu0 %764
        %v766 = vsel %vm579, %v577, 0.0
        %767 = vadd.xlane.f32.xlu0 %v766
        %v768 = vpop.xlane.xlu0 %767
        %v769 = vsel %vm579, %v578, 0.0
        %770 = vadd.xlane.f32.xlu0 %v769
        %v771 = vpop.xlane.xlu0 %770
        %v773 = vsel %vm579, %v403, 0
        %v776 = vsel %vm579, %v404, 0
        %v779 = vsel %vm579, %v405, 0
        %v782 = vsel %vm579, %v406, 0
        %v785 = vsel %vm579, %v407, 0
        %v788 = vsel %vm579, %v408, 0
        %v791 = vsel %vm579, %v409, 0
        %v794 = vsel %vm579, %v410, 0
        %v797 = vsel %vm579, %v411, 0
        %v800 = vsel %vm579, %v412, 0
        %v803 = vsel %vm579, %v413, 0
        %v806 = vsel %vm579, %v414, 0
        %v809 = vsel %vm579, %v415, 0
        %v812 = vsel %vm579, %v416, 0
        %v815 = vsel %vm579, %v417, 0
        %v818 = vsel %vm579, %v418, 0
        %v821 = vsel %vm579, %v435, 0
        %v824 = vsel %vm579, %v436, 0
        %v827 = vsel %vm579, %v437, 0
        %v830 = vsel %vm579, %v438, 0
        %v833 = vsel %vm579, %v439, 0
        %v836 = vsel %vm579, %v440, 0
        %v839 = vsel %vm579, %v441, 0
        %v842 = vsel %vm579, %v442, 0
        %v845 = vsel %vm579, %v443, 0
        %v848 = vsel %vm579, %v444, 0
        %v851 = vsel %vm579, %v445, 0
        %v854 = vsel %vm579, %v446, 0
        %v857 = vsel %vm579, %v447, 0
        %v860 = vsel %vm579, %v448, 0
        %v863 = vsel %vm579, %v449, 0
        %v866 = vsel %vm579, %v450, 0
        %v869 = vsel %vm579, %v467, 0
        %v872 = vsel %vm579, %v468, 0
        %v875 = vsel %vm579, %v469, 0
        %v878 = vsel %vm579, %v470, 0
        %v881 = vsel %vm579, %v471, 0
        %v884 = vsel %vm579, %v472, 0
        %v887 = vsel %vm579, %v473, 0
        %v890 = vsel %vm579, %v474, 0
        %v893 = vsel %vm579, %v475, 0
        %v896 = vsel %vm579, %v476, 0
        %v899 = vsel %vm579, %v477, 0
        %v902 = vsel %vm579, %v478, 0
        %v905 = vsel %vm579, %v479, 0
        %v908 = vsel %vm579, %v480, 0
        %v911 = vsel %vm579, %v481, 0
        %v914 = vsel %vm579, %v482, 0
        %v917 = vsel %vm579, %v499, 0
        %v920 = vsel %vm579, %v500, 0
        %v923 = vsel %vm579, %v501, 0
        %v926 = vsel %vm579, %v502, 0
        %v929 = vsel %vm579, %v503, 0
        %v932 = vsel %vm579, %v504, 0
        %v935 = vsel %vm579, %v505, 0
        %v938 = vsel %vm579, %v506, 0
        %v941 = vsel %vm579, %v507, 0
        %v944 = vsel %vm579, %v508, 0
        %v947 = vsel %vm579, %v509, 0
        %v950 = vsel %vm579, %v510, 0
        %v953 = vsel %vm579, %v511, 0
        %v956 = vsel %vm579, %v512, 0
        %v959 = vsel %vm579, %v513, 0
        %v962 = vsel %vm579, %v514, 0
        %v965 = vsel %vm579, %v366, 0
        %v968 = vsel %vm579, %v367, 0
        %v971 = vsel %vm579, %v368, 0
        %v974 = vsel %vm579, %v369, 0
        %v977 = vsel %vm579, %v370, 0
        %v980 = vsel %vm579, %v371, 0
        %v983 = vsel %vm579, %v372, 0
        %v986 = vsel %vm579, %v373, 0
        %v989 = vsel %vm579, %v374, 0
        %v992 = vsel %vm579, %v375, 0
        %v995 = vsel %vm579, %v376, 0
        %v998 = vsel %vm579, %v377, 0
        %v1001 = vsel %vm579, %v378, 0
        %v1004 = vsel %vm579, %v379, 0
        %v1007 = vsel %vm579, %v380, 0
        %v1010 = vsel %vm579, %v381, 0
        %1012 = vmatprep.subr.mxu0 0.0
        %1013 = vmatpush1.xpose.msra.mxu0 %v965
        %1014 = vmatprep.subr.mxu0 0.0
        %1015 = vmatpush1.xpose.msra.mxu0 %v968
        %1016 = vmatprep.subr.mxu0 0.0
        %1017 = vmatpush1.xpose.msra.mxu0 %v971
        %1018 = vmatprep.subr.mxu0 0.0
        %1019 = vmatpush1.xpose.msra.mxu0 %v974
        %1020 = vmatprep.subr.mxu0 0.0
        %1021 = vmatpush1.xpose.msra.mxu0 %v977
        %1022 = vmatprep.subr.mxu0 0.0
        %1023 = vmatpush1.xpose.msra.mxu0 %v980
        %1024 = vmatprep.subr.mxu0 0.0
        %1025 = vmatpush1.xpose.msra.mxu0 %v983
        %1026 = vmatprep.subr.mxu0 0.0
        %1027 = vmatpush1.xpose.msra.mxu0 %v986
        %1028 = vmatprep.subr.mxu0 0.0
        %1029 = vmatpush1.xpose.msra.mxu0 %v989
        %1030 = vmatprep.subr.mxu0 0.0
        %1031 = vmatpush1.xpose.msra.mxu0 %v992
        %1032 = vmatprep.subr.mxu0 0.0
        %1033 = vmatpush1.xpose.msra.mxu0 %v995
        %1034 = vmatprep.subr.mxu0 0.0
        %1035 = vmatpush1.xpose.msra.mxu0 %v998
        %1036 = vmatprep.subr.mxu0 0.0
        %1037 = vmatpush1.xpose.msra.mxu0 %v1001
        %1038 = vmatprep.subr.mxu0 0.0
        %1039 = vmatpush1.xpose.msra.mxu0 %v1004
        %1040 = vmatprep.subr.mxu0 0.0
        %1041 = vmatpush1.xpose.msra.mxu0 %v1007
        %1042 = vmatprep.subr.mxu0 0.0
        %1043 = vmatpush1.xpose.msra.mxu0 %v1010
        %1044 = vmatprep.subr.mxu0 0.0
        %1045 = vmatpush1.xpose.msra.mxu0 0.0
        %1046 = vmatprep.subr.mxu0 0.0
        %1047 = vmatpush1.xpose.msra.mxu0 0.0
        %1048 = vmatprep.subr.mxu0 0.0
        %1049 = vmatpush1.xpose.msra.mxu0 0.0
        %1050 = vmatprep.subr.mxu0 0.0
        %1051 = vmatpush1.xpose.msra.mxu0 0.0
        %1052 = vmatprep.subr.mxu0 0.0
        %1053 = vmatpush1.xpose.msra.mxu0 0.0
        %1054 = vmatprep.subr.mxu0 0.0
        %1055 = vmatpush1.xpose.msra.mxu0 0.0
        %1056 = vmatprep.subr.mxu0 0.0
        %1057 = vmatpush1.xpose.msra.mxu0 0.0
        %1058 = vmatprep.subr.mxu0 0.0
        %1059 = vmatpush1.xpose.msra.mxu0 0.0
        %1060 = vmatprep.subr.mxu0 0.0
        %1061 = vmatpush1.xpose.msra.mxu0 0.0
        %1062 = vmatprep.subr.mxu0 0.0
        %1063 = vmatpush1.xpose.msra.mxu0 0.0
        %1064 = vmatprep.subr.mxu0 0.0
        %1065 = vmatpush1.xpose.msra.mxu0 0.0
        %1066 = vmatprep.subr.mxu0 0.0
        %1067 = vmatpush1.xpose.msra.mxu0 0.0
        %1068 = vmatprep.subr.mxu0 0.0
        %1069 = vmatpush1.xpose.msra.mxu0 0.0
        %1070 = vmatprep.subr.mxu0 0.0
        %1071 = vmatpush1.xpose.msra.mxu0 0.0
        %1072 = vmatprep.subr.mxu0 0.0
        %1073 = vmatpush1.xpose.msra.mxu0 0.0
        %1074 = vmatprep.subr.mxu0 0.0
        %1075 = vmatpush1.xpose.msra.mxu0 0.0
        %1076 = vmatprep.mubr.f32.mxu0 0.0
        %1077 = vmatmul.mubr.f32.gmra.mrb[0].mxu0 %v773
        %v1078 = vpop.f32.mrb[0].mxu0
        %v1079 = vadd.f32 0.0, %v1078
        %v1080 = vpop.f32.mrb[0].mxu0
        %1081 = vmatprep.mubr.f32.mxu0 0.0
        %1082 = vmatmul.mubr.f32.gmra.mrb[0].mxu0 %v776
        %v1083 = vpop.f32.mrb[0].mxu0
        %v1084 = vadd.f32 0.0, %v1083
        %v1085 = vpop.f32.mrb[0].mxu0
        %1086 = vmatprep.mubr.f32.mxu0 0.0
        %1087 = vmatmul.mubr.f32.gmra.mrb[0].mxu0 %v779
        %v1088 = vpop.f32.mrb[0].mxu0
        %v1089 = vadd.f32 0.0, %v1088
        %v1090 = vpop.f32.mrb[0].mxu0
        %1091 = vmatprep.mubr.f32.mxu0 0.0
        %1092 = vmatmul.mubr.f32.gmra.mrb[0].mxu0 %v782
        %v1093 = vpop.f32.mrb[0].mxu0
        %v1094 = vadd.f32 0.0, %v1093
        %v1095 = vpop.f32.mrb[0].mxu0
        %1096 = vmatprep.mubr.f32.mxu0 0.0
        %1097 = vmatmul.mubr.f32.gmra.mrb[0].mxu0 %v785
        %v1098 = vpop.f32.mrb[0].mxu0
        %v1099 = vadd.f32 0.0, %v1098
        %v1100 = vpop.f32.mrb[0].mxu0
        %1101 = vmatprep.mubr.f32.mxu0 0.0
        %1102 = vmatmul.mubr.f32.gmra.mrb[0].mxu0 %v788
        %v1103 = vpop.f32.mrb[0].mxu0
        %v1104 = vadd.f32 0.0, %v1103
        %v1105 = vpop.f32.mrb[0].mxu0
        %1106 = vmatprep.mubr.f32.mxu0 0.0
        %1107 = vmatmul.mubr.f32.gmra.mrb[0].mxu0 %v791
        %v1108 = vpop.f32.mrb[0].mxu0
        %v1109 = vadd.f32 0.0, %v1108
        %v1110 = vpop.f32.mrb[0].mxu0
        %1111 = vmatprep.mubr.f32.mxu0 0.0
        %1112 = vmatmul.mubr.f32.gmra.mrb[0].mxu0 %v794
        %v1113 = vpop.f32.mrb[0].mxu0
        %v1114 = vadd.f32 0.0, %v1113
        %v1115 = vpop.f32.mrb[0].mxu0
        %1116 = vmatprep.mubr.f32.mxu0 0.0
        %1117 = vmatmul.mubr.f32.gmra.mrb[0].mxu0 %v797
        %v1118 = vpop.f32.mrb[0].mxu0
        %v1119 = vadd.f32 0.0, %v1118
        %v1120 = vpop.f32.mrb[0].mxu0
        %1121 = vmatprep.mubr.f32.mxu0 0.0
        %1122 = vmatmul.mubr.f32.gmra.mrb[0].mxu0 %v800
        %v1123 = vpop.f32.mrb[0].mxu0
        %v1124 = vadd.f32 0.0, %v1123
        %v1125 = vpop.f32.mrb[0].mxu0
        %1126 = vmatprep.mubr.f32.mxu0 0.0
        %1127 = vmatmul.mubr.f32.gmra.mrb[0].mxu0 %v803
        %v1128 = vpop.f32.mrb[0].mxu0
        %v1129 = vadd.f32 0.0, %v1128
        %v1130 = vpop.f32.mrb[0].mxu0
        %1131 = vmatprep.mubr.f32.mxu0 0.0
        %1132 = vmatmul.mubr.f32.gmra.mrb[0].mxu0 %v806
        %v1133 = vpop.f32.mrb[0].mxu0
        %v1134 = vadd.f32 0.0, %v1133
        %v1135 = vpop.f32.mrb[0].mxu0
        %1136 = vmatprep.mubr.f32.mxu0 0.0
        %1137 = vmatmul.mubr.f32.gmra.mrb[0].mxu0 %v809
        %v1138 = vpop.f32.mrb[0].mxu0
        %v1139 = vadd.f32 0.0, %v1138
        %v1140 = vpop.f32.mrb[0].mxu0
        %1141 = vmatprep.mubr.f32.mxu0 0.0
        %1142 = vmatmul.mubr.f32.gmra.mrb[0].mxu0 %v812
        %v1143 = vpop.f32.mrb[0].mxu0
        %v1144 = vadd.f32 0.0, %v1143
        %v1145 = vpop.f32.mrb[0].mxu0
        %1146 = vmatprep.mubr.f32.mxu0 0.0
        %1147 = vmatmul.mubr.f32.gmra.mrb[0].mxu0 %v815
        %v1148 = vpop.f32.mrb[0].mxu0
        %v1149 = vadd.f32 0.0, %v1148
        %v1150 = vpop.f32.mrb[0].mxu0
        %1151 = vmatprep.mubr.f32.mxu0 0.0
        %1152 = vmatmul.mubr.f32.gmra.mrb[0].mxu0 %v818
        %v1153 = vpop.f32.mrb[0].mxu0
        %v1154 = vadd.f32 0.0, %v1153
        %v1155 = vpop.f32.mrb[0].mxu0
        %1156 = vmatprep.mubr.f32.mxu0 0.0
        %1157 = vmatmul.mubr.f32.gmra.mrb[0].mxu0 %v821
        %v1158 = vpop.f32.mrb[0].mxu0
        %v1159 = vadd.f32 0.0, %v1158
        %v1160 = vpop.f32.mrb[0].mxu0
        %1161 = vmatprep.mubr.f32.mxu0 0.0
        %1162 = vmatmul.mubr.f32.gmra.mrb[0].mxu0 %v824
        %v1163 = vpop.f32.mrb[0].mxu0
        %v1164 = vadd.f32 0.0, %v1163
        %v1165 = vpop.f32.mrb[0].mxu0
        %1166 = vmatprep.mubr.f32.mxu0 0.0
        %1167 = vmatmul.mubr.f32.gmra.mrb[0].mxu0 %v827
        %v1168 = vpop.f32.mrb[0].mxu0
        %v1169 = vadd.f32 0.0, %v1168
        %v1170 = vpop.f32.mrb[0].mxu0
        %1171 = vmatprep.mubr.f32.mxu0 0.0
        %1172 = vmatmul.mubr.f32.gmra.mrb[0].mxu0 %v830
        %v1173 = vpop.f32.mrb[0].mxu0
        %v1174 = vadd.f32 0.0, %v1173
        %v1175 = vpop.f32.mrb[0].mxu0
        %1176 = vmatprep.mubr.f32.mxu0 0.0
        %1177 = vmatmul.mubr.f32.gmra.mrb[0].mxu0 %v833
        %v1178 = vpop.f32.mrb[0].mxu0
        %v1179 = vadd.f32 0.0, %v1178
        %v1180 = vpop.f32.mrb[0].mxu0
        %1181 = vmatprep.mubr.f32.mxu0 0.0
        %1182 = vmatmul.mubr.f32.gmra.mrb[0].mxu0 %v836
        %v1183 = vpop.f32.mrb[0].mxu0
        %v1184 = vadd.f32 0.0, %v1183
        %v1185 = vpop.f32.mrb[0].mxu0
        %1186 = vmatprep.mubr.f32.mxu0 0.0
        %1187 = vmatmul.mubr.f32.gmra.mrb[0].mxu0 %v839
        %v1188 = vpop.f32.mrb[0].mxu0
        %v1189 = vadd.f32 0.0, %v1188
        %v1190 = vpop.f32.mrb[0].mxu0
        %1191 = vmatprep.mubr.f32.mxu0 0.0
        %1192 = vmatmul.mubr.f32.gmra.mrb[0].mxu0 %v842
        %v1193 = vpop.f32.mrb[0].mxu0
        %v1194 = vadd.f32 0.0, %v1193
        %v1195 = vpop.f32.mrb[0].mxu0
        %1196 = vmatprep.mubr.f32.mxu0 0.0
        %1197 = vmatmul.mubr.f32.gmra.mrb[0].mxu0 %v845
        %v1198 = vpop.f32.mrb[0].mxu0
        %v1199 = vadd.f32 0.0, %v1198
        %v1200 = vpop.f32.mrb[0].mxu0
        %1201 = vmatprep.mubr.f32.mxu0 0.0
        %1202 = vmatmul.mubr.f32.gmra.mrb[0].mxu0 %v848
        %v1203 = vpop.f32.mrb[0].mxu0
        %v1204 = vadd.f32 0.0, %v1203
        %v1205 = vpop.f32.mrb[0].mxu0
        %1206 = vmatprep.mubr.f32.mxu0 0.0
        %1207 = vmatmul.mubr.f32.gmra.mrb[0].mxu0 %v851
        %v1208 = vpop.f32.mrb[0].mxu0
        %v1209 = vadd.f32 0.0, %v1208
        %v1210 = vpop.f32.mrb[0].mxu0
        %1211 = vmatprep.mubr.f32.mxu0 0.0
        %1212 = vmatmul.mubr.f32.gmra.mrb[0].mxu0 %v854
        %v1213 = vpop.f32.mrb[0].mxu0
        %v1214 = vadd.f32 0.0, %v1213
        %v1215 = vpop.f32.mrb[0].mxu0
        %1216 = vmatprep.mubr.f32.mxu0 0.0
        %1217 = vmatmul.mubr.f32.gmra.mrb[0].mxu0 %v857
        %v1218 = vpop.f32.mrb[0].mxu0
        %v1219 = vadd.f32 0.0, %v1218
        %v1220 = vpop.f32.mrb[0].mxu0
        %1221 = vmatprep.mubr.f32.mxu0 0.0
        %1222 = vmatmul.mubr.f32.gmra.mrb[0].mxu0 %v860
        %v1223 = vpop.f32.mrb[0].mxu0
        %v1224 = vadd.f32 0.0, %v1223
        %v1225 = vpop.f32.mrb[0].mxu0
        %1226 = vmatprep.mubr.f32.mxu0 0.0
        %1227 = vmatmul.mubr.f32.gmra.mrb[0].mxu0 %v863
        %v1228 = vpop.f32.mrb[0].mxu0
        %v1229 = vadd.f32 0.0, %v1228
        %v1230 = vpop.f32.mrb[0].mxu0
        %1231 = vmatprep.mubr.f32.mxu0 0.0
        %1232 = vmatmul.mubr.f32.gmra.mrb[0].mxu0 %v866
        %v1233 = vpop.f32.mrb[0].mxu0
        %v1234 = vadd.f32 0.0, %v1233
        %v1235 = vpop.f32.mrb[0].mxu0
        %1236 = vmatprep.mubr.f32.mxu0 0.0
        %1237 = vmatmul.mubr.f32.gmra.mrb[0].mxu0 %v869
        %v1238 = vpop.f32.mrb[0].mxu0
        %v1239 = vadd.f32 0.0, %v1238
        %v1240 = vpop.f32.mrb[0].mxu0
        %1241 = vmatprep.mubr.f32.mxu0 0.0
        %1242 = vmatmul.mubr.f32.gmra.mrb[0].mxu0 %v872
        %v1243 = vpop.f32.mrb[0].mxu0
        %v1244 = vadd.f32 0.0, %v1243
        %v1245 = vpop.f32.mrb[0].mxu0
        %1246 = vmatprep.mubr.f32.mxu0 0.0
        %1247 = vmatmul.mubr.f32.gmra.mrb[0].mxu0 %v875
        %v1248 = vpop.f32.mrb[0].mxu0
        %v1249 = vadd.f32 0.0, %v1248
        %v1250 = vpop.f32.mrb[0].mxu0
        %1251 = vmatprep.mubr.f32.mxu0 0.0
        %1252 = vmatmul.mubr.f32.gmra.mrb[0].mxu0 %v878
        %v1253 = vpop.f32.mrb[0].mxu0
        %v1254 = vadd.f32 0.0, %v1253
        %v1255 = vpop.f32.mrb[0].mxu0
        %1256 = vmatprep.mubr.f32.mxu0 0.0
        %1257 = vmatmul.mubr.f32.gmra.mrb[0].mxu0 %v881
        %v1258 = vpop.f32.mrb[0].mxu0
        %v1259 = vadd.f32 0.0, %v1258
        %v1260 = vpop.f32.mrb[0].mxu0
        %1261 = vmatprep.mubr.f32.mxu0 0.0
        %1262 = vmatmul.mubr.f32.gmra.mrb[0].mxu0 %v884
        %v1263 = vpop.f32.mrb[0].mxu0
        %v1264 = vadd.f32 0.0, %v1263
        %v1265 = vpop.f32.mrb[0].mxu0
        %1266 = vmatprep.mubr.f32.mxu0 0.0
        %1267 = vmatmul.mubr.f32.gmra.mrb[0].mxu0 %v887
        %v1268 = vpop.f32.mrb[0].mxu0
        %v1269 = vadd.f32 0.0, %v1268
        %v1270 = vpop.f32.mrb[0].mxu0
        %1271 = vmatprep.mubr.f32.mxu0 0.0
        %1272 = vmatmul.mubr.f32.gmra.mrb[0].mxu0 %v890
        %v1273 = vpop.f32.mrb[0].mxu0
        %v1274 = vadd.f32 0.0, %v1273
        %v1275 = vpop.f32.mrb[0].mxu0
        %1276 = vmatprep.mubr.f32.mxu0 0.0
        %1277 = vmatmul.mubr.f32.gmra.mrb[0].mxu0 %v893
        %v1278 = vpop.f32.mrb[0].mxu0
        %v1279 = vadd.f32 0.0, %v1278
        %v1280 = vpop.f32.mrb[0].mxu0
        %1281 = vmatprep.mubr.f32.mxu0 0.0
        %1282 = vmatmul.mubr.f32.gmra.mrb[0].mxu0 %v896
        %v1283 = vpop.f32.mrb[0].mxu0
        %v1284 = vadd.f32 0.0, %v1283
        %v1285 = vpop.f32.mrb[0].mxu0
        %1286 = vmatprep.mubr.f32.mxu0 0.0
        %1287 = vmatmul.mubr.f32.gmra.mrb[0].mxu0 %v899
        %v1288 = vpop.f32.mrb[0].mxu0
        %v1289 = vadd.f32 0.0, %v1288
        %v1290 = vpop.f32.mrb[0].mxu0
        %1291 = vmatprep.mubr.f32.mxu0 0.0
        %1292 = vmatmul.mubr.f32.gmra.mrb[0].mxu0 %v902
        %v1293 = vpop.f32.mrb[0].mxu0
        %v1294 = vadd.f32 0.0, %v1293
        %v1295 = vpop.f32.mrb[0].mxu0
        %1296 = vmatprep.mubr.f32.mxu0 0.0
        %1297 = vmatmul.mubr.f32.gmra.mrb[0].mxu0 %v905
        %v1298 = vpop.f32.mrb[0].mxu0
        %v1299 = vadd.f32 0.0, %v1298
        %v1300 = vpop.f32.mrb[0].mxu0
        %1301 = vmatprep.mubr.f32.mxu0 0.0
        %1302 = vmatmul.mubr.f32.gmra.mrb[0].mxu0 %v908
        %v1303 = vpop.f32.mrb[0].mxu0
        %v1304 = vadd.f32 0.0, %v1303
        %v1305 = vpop.f32.mrb[0].mxu0
        %1306 = vmatprep.mubr.f32.mxu0 0.0
        %1307 = vmatmul.mubr.f32.gmra.mrb[0].mxu0 %v911
        %v1308 = vpop.f32.mrb[0].mxu0
        %v1309 = vadd.f32 0.0, %v1308
        %v1310 = vpop.f32.mrb[0].mxu0
        %1311 = vmatprep.mubr.f32.mxu0 0.0
        %1312 = vmatmul.mubr.f32.gmra.mrb[0].mxu0 %v914
        %v1313 = vpop.f32.mrb[0].mxu0
        %v1314 = vadd.f32 0.0, %v1313
        %v1315 = vpop.f32.mrb[0].mxu0
        %1316 = vmatprep.mubr.f32.mxu0 0.0
        %1317 = vmatmul.mubr.f32.gmra.mrb[0].mxu0 %v917
        %v1318 = vpop.f32.mrb[0].mxu0
        %v1319 = vadd.f32 0.0, %v1318
        %v1320 = vpop.f32.mrb[0].mxu0
        %1321 = vmatprep.mubr.f32.mxu0 0.0
        %1322 = vmatmul.mubr.f32.gmra.mrb[0].mxu0 %v920
        %v1323 = vpop.f32.mrb[0].mxu0
        %v1324 = vadd.f32 0.0, %v1323
        %v1325 = vpop.f32.mrb[0].mxu0
        %1326 = vmatprep.mubr.f32.mxu0 0.0
        %1327 = vmatmul.mubr.f32.gmra.mrb[0].mxu0 %v923
        %v1328 = vpop.f32.mrb[0].mxu0
        %v1329 = vadd.f32 0.0, %v1328
        %v1330 = vpop.f32.mrb[0].mxu0
        %1331 = vmatprep.mubr.f32.mxu0 0.0
        %1332 = vmatmul.mubr.f32.gmra.mrb[0].mxu0 %v926
        %v1333 = vpop.f32.mrb[0].mxu0
        %v1334 = vadd.f32 0.0, %v1333
        %v1335 = vpop.f32.mrb[0].mxu0
        %1336 = vmatprep.mubr.f32.mxu0 0.0
        %1337 = vmatmul.mubr.f32.gmra.mrb[0].mxu0 %v929
        %v1338 = vpop.f32.mrb[0].mxu0
        %v1339 = vadd.f32 0.0, %v1338
        %v1340 = vpop.f32.mrb[0].mxu0
        %1341 = vmatprep.mubr.f32.mxu0 0.0
        %1342 = vmatmul.mubr.f32.gmra.mrb[0].mxu0 %v932
        %v1343 = vpop.f32.mrb[0].mxu0
        %v1344 = vadd.f32 0.0, %v1343
        %v1345 = vpop.f32.mrb[0].mxu0
        %1346 = vmatprep.mubr.f32.mxu0 0.0
        %1347 = vmatmul.mubr.f32.gmra.mrb[0].mxu0 %v935
        %v1348 = vpop.f32.mrb[0].mxu0
        %v1349 = vadd.f32 0.0, %v1348
        %v1350 = vpop.f32.mrb[0].mxu0
        %1351 = vmatprep.mubr.f32.mxu0 0.0
        %1352 = vmatmul.mubr.f32.gmra.mrb[0].mxu0 %v938
        %v1353 = vpop.f32.mrb[0].mxu0
        %v1354 = vadd.f32 0.0, %v1353
        %v1355 = vpop.f32.mrb[0].mxu0
        %1356 = vmatprep.mubr.f32.mxu0 0.0
        %1357 = vmatmul.mubr.f32.gmra.mrb[0].mxu0 %v941
        %v1358 = vpop.f32.mrb[0].mxu0
        %v1359 = vadd.f32 0.0, %v1358
        %v1360 = vpop.f32.mrb[0].mxu0
        %1361 = vmatprep.mubr.f32.mxu0 0.0
        %1362 = vmatmul.mubr.f32.gmra.mrb[0].mxu0 %v944
        %v1363 = vpop.f32.mrb[0].mxu0
        %v1364 = vadd.f32 0.0, %v1363
        %v1365 = vpop.f32.mrb[0].mxu0
        %1366 = vmatprep.mubr.f32.mxu0 0.0
        %1367 = vmatmul.mubr.f32.gmra.mrb[0].mxu0 %v947
        %v1368 = vpop.f32.mrb[0].mxu0
        %v1369 = vadd.f32 0.0, %v1368
        %v1370 = vpop.f32.mrb[0].mxu0
        %1371 = vmatprep.mubr.f32.mxu0 0.0
        %1372 = vmatmul.mubr.f32.gmra.mrb[0].mxu0 %v950
        %v1373 = vpop.f32.mrb[0].mxu0
        %v1374 = vadd.f32 0.0, %v1373
        %v1375 = vpop.f32.mrb[0].mxu0
        %1376 = vmatprep.mubr.f32.mxu0 0.0
        %1377 = vmatmul.mubr.f32.gmra.mrb[0].mxu0 %v953
        %v1378 = vpop.f32.mrb[0].mxu0
        %v1379 = vadd.f32 0.0, %v1378
        %v1380 = vpop.f32.mrb[0].mxu0
        %1381 = vmatprep.mubr.f32.mxu0 0.0
        %1382 = vmatmul.mubr.f32.gmra.mrb[0].mxu0 %v956
        %v1383 = vpop.f32.mrb[0].mxu0
        %v1384 = vadd.f32 0.0, %v1383
        %v1385 = vpop.f32.mrb[0].mxu0
        %1386 = vmatprep.mubr.f32.mxu0 0.0
        %1387 = vmatmul.mubr.f32.gmra.mrb[0].mxu0 %v959
        %v1388 = vpop.f32.mrb[0].mxu0
        %v1389 = vadd.f32 0.0, %v1388
        %v1390 = vpop.f32.mrb[0].mxu0
        %1391 = vmatprep.mubr.f32.mxu0 0.0
        %1392 = vmatmul.mubr.f32.gmra.mrb[0].mxu0 %v962
        %v1393 = vpop.f32.mrb[0].mxu0
        %v1394 = vadd.f32 0.0, %v1393
        %v1395 = vpop.f32.mrb[0].mxu0
        %1396 = vdwg.mxu0
        %v1398 = vlaneseq
        %v1399 = vshrl.u32 %v1398, 7
        %v1400 = vsub.s32 0, %v1399
        %v1401 = vrot.slane %v382, %v1400
        %v1403 = vadd.f32 %v582, %v1401
        %v1404 = vadd.f32 %v585, %v1401
        %v1405 = vadd.f32 %v588, %v1401
        %v1406 = vadd.f32 %v591, %v1401
        %v1407 = vadd.f32 %v594, %v1401
        %v1408 = vadd.f32 %v597, %v1401
        %v1409 = vadd.f32 %v600, %v1401
        %v1410 = vadd.f32 %v603, %v1401
        %v1411 = vadd.f32 %v606, %v1401
        %v1412 = vadd.f32 %v609, %v1401
        %v1413 = vadd.f32 %v612, %v1401
        %v1414 = vadd.f32 %v615, %v1401
        %v1415 = vadd.f32 %v618, %v1401
        %v1416 = vadd.f32 %v621, %v1401
        %v1417 = vadd.f32 %v624, %v1401
        %v1418 = vadd.f32 %v627, %v1401
        %v1419 = vadd.f32 %v630, %v1401
        %v1420 = vadd.f32 %v633, %v1401
        %v1421 = vadd.f32 %v636, %v1401
        %v1422 = vadd.f32 %v639, %v1401
        %v1423 = vadd.f32 %v642, %v1401
        %v1424 = vadd.f32 %v645, %v1401
        %v1425 = vadd.f32 %v648, %v1401
        %v1426 = vadd.f32 %v651, %v1401
        %v1427 = vadd.f32 %v654, %v1401
        %v1428 = vadd.f32 %v657, %v1401
        %v1429 = vadd.f32 %v660, %v1401
        %v1430 = vadd.f32 %v663, %v1401
        %v1431 = vadd.f32 %v666, %v1401
        %v1432 = vadd.f32 %v669, %v1401
        %v1433 = vadd.f32 %v672, %v1401
        %v1434 = vadd.f32 %v675, %v1401
        %v1435 = vadd.f32 %v678, %v1401
        %v1436 = vadd.f32 %v681, %v1401
        %v1437 = vadd.f32 %v684, %v1401
        %v1438 = vadd.f32 %v687, %v1401
        %v1439 = vadd.f32 %v690, %v1401
        %v1440 = vadd.f32 %v693, %v1401
        %v1441 = vadd.f32 %v696, %v1401
        %v1442 = vadd.f32 %v699, %v1401
        %v1443 = vadd.f32 %v702, %v1401
        %v1444 = vadd.f32 %v705, %v1401
        %v1445 = vadd.f32 %v708, %v1401
        %v1446 = vadd.f32 %v711, %v1401
        %v1447 = vadd.f32 %v714, %v1401
        %v1448 = vadd.f32 %v717, %v1401
        %v1449 = vadd.f32 %v720, %v1401
        %v1450 = vadd.f32 %v723, %v1401
        %v1451 = vadd.f32 %v726, %v1401
        %v1452 = vadd.f32 %v729, %v1401
        %v1453 = vadd.f32 %v732, %v1401
        %v1454 = vadd.f32 %v735, %v1401
        %v1455 = vadd.f32 %v738, %v1401
        %v1456 = vadd.f32 %v741, %v1401
        %v1457 = vadd.f32 %v744, %v1401
        %v1458 = vadd.f32 %v747, %v1401
        %v1459 = vadd.f32 %v750, %v1401
        %v1460 = vadd.f32 %v753, %v1401
        %v1461 = vadd.f32 %v756, %v1401
        %v1462 = vadd.f32 %v759, %v1401
        %v1463 = vadd.f32 %v762, %v1401
        %v1464 = vadd.f32 %v765, %v1401
        %v1465 = vadd.f32 %v768, %v1401
        %v1466 = vadd.f32 %v771, %v1401
        %v1467 = vmul.f32 %v1079, 2.0
        %v1468 = vmul.f32 %v1084, 2.0
        %v1469 = vmul.f32 %v1089, 2.0
        %v1470 = vmul.f32 %v1094, 2.0
        %v1471 = vmul.f32 %v1099, 2.0
        %v1472 = vmul.f32 %v1104, 2.0
        %v1473 = vmul.f32 %v1109, 2.0
        %v1474 = vmul.f32 %v1114, 2.0
        %v1475 = vmul.f32 %v1119, 2.0
        %v1476 = vmul.f32 %v1124, 2.0
        %v1477 = vmul.f32 %v1129, 2.0
        %v1478 = vmul.f32 %v1134, 2.0
        %v1479 = vmul.f32 %v1139, 2.0
        %v1480 = vmul.f32 %v1144, 2.0
        %v1481 = vmul.f32 %v1149, 2.0
        %v1482 = vmul.f32 %v1154, 2.0
        %v1483 = vmul.f32 %v1159, 2.0
        %v1484 = vmul.f32 %v1164, 2.0
        %v1485 = vmul.f32 %v1169, 2.0
        %v1486 = vmul.f32 %v1174, 2.0
        %v1487 = vmul.f32 %v1179, 2.0
        %v1488 = vmul.f32 %v1184, 2.0
        %v1489 = vmul.f32 %v1189, 2.0
        %v1490 = vmul.f32 %v1194, 2.0
        %v1491 = vmul.f32 %v1199, 2.0
        %v1492 = vmul.f32 %v1204, 2.0
        %v1493 = vmul.f32 %v1209, 2.0
        %v1494 = vmul.f32 %v1214, 2.0
        %v1495 = vmul.f32 %v1219, 2.0
        %v1496 = vmul.f32 %v1224, 2.0
        %v1497 = vmul.f32 %v1229, 2.0
        %v1498 = vmul.f32 %v1234, 2.0
        %v1499 = vmul.f32 %v1239, 2.0
        %v1500 = vmul.f32 %v1244, 2.0
        %v1501 = vmul.f32 %v1249, 2.0
        %v1502 = vmul.f32 %v1254, 2.0
        %v1503 = vmul.f32 %v1259, 2.0
        %v1504 = vmul.f32 %v1264, 2.0
        %v1505 = vmul.f32 %v1269, 2.0
        %v1506 = vmul.f32 %v1274, 2.0
        %v1507 = vmul.f32 %v1279, 2.0
        %v1508 = vmul.f32 %v1284, 2.0
        %v1509 = vmul.f32 %v1289, 2.0
        %v1510 = vmul.f32 %v1294, 2.0
        %v1511 = vmul.f32 %v1299, 2.0
        %v1512 = vmul.f32 %v1304, 2.0
        %v1513 = vmul.f32 %v1309, 2.0
        %v1514 = vmul.f32 %v1314, 2.0
        %v1515 = vmul.f32 %v1319, 2.0
        %v1516 = vmul.f32 %v1324, 2.0
        %v1517 = vmul.f32 %v1329, 2.0
        %v1518 = vmul.f32 %v1334, 2.0
        %v1519 = vmul.f32 %v1339, 2.0
        %v1520 = vmul.f32 %v1344, 2.0
        %v1521 = vmul.f32 %v1349, 2.0
        %v1522 = vmul.f32 %v1354, 2.0
        %v1523 = vmul.f32 %v1359, 2.0
        %v1524 = vmul.f32 %v1364, 2.0
        %v1525 = vmul.f32 %v1369, 2.0
        %v1526 = vmul.f32 %v1374, 2.0
        %v1527 = vmul.f32 %v1379, 2.0
        %v1528 = vmul.f32 %v1384, 2.0
        %v1529 = vmul.f32 %v1389, 2.0
        %v1530 = vmul.f32 %v1394, 2.0
        %v1531 = vsub.f32 %v1403, %v1467
        %v1532 = vsub.f32 %v1404, %v1468
        %v1533 = vsub.f32 %v1405, %v1469
        %v1534 = vsub.f32 %v1406, %v1470
        %v1535 = vsub.f32 %v1407, %v1471
        %v1536 = vsub.f32 %v1408, %v1472
        %v1537 = vsub.f32 %v1409, %v1473
        %v1538 = vsub.f32 %v1410, %v1474
        %v1539 = vsub.f32 %v1411, %v1475
        %v1540 = vsub.f32 %v1412, %v1476
        %v1541 = vsub.f32 %v1413, %v1477
        %v1542 = vsub.f32 %v1414, %v1478
        %v1543 = vsub.f32 %v1415, %v1479
        %v1544 = vsub.f32 %v1416, %v1480
        %v1545 = vsub.f32 %v1417, %v1481
        %v1546 = vsub.f32 %v1418, %v1482
        %v1547 = vsub.f32 %v1419, %v1483
        %v1548 = vsub.f32 %v1420, %v1484
        %v1549 = vsub.f32 %v1421, %v1485
        %v1550 = vsub.f32 %v1422, %v1486
        %v1551 = vsub.f32 %v1423, %v1487
        %v1552 = vsub.f32 %v1424, %v1488
        %v1553 = vsub.f32 %v1425, %v1489
        %v1554 = vsub.f32 %v1426, %v1490
        %v1555 = vsub.f32 %v1427, %v1491
        %v1556 = vsub.f32 %v1428, %v1492
        %v1557 = vsub.f32 %v1429, %v1493
        %v1558 = vsub.f32 %v1430, %v1494
        %v1559 = vsub.f32 %v1431, %v1495
        %v1560 = vsub.f32 %v1432, %v1496
        %v1561 = vsub.f32 %v1433, %v1497
        %v1562 = vsub.f32 %v1434, %v1498
        %v1563 = vsub.f32 %v1435, %v1499
        %v1564 = vsub.f32 %v1436, %v1500
        %v1565 = vsub.f32 %v1437, %v1501
        %v1566 = vsub.f32 %v1438, %v1502
        %v1567 = vsub.f32 %v1439, %v1503
        %v1568 = vsub.f32 %v1440, %v1504
        %v1569 = vsub.f32 %v1441, %v1505
        %v1570 = vsub.f32 %v1442, %v1506
        %v1571 = vsub.f32 %v1443, %v1507
        %v1572 = vsub.f32 %v1444, %v1508
        %v1573 = vsub.f32 %v1445, %v1509
        %v1574 = vsub.f32 %v1446, %v1510
        %v1575 = vsub.f32 %v1447, %v1511
        %v1576 = vsub.f32 %v1448, %v1512
        %v1577 = vsub.f32 %v1449, %v1513
        %v1578 = vsub.f32 %v1450, %v1514
        %v1579 = vsub.f32 %v1451, %v1515
        %v1580 = vsub.f32 %v1452, %v1516
        %v1581 = vsub.f32 %v1453, %v1517
        %v1582 = vsub.f32 %v1454, %v1518
        %v1583 = vsub.f32 %v1455, %v1519
        %v1584 = vsub.f32 %v1456, %v1520
        %v1585 = vsub.f32 %v1457, %v1521
        %v1586 = vsub.f32 %v1458, %v1522
        %v1587 = vsub.f32 %v1459, %v1523
        %v1588 = vsub.f32 %v1460, %v1524
        %v1589 = vsub.f32 %v1461, %v1525
        %v1590 = vsub.f32 %v1462, %v1526
        %v1591 = vsub.f32 %v1463, %v1527
        %v1592 = vsub.f32 %v1464, %v1528
        %v1593 = vsub.f32 %v1465, %v1529
        %v1594 = vsub.f32 %v1466, %v1530
        %v1595 = vlaneseq
        %v1596 = vand.u32 %v1595, 127
        %1597 = vmin.xlane.f32.xlu0 %v1531
        %v1598 = vpop.xlane.xlu0 %1597
        %1599 = vmin.xlane.f32.xlu0 %v1532
        %v1600 = vpop.xlane.xlu0 %1599
        %1601 = vmin.xlane.f32.xlu0 %v1533
        %v1602 = vpop.xlane.xlu0 %1601
        %1603 = vmin.xlane.f32.xlu0 %v1534
        %v1604 = vpop.xlane.xlu0 %1603
        %1605 = vmin.xlane.f32.xlu0 %v1535
        %v1606 = vpop.xlane.xlu0 %1605
        %1607 = vmin.xlane.f32.xlu0 %v1536
        %v1608 = vpop.xlane.xlu0 %1607
        %1609 = vmin.xlane.f32.xlu0 %v1537
        %v1610 = vpop.xlane.xlu0 %1609
        %1611 = vmin.xlane.f32.xlu0 %v1538
        %v1612 = vpop.xlane.xlu0 %1611
        %1613 = vmin.xlane.f32.xlu0 %v1539
        %v1614 = vpop.xlane.xlu0 %1613
        %1615 = vmin.xlane.f32.xlu0 %v1540
        %v1616 = vpop.xlane.xlu0 %1615
        %1617 = vmin.xlane.f32.xlu0 %v1541
        %v1618 = vpop.xlane.xlu0 %1617
        %1619 = vmin.xlane.f32.xlu0 %v1542
        %v1620 = vpop.xlane.xlu0 %1619
        %1621 = vmin.xlane.f32.xlu0 %v1543
        %v1622 = vpop.xlane.xlu0 %1621
        %1623 = vmin.xlane.f32.xlu0 %v1544
        %v1624 = vpop.xlane.xlu0 %1623
        %1625 = vmin.xlane.f32.xlu0 %v1545
        %v1626 = vpop.xlane.xlu0 %1625
        %1627 = vmin.xlane.f32.xlu0 %v1546
        %v1628 = vpop.xlane.xlu0 %1627
        %1629 = vmin.xlane.f32.xlu0 %v1547
        %v1630 = vpop.xlane.xlu0 %1629
        %1631 = vmin.xlane.f32.xlu0 %v1548
        %v1632 = vpop.xlane.xlu0 %1631
        %1633 = vmin.xlane.f32.xlu0 %v1549
        %v1634 = vpop.xlane.xlu0 %1633
        %1635 = vmin.xlane.f32.xlu0 %v1550
        %v1636 = vpop.xlane.xlu0 %1635
        %1637 = vmin.xlane.f32.xlu0 %v1551
        %v1638 = vpop.xlane.xlu0 %1637
        %1639 = vmin.xlane.f32.xlu0 %v1552
        %v1640 = vpop.xlane.xlu0 %1639
        %1641 = vmin.xlane.f32.xlu0 %v1553
        %v1642 = vpop.xlane.xlu0 %1641
        %1643 = vmin.xlane.f32.xlu0 %v1554
        %v1644 = vpop.xlane.xlu0 %1643
        %1645 = vmin.xlane.f32.xlu0 %v1555
        %v1646 = vpop.xlane.xlu0 %1645
        %1647 = vmin.xlane.f32.xlu0 %v1556
        %v1648 = vpop.xlane.xlu0 %1647
        %1649 = vmin.xlane.f32.xlu0 %v1557
        %v1650 = vpop.xlane.xlu0 %1649
        %1651 = vmin.xlane.f32.xlu0 %v1558
        %v1652 = vpop.xlane.xlu0 %1651
        %1653 = vmin.xlane.f32.xlu0 %v1559
        %v1654 = vpop.xlane.xlu0 %1653
        %1655 = vmin.xlane.f32.xlu0 %v1560
        %v1656 = vpop.xlane.xlu0 %1655
        %1657 = vmin.xlane.f32.xlu0 %v1561
        %v1658 = vpop.xlane.xlu0 %1657
        %1659 = vmin.xlane.f32.xlu0 %v1562
        %v1660 = vpop.xlane.xlu0 %1659
        %1661 = vmin.xlane.f32.xlu0 %v1563
        %v1662 = vpop.xlane.xlu0 %1661
        %1663 = vmin.xlane.f32.xlu0 %v1564
        %v1664 = vpop.xlane.xlu0 %1663
        %1665 = vmin.xlane.f32.xlu0 %v1565
        %v1666 = vpop.xlane.xlu0 %1665
        %1667 = vmin.xlane.f32.xlu0 %v1566
        %v1668 = vpop.xlane.xlu0 %1667
        %1669 = vmin.xlane.f32.xlu0 %v1567
        %v1670 = vpop.xlane.xlu0 %1669
        %1671 = vmin.xlane.f32.xlu0 %v1568
        %v1672 = vpop.xlane.xlu0 %1671
        %1673 = vmin.xlane.f32.xlu0 %v1569
        %v1674 = vpop.xlane.xlu0 %1673
        %1675 = vmin.xlane.f32.xlu0 %v1570
        %v1676 = vpop.xlane.xlu0 %1675
        %1677 = vmin.xlane.f32.xlu0 %v1571
        %v1678 = vpop.xlane.xlu0 %1677
        %1679 = vmin.xlane.f32.xlu0 %v1572
        %v1680 = vpop.xlane.xlu0 %1679
        %1681 = vmin.xlane.f32.xlu0 %v1573
        %v1682 = vpop.xlane.xlu0 %1681
        %1683 = vmin.xlane.f32.xlu0 %v1574
        %v1684 = vpop.xlane.xlu0 %1683
        %1685 = vmin.xlane.f32.xlu0 %v1575
        %v1686 = vpop.xlane.xlu0 %1685
        %1687 = vmin.xlane.f32.xlu0 %v1576
        %v1688 = vpop.xlane.xlu0 %1687
        %1689 = vmin.xlane.f32.xlu0 %v1577
        %v1690 = vpop.xlane.xlu0 %1689
        %1691 = vmin.xlane.f32.xlu0 %v1578
        %v1692 = vpop.xlane.xlu0 %1691
        %1693 = vmin.xlane.f32.xlu0 %v1579
        %v1694 = vpop.xlane.xlu0 %1693
        %1695 = vmin.xlane.f32.xlu0 %v1580
        %v1696 = vpop.xlane.xlu0 %1695
        %1697 = vmin.xlane.f32.xlu0 %v1581
        %v1698 = vpop.xlane.xlu0 %1697
        %1699 = vmin.xlane.f32.xlu0 %v1582
        %v1700 = vpop.xlane.xlu0 %1699
        %1701 = vmin.xlane.f32.xlu0 %v1583
        %v1702 = vpop.xlane.xlu0 %1701
        %1703 = vmin.xlane.f32.xlu0 %v1584
        %v1704 = vpop.xlane.xlu0 %1703
        %1705 = vmin.xlane.f32.xlu0 %v1585
        %v1706 = vpop.xlane.xlu0 %1705
        %1707 = vmin.xlane.f32.xlu0 %v1586
        %v1708 = vpop.xlane.xlu0 %1707
        %1709 = vmin.xlane.f32.xlu0 %v1587
        %v1710 = vpop.xlane.xlu0 %1709
        %1711 = vmin.xlane.f32.xlu0 %v1588
        %v1712 = vpop.xlane.xlu0 %1711
        %1713 = vmin.xlane.f32.xlu0 %v1589
        %v1714 = vpop.xlane.xlu0 %1713
        %1715 = vmin.xlane.f32.xlu0 %v1590
        %v1716 = vpop.xlane.xlu0 %1715
        %1717 = vmin.xlane.f32.xlu0 %v1591
        %v1718 = vpop.xlane.xlu0 %1717
        %1719 = vmin.xlane.f32.xlu0 %v1592
        %v1720 = vpop.xlane.xlu0 %1719
        %1721 = vmin.xlane.f32.xlu0 %v1593
        %v1722 = vpop.xlane.xlu0 %1721
        %1723 = vmin.xlane.f32.xlu0 %v1594
        %v1724 = vpop.xlane.xlu0 %1723
        %vm1725 = vcmp.eq.f32.partialorder %v1531, %v1598
        %vm1726 = vcmp.eq.f32.partialorder %v1532, %v1600
        %vm1727 = vcmp.eq.f32.partialorder %v1533, %v1602
        %vm1728 = vcmp.eq.f32.partialorder %v1534, %v1604
        %vm1729 = vcmp.eq.f32.partialorder %v1535, %v1606
        %vm1730 = vcmp.eq.f32.partialorder %v1536, %v1608
        %vm1731 = vcmp.eq.f32.partialorder %v1537, %v1610
        %vm1732 = vcmp.eq.f32.partialorder %v1538, %v1612
        %vm1733 = vcmp.eq.f32.partialorder %v1539, %v1614
        %vm1734 = vcmp.eq.f32.partialorder %v1540, %v1616
        %vm1735 = vcmp.eq.f32.partialorder %v1541, %v1618
        %vm1736 = vcmp.eq.f32.partialorder %v1542, %v1620
        %vm1737 = vcmp.eq.f32.partialorder %v1543, %v1622
        %vm1738 = vcmp.eq.f32.partialorder %v1544, %v1624
        %vm1739 = vcmp.eq.f32.partialorder %v1545, %v1626
        %vm1740 = vcmp.eq.f32.partialorder %v1546, %v1628
        %vm1741 = vcmp.eq.f32.partialorder %v1547, %v1630
        %vm1742 = vcmp.eq.f32.partialorder %v1548, %v1632
        %vm1743 = vcmp.eq.f32.partialorder %v1549, %v1634
        %vm1744 = vcmp.eq.f32.partialorder %v1550, %v1636
        %vm1745 = vcmp.eq.f32.partialorder %v1551, %v1638
        %vm1746 = vcmp.eq.f32.partialorder %v1552, %v1640
        %vm1747 = vcmp.eq.f32.partialorder %v1553, %v1642
        %vm1748 = vcmp.eq.f32.partialorder %v1554, %v1644
        %vm1749 = vcmp.eq.f32.partialorder %v1555, %v1646
        %vm1750 = vcmp.eq.f32.partialorder %v1556, %v1648
        %vm1751 = vcmp.eq.f32.partialorder %v1557, %v1650
        %vm1752 = vcmp.eq.f32.partialorder %v1558, %v1652
        %vm1753 = vcmp.eq.f32.partialorder %v1559, %v1654
        %vm1754 = vcmp.eq.f32.partialorder %v1560, %v1656
        %vm1755 = vcmp.eq.f32.partialorder %v1561, %v1658
        %vm1756 = vcmp.eq.f32.partialorder %v1562, %v1660
        %vm1757 = vcmp.eq.f32.partialorder %v1563, %v1662
        %vm1758 = vcmp.eq.f32.partialorder %v1564, %v1664
        %vm1759 = vcmp.eq.f32.partialorder %v1565, %v1666
        %vm1760 = vcmp.eq.f32.partialorder %v1566, %v1668
        %vm1761 = vcmp.eq.f32.partialorder %v1567, %v1670
        %vm1762 = vcmp.eq.f32.partialorder %v1568, %v1672
        %vm1763 = vcmp.eq.f32.partialorder %v1569, %v1674
        %vm1764 = vcmp.eq.f32.partialorder %v1570, %v1676
        %vm1765 = vcmp.eq.f32.partialorder %v1571, %v1678
        %vm1766 = vcmp.eq.f32.partialorder %v1572, %v1680
        %vm1767 = vcmp.eq.f32.partialorder %v1573, %v1682
        %vm1768 = vcmp.eq.f32.partialorder %v1574, %v1684
        %vm1769 = vcmp.eq.f32.partialorder %v1575, %v1686
        %vm1770 = vcmp.eq.f32.partialorder %v1576, %v1688
        %vm1771 = vcmp.eq.f32.partialorder %v1577, %v1690
        %vm1772 = vcmp.eq.f32.partialorder %v1578, %v1692
        %vm1773 = vcmp.eq.f32.partialorder %v1579, %v1694
        %vm1774 = vcmp.eq.f32.partialorder %v1580, %v1696
        %vm1775 = vcmp.eq.f32.partialorder %v1581, %v1698
        %vm1776 = vcmp.eq.f32.partialorder %v1582, %v1700
        %vm1777 = vcmp.eq.f32.partialorder %v1583, %v1702
        %vm1778 = vcmp.eq.f32.partialorder %v1584, %v1704
        %vm1779 = vcmp.eq.f32.partialorder %v1585, %v1706
        %vm1780 = vcmp.eq.f32.partialorder %v1586, %v1708
        %vm1781 = vcmp.eq.f32.partialorder %v1587, %v1710
        %vm1782 = vcmp.eq.f32.partialorder %v1588, %v1712
        %vm1783 = vcmp.eq.f32.partialorder %v1589, %v1714
        %vm1784 = vcmp.eq.f32.partialorder %v1590, %v1716
        %vm1785 = vcmp.eq.f32.partialorder %v1591, %v1718
        %vm1786 = vcmp.eq.f32.partialorder %v1592, %v1720
        %vm1787 = vcmp.eq.f32.partialorder %v1593, %v1722
        %vm1788 = vcmp.eq.f32.partialorder %v1594, %v1724
        %v1789 = vsel %vm1725, %v1596, 128
        %v1790 = vsel %vm1726, %v1596, 128
        %v1791 = vsel %vm1727, %v1596, 128
        %v1792 = vsel %vm1728, %v1596, 128
        %v1793 = vsel %vm1729, %v1596, 128
        %v1794 = vsel %vm1730, %v1596, 128
        %v1795 = vsel %vm1731, %v1596, 128
        %v1796 = vsel %vm1732, %v1596, 128
        %v1797 = vsel %vm1733, %v1596, 128
        %v1798 = vsel %vm1734, %v1596, 128
        %v1799 = vsel %vm1735, %v1596, 128
        %v1800 = vsel %vm1736, %v1596, 128
        %v1801 = vsel %vm1737, %v1596, 128
        %v1802 = vsel %vm1738, %v1596, 128
        %v1803 = vsel %vm1739, %v1596, 128
        %v1804 = vsel %vm1740, %v1596, 128
        %v1805 = vsel %vm1741, %v1596, 128
        %v1806 = vsel %vm1742, %v1596, 128
        %v1807 = vsel %vm1743, %v1596, 128
        %v1808 = vsel %vm1744, %v1596, 128
        %v1809 = vsel %vm1745, %v1596, 128
        %v1810 = vsel %vm1746, %v1596, 128
        %v1811 = vsel %vm1747, %v1596, 128
        %v1812 = vsel %vm1748, %v1596, 128
        %v1813 = vsel %vm1749, %v1596, 128
        %v1814 = vsel %vm1750, %v1596, 128
        %v1815 = vsel %vm1751, %v1596, 128
        %v1816 = vsel %vm1752, %v1596, 128
        %v1817 = vsel %vm1753, %v1596, 128
        %v1818 = vsel %vm1754, %v1596, 128
        %v1819 = vsel %vm1755, %v1596, 128
        %v1820 = vsel %vm1756, %v1596, 128
        %v1821 = vsel %vm1757, %v1596, 128
        %v1822 = vsel %vm1758, %v1596, 128
        %v1823 = vsel %vm1759, %v1596, 128
        %v1824 = vsel %vm1760, %v1596, 128
        %v1825 = vsel %vm1761, %v1596, 128
        %v1826 = vsel %vm1762, %v1596, 128
        %v1827 = vsel %vm1763, %v1596, 128
        %v1828 = vsel %vm1764, %v1596, 128
        %v1829 = vsel %vm1765, %v1596, 128
        %v1830 = vsel %vm1766, %v1596, 128
        %v1831 = vsel %vm1767, %v1596, 128
        %v1832 = vsel %vm1768, %v1596, 128
        %v1833 = vsel %vm1769, %v1596, 128
        %v1834 = vsel %vm1770, %v1596, 128
        %v1835 = vsel %vm1771, %v1596, 128
        %v1836 = vsel %vm1772, %v1596, 128
        %v1837 = vsel %vm1773, %v1596, 128
        %v1838 = vsel %vm1774, %v1596, 128
        %v1839 = vsel %vm1775, %v1596, 128
        %v1840 = vsel %vm1776, %v1596, 128
        %v1841 = vsel %vm1777, %v1596, 128
        %v1842 = vsel %vm1778, %v1596, 128
        %v1843 = vsel %vm1779, %v1596, 128
        %v1844 = vsel %vm1780, %v1596, 128
        %v1845 = vsel %vm1781, %v1596, 128
        %v1846 = vsel %vm1782, %v1596, 128
        %v1847 = vsel %vm1783, %v1596, 128
        %v1848 = vsel %vm1784, %v1596, 128
        %v1849 = vsel %vm1785, %v1596, 128
        %v1850 = vsel %vm1786, %v1596, 128
        %v1851 = vsel %vm1787, %v1596, 128
        %v1852 = vsel %vm1788, %v1596, 128
        %v1853 = vand.u32 %v1789, 65535
        %v1854 = vshra.s32 %v1789, 16
        %v1855 = vcvt.s32.f32 %v1853
        %v1856 = vcvt.s32.f32 %v1854
        %1857 = vmin.xlane.f32.xlu0 %v1856
        %v1858 = vpop.xlane.xlu0 %1857
        %vm1859 = vcmp.eq.f32.partialorder %v1856, %v1858
        %v1860 = vsel %vm1859, %v1855, inf
        %1861 = vmin.xlane.f32.xlu0 %v1860
        %v1862 = vpop.xlane.xlu0 %1861
        %v1863 = vcvt.f32.s32 %v1862
        %v1864 = vcvt.f32.s32 %v1858
        %v1865 = vshll.u32 %v1864, 16
        %v1866 = vadd.s32 %v1865, %v1863
        %v1867 = vand.u32 %v1790, 65535
        %v1868 = vshra.s32 %v1790, 16
        %v1869 = vcvt.s32.f32 %v1867
        %v1870 = vcvt.s32.f32 %v1868
        %1871 = vmin.xlane.f32.xlu0 %v1870
        %v1872 = vpop.xlane.xlu0 %1871
        %vm1873 = vcmp.eq.f32.partialorder %v1870, %v1872
        %v1874 = vsel %vm1873, %v1869, inf
        %1875 = vmin.xlane.f32.xlu0 %v1874
        %v1876 = vpop.xlane.xlu0 %1875
        %v1877 = vcvt.f32.s32 %v1876
        %v1878 = vcvt.f32.s32 %v1872
        %v1879 = vshll.u32 %v1878, 16
        %v1880 = vadd.s32 %v1879, %v1877
        %v1881 = vand.u32 %v1791, 65535
        %v1882 = vshra.s32 %v1791, 16
        %v1883 = vcvt.s32.f32 %v1881
        %v1884 = vcvt.s32.f32 %v1882
        %1885 = vmin.xlane.f32.xlu0 %v1884
        %v1886 = vpop.xlane.xlu0 %1885
        %vm1887 = vcmp.eq.f32.partialorder %v1884, %v1886
        %v1888 = vsel %vm1887, %v1883, inf
        %1889 = vmin.xlane.f32.xlu0 %v1888
        %v1890 = vpop.xlane.xlu0 %1889
        %v1891 = vcvt.f32.s32 %v1890
        %v1892 = vcvt.f32.s32 %v1886
        %v1893 = vshll.u32 %v1892, 16
        %v1894 = vadd.s32 %v1893, %v1891
        %v1895 = vand.u32 %v1792, 65535
        %v1896 = vshra.s32 %v1792, 16
        %v1897 = vcvt.s32.f32 %v1895
        %v1898 = vcvt.s32.f32 %v1896
        %1899 = vmin.xlane.f32.xlu0 %v1898
        %v1900 = vpop.xlane.xlu0 %1899
        %vm1901 = vcmp.eq.f32.partialorder %v1898, %v1900
        %v1902 = vsel %vm1901, %v1897, inf
        %1903 = vmin.xlane.f32.xlu0 %v1902
        %v1904 = vpop.xlane.xlu0 %1903
        %v1905 = vcvt.f32.s32 %v1904
        %v1906 = vcvt.f32.s32 %v1900
        %v1907 = vshll.u32 %v1906, 16
        %v1908 = vadd.s32 %v1907, %v1905
        %v1909 = vand.u32 %v1793, 65535
        %v1910 = vshra.s32 %v1793, 16
        %v1911 = vcvt.s32.f32 %v1909
        %v1912 = vcvt.s32.f32 %v1910
        %1913 = vmin.xlane.f32.xlu0 %v1912
        %v1914 = vpop.xlane.xlu0 %1913
        %vm1915 = vcmp.eq.f32.partialorder %v1912, %v1914
        %v1916 = vsel %vm1915, %v1911, inf
        %1917 = vmin.xlane.f32.xlu0 %v1916
        %v1918 = vpop.xlane.xlu0 %1917
        %v1919 = vcvt.f32.s32 %v1918
        %v1920 = vcvt.f32.s32 %v1914
        %v1921 = vshll.u32 %v1920, 16
        %v1922 = vadd.s32 %v1921, %v1919
        %v1923 = vand.u32 %v1794, 65535
        %v1924 = vshra.s32 %v1794, 16
        %v1925 = vcvt.s32.f32 %v1923
        %v1926 = vcvt.s32.f32 %v1924
        %1927 = vmin.xlane.f32.xlu0 %v1926
        %v1928 = vpop.xlane.xlu0 %1927
        %vm1929 = vcmp.eq.f32.partialorder %v1926, %v1928
        %v1930 = vsel %vm1929, %v1925, inf
        %1931 = vmin.xlane.f32.xlu0 %v1930
        %v1932 = vpop.xlane.xlu0 %1931
        %v1933 = vcvt.f32.s32 %v1932
        %v1934 = vcvt.f32.s32 %v1928
        %v1935 = vshll.u32 %v1934, 16
        %v1936 = vadd.s32 %v1935, %v1933
        %v1937 = vand.u32 %v1795, 65535
        %v1938 = vshra.s32 %v1795, 16
        %v1939 = vcvt.s32.f32 %v1937
        %v1940 = vcvt.s32.f32 %v1938
        %1941 = vmin.xlane.f32.xlu0 %v1940
        %v1942 = vpop.xlane.xlu0 %1941
        %vm1943 = vcmp.eq.f32.partialorder %v1940, %v1942
        %v1944 = vsel %vm1943, %v1939, inf
        %1945 = vmin.xlane.f32.xlu0 %v1944
        %v1946 = vpop.xlane.xlu0 %1945
        %v1947 = vcvt.f32.s32 %v1946
        %v1948 = vcvt.f32.s32 %v1942
        %v1949 = vshll.u32 %v1948, 16
        %v1950 = vadd.s32 %v1949, %v1947
        %v1951 = vand.u32 %v1796, 65535
        %v1952 = vshra.s32 %v1796, 16
        %v1953 = vcvt.s32.f32 %v1951
        %v1954 = vcvt.s32.f32 %v1952
        %1955 = vmin.xlane.f32.xlu0 %v1954
        %v1956 = vpop.xlane.xlu0 %1955
        %vm1957 = vcmp.eq.f32.partialorder %v1954, %v1956
        %v1958 = vsel %vm1957, %v1953, inf
        %1959 = vmin.xlane.f32.xlu0 %v1958
        %v1960 = vpop.xlane.xlu0 %1959
        %v1961 = vcvt.f32.s32 %v1960
        %v1962 = vcvt.f32.s32 %v1956
        %v1963 = vshll.u32 %v1962, 16
        %v1964 = vadd.s32 %v1963, %v1961
        %v1965 = vand.u32 %v1797, 65535
        %v1966 = vshra.s32 %v1797, 16
        %v1967 = vcvt.s32.f32 %v1965
        %v1968 = vcvt.s32.f32 %v1966
        %1969 = vmin.xlane.f32.xlu0 %v1968
        %v1970 = vpop.xlane.xlu0 %1969
        %vm1971 = vcmp.eq.f32.partialorder %v1968, %v1970
        %v1972 = vsel %vm1971, %v1967, inf
        %1973 = vmin.xlane.f32.xlu0 %v1972
        %v1974 = vpop.xlane.xlu0 %1973
        %v1975 = vcvt.f32.s32 %v1974
        %v1976 = vcvt.f32.s32 %v1970
        %v1977 = vshll.u32 %v1976, 16
        %v1978 = vadd.s32 %v1977, %v1975
        %v1979 = vand.u32 %v1798, 65535
        %v1980 = vshra.s32 %v1798, 16
        %v1981 = vcvt.s32.f32 %v1979
        %v1982 = vcvt.s32.f32 %v1980
        %1983 = vmin.xlane.f32.xlu0 %v1982
        %v1984 = vpop.xlane.xlu0 %1983
        %vm1985 = vcmp.eq.f32.partialorder %v1982, %v1984
        %v1986 = vsel %vm1985, %v1981, inf
        %1987 = vmin.xlane.f32.xlu0 %v1986
        %v1988 = vpop.xlane.xlu0 %1987
        %v1989 = vcvt.f32.s32 %v1988
        %v1990 = vcvt.f32.s32 %v1984
        %v1991 = vshll.u32 %v1990, 16
        %v1992 = vadd.s32 %v1991, %v1989
        %v1993 = vand.u32 %v1799, 65535
        %v1994 = vshra.s32 %v1799, 16
        %v1995 = vcvt.s32.f32 %v1993
        %v1996 = vcvt.s32.f32 %v1994
        %1997 = vmin.xlane.f32.xlu0 %v1996
        %v1998 = vpop.xlane.xlu0 %1997
        %vm1999 = vcmp.eq.f32.partialorder %v1996, %v1998
        %v2000 = vsel %vm1999, %v1995, inf
        %2001 = vmin.xlane.f32.xlu0 %v2000
        %v2002 = vpop.xlane.xlu0 %2001
        %v2003 = vcvt.f32.s32 %v2002
        %v2004 = vcvt.f32.s32 %v1998
        %v2005 = vshll.u32 %v2004, 16
        %v2006 = vadd.s32 %v2005, %v2003
        %v2007 = vand.u32 %v1800, 65535
        %v2008 = vshra.s32 %v1800, 16
        %v2009 = vcvt.s32.f32 %v2007
        %v2010 = vcvt.s32.f32 %v2008
        %2011 = vmin.xlane.f32.xlu0 %v2010
        %v2012 = vpop.xlane.xlu0 %2011
        %vm2013 = vcmp.eq.f32.partialorder %v2010, %v2012
        %v2014 = vsel %vm2013, %v2009, inf
        %2015 = vmin.xlane.f32.xlu0 %v2014
        %v2016 = vpop.xlane.xlu0 %2015
        %v2017 = vcvt.f32.s32 %v2016
        %v2018 = vcvt.f32.s32 %v2012
        %v2019 = vshll.u32 %v2018, 16
        %v2020 = vadd.s32 %v2019, %v2017
        %v2021 = vand.u32 %v1801, 65535
        %v2022 = vshra.s32 %v1801, 16
        %v2023 = vcvt.s32.f32 %v2021
        %v2024 = vcvt.s32.f32 %v2022
        %2025 = vmin.xlane.f32.xlu0 %v2024
        %v2026 = vpop.xlane.xlu0 %2025
        %vm2027 = vcmp.eq.f32.partialorder %v2024, %v2026
        %v2028 = vsel %vm2027, %v2023, inf
        %2029 = vmin.xlane.f32.xlu0 %v2028
        %v2030 = vpop.xlane.xlu0 %2029
        %v2031 = vcvt.f32.s32 %v2030
        %v2032 = vcvt.f32.s32 %v2026
        %v2033 = vshll.u32 %v2032, 16
        %v2034 = vadd.s32 %v2033, %v2031
        %v2035 = vand.u32 %v1802, 65535
        %v2036 = vshra.s32 %v1802, 16
        %v2037 = vcvt.s32.f32 %v2035
        %v2038 = vcvt.s32.f32 %v2036
        %2039 = vmin.xlane.f32.xlu0 %v2038
        %v2040 = vpop.xlane.xlu0 %2039
        %vm2041 = vcmp.eq.f32.partialorder %v2038, %v2040
        %v2042 = vsel %vm2041, %v2037, inf
        %2043 = vmin.xlane.f32.xlu0 %v2042
        %v2044 = vpop.xlane.xlu0 %2043
        %v2045 = vcvt.f32.s32 %v2044
        %v2046 = vcvt.f32.s32 %v2040
        %v2047 = vshll.u32 %v2046, 16
        %v2048 = vadd.s32 %v2047, %v2045
        %v2049 = vand.u32 %v1803, 65535
        %v2050 = vshra.s32 %v1803, 16
        %v2051 = vcvt.s32.f32 %v2049
        %v2052 = vcvt.s32.f32 %v2050
        %2053 = vmin.xlane.f32.xlu0 %v2052
        %v2054 = vpop.xlane.xlu0 %2053
        %vm2055 = vcmp.eq.f32.partialorder %v2052, %v2054
        %v2056 = vsel %vm2055, %v2051, inf
        %2057 = vmin.xlane.f32.xlu0 %v2056
        %v2058 = vpop.xlane.xlu0 %2057
        %v2059 = vcvt.f32.s32 %v2058
        %v2060 = vcvt.f32.s32 %v2054
        %v2061 = vshll.u32 %v2060, 16
        %v2062 = vadd.s32 %v2061, %v2059
        %v2063 = vand.u32 %v1804, 65535
        %v2064 = vshra.s32 %v1804, 16
        %v2065 = vcvt.s32.f32 %v2063
        %v2066 = vcvt.s32.f32 %v2064
        %2067 = vmin.xlane.f32.xlu0 %v2066
        %v2068 = vpop.xlane.xlu0 %2067
        %vm2069 = vcmp.eq.f32.partialorder %v2066, %v2068
        %v2070 = vsel %vm2069, %v2065, inf
        %2071 = vmin.xlane.f32.xlu0 %v2070
        %v2072 = vpop.xlane.xlu0 %2071
        %v2073 = vcvt.f32.s32 %v2072
        %v2074 = vcvt.f32.s32 %v2068
        %v2075 = vshll.u32 %v2074, 16
        %v2076 = vadd.s32 %v2075, %v2073
        %v2077 = vand.u32 %v1805, 65535
        %v2078 = vshra.s32 %v1805, 16
        %v2079 = vcvt.s32.f32 %v2077
        %v2080 = vcvt.s32.f32 %v2078
        %2081 = vmin.xlane.f32.xlu0 %v2080
        %v2082 = vpop.xlane.xlu0 %2081
        %vm2083 = vcmp.eq.f32.partialorder %v2080, %v2082
        %v2084 = vsel %vm2083, %v2079, inf
        %2085 = vmin.xlane.f32.xlu0 %v2084
        %v2086 = vpop.xlane.xlu0 %2085
        %v2087 = vcvt.f32.s32 %v2086
        %v2088 = vcvt.f32.s32 %v2082
        %v2089 = vshll.u32 %v2088, 16
        %v2090 = vadd.s32 %v2089, %v2087
        %v2091 = vand.u32 %v1806, 65535
        %v2092 = vshra.s32 %v1806, 16
        %v2093 = vcvt.s32.f32 %v2091
        %v2094 = vcvt.s32.f32 %v2092
        %2095 = vmin.xlane.f32.xlu0 %v2094
        %v2096 = vpop.xlane.xlu0 %2095
        %vm2097 = vcmp.eq.f32.partialorder %v2094, %v2096
        %v2098 = vsel %vm2097, %v2093, inf
        %2099 = vmin.xlane.f32.xlu0 %v2098
        %v2100 = vpop.xlane.xlu0 %2099
        %v2101 = vcvt.f32.s32 %v2100
        %v2102 = vcvt.f32.s32 %v2096
        %v2103 = vshll.u32 %v2102, 16
        %v2104 = vadd.s32 %v2103, %v2101
        %v2105 = vand.u32 %v1807, 65535
        %v2106 = vshra.s32 %v1807, 16
        %v2107 = vcvt.s32.f32 %v2105
        %v2108 = vcvt.s32.f32 %v2106
        %2109 = vmin.xlane.f32.xlu0 %v2108
        %v2110 = vpop.xlane.xlu0 %2109
        %vm2111 = vcmp.eq.f32.partialorder %v2108, %v2110
        %v2112 = vsel %vm2111, %v2107, inf
        %2113 = vmin.xlane.f32.xlu0 %v2112
        %v2114 = vpop.xlane.xlu0 %2113
        %v2115 = vcvt.f32.s32 %v2114
        %v2116 = vcvt.f32.s32 %v2110
        %v2117 = vshll.u32 %v2116, 16
        %v2118 = vadd.s32 %v2117, %v2115
        %v2119 = vand.u32 %v1808, 65535
        %v2120 = vshra.s32 %v1808, 16
        %v2121 = vcvt.s32.f32 %v2119
        %v2122 = vcvt.s32.f32 %v2120
        %2123 = vmin.xlane.f32.xlu0 %v2122
        %v2124 = vpop.xlane.xlu0 %2123
        %vm2125 = vcmp.eq.f32.partialorder %v2122, %v2124
        %v2126 = vsel %vm2125, %v2121, inf
        %2127 = vmin.xlane.f32.xlu0 %v2126
        %v2128 = vpop.xlane.xlu0 %2127
        %v2129 = vcvt.f32.s32 %v2128
        %v2130 = vcvt.f32.s32 %v2124
        %v2131 = vshll.u32 %v2130, 16
        %v2132 = vadd.s32 %v2131, %v2129
        %v2133 = vand.u32 %v1809, 65535
        %v2134 = vshra.s32 %v1809, 16
        %v2135 = vcvt.s32.f32 %v2133
        %v2136 = vcvt.s32.f32 %v2134
        %2137 = vmin.xlane.f32.xlu0 %v2136
        %v2138 = vpop.xlane.xlu0 %2137
        %vm2139 = vcmp.eq.f32.partialorder %v2136, %v2138
        %v2140 = vsel %vm2139, %v2135, inf
        %2141 = vmin.xlane.f32.xlu0 %v2140
        %v2142 = vpop.xlane.xlu0 %2141
        %v2143 = vcvt.f32.s32 %v2142
        %v2144 = vcvt.f32.s32 %v2138
        %v2145 = vshll.u32 %v2144, 16
        %v2146 = vadd.s32 %v2145, %v2143
        %v2147 = vand.u32 %v1810, 65535
        %v2148 = vshra.s32 %v1810, 16
        %v2149 = vcvt.s32.f32 %v2147
        %v2150 = vcvt.s32.f32 %v2148
        %2151 = vmin.xlane.f32.xlu0 %v2150
        %v2152 = vpop.xlane.xlu0 %2151
        %vm2153 = vcmp.eq.f32.partialorder %v2150, %v2152
        %v2154 = vsel %vm2153, %v2149, inf
        %2155 = vmin.xlane.f32.xlu0 %v2154
        %v2156 = vpop.xlane.xlu0 %2155
        %v2157 = vcvt.f32.s32 %v2156
        %v2158 = vcvt.f32.s32 %v2152
        %v2159 = vshll.u32 %v2158, 16
        %v2160 = vadd.s32 %v2159, %v2157
        %v2161 = vand.u32 %v1811, 65535
        %v2162 = vshra.s32 %v1811, 16
        %v2163 = vcvt.s32.f32 %v2161
        %v2164 = vcvt.s32.f32 %v2162
        %2165 = vmin.xlane.f32.xlu0 %v2164
        %v2166 = vpop.xlane.xlu0 %2165
        %vm2167 = vcmp.eq.f32.partialorder %v2164, %v2166
        %v2168 = vsel %vm2167, %v2163, inf
        %2169 = vmin.xlane.f32.xlu0 %v2168
        %v2170 = vpop.xlane.xlu0 %2169
        %v2171 = vcvt.f32.s32 %v2170
        %v2172 = vcvt.f32.s32 %v2166
        %v2173 = vshll.u32 %v2172, 16
        %v2174 = vadd.s32 %v2173, %v2171
        %v2175 = vand.u32 %v1812, 65535
        %v2176 = vshra.s32 %v1812, 16
        %v2177 = vcvt.s32.f32 %v2175
        %v2178 = vcvt.s32.f32 %v2176
        %2179 = vmin.xlane.f32.xlu0 %v2178
        %v2180 = vpop.xlane.xlu0 %2179
        %vm2181 = vcmp.eq.f32.partialorder %v2178, %v2180
        %v2182 = vsel %vm2181, %v2177, inf
        %2183 = vmin.xlane.f32.xlu0 %v2182
        %v2184 = vpop.xlane.xlu0 %2183
        %v2185 = vcvt.f32.s32 %v2184
        %v2186 = vcvt.f32.s32 %v2180
        %v2187 = vshll.u32 %v2186, 16
        %v2188 = vadd.s32 %v2187, %v2185
        %v2189 = vand.u32 %v1813, 65535
        %v2190 = vshra.s32 %v1813, 16
        %v2191 = vcvt.s32.f32 %v2189
        %v2192 = vcvt.s32.f32 %v2190
        %2193 = vmin.xlane.f32.xlu0 %v2192
        %v2194 = vpop.xlane.xlu0 %2193
        %vm2195 = vcmp.eq.f32.partialorder %v2192, %v2194
        %v2196 = vsel %vm2195, %v2191, inf
        %2197 = vmin.xlane.f32.xlu0 %v2196
        %v2198 = vpop.xlane.xlu0 %2197
        %v2199 = vcvt.f32.s32 %v2198
        %v2200 = vcvt.f32.s32 %v2194
        %v2201 = vshll.u32 %v2200, 16
        %v2202 = vadd.s32 %v2201, %v2199
        %v2203 = vand.u32 %v1814, 65535
        %v2204 = vshra.s32 %v1814, 16
        %v2205 = vcvt.s32.f32 %v2203
        %v2206 = vcvt.s32.f32 %v2204
        %2207 = vmin.xlane.f32.xlu0 %v2206
        %v2208 = vpop.xlane.xlu0 %2207
        %vm2209 = vcmp.eq.f32.partialorder %v2206, %v2208
        %v2210 = vsel %vm2209, %v2205, inf
        %2211 = vmin.xlane.f32.xlu0 %v2210
        %v2212 = vpop.xlane.xlu0 %2211
        %v2213 = vcvt.f32.s32 %v2212
        %v2214 = vcvt.f32.s32 %v2208
        %v2215 = vshll.u32 %v2214, 16
        %v2216 = vadd.s32 %v2215, %v2213
        %v2217 = vand.u32 %v1815, 65535
        %v2218 = vshra.s32 %v1815, 16
        %v2219 = vcvt.s32.f32 %v2217
        %v2220 = vcvt.s32.f32 %v2218
        %2221 = vmin.xlane.f32.xlu0 %v2220
        %v2222 = vpop.xlane.xlu0 %2221
        %vm2223 = vcmp.eq.f32.partialorder %v2220, %v2222
        %v2224 = vsel %vm2223, %v2219, inf
        %2225 = vmin.xlane.f32.xlu0 %v2224
        %v2226 = vpop.xlane.xlu0 %2225
        %v2227 = vcvt.f32.s32 %v2226
        %v2228 = vcvt.f32.s32 %v2222
        %v2229 = vshll.u32 %v2228, 16
        %v2230 = vadd.s32 %v2229, %v2227
        %v2231 = vand.u32 %v1816, 65535
        %v2232 = vshra.s32 %v1816, 16
        %v2233 = vcvt.s32.f32 %v2231
        %v2234 = vcvt.s32.f32 %v2232
        %2235 = vmin.xlane.f32.xlu0 %v2234
        %v2236 = vpop.xlane.xlu0 %2235
        %vm2237 = vcmp.eq.f32.partialorder %v2234, %v2236
        %v2238 = vsel %vm2237, %v2233, inf
        %2239 = vmin.xlane.f32.xlu0 %v2238
        %v2240 = vpop.xlane.xlu0 %2239
        %v2241 = vcvt.f32.s32 %v2240
        %v2242 = vcvt.f32.s32 %v2236
        %v2243 = vshll.u32 %v2242, 16
        %v2244 = vadd.s32 %v2243, %v2241
        %v2245 = vand.u32 %v1817, 65535
        %v2246 = vshra.s32 %v1817, 16
        %v2247 = vcvt.s32.f32 %v2245
        %v2248 = vcvt.s32.f32 %v2246
        %2249 = vmin.xlane.f32.xlu0 %v2248
        %v2250 = vpop.xlane.xlu0 %2249
        %vm2251 = vcmp.eq.f32.partialorder %v2248, %v2250
        %v2252 = vsel %vm2251, %v2247, inf
        %2253 = vmin.xlane.f32.xlu0 %v2252
        %v2254 = vpop.xlane.xlu0 %2253
        %v2255 = vcvt.f32.s32 %v2254
        %v2256 = vcvt.f32.s32 %v2250
        %v2257 = vshll.u32 %v2256, 16
        %v2258 = vadd.s32 %v2257, %v2255
        %v2259 = vand.u32 %v1818, 65535
        %v2260 = vshra.s32 %v1818, 16
        %v2261 = vcvt.s32.f32 %v2259
        %v2262 = vcvt.s32.f32 %v2260
        %2263 = vmin.xlane.f32.xlu0 %v2262
        %v2264 = vpop.xlane.xlu0 %2263
        %vm2265 = vcmp.eq.f32.partialorder %v2262, %v2264
        %v2266 = vsel %vm2265, %v2261, inf
        %2267 = vmin.xlane.f32.xlu0 %v2266
        %v2268 = vpop.xlane.xlu0 %2267
        %v2269 = vcvt.f32.s32 %v2268
        %v2270 = vcvt.f32.s32 %v2264
        %v2271 = vshll.u32 %v2270, 16
        %v2272 = vadd.s32 %v2271, %v2269
        %v2273 = vand.u32 %v1819, 65535
        %v2274 = vshra.s32 %v1819, 16
        %v2275 = vcvt.s32.f32 %v2273
        %v2276 = vcvt.s32.f32 %v2274
        %2277 = vmin.xlane.f32.xlu0 %v2276
        %v2278 = vpop.xlane.xlu0 %2277
        %vm2279 = vcmp.eq.f32.partialorder %v2276, %v2278
        %v2280 = vsel %vm2279, %v2275, inf
        %2281 = vmin.xlane.f32.xlu0 %v2280
        %v2282 = vpop.xlane.xlu0 %2281
        %v2283 = vcvt.f32.s32 %v2282
        %v2284 = vcvt.f32.s32 %v2278
        %v2285 = vshll.u32 %v2284, 16
        %v2286 = vadd.s32 %v2285, %v2283
        %v2287 = vand.u32 %v1820, 65535
        %v2288 = vshra.s32 %v1820, 16
        %v2289 = vcvt.s32.f32 %v2287
        %v2290 = vcvt.s32.f32 %v2288
        %2291 = vmin.xlane.f32.xlu0 %v2290
        %v2292 = vpop.xlane.xlu0 %2291
        %vm2293 = vcmp.eq.f32.partialorder %v2290, %v2292
        %v2294 = vsel %vm2293, %v2289, inf
        %2295 = vmin.xlane.f32.xlu0 %v2294
        %v2296 = vpop.xlane.xlu0 %2295
        %v2297 = vcvt.f32.s32 %v2296
        %v2298 = vcvt.f32.s32 %v2292
        %v2299 = vshll.u32 %v2298, 16
        %v2300 = vadd.s32 %v2299, %v2297
        %v2301 = vand.u32 %v1821, 65535
        %v2302 = vshra.s32 %v1821, 16
        %v2303 = vcvt.s32.f32 %v2301
        %v2304 = vcvt.s32.f32 %v2302
        %2305 = vmin.xlane.f32.xlu0 %v2304
        %v2306 = vpop.xlane.xlu0 %2305
        %vm2307 = vcmp.eq.f32.partialorder %v2304, %v2306
        %v2308 = vsel %vm2307, %v2303, inf
        %2309 = vmin.xlane.f32.xlu0 %v2308
        %v2310 = vpop.xlane.xlu0 %2309
        %v2311 = vcvt.f32.s32 %v2310
        %v2312 = vcvt.f32.s32 %v2306
        %v2313 = vshll.u32 %v2312, 16
        %v2314 = vadd.s32 %v2313, %v2311
        %v2315 = vand.u32 %v1822, 65535
        %v2316 = vshra.s32 %v1822, 16
        %v2317 = vcvt.s32.f32 %v2315
        %v2318 = vcvt.s32.f32 %v2316
        %2319 = vmin.xlane.f32.xlu0 %v2318
        %v2320 = vpop.xlane.xlu0 %2319
        %vm2321 = vcmp.eq.f32.partialorder %v2318, %v2320
        %v2322 = vsel %vm2321, %v2317, inf
        %2323 = vmin.xlane.f32.xlu0 %v2322
        %v2324 = vpop.xlane.xlu0 %2323
        %v2325 = vcvt.f32.s32 %v2324
        %v2326 = vcvt.f32.s32 %v2320
        %v2327 = vshll.u32 %v2326, 16
        %v2328 = vadd.s32 %v2327, %v2325
        %v2329 = vand.u32 %v1823, 65535
        %v2330 = vshra.s32 %v1823, 16
        %v2331 = vcvt.s32.f32 %v2329
        %v2332 = vcvt.s32.f32 %v2330
        %2333 = vmin.xlane.f32.xlu0 %v2332
        %v2334 = vpop.xlane.xlu0 %2333
        %vm2335 = vcmp.eq.f32.partialorder %v2332, %v2334
        %v2336 = vsel %vm2335, %v2331, inf
        %2337 = vmin.xlane.f32.xlu0 %v2336
        %v2338 = vpop.xlane.xlu0 %2337
        %v2339 = vcvt.f32.s32 %v2338
        %v2340 = vcvt.f32.s32 %v2334
        %v2341 = vshll.u32 %v2340, 16
        %v2342 = vadd.s32 %v2341, %v2339
        %v2343 = vand.u32 %v1824, 65535
        %v2344 = vshra.s32 %v1824, 16
        %v2345 = vcvt.s32.f32 %v2343
        %v2346 = vcvt.s32.f32 %v2344
        %2347 = vmin.xlane.f32.xlu0 %v2346
        %v2348 = vpop.xlane.xlu0 %2347
        %vm2349 = vcmp.eq.f32.partialorder %v2346, %v2348
        %v2350 = vsel %vm2349, %v2345, inf
        %2351 = vmin.xlane.f32.xlu0 %v2350
        %v2352 = vpop.xlane.xlu0 %2351
        %v2353 = vcvt.f32.s32 %v2352
        %v2354 = vcvt.f32.s32 %v2348
        %v2355 = vshll.u32 %v2354, 16
        %v2356 = vadd.s32 %v2355, %v2353
        %v2357 = vand.u32 %v1825, 65535
        %v2358 = vshra.s32 %v1825, 16
        %v2359 = vcvt.s32.f32 %v2357
        %v2360 = vcvt.s32.f32 %v2358
        %2361 = vmin.xlane.f32.xlu0 %v2360
        %v2362 = vpop.xlane.xlu0 %2361
        %vm2363 = vcmp.eq.f32.partialorder %v2360, %v2362
        %v2364 = vsel %vm2363, %v2359, inf
        %2365 = vmin.xlane.f32.xlu0 %v2364
        %v2366 = vpop.xlane.xlu0 %2365
        %v2367 = vcvt.f32.s32 %v2366
        %v2368 = vcvt.f32.s32 %v2362
        %v2369 = vshll.u32 %v2368, 16
        %v2370 = vadd.s32 %v2369, %v2367
        %v2371 = vand.u32 %v1826, 65535
        %v2372 = vshra.s32 %v1826, 16
        %v2373 = vcvt.s32.f32 %v2371
        %v2374 = vcvt.s32.f32 %v2372
        %2375 = vmin.xlane.f32.xlu0 %v2374
        %v2376 = vpop.xlane.xlu0 %2375
        %vm2377 = vcmp.eq.f32.partialorder %v2374, %v2376
        %v2378 = vsel %vm2377, %v2373, inf
        %2379 = vmin.xlane.f32.xlu0 %v2378
        %v2380 = vpop.xlane.xlu0 %2379
        %v2381 = vcvt.f32.s32 %v2380
        %v2382 = vcvt.f32.s32 %v2376
        %v2383 = vshll.u32 %v2382, 16
        %v2384 = vadd.s32 %v2383, %v2381
        %v2385 = vand.u32 %v1827, 65535
        %v2386 = vshra.s32 %v1827, 16
        %v2387 = vcvt.s32.f32 %v2385
        %v2388 = vcvt.s32.f32 %v2386
        %2389 = vmin.xlane.f32.xlu0 %v2388
        %v2390 = vpop.xlane.xlu0 %2389
        %vm2391 = vcmp.eq.f32.partialorder %v2388, %v2390
        %v2392 = vsel %vm2391, %v2387, inf
        %2393 = vmin.xlane.f32.xlu0 %v2392
        %v2394 = vpop.xlane.xlu0 %2393
        %v2395 = vcvt.f32.s32 %v2394
        %v2396 = vcvt.f32.s32 %v2390
        %v2397 = vshll.u32 %v2396, 16
        %v2398 = vadd.s32 %v2397, %v2395
        %v2399 = vand.u32 %v1828, 65535
        %v2400 = vshra.s32 %v1828, 16
        %v2401 = vcvt.s32.f32 %v2399
        %v2402 = vcvt.s32.f32 %v2400
        %2403 = vmin.xlane.f32.xlu0 %v2402
        %v2404 = vpop.xlane.xlu0 %2403
        %vm2405 = vcmp.eq.f32.partialorder %v2402, %v2404
        %v2406 = vsel %vm2405, %v2401, inf
        %2407 = vmin.xlane.f32.xlu0 %v2406
        %v2408 = vpop.xlane.xlu0 %2407
        %v2409 = vcvt.f32.s32 %v2408
        %v2410 = vcvt.f32.s32 %v2404
        %v2411 = vshll.u32 %v2410, 16
        %v2412 = vadd.s32 %v2411, %v2409
        %v2413 = vand.u32 %v1829, 65535
        %v2414 = vshra.s32 %v1829, 16
        %v2415 = vcvt.s32.f32 %v2413
        %v2416 = vcvt.s32.f32 %v2414
        %2417 = vmin.xlane.f32.xlu0 %v2416
        %v2418 = vpop.xlane.xlu0 %2417
        %vm2419 = vcmp.eq.f32.partialorder %v2416, %v2418
        %v2420 = vsel %vm2419, %v2415, inf
        %2421 = vmin.xlane.f32.xlu0 %v2420
        %v2422 = vpop.xlane.xlu0 %2421
        %v2423 = vcvt.f32.s32 %v2422
        %v2424 = vcvt.f32.s32 %v2418
        %v2425 = vshll.u32 %v2424, 16
        %v2426 = vadd.s32 %v2425, %v2423
        %v2427 = vand.u32 %v1830, 65535
        %v2428 = vshra.s32 %v1830, 16
        %v2429 = vcvt.s32.f32 %v2427
        %v2430 = vcvt.s32.f32 %v2428
        %2431 = vmin.xlane.f32.xlu0 %v2430
        %v2432 = vpop.xlane.xlu0 %2431
        %vm2433 = vcmp.eq.f32.partialorder %v2430, %v2432
        %v2434 = vsel %vm2433, %v2429, inf
        %2435 = vmin.xlane.f32.xlu0 %v2434
        %v2436 = vpop.xlane.xlu0 %2435
        %v2437 = vcvt.f32.s32 %v2436
        %v2438 = vcvt.f32.s32 %v2432
        %v2439 = vshll.u32 %v2438, 16
        %v2440 = vadd.s32 %v2439, %v2437
        %v2441 = vand.u32 %v1831, 65535
        %v2442 = vshra.s32 %v1831, 16
        %v2443 = vcvt.s32.f32 %v2441
        %v2444 = vcvt.s32.f32 %v2442
        %2445 = vmin.xlane.f32.xlu0 %v2444
        %v2446 = vpop.xlane.xlu0 %2445
        %vm2447 = vcmp.eq.f32.partialorder %v2444, %v2446
        %v2448 = vsel %vm2447, %v2443, inf
        %2449 = vmin.xlane.f32.xlu0 %v2448
        %v2450 = vpop.xlane.xlu0 %2449
        %v2451 = vcvt.f32.s32 %v2450
        %v2452 = vcvt.f32.s32 %v2446
        %v2453 = vshll.u32 %v2452, 16
        %v2454 = vadd.s32 %v2453, %v2451
        %v2455 = vand.u32 %v1832, 65535
        %v2456 = vshra.s32 %v1832, 16
        %v2457 = vcvt.s32.f32 %v2455
        %v2458 = vcvt.s32.f32 %v2456
        %2459 = vmin.xlane.f32.xlu0 %v2458
        %v2460 = vpop.xlane.xlu0 %2459
        %vm2461 = vcmp.eq.f32.partialorder %v2458, %v2460
        %v2462 = vsel %vm2461, %v2457, inf
        %2463 = vmin.xlane.f32.xlu0 %v2462
        %v2464 = vpop.xlane.xlu0 %2463
        %v2465 = vcvt.f32.s32 %v2464
        %v2466 = vcvt.f32.s32 %v2460
        %v2467 = vshll.u32 %v2466, 16
        %v2468 = vadd.s32 %v2467, %v2465
        %v2469 = vand.u32 %v1833, 65535
        %v2470 = vshra.s32 %v1833, 16
        %v2471 = vcvt.s32.f32 %v2469
        %v2472 = vcvt.s32.f32 %v2470
        %2473 = vmin.xlane.f32.xlu0 %v2472
        %v2474 = vpop.xlane.xlu0 %2473
        %vm2475 = vcmp.eq.f32.partialorder %v2472, %v2474
        %v2476 = vsel %vm2475, %v2471, inf
        %2477 = vmin.xlane.f32.xlu0 %v2476
        %v2478 = vpop.xlane.xlu0 %2477
        %v2479 = vcvt.f32.s32 %v2478
        %v2480 = vcvt.f32.s32 %v2474
        %v2481 = vshll.u32 %v2480, 16
        %v2482 = vadd.s32 %v2481, %v2479
        %v2483 = vand.u32 %v1834, 65535
        %v2484 = vshra.s32 %v1834, 16
        %v2485 = vcvt.s32.f32 %v2483
        %v2486 = vcvt.s32.f32 %v2484
        %2487 = vmin.xlane.f32.xlu0 %v2486
        %v2488 = vpop.xlane.xlu0 %2487
        %vm2489 = vcmp.eq.f32.partialorder %v2486, %v2488
        %v2490 = vsel %vm2489, %v2485, inf
        %2491 = vmin.xlane.f32.xlu0 %v2490
        %v2492 = vpop.xlane.xlu0 %2491
        %v2493 = vcvt.f32.s32 %v2492
        %v2494 = vcvt.f32.s32 %v2488
        %v2495 = vshll.u32 %v2494, 16
        %v2496 = vadd.s32 %v2495, %v2493
        %v2497 = vand.u32 %v1835, 65535
        %v2498 = vshra.s32 %v1835, 16
        %v2499 = vcvt.s32.f32 %v2497
        %v2500 = vcvt.s32.f32 %v2498
        %2501 = vmin.xlane.f32.xlu0 %v2500
        %v2502 = vpop.xlane.xlu0 %2501
        %vm2503 = vcmp.eq.f32.partialorder %v2500, %v2502
        %v2504 = vsel %vm2503, %v2499, inf
        %2505 = vmin.xlane.f32.xlu0 %v2504
        %v2506 = vpop.xlane.xlu0 %2505
        %v2507 = vcvt.f32.s32 %v2506
        %v2508 = vcvt.f32.s32 %v2502
        %v2509 = vshll.u32 %v2508, 16
        %v2510 = vadd.s32 %v2509, %v2507
        %v2511 = vand.u32 %v1836, 65535
        %v2512 = vshra.s32 %v1836, 16
        %v2513 = vcvt.s32.f32 %v2511
        %v2514 = vcvt.s32.f32 %v2512
        %2515 = vmin.xlane.f32.xlu0 %v2514
        %v2516 = vpop.xlane.xlu0 %2515
        %vm2517 = vcmp.eq.f32.partialorder %v2514, %v2516
        %v2518 = vsel %vm2517, %v2513, inf
        %2519 = vmin.xlane.f32.xlu0 %v2518
        %v2520 = vpop.xlane.xlu0 %2519
        %v2521 = vcvt.f32.s32 %v2520
        %v2522 = vcvt.f32.s32 %v2516
        %v2523 = vshll.u32 %v2522, 16
        %v2524 = vadd.s32 %v2523, %v2521
        %v2525 = vand.u32 %v1837, 65535
        %v2526 = vshra.s32 %v1837, 16
        %v2527 = vcvt.s32.f32 %v2525
        %v2528 = vcvt.s32.f32 %v2526
        %2529 = vmin.xlane.f32.xlu0 %v2528
        %v2530 = vpop.xlane.xlu0 %2529
        %vm2531 = vcmp.eq.f32.partialorder %v2528, %v2530
        %v2532 = vsel %vm2531, %v2527, inf
        %2533 = vmin.xlane.f32.xlu0 %v2532
        %v2534 = vpop.xlane.xlu0 %2533
        %v2535 = vcvt.f32.s32 %v2534
        %v2536 = vcvt.f32.s32 %v2530
        %v2537 = vshll.u32 %v2536, 16
        %v2538 = vadd.s32 %v2537, %v2535
        %v2539 = vand.u32 %v1838, 65535
        %v2540 = vshra.s32 %v1838, 16
        %v2541 = vcvt.s32.f32 %v2539
        %v2542 = vcvt.s32.f32 %v2540
        %2543 = vmin.xlane.f32.xlu0 %v2542
        %v2544 = vpop.xlane.xlu0 %2543
        %vm2545 = vcmp.eq.f32.partialorder %v2542, %v2544
        %v2546 = vsel %vm2545, %v2541, inf
        %2547 = vmin.xlane.f32.xlu0 %v2546
        %v2548 = vpop.xlane.xlu0 %2547
        %v2549 = vcvt.f32.s32 %v2548
        %v2550 = vcvt.f32.s32 %v2544
        %v2551 = vshll.u32 %v2550, 16
        %v2552 = vadd.s32 %v2551, %v2549
        %v2553 = vand.u32 %v1839, 65535
        %v2554 = vshra.s32 %v1839, 16
        %v2555 = vcvt.s32.f32 %v2553
        %v2556 = vcvt.s32.f32 %v2554
        %2557 = vmin.xlane.f32.xlu0 %v2556
        %v2558 = vpop.xlane.xlu0 %2557
        %vm2559 = vcmp.eq.f32.partialorder %v2556, %v2558
        %v2560 = vsel %vm2559, %v2555, inf
        %2561 = vmin.xlane.f32.xlu0 %v2560
        %v2562 = vpop.xlane.xlu0 %2561
        %v2563 = vcvt.f32.s32 %v2562
        %v2564 = vcvt.f32.s32 %v2558
        %v2565 = vshll.u32 %v2564, 16
        %v2566 = vadd.s32 %v2565, %v2563
        %v2567 = vand.u32 %v1840, 65535
        %v2568 = vshra.s32 %v1840, 16
        %v2569 = vcvt.s32.f32 %v2567
        %v2570 = vcvt.s32.f32 %v2568
        %2571 = vmin.xlane.f32.xlu0 %v2570
        %v2572 = vpop.xlane.xlu0 %2571
        %vm2573 = vcmp.eq.f32.partialorder %v2570, %v2572
        %v2574 = vsel %vm2573, %v2569, inf
        %2575 = vmin.xlane.f32.xlu0 %v2574
        %v2576 = vpop.xlane.xlu0 %2575
        %v2577 = vcvt.f32.s32 %v2576
        %v2578 = vcvt.f32.s32 %v2572
        %v2579 = vshll.u32 %v2578, 16
        %v2580 = vadd.s32 %v2579, %v2577
        %v2581 = vand.u32 %v1841, 65535
        %v2582 = vshra.s32 %v1841, 16
        %v2583 = vcvt.s32.f32 %v2581
        %v2584 = vcvt.s32.f32 %v2582
        %2585 = vmin.xlane.f32.xlu0 %v2584
        %v2586 = vpop.xlane.xlu0 %2585
        %vm2587 = vcmp.eq.f32.partialorder %v2584, %v2586
        %v2588 = vsel %vm2587, %v2583, inf
        %2589 = vmin.xlane.f32.xlu0 %v2588
        %v2590 = vpop.xlane.xlu0 %2589
        %v2591 = vcvt.f32.s32 %v2590
        %v2592 = vcvt.f32.s32 %v2586
        %v2593 = vshll.u32 %v2592, 16
        %v2594 = vadd.s32 %v2593, %v2591
        %v2595 = vand.u32 %v1842, 65535
        %v2596 = vshra.s32 %v1842, 16
        %v2597 = vcvt.s32.f32 %v2595
        %v2598 = vcvt.s32.f32 %v2596
        %2599 = vmin.xlane.f32.xlu0 %v2598
        %v2600 = vpop.xlane.xlu0 %2599
        %vm2601 = vcmp.eq.f32.partialorder %v2598, %v2600
        %v2602 = vsel %vm2601, %v2597, inf
        %2603 = vmin.xlane.f32.xlu0 %v2602
        %v2604 = vpop.xlane.xlu0 %2603
        %v2605 = vcvt.f32.s32 %v2604
        %v2606 = vcvt.f32.s32 %v2600
        %v2607 = vshll.u32 %v2606, 16
        %v2608 = vadd.s32 %v2607, %v2605
        %v2609 = vand.u32 %v1843, 65535
        %v2610 = vshra.s32 %v1843, 16
        %v2611 = vcvt.s32.f32 %v2609
        %v2612 = vcvt.s32.f32 %v2610
        %2613 = vmin.xlane.f32.xlu0 %v2612
        %v2614 = vpop.xlane.xlu0 %2613
        %vm2615 = vcmp.eq.f32.partialorder %v2612, %v2614
        %v2616 = vsel %vm2615, %v2611, inf
        %2617 = vmin.xlane.f32.xlu0 %v2616
        %v2618 = vpop.xlane.xlu0 %2617
        %v2619 = vcvt.f32.s32 %v2618
        %v2620 = vcvt.f32.s32 %v2614
        %v2621 = vshll.u32 %v2620, 16
        %v2622 = vadd.s32 %v2621, %v2619
        %v2623 = vand.u32 %v1844, 65535
        %v2624 = vshra.s32 %v1844, 16
        %v2625 = vcvt.s32.f32 %v2623
        %v2626 = vcvt.s32.f32 %v2624
        %2627 = vmin.xlane.f32.xlu0 %v2626
        %v2628 = vpop.xlane.xlu0 %2627
        %vm2629 = vcmp.eq.f32.partialorder %v2626, %v2628
        %v2630 = vsel %vm2629, %v2625, inf
        %2631 = vmin.xlane.f32.xlu0 %v2630
        %v2632 = vpop.xlane.xlu0 %2631
        %v2633 = vcvt.f32.s32 %v2632
        %v2634 = vcvt.f32.s32 %v2628
        %v2635 = vshll.u32 %v2634, 16
        %v2636 = vadd.s32 %v2635, %v2633
        %v2637 = vand.u32 %v1845, 65535
        %v2638 = vshra.s32 %v1845, 16
        %v2639 = vcvt.s32.f32 %v2637
        %v2640 = vcvt.s32.f32 %v2638
        %2641 = vmin.xlane.f32.xlu0 %v2640
        %v2642 = vpop.xlane.xlu0 %2641
        %vm2643 = vcmp.eq.f32.partialorder %v2640, %v2642
        %v2644 = vsel %vm2643, %v2639, inf
        %2645 = vmin.xlane.f32.xlu0 %v2644
        %v2646 = vpop.xlane.xlu0 %2645
        %v2647 = vcvt.f32.s32 %v2646
        %v2648 = vcvt.f32.s32 %v2642
        %v2649 = vshll.u32 %v2648, 16
        %v2650 = vadd.s32 %v2649, %v2647
        %v2651 = vand.u32 %v1846, 65535
        %v2652 = vshra.s32 %v1846, 16
        %v2653 = vcvt.s32.f32 %v2651
        %v2654 = vcvt.s32.f32 %v2652
        %2655 = vmin.xlane.f32.xlu0 %v2654
        %v2656 = vpop.xlane.xlu0 %2655
        %vm2657 = vcmp.eq.f32.partialorder %v2654, %v2656
        %v2658 = vsel %vm2657, %v2653, inf
        %2659 = vmin.xlane.f32.xlu0 %v2658
        %v2660 = vpop.xlane.xlu0 %2659
        %v2661 = vcvt.f32.s32 %v2660
        %v2662 = vcvt.f32.s32 %v2656
        %v2663 = vshll.u32 %v2662, 16
        %v2664 = vadd.s32 %v2663, %v2661
        %v2665 = vand.u32 %v1847, 65535
        %v2666 = vshra.s32 %v1847, 16
        %v2667 = vcvt.s32.f32 %v2665
        %v2668 = vcvt.s32.f32 %v2666
        %2669 = vmin.xlane.f32.xlu0 %v2668
        %v2670 = vpop.xlane.xlu0 %2669
        %vm2671 = vcmp.eq.f32.partialorder %v2668, %v2670
        %v2672 = vsel %vm2671, %v2667, inf
        %2673 = vmin.xlane.f32.xlu0 %v2672
        %v2674 = vpop.xlane.xlu0 %2673
        %v2675 = vcvt.f32.s32 %v2674
        %v2676 = vcvt.f32.s32 %v2670
        %v2677 = vshll.u32 %v2676, 16
        %v2678 = vadd.s32 %v2677, %v2675
        %v2679 = vand.u32 %v1848, 65535
        %v2680 = vshra.s32 %v1848, 16
        %v2681 = vcvt.s32.f32 %v2679
        %v2682 = vcvt.s32.f32 %v2680
        %2683 = vmin.xlane.f32.xlu0 %v2682
        %v2684 = vpop.xlane.xlu0 %2683
        %vm2685 = vcmp.eq.f32.partialorder %v2682, %v2684
        %v2686 = vsel %vm2685, %v2681, inf
        %2687 = vmin.xlane.f32.xlu0 %v2686
        %v2688 = vpop.xlane.xlu0 %2687
        %v2689 = vcvt.f32.s32 %v2688
        %v2690 = vcvt.f32.s32 %v2684
        %v2691 = vshll.u32 %v2690, 16
        %v2692 = vadd.s32 %v2691, %v2689
        %v2693 = vand.u32 %v1849, 65535
        %v2694 = vshra.s32 %v1849, 16
        %v2695 = vcvt.s32.f32 %v2693
        %v2696 = vcvt.s32.f32 %v2694
        %2697 = vmin.xlane.f32.xlu0 %v2696
        %v2698 = vpop.xlane.xlu0 %2697
        %vm2699 = vcmp.eq.f32.partialorder %v2696, %v2698
        %v2700 = vsel %vm2699, %v2695, inf
        %2701 = vmin.xlane.f32.xlu0 %v2700
        %v2702 = vpop.xlane.xlu0 %2701
        %v2703 = vcvt.f32.s32 %v2702
        %v2704 = vcvt.f32.s32 %v2698
        %v2705 = vshll.u32 %v2704, 16
        %v2706 = vadd.s32 %v2705, %v2703
        %v2707 = vand.u32 %v1850, 65535
        %v2708 = vshra.s32 %v1850, 16
        %v2709 = vcvt.s32.f32 %v2707
        %v2710 = vcvt.s32.f32 %v2708
        %2711 = vmin.xlane.f32.xlu0 %v2710
        %v2712 = vpop.xlane.xlu0 %2711
        %vm2713 = vcmp.eq.f32.partialorder %v2710, %v2712
        %v2714 = vsel %vm2713, %v2709, inf
        %2715 = vmin.xlane.f32.xlu0 %v2714
        %v2716 = vpop.xlane.xlu0 %2715
        %v2717 = vcvt.f32.s32 %v2716
        %v2718 = vcvt.f32.s32 %v2712
        %v2719 = vshll.u32 %v2718, 16
        %v2720 = vadd.s32 %v2719, %v2717
        %v2721 = vand.u32 %v1851, 65535
        %v2722 = vshra.s32 %v1851, 16
        %v2723 = vcvt.s32.f32 %v2721
        %v2724 = vcvt.s32.f32 %v2722
        %2725 = vmin.xlane.f32.xlu0 %v2724
        %v2726 = vpop.xlane.xlu0 %2725
        %vm2727 = vcmp.eq.f32.partialorder %v2724, %v2726
        %v2728 = vsel %vm2727, %v2723, inf
        %2729 = vmin.xlane.f32.xlu0 %v2728
        %v2730 = vpop.xlane.xlu0 %2729
        %v2731 = vcvt.f32.s32 %v2730
        %v2732 = vcvt.f32.s32 %v2726
        %v2733 = vshll.u32 %v2732, 16
        %v2734 = vadd.s32 %v2733, %v2731
        %v2735 = vand.u32 %v1852, 65535
        %v2736 = vshra.s32 %v1852, 16
        %v2737 = vcvt.s32.f32 %v2735
        %v2738 = vcvt.s32.f32 %v2736
        %2739 = vmin.xlane.f32.xlu0 %v2738
        %v2740 = vpop.xlane.xlu0 %2739
        %vm2741 = vcmp.eq.f32.partialorder %v2738, %v2740
        %v2742 = vsel %vm2741, %v2737, inf
        %2743 = vmin.xlane.f32.xlu0 %v2742
        %v2744 = vpop.xlane.xlu0 %2743
        %v2745 = vcvt.f32.s32 %v2744
        %v2746 = vcvt.f32.s32 %v2740
        %v2747 = vshll.u32 %v2746, 16
        %v2748 = vadd.s32 %v2747, %v2745
        %v2749 = vmul.f32 %v1531, -1.0
        %v2750 = vmul.f32 %v1532, -1.0
        %v2751 = vmul.f32 %v1533, -1.0
        %v2752 = vmul.f32 %v1534, -1.0
        %v2753 = vmul.f32 %v1535, -1.0
        %v2754 = vmul.f32 %v1536, -1.0
        %v2755 = vmul.f32 %v1537, -1.0
        %v2756 = vmul.f32 %v1538, -1.0
        %v2757 = vmul.f32 %v1539, -1.0
        %v2758 = vmul.f32 %v1540, -1.0
        %v2759 = vmul.f32 %v1541, -1.0
        %v2760 = vmul.f32 %v1542, -1.0
        %v2761 = vmul.f32 %v1543, -1.0
        %v2762 = vmul.f32 %v1544, -1.0
        %v2763 = vmul.f32 %v1545, -1.0
        %v2764 = vmul.f32 %v1546, -1.0
        %v2765 = vmul.f32 %v1547, -1.0
        %v2766 = vmul.f32 %v1548, -1.0
        %v2767 = vmul.f32 %v1549, -1.0
        %v2768 = vmul.f32 %v1550, -1.0
        %v2769 = vmul.f32 %v1551, -1.0
        %v2770 = vmul.f32 %v1552, -1.0
        %v2771 = vmul.f32 %v1553, -1.0
        %v2772 = vmul.f32 %v1554, -1.0
        %v2773 = vmul.f32 %v1555, -1.0
        %v2774 = vmul.f32 %v1556, -1.0
        %v2775 = vmul.f32 %v1557, -1.0
        %v2776 = vmul.f32 %v1558, -1.0
        %v2777 = vmul.f32 %v1559, -1.0
        %v2778 = vmul.f32 %v1560, -1.0
        %v2779 = vmul.f32 %v1561, -1.0
        %v2780 = vmul.f32 %v1562, -1.0
        %v2781 = vmul.f32 %v1563, -1.0
        %v2782 = vmul.f32 %v1564, -1.0
        %v2783 = vmul.f32 %v1565, -1.0
        %v2784 = vmul.f32 %v1566, -1.0
        %v2785 = vmul.f32 %v1567, -1.0
        %v2786 = vmul.f32 %v1568, -1.0
        %v2787 = vmul.f32 %v1569, -1.0
        %v2788 = vmul.f32 %v1570, -1.0
        %v2789 = vmul.f32 %v1571, -1.0
        %v2790 = vmul.f32 %v1572, -1.0
        %v2791 = vmul.f32 %v1573, -1.0
        %v2792 = vmul.f32 %v1574, -1.0
        %v2793 = vmul.f32 %v1575, -1.0
        %v2794 = vmul.f32 %v1576, -1.0
        %v2795 = vmul.f32 %v1577, -1.0
        %v2796 = vmul.f32 %v1578, -1.0
        %v2797 = vmul.f32 %v1579, -1.0
        %v2798 = vmul.f32 %v1580, -1.0
        %v2799 = vmul.f32 %v1581, -1.0
        %v2800 = vmul.f32 %v1582, -1.0
        %v2801 = vmul.f32 %v1583, -1.0
        %v2802 = vmul.f32 %v1584, -1.0
        %v2803 = vmul.f32 %v1585, -1.0
        %v2804 = vmul.f32 %v1586, -1.0
        %v2805 = vmul.f32 %v1587, -1.0
        %v2806 = vmul.f32 %v1588, -1.0
        %v2807 = vmul.f32 %v1589, -1.0
        %v2808 = vmul.f32 %v1590, -1.0
        %v2809 = vmul.f32 %v1591, -1.0
        %v2810 = vmul.f32 %v1592, -1.0
        %v2811 = vmul.f32 %v1593, -1.0
        %v2812 = vmul.f32 %v1594, -1.0
        %2813 = vmax.xlane.f32.xlu0 %v2749
        %v2814 = vpop.xlane.xlu0 %2813
        %2815 = vmax.xlane.f32.xlu0 %v2750
        %v2816 = vpop.xlane.xlu0 %2815
        %2817 = vmax.xlane.f32.xlu0 %v2751
        %v2818 = vpop.xlane.xlu0 %2817
        %2819 = vmax.xlane.f32.xlu0 %v2752
        %v2820 = vpop.xlane.xlu0 %2819
        %2821 = vmax.xlane.f32.xlu0 %v2753
        %v2822 = vpop.xlane.xlu0 %2821
        %2823 = vmax.xlane.f32.xlu0 %v2754
        %v2824 = vpop.xlane.xlu0 %2823
        %2825 = vmax.xlane.f32.xlu0 %v2755
        %v2826 = vpop.xlane.xlu0 %2825
        %2827 = vmax.xlane.f32.xlu0 %v2756
        %v2828 = vpop.xlane.xlu0 %2827
        %2829 = vmax.xlane.f32.xlu0 %v2757
        %v2830 = vpop.xlane.xlu0 %2829
        %2831 = vmax.xlane.f32.xlu0 %v2758
        %v2832 = vpop.xlane.xlu0 %2831
        %2833 = vmax.xlane.f32.xlu0 %v2759
        %v2834 = vpop.xlane.xlu0 %2833
        %2835 = vmax.xlane.f32.xlu0 %v2760
        %v2836 = vpop.xlane.xlu0 %2835
        %2837 = vmax.xlane.f32.xlu0 %v2761
        %v2838 = vpop.xlane.xlu0 %2837
        %2839 = vmax.xlane.f32.xlu0 %v2762
        %v2840 = vpop.xlane.xlu0 %2839
        %2841 = vmax.xlane.f32.xlu0 %v2763
        %v2842 = vpop.xlane.xlu0 %2841
        %2843 = vmax.xlane.f32.xlu0 %v2764
        %v2844 = vpop.xlane.xlu0 %2843
        %2845 = vmax.xlane.f32.xlu0 %v2765
        %v2846 = vpop.xlane.xlu0 %2845
        %2847 = vmax.xlane.f32.xlu0 %v2766
        %v2848 = vpop.xlane.xlu0 %2847
        %2849 = vmax.xlane.f32.xlu0 %v2767
        %v2850 = vpop.xlane.xlu0 %2849
        %2851 = vmax.xlane.f32.xlu0 %v2768
        %v2852 = vpop.xlane.xlu0 %2851
        %2853 = vmax.xlane.f32.xlu0 %v2769
        %v2854 = vpop.xlane.xlu0 %2853
        %2855 = vmax.xlane.f32.xlu0 %v2770
        %v2856 = vpop.xlane.xlu0 %2855
        %2857 = vmax.xlane.f32.xlu0 %v2771
        %v2858 = vpop.xlane.xlu0 %2857
        %2859 = vmax.xlane.f32.xlu0 %v2772
        %v2860 = vpop.xlane.xlu0 %2859
        %2861 = vmax.xlane.f32.xlu0 %v2773
        %v2862 = vpop.xlane.xlu0 %2861
        %2863 = vmax.xlane.f32.xlu0 %v2774
        %v2864 = vpop.xlane.xlu0 %2863
        %2865 = vmax.xlane.f32.xlu0 %v2775
        %v2866 = vpop.xlane.xlu0 %2865
        %2867 = vmax.xlane.f32.xlu0 %v2776
        %v2868 = vpop.xlane.xlu0 %2867
        %2869 = vmax.xlane.f32.xlu0 %v2777
        %v2870 = vpop.xlane.xlu0 %2869
        %2871 = vmax.xlane.f32.xlu0 %v2778
        %v2872 = vpop.xlane.xlu0 %2871
        %2873 = vmax.xlane.f32.xlu0 %v2779
        %v2874 = vpop.xlane.xlu0 %2873
        %2875 = vmax.xlane.f32.xlu0 %v2780
        %v2876 = vpop.xlane.xlu0 %2875
        %2877 = vmax.xlane.f32.xlu0 %v2781
        %v2878 = vpop.xlane.xlu0 %2877
        %2879 = vmax.xlane.f32.xlu0 %v2782
        %v2880 = vpop.xlane.xlu0 %2879
        %2881 = vmax.xlane.f32.xlu0 %v2783
        %v2882 = vpop.xlane.xlu0 %2881
        %2883 = vmax.xlane.f32.xlu0 %v2784
        %v2884 = vpop.xlane.xlu0 %2883
        %2885 = vmax.xlane.f32.xlu0 %v2785
        %v2886 = vpop.xlane.xlu0 %2885
        %2887 = vmax.xlane.f32.xlu0 %v2786
        %v2888 = vpop.xlane.xlu0 %2887
        %2889 = vmax.xlane.f32.xlu0 %v2787
        %v2890 = vpop.xlane.xlu0 %2889
        %2891 = vmax.xlane.f32.xlu0 %v2788
        %v2892 = vpop.xlane.xlu0 %2891
        %2893 = vmax.xlane.f32.xlu0 %v2789
        %v2894 = vpop.xlane.xlu0 %2893
        %2895 = vmax.xlane.f32.xlu0 %v2790
        %v2896 = vpop.xlane.xlu0 %2895
        %2897 = vmax.xlane.f32.xlu0 %v2791
        %v2898 = vpop.xlane.xlu0 %2897
        %2899 = vmax.xlane.f32.xlu0 %v2792
        %v2900 = vpop.xlane.xlu0 %2899
        %2901 = vmax.xlane.f32.xlu0 %v2793
        %v2902 = vpop.xlane.xlu0 %2901
        %2903 = vmax.xlane.f32.xlu0 %v2794
        %v2904 = vpop.xlane.xlu0 %2903
        %2905 = vmax.xlane.f32.xlu0 %v2795
        %v2906 = vpop.xlane.xlu0 %2905
        %2907 = vmax.xlane.f32.xlu0 %v2796
        %v2908 = vpop.xlane.xlu0 %2907
        %2909 = vmax.xlane.f32.xlu0 %v2797
        %v2910 = vpop.xlane.xlu0 %2909
        %2911 = vmax.xlane.f32.xlu0 %v2798
        %v2912 = vpop.xlane.xlu0 %2911
        %2913 = vmax.xlane.f32.xlu0 %v2799
        %v2914 = vpop.xlane.xlu0 %2913
        %2915 = vmax.xlane.f32.xlu0 %v2800
        %v2916 = vpop.xlane.xlu0 %2915
        %2917 = vmax.xlane.f32.xlu0 %v2801
        %v2918 = vpop.xlane.xlu0 %2917
        %2919 = vmax.xlane.f32.xlu0 %v2802
        %v2920 = vpop.xlane.xlu0 %2919
        %2921 = vmax.xlane.f32.xlu0 %v2803
        %v2922 = vpop.xlane.xlu0 %2921
        %2923 = vmax.xlane.f32.xlu0 %v2804
        %v2924 = vpop.xlane.xlu0 %2923
        %2925 = vmax.xlane.f32.xlu0 %v2805
        %v2926 = vpop.xlane.xlu0 %2925
        %2927 = vmax.xlane.f32.xlu0 %v2806
        %v2928 = vpop.xlane.xlu0 %2927
        %2929 = vmax.xlane.f32.xlu0 %v2807
        %v2930 = vpop.xlane.xlu0 %2929
        %2931 = vmax.xlane.f32.xlu0 %v2808
        %v2932 = vpop.xlane.xlu0 %2931
        %2933 = vmax.xlane.f32.xlu0 %v2809
        %v2934 = vpop.xlane.xlu0 %2933
        %2935 = vmax.xlane.f32.xlu0 %v2810
        %v2936 = vpop.xlane.xlu0 %2935
        %2937 = vmax.xlane.f32.xlu0 %v2811
        %v2938 = vpop.xlane.xlu0 %2937
        %2939 = vmax.xlane.f32.xlu0 %v2812
        %v2940 = vpop.xlane.xlu0 %2939
        %v2941 = vsub.f32 %v2749, %v2814
        %v2942 = vsub.f32 %v2750, %v2816
        %v2943 = vsub.f32 %v2751, %v2818
        %v2944 = vsub.f32 %v2752, %v2820
        %v2945 = vsub.f32 %v2753, %v2822
        %v2946 = vsub.f32 %v2754, %v2824
        %v2947 = vsub.f32 %v2755, %v2826
        %v2948 = vsub.f32 %v2756, %v2828
        %v2949 = vsub.f32 %v2757, %v2830
        %v2950 = vsub.f32 %v2758, %v2832
        %v2951 = vsub.f32 %v2759, %v2834
        %v2952 = vsub.f32 %v2760, %v2836
        %v2953 = vsub.f32 %v2761, %v2838
        %v2954 = vsub.f32 %v2762, %v2840
        %v2955 = vsub.f32 %v2763, %v2842
        %v2956 = vsub.f32 %v2764, %v2844
        %v2957 = vsub.f32 %v2765, %v2846
        %v2958 = vsub.f32 %v2766, %v2848
        %v2959 = vsub.f32 %v2767, %v2850
        %v2960 = vsub.f32 %v2768, %v2852
        %v2961 = vsub.f32 %v2769, %v2854
        %v2962 = vsub.f32 %v2770, %v2856
        %v2963 = vsub.f32 %v2771, %v2858
        %v2964 = vsub.f32 %v2772, %v2860
        %v2965 = vsub.f32 %v2773, %v2862
        %v2966 = vsub.f32 %v2774, %v2864
        %v2967 = vsub.f32 %v2775, %v2866
        %v2968 = vsub.f32 %v2776, %v2868
        %v2969 = vsub.f32 %v2777, %v2870
        %v2970 = vsub.f32 %v2778, %v2872
        %v2971 = vsub.f32 %v2779, %v2874
        %v2972 = vsub.f32 %v2780, %v2876
        %v2973 = vsub.f32 %v2781, %v2878
        %v2974 = vsub.f32 %v2782, %v2880
        %v2975 = vsub.f32 %v2783, %v2882
        %v2976 = vsub.f32 %v2784, %v2884
        %v2977 = vsub.f32 %v2785, %v2886
        %v2978 = vsub.f32 %v2786, %v2888
        %v2979 = vsub.f32 %v2787, %v2890
        %v2980 = vsub.f32 %v2788, %v2892
        %v2981 = vsub.f32 %v2789, %v2894
        %v2982 = vsub.f32 %v2790, %v2896
        %v2983 = vsub.f32 %v2791, %v2898
        %v2984 = vsub.f32 %v2792, %v2900
        %v2985 = vsub.f32 %v2793, %v2902
        %v2986 = vsub.f32 %v2794, %v2904
        %v2987 = vsub.f32 %v2795, %v2906
        %v2988 = vsub.f32 %v2796, %v2908
        %v2989 = vsub.f32 %v2797, %v2910
        %v2990 = vsub.f32 %v2798, %v2912
        %v2991 = vsub.f32 %v2799, %v2914
        %v2992 = vsub.f32 %v2800, %v2916
        %v2993 = vsub.f32 %v2801, %v2918
        %v2994 = vsub.f32 %v2802, %v2920
        %v2995 = vsub.f32 %v2803, %v2922
        %v2996 = vsub.f32 %v2804, %v2924
        %v2997 = vsub.f32 %v2805, %v2926
        %v2998 = vsub.f32 %v2806, %v2928
        %v2999 = vsub.f32 %v2807, %v2930
        %v3000 = vsub.f32 %v2808, %v2932
        %v3001 = vsub.f32 %v2809, %v2934
        %v3002 = vsub.f32 %v2810, %v2936
        %v3003 = vsub.f32 %v2811, %v2938
        %v3004 = vsub.f32 %v2812, %v2940
        %v3005 = vmul.f32 %v2941, 1.442695
        %v3006 = vpow.pop %v3005
        %v3007 = vmul.f32 %v2942, 1.442695
        %v3008 = vpow.pop %v3007
        %v3009 = vmul.f32 %v2943, 1.442695
        %v3010 = vpow.pop %v3009
        %v3011 = vmul.f32 %v2944, 1.442695
        %v3012 = vpow.pop %v3011
        %v3013 = vmul.f32 %v2945, 1.442695
        %v3014 = vpow.pop %v3013
        %v3015 = vmul.f32 %v2946, 1.442695
        %v3016 = vpow.pop %v3015
        %v3017 = vmul.f32 %v2947, 1.442695
        %v3018 = vpow.pop %v3017
        %v3019 = vmul.f32 %v2948, 1.442695
        %v3020 = vpow.pop %v3019
        %v3021 = vmul.f32 %v2949, 1.442695
        %v3022 = vpow.pop %v3021
        %v3023 = vmul.f32 %v2950, 1.442695
        %v3024 = vpow.pop %v3023
        %v3025 = vmul.f32 %v2951, 1.442695
        %v3026 = vpow.pop %v3025
        %v3027 = vmul.f32 %v2952, 1.442695
        %v3028 = vpow.pop %v3027
        %v3029 = vmul.f32 %v2953, 1.442695
        %v3030 = vpow.pop %v3029
        %v3031 = vmul.f32 %v2954, 1.442695
        %v3032 = vpow.pop %v3031
        %v3033 = vmul.f32 %v2955, 1.442695
        %v3034 = vpow.pop %v3033
        %v3035 = vmul.f32 %v2956, 1.442695
        %v3036 = vpow.pop %v3035
        %v3037 = vmul.f32 %v2957, 1.442695
        %v3038 = vpow.pop %v3037
        %v3039 = vmul.f32 %v2958, 1.442695
        %v3040 = vpow.pop %v3039
        %v3041 = vmul.f32 %v2959, 1.442695
        %v3042 = vpow.pop %v3041
        %v3043 = vmul.f32 %v2960, 1.442695
        %v3044 = vpow.pop %v3043
        %v3045 = vmul.f32 %v2961, 1.442695
        %v3046 = vpow.pop %v3045
        %v3047 = vmul.f32 %v2962, 1.442695
        %v3048 = vpow.pop %v3047
        %v3049 = vmul.f32 %v2963, 1.442695
        %v3050 = vpow.pop %v3049
        %v3051 = vmul.f32 %v2964, 1.442695
        %v3052 = vpow.pop %v3051
        %v3053 = vmul.f32 %v2965, 1.442695
        %v3054 = vpow.pop %v3053
        %v3055 = vmul.f32 %v2966, 1.442695
        %v3056 = vpow.pop %v3055
        %v3057 = vmul.f32 %v2967, 1.442695
        %v3058 = vpow.pop %v3057
        %v3059 = vmul.f32 %v2968, 1.442695
        %v3060 = vpow.pop %v3059
        %v3061 = vmul.f32 %v2969, 1.442695
        %v3062 = vpow.pop %v3061
        %v3063 = vmul.f32 %v2970, 1.442695
        %v3064 = vpow.pop %v3063
        %v3065 = vmul.f32 %v2971, 1.442695
        %v3066 = vpow.pop %v3065
        %v3067 = vmul.f32 %v2972, 1.442695
        %v3068 = vpow.pop %v3067
        %v3069 = vmul.f32 %v2973, 1.442695
        %v3070 = vpow.pop %v3069
        %v3071 = vmul.f32 %v2974, 1.442695
        %v3072 = vpow.pop %v3071
        %v3073 = vmul.f32 %v2975, 1.442695
        %v3074 = vpow.pop %v3073
        %v3075 = vmul.f32 %v2976, 1.442695
        %v3076 = vpow.pop %v3075
        %v3077 = vmul.f32 %v2977, 1.442695
        %v3078 = vpow.pop %v3077
        %v3079 = vmul.f32 %v2978, 1.442695
        %v3080 = vpow.pop %v3079
        %v3081 = vmul.f32 %v2979, 1.442695
        %v3082 = vpow.pop %v3081
        %v3083 = vmul.f32 %v2980, 1.442695
        %v3084 = vpow.pop %v3083
        %v3085 = vmul.f32 %v2981, 1.442695
        %v3086 = vpow.pop %v3085
        %v3087 = vmul.f32 %v2982, 1.442695
        %v3088 = vpow.pop %v3087
        %v3089 = vmul.f32 %v2983, 1.442695
        %v3090 = vpow.pop %v3089
        %v3091 = vmul.f32 %v2984, 1.442695
        %v3092 = vpow.pop %v3091
        %v3093 = vmul.f32 %v2985, 1.442695
        %v3094 = vpow.pop %v3093
        %v3095 = vmul.f32 %v2986, 1.442695
        %v3096 = vpow.pop %v3095
        %v3097 = vmul.f32 %v2987, 1.442695
        %v3098 = vpow.pop %v3097
        %v3099 = vmul.f32 %v2988, 1.442695
        %v3100 = vpow.pop %v3099
        %v3101 = vmul.f32 %v2989, 1.442695
        %v3102 = vpow.pop %v3101
        %v3103 = vmul.f32 %v2990, 1.442695
        %v3104 = vpow.pop %v3103
        %v3105 = vmul.f32 %v2991, 1.442695
        %v3106 = vpow.pop %v3105
        %v3107 = vmul.f32 %v2992, 1.442695
        %v3108 = vpow.pop %v3107
        %v3109 = vmul.f32 %v2993, 1.442695
        %v3110 = vpow.pop %v3109
        %v3111 = vmul.f32 %v2994, 1.442695
        %v3112 = vpow.pop %v3111
        %v3113 = vmul.f32 %v2995, 1.442695
        %v3114 = vpow.pop %v3113
        %v3115 = vmul.f32 %v2996, 1.442695
        %v3116 = vpow.pop %v3115
        %v3117 = vmul.f32 %v2997, 1.442695
        %v3118 = vpow.pop %v3117
        %v3119 = vmul.f32 %v2998, 1.442695
        %v3120 = vpow.pop %v3119
        %v3121 = vmul.f32 %v2999, 1.442695
        %v3122 = vpow.pop %v3121
        %v3123 = vmul.f32 %v3000, 1.442695
        %v3124 = vpow.pop %v3123
        %v3125 = vmul.f32 %v3001, 1.442695
        %v3126 = vpow.pop %v3125
        %v3127 = vmul.f32 %v3002, 1.442695
        %v3128 = vpow.pop %v3127
        %v3129 = vmul.f32 %v3003, 1.442695
        %v3130 = vpow.pop %v3129
        %v3131 = vmul.f32 %v3004, 1.442695
        %v3132 = vpow.pop %v3131
        %3133 = vadd.xlane.f32.xlu0 %v3006
        %v3134 = vpop.xlane.xlu0 %3133
        %3135 = vadd.xlane.f32.xlu0 %v3008
        %v3136 = vpop.xlane.xlu0 %3135
        %3137 = vadd.xlane.f32.xlu0 %v3010
        %v3138 = vpop.xlane.xlu0 %3137
        %3139 = vadd.xlane.f32.xlu0 %v3012
        %v3140 = vpop.xlane.xlu0 %3139
        %3141 = vadd.xlane.f32.xlu0 %v3014
        %v3142 = vpop.xlane.xlu0 %3141
        %3143 = vadd.xlane.f32.xlu0 %v3016
        %v3144 = vpop.xlane.xlu0 %3143
        %3145 = vadd.xlane.f32.xlu0 %v3018
        %v3146 = vpop.xlane.xlu0 %3145
        %3147 = vadd.xlane.f32.xlu0 %v3020
        %v3148 = vpop.xlane.xlu0 %3147
        %3149 = vadd.xlane.f32.xlu0 %v3022
        %v3150 = vpop.xlane.xlu0 %3149
        %3151 = vadd.xlane.f32.xlu0 %v3024
        %v3152 = vpop.xlane.xlu0 %3151
        %3153 = vadd.xlane.f32.xlu0 %v3026
        %v3154 = vpop.xlane.xlu0 %3153
        %3155 = vadd.xlane.f32.xlu0 %v3028
        %v3156 = vpop.xlane.xlu0 %3155
        %3157 = vadd.xlane.f32.xlu0 %v3030
        %v3158 = vpop.xlane.xlu0 %3157
        %3159 = vadd.xlane.f32.xlu0 %v3032
        %v3160 = vpop.xlane.xlu0 %3159
        %3161 = vadd.xlane.f32.xlu0 %v3034
        %v3162 = vpop.xlane.xlu0 %3161
        %3163 = vadd.xlane.f32.xlu0 %v3036
        %v3164 = vpop.xlane.xlu0 %3163
        %3165 = vadd.xlane.f32.xlu0 %v3038
        %v3166 = vpop.xlane.xlu0 %3165
        %3167 = vadd.xlane.f32.xlu0 %v3040
        %v3168 = vpop.xlane.xlu0 %3167
        %3169 = vadd.xlane.f32.xlu0 %v3042
        %v3170 = vpop.xlane.xlu0 %3169
        %3171 = vadd.xlane.f32.xlu0 %v3044
        %v3172 = vpop.xlane.xlu0 %3171
        %3173 = vadd.xlane.f32.xlu0 %v3046
        %v3174 = vpop.xlane.xlu0 %3173
        %3175 = vadd.xlane.f32.xlu0 %v3048
        %v3176 = vpop.xlane.xlu0 %3175
        %3177 = vadd.xlane.f32.xlu0 %v3050
        %v3178 = vpop.xlane.xlu0 %3177
        %3179 = vadd.xlane.f32.xlu0 %v3052
        %v3180 = vpop.xlane.xlu0 %3179
        %3181 = vadd.xlane.f32.xlu0 %v3054
        %v3182 = vpop.xlane.xlu0 %3181
        %3183 = vadd.xlane.f32.xlu0 %v3056
        %v3184 = vpop.xlane.xlu0 %3183
        %3185 = vadd.xlane.f32.xlu0 %v3058
        %v3186 = vpop.xlane.xlu0 %3185
        %3187 = vadd.xlane.f32.xlu0 %v3060
        %v3188 = vpop.xlane.xlu0 %3187
        %3189 = vadd.xlane.f32.xlu0 %v3062
        %v3190 = vpop.xlane.xlu0 %3189
        %3191 = vadd.xlane.f32.xlu0 %v3064
        %v3192 = vpop.xlane.xlu0 %3191
        %3193 = vadd.xlane.f32.xlu0 %v3066
        %v3194 = vpop.xlane.xlu0 %3193
        %3195 = vadd.xlane.f32.xlu0 %v3068
        %v3196 = vpop.xlane.xlu0 %3195
        %3197 = vadd.xlane.f32.xlu0 %v3070
        %v3198 = vpop.xlane.xlu0 %3197
        %3199 = vadd.xlane.f32.xlu0 %v3072
        %v3200 = vpop.xlane.xlu0 %3199
        %3201 = vadd.xlane.f32.xlu0 %v3074
        %v3202 = vpop.xlane.xlu0 %3201
        %3203 = vadd.xlane.f32.xlu0 %v3076
        %v3204 = vpop.xlane.xlu0 %3203
        %3205 = vadd.xlane.f32.xlu0 %v3078
        %v3206 = vpop.xlane.xlu0 %3205
        %3207 = vadd.xlane.f32.xlu0 %v3080
        %v3208 = vpop.xlane.xlu0 %3207
        %3209 = vadd.xlane.f32.xlu0 %v3082
        %v3210 = vpop.xlane.xlu0 %3209
        %3211 = vadd.xlane.f32.xlu0 %v3084
        %v3212 = vpop.xlane.xlu0 %3211
        %3213 = vadd.xlane.f32.xlu0 %v3086
        %v3214 = vpop.xlane.xlu0 %3213
        %3215 = vadd.xlane.f32.xlu0 %v3088
        %v3216 = vpop.xlane.xlu0 %3215
        %3217 = vadd.xlane.f32.xlu0 %v3090
        %v3218 = vpop.xlane.xlu0 %3217
        %3219 = vadd.xlane.f32.xlu0 %v3092
        %v3220 = vpop.xlane.xlu0 %3219
        %3221 = vadd.xlane.f32.xlu0 %v3094
        %v3222 = vpop.xlane.xlu0 %3221
        %3223 = vadd.xlane.f32.xlu0 %v3096
        %v3224 = vpop.xlane.xlu0 %3223
        %3225 = vadd.xlane.f32.xlu0 %v3098
        %v3226 = vpop.xlane.xlu0 %3225
        %3227 = vadd.xlane.f32.xlu0 %v3100
        %v3228 = vpop.xlane.xlu0 %3227
        %3229 = vadd.xlane.f32.xlu0 %v3102
        %v3230 = vpop.xlane.xlu0 %3229
        %3231 = vadd.xlane.f32.xlu0 %v3104
        %v3232 = vpop.xlane.xlu0 %3231
        %3233 = vadd.xlane.f32.xlu0 %v3106
        %v3234 = vpop.xlane.xlu0 %3233
        %3235 = vadd.xlane.f32.xlu0 %v3108
        %v3236 = vpop.xlane.xlu0 %3235
        %3237 = vadd.xlane.f32.xlu0 %v3110
        %v3238 = vpop.xlane.xlu0 %3237
        %3239 = vadd.xlane.f32.xlu0 %v3112
        %v3240 = vpop.xlane.xlu0 %3239
        %3241 = vadd.xlane.f32.xlu0 %v3114
        %v3242 = vpop.xlane.xlu0 %3241
        %3243 = vadd.xlane.f32.xlu0 %v3116
        %v3244 = vpop.xlane.xlu0 %3243
        %3245 = vadd.xlane.f32.xlu0 %v3118
        %v3246 = vpop.xlane.xlu0 %3245
        %3247 = vadd.xlane.f32.xlu0 %v3120
        %v3248 = vpop.xlane.xlu0 %3247
        %3249 = vadd.xlane.f32.xlu0 %v3122
        %v3250 = vpop.xlane.xlu0 %3249
        %3251 = vadd.xlane.f32.xlu0 %v3124
        %v3252 = vpop.xlane.xlu0 %3251
        %3253 = vadd.xlane.f32.xlu0 %v3126
        %v3254 = vpop.xlane.xlu0 %3253
        %3255 = vadd.xlane.f32.xlu0 %v3128
        %v3256 = vpop.xlane.xlu0 %3255
        %3257 = vadd.xlane.f32.xlu0 %v3130
        %v3258 = vpop.xlane.xlu0 %3257
        %3259 = vadd.xlane.f32.xlu0 %v3132
        %v3260 = vpop.xlane.xlu0 %3259
        %v3261 = vrcp.pop %v3134
        %v3262 = vmul.f32 %v3006, %v3261
        %v3263 = vrcp.pop %v3136
        %v3264 = vmul.f32 %v3008, %v3263
        %v3265 = vrcp.pop %v3138
        %v3266 = vmul.f32 %v3010, %v3265
        %v3267 = vrcp.pop %v3140
        %v3268 = vmul.f32 %v3012, %v3267
        %v3269 = vrcp.pop %v3142
        %v3270 = vmul.f32 %v3014, %v3269
        %v3271 = vrcp.pop %v3144
        %v3272 = vmul.f32 %v3016, %v3271
        %v3273 = vrcp.pop %v3146
        %v3274 = vmul.f32 %v3018, %v3273
        %v3275 = vrcp.pop %v3148
        %v3276 = vmul.f32 %v3020, %v3275
        %v3277 = vrcp.pop %v3150
        %v3278 = vmul.f32 %v3022, %v3277
        %v3279 = vrcp.pop %v3152
        %v3280 = vmul.f32 %v3024, %v3279
        %v3281 = vrcp.pop %v3154
        %v3282 = vmul.f32 %v3026, %v3281
        %v3283 = vrcp.pop %v3156
        %v3284 = vmul.f32 %v3028, %v3283
        %v3285 = vrcp.pop %v3158
        %v3286 = vmul.f32 %v3030, %v3285
        %v3287 = vrcp.pop %v3160
        %v3288 = vmul.f32 %v3032, %v3287
        %v3289 = vrcp.pop %v3162
        %v3290 = vmul.f32 %v3034, %v3289
        %v3291 = vrcp.pop %v3164
        %v3292 = vmul.f32 %v3036, %v3291
        %v3293 = vrcp.pop %v3166
        %v3294 = vmul.f32 %v3038, %v3293
        %v3295 = vrcp.pop %v3168
        %v3296 = vmul.f32 %v3040, %v3295
        %v3297 = vrcp.pop %v3170
        %v3298 = vmul.f32 %v3042, %v3297
        %v3299 = vrcp.pop %v3172
        %v3300 = vmul.f32 %v3044, %v3299
        %v3301 = vrcp.pop %v3174
        %v3302 = vmul.f32 %v3046, %v3301
        %v3303 = vrcp.pop %v3176
        %v3304 = vmul.f32 %v3048, %v3303
        %v3305 = vrcp.pop %v3178
        %v3306 = vmul.f32 %v3050, %v3305
        %v3307 = vrcp.pop %v3180
        %v3308 = vmul.f32 %v3052, %v3307
        %v3309 = vrcp.pop %v3182
        %v3310 = vmul.f32 %v3054, %v3309
        %v3311 = vrcp.pop %v3184
        %v3312 = vmul.f32 %v3056, %v3311
        %v3313 = vrcp.pop %v3186
        %v3314 = vmul.f32 %v3058, %v3313
        %v3315 = vrcp.pop %v3188
        %v3316 = vmul.f32 %v3060, %v3315
        %v3317 = vrcp.pop %v3190
        %v3318 = vmul.f32 %v3062, %v3317
        %v3319 = vrcp.pop %v3192
        %v3320 = vmul.f32 %v3064, %v3319
        %v3321 = vrcp.pop %v3194
        %v3322 = vmul.f32 %v3066, %v3321
        %v3323 = vrcp.pop %v3196
        %v3324 = vmul.f32 %v3068, %v3323
        %v3325 = vrcp.pop %v3198
        %v3326 = vmul.f32 %v3070, %v3325
        %v3327 = vrcp.pop %v3200
        %v3328 = vmul.f32 %v3072, %v3327
        %v3329 = vrcp.pop %v3202
        %v3330 = vmul.f32 %v3074, %v3329
        %v3331 = vrcp.pop %v3204
        %v3332 = vmul.f32 %v3076, %v3331
        %v3333 = vrcp.pop %v3206
        %v3334 = vmul.f32 %v3078, %v3333
        %v3335 = vrcp.pop %v3208
        %v3336 = vmul.f32 %v3080, %v3335
        %v3337 = vrcp.pop %v3210
        %v3338 = vmul.f32 %v3082, %v3337
        %v3339 = vrcp.pop %v3212
        %v3340 = vmul.f32 %v3084, %v3339
        %v3341 = vrcp.pop %v3214
        %v3342 = vmul.f32 %v3086, %v3341
        %v3343 = vrcp.pop %v3216
        %v3344 = vmul.f32 %v3088, %v3343
        %v3345 = vrcp.pop %v3218
        %v3346 = vmul.f32 %v3090, %v3345
        %v3347 = vrcp.pop %v3220
        %v3348 = vmul.f32 %v3092, %v3347
        %v3349 = vrcp.pop %v3222
        %v3350 = vmul.f32 %v3094, %v3349
        %v3351 = vrcp.pop %v3224
        %v3352 = vmul.f32 %v3096, %v3351
        %v3353 = vrcp.pop %v3226
        %v3354 = vmul.f32 %v3098, %v3353
        %v3355 = vrcp.pop %v3228
        %v3356 = vmul.f32 %v3100, %v3355
        %v3357 = vrcp.pop %v3230
        %v3358 = vmul.f32 %v3102, %v3357
        %v3359 = vrcp.pop %v3232
        %v3360 = vmul.f32 %v3104, %v3359
        %v3361 = vrcp.pop %v3234
        %v3362 = vmul.f32 %v3106, %v3361
        %v3363 = vrcp.pop %v3236
        %v3364 = vmul.f32 %v3108, %v3363
        %v3365 = vrcp.pop %v3238
        %v3366 = vmul.f32 %v3110, %v3365
        %v3367 = vrcp.pop %v3240
        %v3368 = vmul.f32 %v3112, %v3367
        %v3369 = vrcp.pop %v3242
        %v3370 = vmul.f32 %v3114, %v3369
        %v3371 = vrcp.pop %v3244
        %v3372 = vmul.f32 %v3116, %v3371
        %v3373 = vrcp.pop %v3246
        %v3374 = vmul.f32 %v3118, %v3373
        %v3375 = vrcp.pop %v3248
        %v3376 = vmul.f32 %v3120, %v3375
        %v3377 = vrcp.pop %v3250
        %v3378 = vmul.f32 %v3122, %v3377
        %v3379 = vrcp.pop %v3252
        %v3380 = vmul.f32 %v3124, %v3379
        %v3381 = vrcp.pop %v3254
        %v3382 = vmul.f32 %v3126, %v3381
        %v3383 = vrcp.pop %v3256
        %v3384 = vmul.f32 %v3128, %v3383
        %v3385 = vrcp.pop %v3258
        %v3386 = vmul.f32 %v3130, %v3385
        %v3387 = vrcp.pop %v3260
        %v3388 = vmul.f32 %v3132, %v3387
        %3389 = vst [vmem:[%s339] sm:$0xff] %v3262
        %3390 = vst [vmem:[%s339 + $0x8] sm:$0xff] %v3264
        %3391 = vst [vmem:[%s339 + $0x10] sm:$0xff] %v3266
        %3392 = vst [vmem:[%s339 + $0x18] sm:$0xff] %v3268
        %3393 = vst [vmem:[%s339 + $0x20] sm:$0xff] %v3270
        %3394 = vst [vmem:[%s339 + $0x28] sm:$0xff] %v3272
        %3395 = vst [vmem:[%s339 + $0x30] sm:$0xff] %v3274
        %3396 = vst [vmem:[%s339 + $0x38] sm:$0xff] %v3276
        %3397 = vst [vmem:[%s339 + $0x40] sm:$0xff] %v3278
        %3398 = vst [vmem:[%s339 + $0x48] sm:$0xff] %v3280
        %3399 = vst [vmem:[%s339 + $0x50] sm:$0xff] %v3282
        %3400 = vst [vmem:[%s339 + $0x58] sm:$0xff] %v3284
        %3401 = vst [vmem:[%s339 + $0x60] sm:$0xff] %v3286
        %3402 = vst [vmem:[%s339 + $0x68] sm:$0xff] %v3288
        %3403 = vst [vmem:[%s339 + $0x70] sm:$0xff] %v3290
        %3404 = vst [vmem:[%s339 + $0x78] sm:$0xff] %v3292
        %3405 = vst [vmem:[%s339 + $0x80] sm:$0xff] %v3294
        %3406 = vst [vmem:[%s339 + $0x88] sm:$0xff] %v3296
        %3407 = vst [vmem:[%s339 + $0x90] sm:$0xff] %v3298
        %3408 = vst [vmem:[%s339 + $0x98] sm:$0xff] %v3300
        %3409 = vst [vmem:[%s339 + $0xa0] sm:$0xff] %v3302
        %3410 = vst [vmem:[%s339 + $0xa8] sm:$0xff] %v3304
        %3411 = vst [vmem:[%s339 + $0xb0] sm:$0xff] %v3306
        %3412 = vst [vmem:[%s339 + $0xb8] sm:$0xff] %v3308
        %3413 = vst [vmem:[%s339 + $0xc0] sm:$0xff] %v3310
        %3414 = vst [vmem:[%s339 + $0xc8] sm:$0xff] %v3312
        %3415 = vst [vmem:[%s339 + $0xd0] sm:$0xff] %v3314
        %3416 = vst [vmem:[%s339 + $0xd8] sm:$0xff] %v3316
        %3417 = vst [vmem:[%s339 + $0xe0] sm:$0xff] %v3318
        %3418 = vst [vmem:[%s339 + $0xe8] sm:$0xff] %v3320
        %3419 = vst [vmem:[%s339 + $0xf0] sm:$0xff] %v3322
        %3420 = vst [vmem:[%s339 + $0xf8] sm:$0xff] %v3324
        %3421 = vst [vmem:[%s339 + $0x100] sm:$0xff] %v3326
        %3422 = vst [vmem:[%s339 + $0x108] sm:$0xff] %v3328
        %3423 = vst [vmem:[%s339 + $0x110] sm:$0xff] %v3330
        %3424 = vst [vmem:[%s339 + $0x118] sm:$0xff] %v3332
        %3425 = vst [vmem:[%s339 + $0x120] sm:$0xff] %v3334
        %3426 = vst [vmem:[%s339 + $0x128] sm:$0xff] %v3336
        %3427 = vst [vmem:[%s339 + $0x130] sm:$0xff] %v3338
        %3428 = vst [vmem:[%s339 + $0x138] sm:$0xff] %v3340
        %3429 = vst [vmem:[%s339 + $0x140] sm:$0xff] %v3342
        %3430 = vst [vmem:[%s339 + $0x148] sm:$0xff] %v3344
        %3431 = vst [vmem:[%s339 + $0x150] sm:$0xff] %v3346
        %3432 = vst [vmem:[%s339 + $0x158] sm:$0xff] %v3348
        %3433 = vst [vmem:[%s339 + $0x160] sm:$0xff] %v3350
        %3434 = vst [vmem:[%s339 + $0x168] sm:$0xff] %v3352
        %3435 = vst [vmem:[%s339 + $0x170] sm:$0xff] %v3354
        %3436 = vst [vmem:[%s339 + $0x178] sm:$0xff] %v3356
        %3437 = vst [vmem:[%s339 + $0x180] sm:$0xff] %v3358
        %3438 = vst [vmem:[%s339 + $0x188] sm:$0xff] %v3360
        %3439 = vst [vmem:[%s339 + $0x190] sm:$0xff] %v3362
        %3440 = vst [vmem:[%s339 + $0x198] sm:$0xff] %v3364
        %3441 = vst [vmem:[%s339 + $0x1a0] sm:$0xff] %v3366
        %3442 = vst [vmem:[%s339 + $0x1a8] sm:$0xff] %v3368
        %3443 = vst [vmem:[%s339 + $0x1b0] sm:$0xff] %v3370
        %3444 = vst [vmem:[%s339 + $0x1b8] sm:$0xff] %v3372
        %3445 = vst [vmem:[%s339 + $0x1c0] sm:$0xff] %v3374
        %3446 = vst [vmem:[%s339 + $0x1c8] sm:$0xff] %v3376
        %3447 = vst [vmem:[%s339 + $0x1d0] sm:$0xff] %v3378
        %3448 = vst [vmem:[%s339 + $0x1d8] sm:$0xff] %v3380
        %3449 = vst [vmem:[%s339 + $0x1e0] sm:$0xff] %v3382
        %3450 = vst [vmem:[%s339 + $0x1e8] sm:$0xff] %v3384
        %3451 = vst [vmem:[%s339 + $0x1f0] sm:$0xff] %v3386
        %3452 = vst [vmem:[%s339 + $0x1f8] sm:$0xff] %v3388
        %vm3453 = vcmp.eq.s32.totalorder %v1866, %v1596
        %vm3454 = vcmp.eq.s32.totalorder %v1880, %v1596
        %vm3455 = vcmp.eq.s32.totalorder %v1894, %v1596
        %vm3456 = vcmp.eq.s32.totalorder %v1908, %v1596
        %vm3457 = vcmp.eq.s32.totalorder %v1922, %v1596
        %vm3458 = vcmp.eq.s32.totalorder %v1936, %v1596
        %vm3459 = vcmp.eq.s32.totalorder %v1950, %v1596
        %vm3460 = vcmp.eq.s32.totalorder %v1964, %v1596
        %vm3461 = vcmp.eq.s32.totalorder %v1978, %v1596
        %vm3462 = vcmp.eq.s32.totalorder %v1992, %v1596
        %vm3463 = vcmp.eq.s32.totalorder %v2006, %v1596
        %vm3464 = vcmp.eq.s32.totalorder %v2020, %v1596
        %vm3465 = vcmp.eq.s32.totalorder %v2034, %v1596
        %vm3466 = vcmp.eq.s32.totalorder %v2048, %v1596
        %vm3467 = vcmp.eq.s32.totalorder %v2062, %v1596
        %vm3468 = vcmp.eq.s32.totalorder %v2076, %v1596
        %vm3469 = vcmp.eq.s32.totalorder %v2090, %v1596
        %vm3470 = vcmp.eq.s32.totalorder %v2104, %v1596
        %vm3471 = vcmp.eq.s32.totalorder %v2118, %v1596
        %vm3472 = vcmp.eq.s32.totalorder %v2132, %v1596
        %vm3473 = vcmp.eq.s32.totalorder %v2146, %v1596
        %vm3474 = vcmp.eq.s32.totalorder %v2160, %v1596
        %vm3475 = vcmp.eq.s32.totalorder %v2174, %v1596
        %vm3476 = vcmp.eq.s32.totalorder %v2188, %v1596
        %vm3477 = vcmp.eq.s32.totalorder %v2202, %v1596
        %vm3478 = vcmp.eq.s32.totalorder %v2216, %v1596
        %vm3479 = vcmp.eq.s32.totalorder %v2230, %v1596
        %vm3480 = vcmp.eq.s32.totalorder %v2244, %v1596
        %vm3481 = vcmp.eq.s32.totalorder %v2258, %v1596
        %vm3482 = vcmp.eq.s32.totalorder %v2272, %v1596
        %vm3483 = vcmp.eq.s32.totalorder %v2286, %v1596
        %vm3484 = vcmp.eq.s32.totalorder %v2300, %v1596
        %vm3485 = vcmp.eq.s32.totalorder %v2314, %v1596
        %vm3486 = vcmp.eq.s32.totalorder %v2328, %v1596
        %vm3487 = vcmp.eq.s32.totalorder %v2342, %v1596
        %vm3488 = vcmp.eq.s32.totalorder %v2356, %v1596
        %vm3489 = vcmp.eq.s32.totalorder %v2370, %v1596
        %vm3490 = vcmp.eq.s32.totalorder %v2384, %v1596
        %vm3491 = vcmp.eq.s32.totalorder %v2398, %v1596
        %vm3492 = vcmp.eq.s32.totalorder %v2412, %v1596
        %vm3493 = vcmp.eq.s32.totalorder %v2426, %v1596
        %vm3494 = vcmp.eq.s32.totalorder %v2440, %v1596
        %vm3495 = vcmp.eq.s32.totalorder %v2454, %v1596
        %vm3496 = vcmp.eq.s32.totalorder %v2468, %v1596
        %vm3497 = vcmp.eq.s32.totalorder %v2482, %v1596
        %vm3498 = vcmp.eq.s32.totalorder %v2496, %v1596
        %vm3499 = vcmp.eq.s32.totalorder %v2510, %v1596
        %vm3500 = vcmp.eq.s32.totalorder %v2524, %v1596
        %vm3501 = vcmp.eq.s32.totalorder %v2538, %v1596
        %vm3502 = vcmp.eq.s32.totalorder %v2552, %v1596
        %vm3503 = vcmp.eq.s32.totalorder %v2566, %v1596
        %vm3504 = vcmp.eq.s32.totalorder %v2580, %v1596
        %vm3505 = vcmp.eq.s32.totalorder %v2594, %v1596
        %vm3506 = vcmp.eq.s32.totalorder %v2608, %v1596
        %vm3507 = vcmp.eq.s32.totalorder %v2622, %v1596
        %vm3508 = vcmp.eq.s32.totalorder %v2636, %v1596
        %vm3509 = vcmp.eq.s32.totalorder %v2650, %v1596
        %vm3510 = vcmp.eq.s32.totalorder %v2664, %v1596
        %vm3511 = vcmp.eq.s32.totalorder %v2678, %v1596
        %vm3512 = vcmp.eq.s32.totalorder %v2692, %v1596
        %vm3513 = vcmp.eq.s32.totalorder %v2706, %v1596
        %vm3514 = vcmp.eq.s32.totalorder %v2720, %v1596
        %vm3515 = vcmp.eq.s32.totalorder %v2734, %v1596
        %vm3516 = vcmp.eq.s32.totalorder %v2748, %v1596
        %v3517 = vsel %vm3453, 1, 0
        %v3518 = vsel %vm3454, 1, 0
        %v3519 = vsel %vm3455, 1, 0
        %v3520 = vsel %vm3456, 1, 0
        %v3521 = vsel %vm3457, 1, 0
        %v3522 = vsel %vm3458, 1, 0
        %v3523 = vsel %vm3459, 1, 0
        %v3524 = vsel %vm3460, 1, 0
        %v3525 = vsel %vm3461, 1, 0
        %v3526 = vsel %vm3462, 1, 0
        %v3527 = vsel %vm3463, 1, 0
        %v3528 = vsel %vm3464, 1, 0
        %v3529 = vsel %vm3465, 1, 0
        %v3530 = vsel %vm3466, 1, 0
        %v3531 = vsel %vm3467, 1, 0
        %v3532 = vsel %vm3468, 1, 0
        %v3533 = vsel %vm3469, 1, 0
        %v3534 = vsel %vm3470, 1, 0
        %v3535 = vsel %vm3471, 1, 0
        %v3536 = vsel %vm3472, 1, 0
        %v3537 = vsel %vm3473, 1, 0
        %v3538 = vsel %vm3474, 1, 0
        %v3539 = vsel %vm3475, 1, 0
        %v3540 = vsel %vm3476, 1, 0
        %v3541 = vsel %vm3477, 1, 0
        %v3542 = vsel %vm3478, 1, 0
        %v3543 = vsel %vm3479, 1, 0
        %v3544 = vsel %vm3480, 1, 0
        %v3545 = vsel %vm3481, 1, 0
        %v3546 = vsel %vm3482, 1, 0
        %v3547 = vsel %vm3483, 1, 0
        %v3548 = vsel %vm3484, 1, 0
        %v3549 = vsel %vm3485, 1, 0
        %v3550 = vsel %vm3486, 1, 0
        %v3551 = vsel %vm3487, 1, 0
        %v3552 = vsel %vm3488, 1, 0
        %v3553 = vsel %vm3489, 1, 0
        %v3554 = vsel %vm3490, 1, 0
        %v3555 = vsel %vm3491, 1, 0
        %v3556 = vsel %vm3492, 1, 0
        %v3557 = vsel %vm3493, 1, 0
        %v3558 = vsel %vm3494, 1, 0
        %v3559 = vsel %vm3495, 1, 0
        %v3560 = vsel %vm3496, 1, 0
        %v3561 = vsel %vm3497, 1, 0
        %v3562 = vsel %vm3498, 1, 0
        %v3563 = vsel %vm3499, 1, 0
        %v3564 = vsel %vm3500, 1, 0
        %v3565 = vsel %vm3501, 1, 0
        %v3566 = vsel %vm3502, 1, 0
        %v3567 = vsel %vm3503, 1, 0
        %v3568 = vsel %vm3504, 1, 0
        %v3569 = vsel %vm3505, 1, 0
        %v3570 = vsel %vm3506, 1, 0
        %v3571 = vsel %vm3507, 1, 0
        %v3572 = vsel %vm3508, 1, 0
        %v3573 = vsel %vm3509, 1, 0
        %v3574 = vsel %vm3510, 1, 0
        %v3575 = vsel %vm3511, 1, 0
        %v3576 = vsel %vm3512, 1, 0
        %v3577 = vsel %vm3513, 1, 0
        %v3578 = vsel %vm3514, 1, 0
        %v3579 = vsel %vm3515, 1, 0
        %v3580 = vsel %vm3516, 1, 0
        %v3581 = vcvt.s32.f32 %v3517
        %v3582 = vcvt.s32.f32 %v3518
        %v3583 = vcvt.s32.f32 %v3519
        %v3584 = vcvt.s32.f32 %v3520
        %v3585 = vcvt.s32.f32 %v3521
        %v3586 = vcvt.s32.f32 %v3522
        %v3587 = vcvt.s32.f32 %v3523
        %v3588 = vcvt.s32.f32 %v3524
        %v3589 = vcvt.s32.f32 %v3525
        %v3590 = vcvt.s32.f32 %v3526
        %v3591 = vcvt.s32.f32 %v3527
        %v3592 = vcvt.s32.f32 %v3528
        %v3593 = vcvt.s32.f32 %v3529
        %v3594 = vcvt.s32.f32 %v3530
        %v3595 = vcvt.s32.f32 %v3531
        %v3596 = vcvt.s32.f32 %v3532
        %v3597 = vcvt.s32.f32 %v3533
        %v3598 = vcvt.s32.f32 %v3534
        %v3599 = vcvt.s32.f32 %v3535
        %v3600 = vcvt.s32.f32 %v3536
        %v3601 = vcvt.s32.f32 %v3537
        %v3602 = vcvt.s32.f32 %v3538
        %v3603 = vcvt.s32.f32 %v3539
        %v3604 = vcvt.s32.f32 %v3540
        %v3605 = vcvt.s32.f32 %v3541
        %v3606 = vcvt.s32.f32 %v3542
        %v3607 = vcvt.s32.f32 %v3543
        %v3608 = vcvt.s32.f32 %v3544
        %v3609 = vcvt.s32.f32 %v3545
        %v3610 = vcvt.s32.f32 %v3546
        %v3611 = vcvt.s32.f32 %v3547
        %v3612 = vcvt.s32.f32 %v3548
        %v3613 = vcvt.s32.f32 %v3549
        %v3614 = vcvt.s32.f32 %v3550
        %v3615 = vcvt.s32.f32 %v3551
        %v3616 = vcvt.s32.f32 %v3552
        %v3617 = vcvt.s32.f32 %v3553
        %v3618 = vcvt.s32.f32 %v3554
        %v3619 = vcvt.s32.f32 %v3555
        %v3620 = vcvt.s32.f32 %v3556
        %v3621 = vcvt.s32.f32 %v3557
        %v3622 = vcvt.s32.f32 %v3558
        %v3623 = vcvt.s32.f32 %v3559
        %v3624 = vcvt.s32.f32 %v3560
        %v3625 = vcvt.s32.f32 %v3561
        %v3626 = vcvt.s32.f32 %v3562
        %v3627 = vcvt.s32.f32 %v3563
        %v3628 = vcvt.s32.f32 %v3564
        %v3629 = vcvt.s32.f32 %v3565
        %v3630 = vcvt.s32.f32 %v3566
        %v3631 = vcvt.s32.f32 %v3567
        %v3632 = vcvt.s32.f32 %v3568
        %v3633 = vcvt.s32.f32 %v3569
        %v3634 = vcvt.s32.f32 %v3570
        %v3635 = vcvt.s32.f32 %v3571
        %v3636 = vcvt.s32.f32 %v3572
        %v3637 = vcvt.s32.f32 %v3573
        %v3638 = vcvt.s32.f32 %v3574
        %v3639 = vcvt.s32.f32 %v3575
        %v3640 = vcvt.s32.f32 %v3576
        %v3641 = vcvt.s32.f32 %v3577
        %v3642 = vcvt.s32.f32 %v3578
        %v3643 = vcvt.s32.f32 %v3579
        %v3644 = vcvt.s32.f32 %v3580
        %3645 = vmatprep.subr.mxu0 0.0
        %3646 = vmatpush1.msra.mxu0 %v366
        %3647 = vmatprep.subr.mxu0 0.0
        %3648 = vmatpush1.msra.mxu0 %v367
        %3649 = vmatprep.subr.mxu0 0.0
        %3650 = vmatpush1.msra.mxu0 %v368
        %3651 = vmatprep.subr.mxu0 0.0
        %3652 = vmatpush1.msra.mxu0 %v369
        %3653 = vmatprep.subr.mxu0 0.0
        %3654 = vmatpush1.msra.mxu0 %v370
        %3655 = vmatprep.subr.mxu0 0.0
        %3656 = vmatpush1.msra.mxu0 %v371
        %3657 = vmatprep.subr.mxu0 0.0
        %3658 = vmatpush1.msra.mxu0 %v372
        %3659 = vmatprep.subr.mxu0 0.0
        %3660 = vmatpush1.msra.mxu0 %v373
        %3661 = vmatprep.subr.mxu0 0.0
        %3662 = vmatpush1.msra.mxu0 %v374
        %3663 = vmatprep.subr.mxu0 0.0
        %3664 = vmatpush1.msra.mxu0 %v375
        %3665 = vmatprep.subr.mxu0 0.0
        %3666 = vmatpush1.msra.mxu0 %v376
        %3667 = vmatprep.subr.mxu0 0.0
        %3668 = vmatpush1.msra.mxu0 %v377
        %3669 = vmatprep.subr.mxu0 0.0
        %3670 = vmatpush1.msra.mxu0 %v378
        %3671 = vmatprep.subr.mxu0 0.0
        %3672 = vmatpush1.msra.mxu0 %v379
        %3673 = vmatprep.subr.mxu0 0.0
        %3674 = vmatpush1.msra.mxu0 %v380
        %3675 = vmatprep.subr.mxu0 0.0
        %3676 = vmatpush1.msra.mxu0 %v381
        %3677 = vmatprep.subr.mxu0 0.0
        %3678 = vmatpush1.msra.mxu0 0.0
        %3679 = vmatprep.subr.mxu0 0.0
        %3680 = vmatpush1.msra.mxu0 0.0
        %3681 = vmatprep.subr.mxu0 0.0
        %3682 = vmatpush1.msra.mxu0 0.0
        %3683 = vmatprep.subr.mxu0 0.0
        %3684 = vmatpush1.msra.mxu0 0.0
        %3685 = vmatprep.subr.mxu0 0.0
        %3686 = vmatpush1.msra.mxu0 0.0
        %3687 = vmatprep.subr.mxu0 0.0
        %3688 = vmatpush1.msra.mxu0 0.0
        %3689 = vmatprep.subr.mxu0 0.0
        %3690 = vmatpush1.msra.mxu0 0.0
        %3691 = vmatprep.subr.mxu0 0.0
        %3692 = vmatpush1.msra.mxu0 0.0
        %3693 = vmatprep.subr.mxu0 0.0
        %3694 = vmatpush1.msra.mxu0 0.0
        %3695 = vmatprep.subr.mxu0 0.0
        %3696 = vmatpush1.msra.mxu0 0.0
        %3697 = vmatprep.subr.mxu0 0.0
        %3698 = vmatpush1.msra.mxu0 0.0
        %3699 = vmatprep.subr.mxu0 0.0
        %3700 = vmatpush1.msra.mxu0 0.0
        %3701 = vmatprep.subr.mxu0 0.0
        %3702 = vmatpush1.msra.mxu0 0.0
        %3703 = vmatprep.subr.mxu0 0.0
        %3704 = vmatpush1.msra.mxu0 0.0
        %3705 = vmatprep.subr.mxu0 0.0
        %3706 = vmatpush1.msra.mxu0 0.0
        %3707 = vmatprep.subr.mxu0 0.0
        %3708 = vmatpush1.msra.mxu0 0.0
        %3709 = vmatprep.mubr.f32.mxu0 0.0
        %3710 = vmatmul.mubr.f32.gmra.mrb[0].mxu0 %v3581
        %v3711 = vpop.f32.mrb[0].mxu0
        %v3712 = vadd.f32 0.0, %v3711
        %v3713 = vpop.f32.mrb[0].mxu0
        %3714 = vmatprep.mubr.f32.mxu0 0.0
        %3715 = vmatmul.mubr.f32.gmra.mrb[0].mxu0 %v3582
        %v3716 = vpop.f32.mrb[0].mxu0
        %v3717 = vadd.f32 0.0, %v3716
        %v3718 = vpop.f32.mrb[0].mxu0
        %3719 = vmatprep.mubr.f32.mxu0 0.0
        %3720 = vmatmul.mubr.f32.gmra.mrb[0].mxu0 %v3583
        %v3721 = vpop.f32.mrb[0].mxu0
        %v3722 = vadd.f32 0.0, %v3721
        %v3723 = vpop.f32.mrb[0].mxu0
        %3724 = vmatprep.mubr.f32.mxu0 0.0
        %3725 = vmatmul.mubr.f32.gmra.mrb[0].mxu0 %v3584
        %v3726 = vpop.f32.mrb[0].mxu0
        %v3727 = vadd.f32 0.0, %v3726
        %v3728 = vpop.f32.mrb[0].mxu0
        %3729 = vmatprep.mubr.f32.mxu0 0.0
        %3730 = vmatmul.mubr.f32.gmra.mrb[0].mxu0 %v3585
        %v3731 = vpop.f32.mrb[0].mxu0
        %v3732 = vadd.f32 0.0, %v3731
        %v3733 = vpop.f32.mrb[0].mxu0
        %3734 = vmatprep.mubr.f32.mxu0 0.0
        %3735 = vmatmul.mubr.f32.gmra.mrb[0].mxu0 %v3586
        %v3736 = vpop.f32.mrb[0].mxu0
        %v3737 = vadd.f32 0.0, %v3736
        %v3738 = vpop.f32.mrb[0].mxu0
        %3739 = vmatprep.mubr.f32.mxu0 0.0
        %3740 = vmatmul.mubr.f32.gmra.mrb[0].mxu0 %v3587
        %v3741 = vpop.f32.mrb[0].mxu0
        %v3742 = vadd.f32 0.0, %v3741
        %v3743 = vpop.f32.mrb[0].mxu0
        %3744 = vmatprep.mubr.f32.mxu0 0.0
        %3745 = vmatmul.mubr.f32.gmra.mrb[0].mxu0 %v3588
        %v3746 = vpop.f32.mrb[0].mxu0
        %v3747 = vadd.f32 0.0, %v3746
        %v3748 = vpop.f32.mrb[0].mxu0
        %3749 = vmatprep.mubr.f32.mxu0 0.0
        %3750 = vmatmul.mubr.f32.gmra.mrb[0].mxu0 %v3589
        %v3751 = vpop.f32.mrb[0].mxu0
        %v3752 = vadd.f32 0.0, %v3751
        %v3753 = vpop.f32.mrb[0].mxu0
        %3754 = vmatprep.mubr.f32.mxu0 0.0
        %3755 = vmatmul.mubr.f32.gmra.mrb[0].mxu0 %v3590
        %v3756 = vpop.f32.mrb[0].mxu0
        %v3757 = vadd.f32 0.0, %v3756
        %v3758 = vpop.f32.mrb[0].mxu0
        %3759 = vmatprep.mubr.f32.mxu0 0.0
        %3760 = vmatmul.mubr.f32.gmra.mrb[0].mxu0 %v3591
        %v3761 = vpop.f32.mrb[0].mxu0
        %v3762 = vadd.f32 0.0, %v3761
        %v3763 = vpop.f32.mrb[0].mxu0
        %3764 = vmatprep.mubr.f32.mxu0 0.0
        %3765 = vmatmul.mubr.f32.gmra.mrb[0].mxu0 %v3592
        %v3766 = vpop.f32.mrb[0].mxu0
        %v3767 = vadd.f32 0.0, %v3766
        %v3768 = vpop.f32.mrb[0].mxu0
        %3769 = vmatprep.mubr.f32.mxu0 0.0
        %3770 = vmatmul.mubr.f32.gmra.mrb[0].mxu0 %v3593
        %v3771 = vpop.f32.mrb[0].mxu0
        %v3772 = vadd.f32 0.0, %v3771
        %v3773 = vpop.f32.mrb[0].mxu0
        %3774 = vmatprep.mubr.f32.mxu0 0.0
        %3775 = vmatmul.mubr.f32.gmra.mrb[0].mxu0 %v3594
        %v3776 = vpop.f32.mrb[0].mxu0
        %v3777 = vadd.f32 0.0, %v3776
        %v3778 = vpop.f32.mrb[0].mxu0
        %3779 = vmatprep.mubr.f32.mxu0 0.0
        %3780 = vmatmul.mubr.f32.gmra.mrb[0].mxu0 %v3595
        %v3781 = vpop.f32.mrb[0].mxu0
        %v3782 = vadd.f32 0.0, %v3781
        %v3783 = vpop.f32.mrb[0].mxu0
        %3784 = vmatprep.mubr.f32.mxu0 0.0
        %3785 = vmatmul.mubr.f32.gmra.mrb[0].mxu0 %v3596
        %v3786 = vpop.f32.mrb[0].mxu0
        %v3787 = vadd.f32 0.0, %v3786
        %v3788 = vpop.f32.mrb[0].mxu0
        %3789 = vmatprep.mubr.f32.mxu0 0.0
        %3790 = vmatmul.mubr.f32.gmra.mrb[0].mxu0 %v3597
        %v3791 = vpop.f32.mrb[0].mxu0
        %v3792 = vadd.f32 0.0, %v3791
        %v3793 = vpop.f32.mrb[0].mxu0
        %3794 = vmatprep.mubr.f32.mxu0 0.0
        %3795 = vmatmul.mubr.f32.gmra.mrb[0].mxu0 %v3598
        %v3796 = vpop.f32.mrb[0].mxu0
        %v3797 = vadd.f32 0.0, %v3796
        %v3798 = vpop.f32.mrb[0].mxu0
        %3799 = vmatprep.mubr.f32.mxu0 0.0
        %3800 = vmatmul.mubr.f32.gmra.mrb[0].mxu0 %v3599
        %v3801 = vpop.f32.mrb[0].mxu0
        %v3802 = vadd.f32 0.0, %v3801
        %v3803 = vpop.f32.mrb[0].mxu0
        %3804 = vmatprep.mubr.f32.mxu0 0.0
        %3805 = vmatmul.mubr.f32.gmra.mrb[0].mxu0 %v3600
        %v3806 = vpop.f32.mrb[0].mxu0
        %v3807 = vadd.f32 0.0, %v3806
        %v3808 = vpop.f32.mrb[0].mxu0
        %3809 = vmatprep.mubr.f32.mxu0 0.0
        %3810 = vmatmul.mubr.f32.gmra.mrb[0].mxu0 %v3601
        %v3811 = vpop.f32.mrb[0].mxu0
        %v3812 = vadd.f32 0.0, %v3811
        %v3813 = vpop.f32.mrb[0].mxu0
        %3814 = vmatprep.mubr.f32.mxu0 0.0
        %3815 = vmatmul.mubr.f32.gmra.mrb[0].mxu0 %v3602
        %v3816 = vpop.f32.mrb[0].mxu0
        %v3817 = vadd.f32 0.0, %v3816
        %v3818 = vpop.f32.mrb[0].mxu0
        %3819 = vmatprep.mubr.f32.mxu0 0.0
        %3820 = vmatmul.mubr.f32.gmra.mrb[0].mxu0 %v3603
        %v3821 = vpop.f32.mrb[0].mxu0
        %v3822 = vadd.f32 0.0, %v3821
        %v3823 = vpop.f32.mrb[0].mxu0
        %3824 = vmatprep.mubr.f32.mxu0 0.0
        %3825 = vmatmul.mubr.f32.gmra.mrb[0].mxu0 %v3604
        %v3826 = vpop.f32.mrb[0].mxu0
        %v3827 = vadd.f32 0.0, %v3826
        %v3828 = vpop.f32.mrb[0].mxu0
        %3829 = vmatprep.mubr.f32.mxu0 0.0
        %3830 = vmatmul.mubr.f32.gmra.mrb[0].mxu0 %v3605
        %v3831 = vpop.f32.mrb[0].mxu0
        %v3832 = vadd.f32 0.0, %v3831
        %v3833 = vpop.f32.mrb[0].mxu0
        %3834 = vmatprep.mubr.f32.mxu0 0.0
        %3835 = vmatmul.mubr.f32.gmra.mrb[0].mxu0 %v3606
        %v3836 = vpop.f32.mrb[0].mxu0
        %v3837 = vadd.f32 0.0, %v3836
        %v3838 = vpop.f32.mrb[0].mxu0
        %3839 = vmatprep.mubr.f32.mxu0 0.0
        %3840 = vmatmul.mubr.f32.gmra.mrb[0].mxu0 %v3607
        %v3841 = vpop.f32.mrb[0].mxu0
        %v3842 = vadd.f32 0.0, %v3841
        %v3843 = vpop.f32.mrb[0].mxu0
        %3844 = vmatprep.mubr.f32.mxu0 0.0
        %3845 = vmatmul.mubr.f32.gmra.mrb[0].mxu0 %v3608
        %v3846 = vpop.f32.mrb[0].mxu0
        %v3847 = vadd.f32 0.0, %v3846
        %v3848 = vpop.f32.mrb[0].mxu0
        %3849 = vmatprep.mubr.f32.mxu0 0.0
        %3850 = vmatmul.mubr.f32.gmra.mrb[0].mxu0 %v3609
        %v3851 = vpop.f32.mrb[0].mxu0
        %v3852 = vadd.f32 0.0, %v3851
        %v3853 = vpop.f32.mrb[0].mxu0
        %3854 = vmatprep.mubr.f32.mxu0 0.0
        %3855 = vmatmul.mubr.f32.gmra.mrb[0].mxu0 %v3610
        %v3856 = vpop.f32.mrb[0].mxu0
        %v3857 = vadd.f32 0.0, %v3856
        %v3858 = vpop.f32.mrb[0].mxu0
        %3859 = vmatprep.mubr.f32.mxu0 0.0
        %3860 = vmatmul.mubr.f32.gmra.mrb[0].mxu0 %v3611
        %v3861 = vpop.f32.mrb[0].mxu0
        %v3862 = vadd.f32 0.0, %v3861
        %v3863 = vpop.f32.mrb[0].mxu0
        %3864 = vmatprep.mubr.f32.mxu0 0.0
        %3865 = vmatmul.mubr.f32.gmra.mrb[0].mxu0 %v3612
        %v3866 = vpop.f32.mrb[0].mxu0
        %v3867 = vadd.f32 0.0, %v3866
        %v3868 = vpop.f32.mrb[0].mxu0
        %3869 = vmatprep.mubr.f32.mxu0 0.0
        %3870 = vmatmul.mubr.f32.gmra.mrb[0].mxu0 %v3613
        %v3871 = vpop.f32.mrb[0].mxu0
        %v3872 = vadd.f32 0.0, %v3871
        %v3873 = vpop.f32.mrb[0].mxu0
        %3874 = vmatprep.mubr.f32.mxu0 0.0
        %3875 = vmatmul.mubr.f32.gmra.mrb[0].mxu0 %v3614
        %v3876 = vpop.f32.mrb[0].mxu0
        %v3877 = vadd.f32 0.0, %v3876
        %v3878 = vpop.f32.mrb[0].mxu0
        %3879 = vmatprep.mubr.f32.mxu0 0.0
        %3880 = vmatmul.mubr.f32.gmra.mrb[0].mxu0 %v3615
        %v3881 = vpop.f32.mrb[0].mxu0
        %v3882 = vadd.f32 0.0, %v3881
        %v3883 = vpop.f32.mrb[0].mxu0
        %3884 = vmatprep.mubr.f32.mxu0 0.0
        %3885 = vmatmul.mubr.f32.gmra.mrb[0].mxu0 %v3616
        %v3886 = vpop.f32.mrb[0].mxu0
        %v3887 = vadd.f32 0.0, %v3886
        %v3888 = vpop.f32.mrb[0].mxu0
        %3889 = vmatprep.mubr.f32.mxu0 0.0
        %3890 = vmatmul.mubr.f32.gmra.mrb[0].mxu0 %v3617
        %v3891 = vpop.f32.mrb[0].mxu0
        %v3892 = vadd.f32 0.0, %v3891
        %v3893 = vpop.f32.mrb[0].mxu0
        %3894 = vmatprep.mubr.f32.mxu0 0.0
        %3895 = vmatmul.mubr.f32.gmra.mrb[0].mxu0 %v3618
        %v3896 = vpop.f32.mrb[0].mxu0
        %v3897 = vadd.f32 0.0, %v3896
        %v3898 = vpop.f32.mrb[0].mxu0
        %3899 = vmatprep.mubr.f32.mxu0 0.0
        %3900 = vmatmul.mubr.f32.gmra.mrb[0].mxu0 %v3619
        %v3901 = vpop.f32.mrb[0].mxu0
        %v3902 = vadd.f32 0.0, %v3901
        %v3903 = vpop.f32.mrb[0].mxu0
        %3904 = vmatprep.mubr.f32.mxu0 0.0
        %3905 = vmatmul.mubr.f32.gmra.mrb[0].mxu0 %v3620
        %v3906 = vpop.f32.mrb[0].mxu0
        %v3907 = vadd.f32 0.0, %v3906
        %v3908 = vpop.f32.mrb[0].mxu0
        %3909 = vmatprep.mubr.f32.mxu0 0.0
        %3910 = vmatmul.mubr.f32.gmra.mrb[0].mxu0 %v3621
        %v3911 = vpop.f32.mrb[0].mxu0
        %v3912 = vadd.f32 0.0, %v3911
        %v3913 = vpop.f32.mrb[0].mxu0
        %3914 = vmatprep.mubr.f32.mxu0 0.0
        %3915 = vmatmul.mubr.f32.gmra.mrb[0].mxu0 %v3622
        %v3916 = vpop.f32.mrb[0].mxu0
        %v3917 = vadd.f32 0.0, %v3916
        %v3918 = vpop.f32.mrb[0].mxu0
        %3919 = vmatprep.mubr.f32.mxu0 0.0
        %3920 = vmatmul.mubr.f32.gmra.mrb[0].mxu0 %v3623
        %v3921 = vpop.f32.mrb[0].mxu0
        %v3922 = vadd.f32 0.0, %v3921
        %v3923 = vpop.f32.mrb[0].mxu0
        %3924 = vmatprep.mubr.f32.mxu0 0.0
        %3925 = vmatmul.mubr.f32.gmra.mrb[0].mxu0 %v3624
        %v3926 = vpop.f32.mrb[0].mxu0
        %v3927 = vadd.f32 0.0, %v3926
        %v3928 = vpop.f32.mrb[0].mxu0
        %3929 = vmatprep.mubr.f32.mxu0 0.0
        %3930 = vmatmul.mubr.f32.gmra.mrb[0].mxu0 %v3625
        %v3931 = vpop.f32.mrb[0].mxu0
        %v3932 = vadd.f32 0.0, %v3931
        %v3933 = vpop.f32.mrb[0].mxu0
        %3934 = vmatprep.mubr.f32.mxu0 0.0
        %3935 = vmatmul.mubr.f32.gmra.mrb[0].mxu0 %v3626
        %v3936 = vpop.f32.mrb[0].mxu0
        %v3937 = vadd.f32 0.0, %v3936
        %v3938 = vpop.f32.mrb[0].mxu0
        %3939 = vmatprep.mubr.f32.mxu0 0.0
        %3940 = vmatmul.mubr.f32.gmra.mrb[0].mxu0 %v3627
        %v3941 = vpop.f32.mrb[0].mxu0
        %v3942 = vadd.f32 0.0, %v3941
        %v3943 = vpop.f32.mrb[0].mxu0
        %3944 = vmatprep.mubr.f32.mxu0 0.0
        %3945 = vmatmul.mubr.f32.gmra.mrb[0].mxu0 %v3628
        %v3946 = vpop.f32.mrb[0].mxu0
        %v3947 = vadd.f32 0.0, %v3946
        %v3948 = vpop.f32.mrb[0].mxu0
        %3949 = vmatprep.mubr.f32.mxu0 0.0
        %3950 = vmatmul.mubr.f32.gmra.mrb[0].mxu0 %v3629
        %v3951 = vpop.f32.mrb[0].mxu0
        %v3952 = vadd.f32 0.0, %v3951
        %v3953 = vpop.f32.mrb[0].mxu0
        %3954 = vmatprep.mubr.f32.mxu0 0.0
        %3955 = vmatmul.mubr.f32.gmra.mrb[0].mxu0 %v3630
        %v3956 = vpop.f32.mrb[0].mxu0
        %v3957 = vadd.f32 0.0, %v3956
        %v3958 = vpop.f32.mrb[0].mxu0
        %3959 = vmatprep.mubr.f32.mxu0 0.0
        %3960 = vmatmul.mubr.f32.gmra.mrb[0].mxu0 %v3631
        %v3961 = vpop.f32.mrb[0].mxu0
        %v3962 = vadd.f32 0.0, %v3961
        %v3963 = vpop.f32.mrb[0].mxu0
        %3964 = vmatprep.mubr.f32.mxu0 0.0
        %3965 = vmatmul.mubr.f32.gmra.mrb[0].mxu0 %v3632
        %v3966 = vpop.f32.mrb[0].mxu0
        %v3967 = vadd.f32 0.0, %v3966
        %v3968 = vpop.f32.mrb[0].mxu0
        %3969 = vmatprep.mubr.f32.mxu0 0.0
        %3970 = vmatmul.mubr.f32.gmra.mrb[0].mxu0 %v3633
        %v3971 = vpop.f32.mrb[0].mxu0
        %v3972 = vadd.f32 0.0, %v3971
        %v3973 = vpop.f32.mrb[0].mxu0
        %3974 = vmatprep.mubr.f32.mxu0 0.0
        %3975 = vmatmul.mubr.f32.gmra.mrb[0].mxu0 %v3634
        %v3976 = vpop.f32.mrb[0].mxu0
        %v3977 = vadd.f32 0.0, %v3976
        %v3978 = vpop.f32.mrb[0].mxu0
        %3979 = vmatprep.mubr.f32.mxu0 0.0
        %3980 = vmatmul.mubr.f32.gmra.mrb[0].mxu0 %v3635
        %v3981 = vpop.f32.mrb[0].mxu0
        %v3982 = vadd.f32 0.0, %v3981
        %v3983 = vpop.f32.mrb[0].mxu0
        %3984 = vmatprep.mubr.f32.mxu0 0.0
        %3985 = vmatmul.mubr.f32.gmra.mrb[0].mxu0 %v3636
        %v3986 = vpop.f32.mrb[0].mxu0
        %v3987 = vadd.f32 0.0, %v3986
        %v3988 = vpop.f32.mrb[0].mxu0
        %3989 = vmatprep.mubr.f32.mxu0 0.0
        %3990 = vmatmul.mubr.f32.gmra.mrb[0].mxu0 %v3637
        %v3991 = vpop.f32.mrb[0].mxu0
        %v3992 = vadd.f32 0.0, %v3991
        %v3993 = vpop.f32.mrb[0].mxu0
        %3994 = vmatprep.mubr.f32.mxu0 0.0
        %3995 = vmatmul.mubr.f32.gmra.mrb[0].mxu0 %v3638
        %v3996 = vpop.f32.mrb[0].mxu0
        %v3997 = vadd.f32 0.0, %v3996
        %v3998 = vpop.f32.mrb[0].mxu0
        %3999 = vmatprep.mubr.f32.mxu0 0.0
        %4000 = vmatmul.mubr.f32.gmra.mrb[0].mxu0 %v3639
        %v4001 = vpop.f32.mrb[0].mxu0
        %v4002 = vadd.f32 0.0, %v4001
        %v4003 = vpop.f32.mrb[0].mxu0
        %4004 = vmatprep.mubr.f32.mxu0 0.0
        %4005 = vmatmul.mubr.f32.gmra.mrb[0].mxu0 %v3640
        %v4006 = vpop.f32.mrb[0].mxu0
        %v4007 = vadd.f32 0.0, %v4006
        %v4008 = vpop.f32.mrb[0].mxu0
        %4009 = vmatprep.mubr.f32.mxu0 0.0
        %4010 = vmatmul.mubr.f32.gmra.mrb[0].mxu0 %v3641
        %v4011 = vpop.f32.mrb[0].mxu0
        %v4012 = vadd.f32 0.0, %v4011
        %v4013 = vpop.f32.mrb[0].mxu0
        %4014 = vmatprep.mubr.f32.mxu0 0.0
        %4015 = vmatmul.mubr.f32.gmra.mrb[0].mxu0 %v3642
        %v4016 = vpop.f32.mrb[0].mxu0
        %v4017 = vadd.f32 0.0, %v4016
        %v4018 = vpop.f32.mrb[0].mxu0
        %4019 = vmatprep.mubr.f32.mxu0 0.0
        %4020 = vmatmul.mubr.f32.gmra.mrb[0].mxu0 %v3643
        %v4021 = vpop.f32.mrb[0].mxu0
        %v4022 = vadd.f32 0.0, %v4021
        %v4023 = vpop.f32.mrb[0].mxu0
        %4024 = vmatprep.mubr.f32.mxu0 0.0
        %4025 = vmatmul.mubr.f32.gmra.mrb[0].mxu0 %v3644
        %v4026 = vpop.f32.mrb[0].mxu0
        %v4027 = vadd.f32 0.0, %v4026
        %v4028 = vpop.f32.mrb[0].mxu0
        %4029 = vdwg.mxu0
        %4030 = vxpose.xlu0.b32.start [1/16] %v3712, 128
        %4031 = vxpose.xlu0.b32.cont [2/16] %v3717, 128
        %4032 = vxpose.xlu0.b32.cont [3/16] %v3722, 128
        %4033 = vxpose.xlu0.b32.cont [4/16] %v3727, 128
        %4034 = vxpose.xlu0.b32.cont [5/16] %v3732, 128
        %4035 = vxpose.xlu0.b32.cont [6/16] %v3737, 128
        %4036 = vxpose.xlu0.b32.cont [7/16] %v3742, 128
        %4037 = vxpose.xlu0.b32.cont [8/16] %v3747, 128
        %4038 = vxpose.xlu0.b32.cont [9/16] %v3752, 128
        %4039 = vxpose.xlu0.b32.cont [10/16] %v3757, 128
        %4040 = vxpose.xlu0.b32.cont [11/16] %v3762, 128
        %4041 = vxpose.xlu0.b32.cont [12/16] %v3767, 128
        %4042 = vxpose.xlu0.b32.cont [13/16] %v3772, 128
        %4043 = vxpose.xlu0.b32.cont [14/16] %v3777, 128
        %4044 = vxpose.xlu0.b32.cont [15/16] %v3782, 128
        %4045 = vxpose.xlu0.b32.end [16/16] %v3787, 128
        %v4046 = vpop.trf.xlu0
        %v4047 = vpop.trf.xlu0
        %v4048 = vpop.trf.xlu0
        %v4049 = vpop.trf.xlu0
        %v4050 = vpop.trf.xlu0
        %v4051 = vpop.trf.xlu0
        %v4052 = vpop.trf.xlu0
        %v4053 = vpop.trf.xlu0
        %v4054 = vpop.trf.xlu0
        %v4055 = vpop.trf.xlu0
        %v4056 = vpop.trf.xlu0
        %v4057 = vpop.trf.xlu0
        %v4058 = vpop.trf.xlu0
        %v4059 = vpop.trf.xlu0
        %v4060 = vpop.trf.xlu0
        %v4061 = vpop.trf.xlu0
        %4062 = vxpose.xlu0.b32.start [1/16] %v3792, 128
        %4063 = vxpose.xlu0.b32.cont [2/16] %v3797, 128
        %4064 = vxpose.xlu0.b32.cont [3/16] %v3802, 128
        %4065 = vxpose.xlu0.b32.cont [4/16] %v3807, 128
        %4066 = vxpose.xlu0.b32.cont [5/16] %v3812, 128
        %4067 = vxpose.xlu0.b32.cont [6/16] %v3817, 128
        %4068 = vxpose.xlu0.b32.cont [7/16] %v3822, 128
        %4069 = vxpose.xlu0.b32.cont [8/16] %v3827, 128
        %4070 = vxpose.xlu0.b32.cont [9/16] %v3832, 128
        %4071 = vxpose.xlu0.b32.cont [10/16] %v3837, 128
        %4072 = vxpose.xlu0.b32.cont [11/16] %v3842, 128
        %4073 = vxpose.xlu0.b32.cont [12/16] %v3847, 128
        %4074 = vxpose.xlu0.b32.cont [13/16] %v3852, 128
        %4075 = vxpose.xlu0.b32.cont [14/16] %v3857, 128
        %4076 = vxpose.xlu0.b32.cont [15/16] %v3862, 128
        %4077 = vxpose.xlu0.b32.end [16/16] %v3867, 128
        %v4078 = vpop.trf.xlu0
        %v4079 = vpop.trf.xlu0
        %v4080 = vpop.trf.xlu0
        %v4081 = vpop.trf.xlu0
        %v4082 = vpop.trf.xlu0
        %v4083 = vpop.trf.xlu0
        %v4084 = vpop.trf.xlu0
        %v4085 = vpop.trf.xlu0
        %v4086 = vpop.trf.xlu0
        %v4087 = vpop.trf.xlu0
        %v4088 = vpop.trf.xlu0
        %v4089 = vpop.trf.xlu0
        %v4090 = vpop.trf.xlu0
        %v4091 = vpop.trf.xlu0
        %v4092 = vpop.trf.xlu0
        %v4093 = vpop.trf.xlu0
        %4094 = vxpose.xlu0.b32.start [1/16] %v3872, 128
        %4095 = vxpose.xlu0.b32.cont [2/16] %v3877, 128
        %4096 = vxpose.xlu0.b32.cont [3/16] %v3882, 128
        %4097 = vxpose.xlu0.b32.cont [4/16] %v3887, 128
        %4098 = vxpose.xlu0.b32.cont [5/16] %v3892, 128
        %4099 = vxpose.xlu0.b32.cont [6/16] %v3897, 128
        %4100 = vxpose.xlu0.b32.cont [7/16] %v3902, 128
        %4101 = vxpose.xlu0.b32.cont [8/16] %v3907, 128
        %4102 = vxpose.xlu0.b32.cont [9/16] %v3912, 128
        %4103 = vxpose.xlu0.b32.cont [10/16] %v3917, 128
        %4104 = vxpose.xlu0.b32.cont [11/16] %v3922, 128
        %4105 = vxpose.xlu0.b32.cont [12/16] %v3927, 128
        %4106 = vxpose.xlu0.b32.cont [13/16] %v3932, 128
        %4107 = vxpose.xlu0.b32.cont [14/16] %v3937, 128
        %4108 = vxpose.xlu0.b32.cont [15/16] %v3942, 128
        %4109 = vxpose.xlu0.b32.end [16/16] %v3947, 128
        %v4110 = vpop.trf.xlu0
        %v4111 = vpop.trf.xlu0
        %v4112 = vpop.trf.xlu0
        %v4113 = vpop.trf.xlu0
        %v4114 = vpop.trf.xlu0
        %v4115 = vpop.trf.xlu0
        %v4116 = vpop.trf.xlu0
        %v4117 = vpop.trf.xlu0
        %v4118 = vpop.trf.xlu0
        %v4119 = vpop.trf.xlu0
        %v4120 = vpop.trf.xlu0
        %v4121 = vpop.trf.xlu0
        %v4122 = vpop.trf.xlu0
        %v4123 = vpop.trf.xlu0
        %v4124 = vpop.trf.xlu0
        %v4125 = vpop.trf.xlu0
        %4126 = vxpose.xlu0.b32.start [1/16] %v3952, 128
        %4127 = vxpose.xlu0.b32.cont [2/16] %v3957, 128
        %4128 = vxpose.xlu0.b32.cont [3/16] %v3962, 128
        %4129 = vxpose.xlu0.b32.cont [4/16] %v3967, 128
        %4130 = vxpose.xlu0.b32.cont [5/16] %v3972, 128
        %4131 = vxpose.xlu0.b32.cont [6/16] %v3977, 128
        %4132 = vxpose.xlu0.b32.cont [7/16] %v3982, 128
        %4133 = vxpose.xlu0.b32.cont [8/16] %v3987, 128
        %4134 = vxpose.xlu0.b32.cont [9/16] %v3992, 128
        %4135 = vxpose.xlu0.b32.cont [10/16] %v3997, 128
        %4136 = vxpose.xlu0.b32.cont [11/16] %v4002, 128
        %4137 = vxpose.xlu0.b32.cont [12/16] %v4007, 128
        %4138 = vxpose.xlu0.b32.cont [13/16] %v4012, 128
        %4139 = vxpose.xlu0.b32.cont [14/16] %v4017, 128
        %4140 = vxpose.xlu0.b32.cont [15/16] %v4022, 128
        %4141 = vxpose.xlu0.b32.end [16/16] %v4027, 128
        %v4142 = vpop.trf.xlu0
        %v4143 = vpop.trf.xlu0
        %v4144 = vpop.trf.xlu0
        %v4145 = vpop.trf.xlu0
        %v4146 = vpop.trf.xlu0
        %v4147 = vpop.trf.xlu0
        %v4148 = vpop.trf.xlu0
        %v4149 = vpop.trf.xlu0
        %v4150 = vpop.trf.xlu0
        %v4151 = vpop.trf.xlu0
        %v4152 = vpop.trf.xlu0
        %v4153 = vpop.trf.xlu0
        %v4154 = vpop.trf.xlu0
        %v4155 = vpop.trf.xlu0
        %v4156 = vpop.trf.xlu0
        %v4157 = vpop.trf.xlu0
        %4158 = vst [vmem:[%s332] sm:$0xff] %v4046
        %4159 = vst [vmem:[%s332 + $0x8] sm:$0xff] %v4078
        %4160 = vst [vmem:[%s332 + $0x10] sm:$0xff] %v4110
        %4161 = vst [vmem:[%s332 + $0x18] sm:$0xff] %v4142
        %v4162 = vlaneseq
        %v4163 = vshrl.u32 %v4162, 7
        %v4164 = vsub.s32 0, %v4163
        %v4165 = vrot.slane %v1866, %v4164
        %v4166 = vlaneseq
        %v4167 = vshrl.u32 %v4166, 7
        %v4168 = vsub.s32 1, %v4167
        %v4169 = vrot.slane %v1866, %v4168
        %v4170 = vlaneseq
        %v4171 = vshrl.u32 %v4170, 7
        %v4172 = vsub.s32 2, %v4171
        %v4173 = vrot.slane %v1866, %v4172
        %v4174 = vlaneseq
        %v4175 = vshrl.u32 %v4174, 7
        %v4176 = vsub.s32 3, %v4175
        %v4177 = vrot.slane %v1866, %v4176
        %v4178 = vlaneseq
        %v4179 = vshrl.u32 %v4178, 7
        %v4180 = vsub.s32 4, %v4179
        %v4181 = vrot.slane %v1866, %v4180
        %v4182 = vlaneseq
        %v4183 = vshrl.u32 %v4182, 7
        %v4184 = vsub.s32 5, %v4183
        %v4185 = vrot.slane %v1866, %v4184
        %v4186 = vlaneseq
        %v4187 = vshrl.u32 %v4186, 7
        %v4188 = vsub.s32 6, %v4187
        %v4189 = vrot.slane %v1866, %v4188
        %v4190 = vlaneseq
        %v4191 = vshrl.u32 %v4190, 7
        %v4192 = vsub.s32 7, %v4191
        %v4193 = vrot.slane %v1866, %v4192
        %v4194 = vlaneseq
        %v4195 = vshrl.u32 %v4194, 7
        %v4196 = vsub.s32 0, %v4195
        %v4197 = vrot.slane %v1880, %v4196
        %v4198 = vlaneseq
        %v4199 = vshrl.u32 %v4198, 7
        %v4200 = vsub.s32 1, %v4199
        %v4201 = vrot.slane %v1880, %v4200
        %v4202 = vlaneseq
        %v4203 = vshrl.u32 %v4202, 7
        %v4204 = vsub.s32 2, %v4203
        %v4205 = vrot.slane %v1880, %v4204
        %v4206 = vlaneseq
        %v4207 = vshrl.u32 %v4206, 7
        %v4208 = vsub.s32 3, %v4207
        %v4209 = vrot.slane %v1880, %v4208
        %v4210 = vlaneseq
        %v4211 = vshrl.u32 %v4210, 7
        %v4212 = vsub.s32 4, %v4211
        %v4213 = vrot.slane %v1880, %v4212
        %v4214 = vlaneseq
        %v4215 = vshrl.u32 %v4214, 7
        %v4216 = vsub.s32 5, %v4215
        %v4217 = vrot.slane %v1880, %v4216
        %v4218 = vlaneseq
        %v4219 = vshrl.u32 %v4218, 7
        %v4220 = vsub.s32 6, %v4219
        %v4221 = vrot.slane %v1880, %v4220
        %v4222 = vlaneseq
        %v4223 = vshrl.u32 %v4222, 7
        %v4224 = vsub.s32 7, %v4223
        %v4225 = vrot.slane %v1880, %v4224
        %v4226 = vlaneseq
        %v4227 = vshrl.u32 %v4226, 7
        %v4228 = vsub.s32 0, %v4227
        %v4229 = vrot.slane %v1894, %v4228
        %v4230 = vlaneseq
        %v4231 = vshrl.u32 %v4230, 7
        %v4232 = vsub.s32 1, %v4231
        %v4233 = vrot.slane %v1894, %v4232
        %v4234 = vlaneseq
        %v4235 = vshrl.u32 %v4234, 7
        %v4236 = vsub.s32 2, %v4235
        %v4237 = vrot.slane %v1894, %v4236
        %v4238 = vlaneseq
        %v4239 = vshrl.u32 %v4238, 7
        %v4240 = vsub.s32 3, %v4239
        %v4241 = vrot.slane %v1894, %v4240
        %v4242 = vlaneseq
        %v4243 = vshrl.u32 %v4242, 7
        %v4244 = vsub.s32 4, %v4243
        %v4245 = vrot.slane %v1894, %v4244
        %v4246 = vlaneseq
        %v4247 = vshrl.u32 %v4246, 7
        %v4248 = vsub.s32 5, %v4247
        %v4249 = vrot.slane %v1894, %v4248
        %v4250 = vlaneseq
        %v4251 = vshrl.u32 %v4250, 7
        %v4252 = vsub.s32 6, %v4251
        %v4253 = vrot.slane %v1894, %v4252
        %v4254 = vlaneseq
        %v4255 = vshrl.u32 %v4254, 7
        %v4256 = vsub.s32 7, %v4255
        %v4257 = vrot.slane %v1894, %v4256
        %v4258 = vlaneseq
        %v4259 = vshrl.u32 %v4258, 7
        %v4260 = vsub.s32 0, %v4259
        %v4261 = vrot.slane %v1908, %v4260
        %v4262 = vlaneseq
        %v4263 = vshrl.u32 %v4262, 7
        %v4264 = vsub.s32 1, %v4263
        %v4265 = vrot.slane %v1908, %v4264
        %v4266 = vlaneseq
        %v4267 = vshrl.u32 %v4266, 7
        %v4268 = vsub.s32 2, %v4267
        %v4269 = vrot.slane %v1908, %v4268
        %v4270 = vlaneseq
        %v4271 = vshrl.u32 %v4270, 7
        %v4272 = vsub.s32 3, %v4271
        %v4273 = vrot.slane %v1908, %v4272
        %v4274 = vlaneseq
        %v4275 = vshrl.u32 %v4274, 7
        %v4276 = vsub.s32 4, %v4275
        %v4277 = vrot.slane %v1908, %v4276
        %v4278 = vlaneseq
        %v4279 = vshrl.u32 %v4278, 7
        %v4280 = vsub.s32 5, %v4279
        %v4281 = vrot.slane %v1908, %v4280
        %v4282 = vlaneseq
        %v4283 = vshrl.u32 %v4282, 7
        %v4284 = vsub.s32 6, %v4283
        %v4285 = vrot.slane %v1908, %v4284
        %v4286 = vlaneseq
        %v4287 = vshrl.u32 %v4286, 7
        %v4288 = vsub.s32 7, %v4287
        %v4289 = vrot.slane %v1908, %v4288
        %v4290 = vlaneseq
        %v4291 = vshrl.u32 %v4290, 7
        %v4292 = vsub.s32 0, %v4291
        %v4293 = vrot.slane %v1922, %v4292
        %v4294 = vlaneseq
        %v4295 = vshrl.u32 %v4294, 7
        %v4296 = vsub.s32 1, %v4295
        %v4297 = vrot.slane %v1922, %v4296
        %v4298 = vlaneseq
        %v4299 = vshrl.u32 %v4298, 7
        %v4300 = vsub.s32 2, %v4299
        %v4301 = vrot.slane %v1922, %v4300
        %v4302 = vlaneseq
        %v4303 = vshrl.u32 %v4302, 7
        %v4304 = vsub.s32 3, %v4303
        %v4305 = vrot.slane %v1922, %v4304
        %v4306 = vlaneseq
        %v4307 = vshrl.u32 %v4306, 7
        %v4308 = vsub.s32 4, %v4307
        %v4309 = vrot.slane %v1922, %v4308
        %v4310 = vlaneseq
        %v4311 = vshrl.u32 %v4310, 7
        %v4312 = vsub.s32 5, %v4311
        %v4313 = vrot.slane %v1922, %v4312
        %v4314 = vlaneseq
        %v4315 = vshrl.u32 %v4314, 7
        %v4316 = vsub.s32 6, %v4315
        %v4317 = vrot.slane %v1922, %v4316
        %v4318 = vlaneseq
        %v4319 = vshrl.u32 %v4318, 7
        %v4320 = vsub.s32 7, %v4319
        %v4321 = vrot.slane %v1922, %v4320
        %v4322 = vlaneseq
        %v4323 = vshrl.u32 %v4322, 7
        %v4324 = vsub.s32 0, %v4323
        %v4325 = vrot.slane %v1936, %v4324
        %v4326 = vlaneseq
        %v4327 = vshrl.u32 %v4326, 7
        %v4328 = vsub.s32 1, %v4327
        %v4329 = vrot.slane %v1936, %v4328
        %v4330 = vlaneseq
        %v4331 = vshrl.u32 %v4330, 7
        %v4332 = vsub.s32 2, %v4331
        %v4333 = vrot.slane %v1936, %v4332
        %v4334 = vlaneseq
        %v4335 = vshrl.u32 %v4334, 7
        %v4336 = vsub.s32 3, %v4335
        %v4337 = vrot.slane %v1936, %v4336
        %v4338 = vlaneseq
        %v4339 = vshrl.u32 %v4338, 7
        %v4340 = vsub.s32 4, %v4339
        %v4341 = vrot.slane %v1936, %v4340
        %v4342 = vlaneseq
        %v4343 = vshrl.u32 %v4342, 7
        %v4344 = vsub.s32 5, %v4343
        %v4345 = vrot.slane %v1936, %v4344
        %v4346 = vlaneseq
        %v4347 = vshrl.u32 %v4346, 7
        %v4348 = vsub.s32 6, %v4347
        %v4349 = vrot.slane %v1936, %v4348
        %v4350 = vlaneseq
        %v4351 = vshrl.u32 %v4350, 7
        %v4352 = vsub.s32 7, %v4351
        %v4353 = vrot.slane %v1936, %v4352
        %v4354 = vlaneseq
        %v4355 = vshrl.u32 %v4354, 7
        %v4356 = vsub.s32 0, %v4355
        %v4357 = vrot.slane %v1950, %v4356
        %v4358 = vlaneseq
        %v4359 = vshrl.u32 %v4358, 7
        %v4360 = vsub.s32 1, %v4359
        %v4361 = vrot.slane %v1950, %v4360
        %v4362 = vlaneseq
        %v4363 = vshrl.u32 %v4362, 7
        %v4364 = vsub.s32 2, %v4363
        %v4365 = vrot.slane %v1950, %v4364
        %v4366 = vlaneseq
        %v4367 = vshrl.u32 %v4366, 7
        %v4368 = vsub.s32 3, %v4367
        %v4369 = vrot.slane %v1950, %v4368
        %v4370 = vlaneseq
        %v4371 = vshrl.u32 %v4370, 7
        %v4372 = vsub.s32 4, %v4371
        %v4373 = vrot.slane %v1950, %v4372
        %v4374 = vlaneseq
        %v4375 = vshrl.u32 %v4374, 7
        %v4376 = vsub.s32 5, %v4375
        %v4377 = vrot.slane %v1950, %v4376
        %v4378 = vlaneseq
        %v4379 = vshrl.u32 %v4378, 7
        %v4380 = vsub.s32 6, %v4379
        %v4381 = vrot.slane %v1950, %v4380
        %v4382 = vlaneseq
        %v4383 = vshrl.u32 %v4382, 7
        %v4384 = vsub.s32 7, %v4383
        %v4385 = vrot.slane %v1950, %v4384
        %v4386 = vlaneseq
        %v4387 = vshrl.u32 %v4386, 7
        %v4388 = vsub.s32 0, %v4387
        %v4389 = vrot.slane %v1964, %v4388
        %v4390 = vlaneseq
        %v4391 = vshrl.u32 %v4390, 7
        %v4392 = vsub.s32 1, %v4391
        %v4393 = vrot.slane %v1964, %v4392
        %v4394 = vlaneseq
        %v4395 = vshrl.u32 %v4394, 7
        %v4396 = vsub.s32 2, %v4395
        %v4397 = vrot.slane %v1964, %v4396
        %v4398 = vlaneseq
        %v4399 = vshrl.u32 %v4398, 7
        %v4400 = vsub.s32 3, %v4399
        %v4401 = vrot.slane %v1964, %v4400
        %v4402 = vlaneseq
        %v4403 = vshrl.u32 %v4402, 7
        %v4404 = vsub.s32 4, %v4403
        %v4405 = vrot.slane %v1964, %v4404
        %v4406 = vlaneseq
        %v4407 = vshrl.u32 %v4406, 7
        %v4408 = vsub.s32 5, %v4407
        %v4409 = vrot.slane %v1964, %v4408
        %v4410 = vlaneseq
        %v4411 = vshrl.u32 %v4410, 7
        %v4412 = vsub.s32 6, %v4411
        %v4413 = vrot.slane %v1964, %v4412
        %v4414 = vlaneseq
        %v4415 = vshrl.u32 %v4414, 7
        %v4416 = vsub.s32 7, %v4415
        %v4417 = vrot.slane %v1964, %v4416
        %v4418 = vlaneseq
        %v4419 = vshrl.u32 %v4418, 7
        %v4420 = vsub.s32 0, %v4419
        %v4421 = vrot.slane %v1978, %v4420
        %v4422 = vlaneseq
        %v4423 = vshrl.u32 %v4422, 7
        %v4424 = vsub.s32 1, %v4423
        %v4425 = vrot.slane %v1978, %v4424
        %v4426 = vlaneseq
        %v4427 = vshrl.u32 %v4426, 7
        %v4428 = vsub.s32 2, %v4427
        %v4429 = vrot.slane %v1978, %v4428
        %v4430 = vlaneseq
        %v4431 = vshrl.u32 %v4430, 7
        %v4432 = vsub.s32 3, %v4431
        %v4433 = vrot.slane %v1978, %v4432
        %v4434 = vlaneseq
        %v4435 = vshrl.u32 %v4434, 7
        %v4436 = vsub.s32 4, %v4435
        %v4437 = vrot.slane %v1978, %v4436
        %v4438 = vlaneseq
        %v4439 = vshrl.u32 %v4438, 7
        %v4440 = vsub.s32 5, %v4439
        %v4441 = vrot.slane %v1978, %v4440
        %v4442 = vlaneseq
        %v4443 = vshrl.u32 %v4442, 7
        %v4444 = vsub.s32 6, %v4443
        %v4445 = vrot.slane %v1978, %v4444
        %v4446 = vlaneseq
        %v4447 = vshrl.u32 %v4446, 7
        %v4448 = vsub.s32 7, %v4447
        %v4449 = vrot.slane %v1978, %v4448
        %v4450 = vlaneseq
        %v4451 = vshrl.u32 %v4450, 7
        %v4452 = vsub.s32 0, %v4451
        %v4453 = vrot.slane %v1992, %v4452
        %v4454 = vlaneseq
        %v4455 = vshrl.u32 %v4454, 7
        %v4456 = vsub.s32 1, %v4455
        %v4457 = vrot.slane %v1992, %v4456
        %v4458 = vlaneseq
        %v4459 = vshrl.u32 %v4458, 7
        %v4460 = vsub.s32 2, %v4459
        %v4461 = vrot.slane %v1992, %v4460
        %v4462 = vlaneseq
        %v4463 = vshrl.u32 %v4462, 7
        %v4464 = vsub.s32 3, %v4463
        %v4465 = vrot.slane %v1992, %v4464
        %v4466 = vlaneseq
        %v4467 = vshrl.u32 %v4466, 7
        %v4468 = vsub.s32 4, %v4467
        %v4469 = vrot.slane %v1992, %v4468
        %v4470 = vlaneseq
        %v4471 = vshrl.u32 %v4470, 7
        %v4472 = vsub.s32 5, %v4471
        %v4473 = vrot.slane %v1992, %v4472
        %v4474 = vlaneseq
        %v4475 = vshrl.u32 %v4474, 7
        %v4476 = vsub.s32 6, %v4475
        %v4477 = vrot.slane %v1992, %v4476
        %v4478 = vlaneseq
        %v4479 = vshrl.u32 %v4478, 7
        %v4480 = vsub.s32 7, %v4479
        %v4481 = vrot.slane %v1992, %v4480
        %v4482 = vlaneseq
        %v4483 = vshrl.u32 %v4482, 7
        %v4484 = vsub.s32 0, %v4483
        %v4485 = vrot.slane %v2006, %v4484
        %v4486 = vlaneseq
        %v4487 = vshrl.u32 %v4486, 7
        %v4488 = vsub.s32 1, %v4487
        %v4489 = vrot.slane %v2006, %v4488
        %v4490 = vlaneseq
        %v4491 = vshrl.u32 %v4490, 7
        %v4492 = vsub.s32 2, %v4491
        %v4493 = vrot.slane %v2006, %v4492
        %v4494 = vlaneseq
        %v4495 = vshrl.u32 %v4494, 7
        %v4496 = vsub.s32 3, %v4495
        %v4497 = vrot.slane %v2006, %v4496
        %v4498 = vlaneseq
        %v4499 = vshrl.u32 %v4498, 7
        %v4500 = vsub.s32 4, %v4499
        %v4501 = vrot.slane %v2006, %v4500
        %v4502 = vlaneseq
        %v4503 = vshrl.u32 %v4502, 7
        %v4504 = vsub.s32 5, %v4503
        %v4505 = vrot.slane %v2006, %v4504
        %v4506 = vlaneseq
        %v4507 = vshrl.u32 %v4506, 7
        %v4508 = vsub.s32 6, %v4507
        %v4509 = vrot.slane %v2006, %v4508
        %v4510 = vlaneseq
        %v4511 = vshrl.u32 %v4510, 7
        %v4512 = vsub.s32 7, %v4511
        %v4513 = vrot.slane %v2006, %v4512
        %v4514 = vlaneseq
        %v4515 = vshrl.u32 %v4514, 7
        %v4516 = vsub.s32 0, %v4515
        %v4517 = vrot.slane %v2020, %v4516
        %v4518 = vlaneseq
        %v4519 = vshrl.u32 %v4518, 7
        %v4520 = vsub.s32 1, %v4519
        %v4521 = vrot.slane %v2020, %v4520
        %v4522 = vlaneseq
        %v4523 = vshrl.u32 %v4522, 7
        %v4524 = vsub.s32 2, %v4523
        %v4525 = vrot.slane %v2020, %v4524
        %v4526 = vlaneseq
        %v4527 = vshrl.u32 %v4526, 7
        %v4528 = vsub.s32 3, %v4527
        %v4529 = vrot.slane %v2020, %v4528
        %v4530 = vlaneseq
        %v4531 = vshrl.u32 %v4530, 7
        %v4532 = vsub.s32 4, %v4531
        %v4533 = vrot.slane %v2020, %v4532
        %v4534 = vlaneseq
        %v4535 = vshrl.u32 %v4534, 7
        %v4536 = vsub.s32 5, %v4535
        %v4537 = vrot.slane %v2020, %v4536
        %v4538 = vlaneseq
        %v4539 = vshrl.u32 %v4538, 7
        %v4540 = vsub.s32 6, %v4539
        %v4541 = vrot.slane %v2020, %v4540
        %v4542 = vlaneseq
        %v4543 = vshrl.u32 %v4542, 7
        %v4544 = vsub.s32 7, %v4543
        %v4545 = vrot.slane %v2020, %v4544
        %v4546 = vlaneseq
        %v4547 = vshrl.u32 %v4546, 7
        %v4548 = vsub.s32 0, %v4547
        %v4549 = vrot.slane %v2034, %v4548
        %v4550 = vlaneseq
        %v4551 = vshrl.u32 %v4550, 7
        %v4552 = vsub.s32 1, %v4551
        %v4553 = vrot.slane %v2034, %v4552
        %v4554 = vlaneseq
        %v4555 = vshrl.u32 %v4554, 7
        %v4556 = vsub.s32 2, %v4555
        %v4557 = vrot.slane %v2034, %v4556
        %v4558 = vlaneseq
        %v4559 = vshrl.u32 %v4558, 7
        %v4560 = vsub.s32 3, %v4559
        %v4561 = vrot.slane %v2034, %v4560
        %v4562 = vlaneseq
        %v4563 = vshrl.u32 %v4562, 7
        %v4564 = vsub.s32 4, %v4563
        %v4565 = vrot.slane %v2034, %v4564
        %v4566 = vlaneseq
        %v4567 = vshrl.u32 %v4566, 7
        %v4568 = vsub.s32 5, %v4567
        %v4569 = vrot.slane %v2034, %v4568
        %v4570 = vlaneseq
        %v4571 = vshrl.u32 %v4570, 7
        %v4572 = vsub.s32 6, %v4571
        %v4573 = vrot.slane %v2034, %v4572
        %v4574 = vlaneseq
        %v4575 = vshrl.u32 %v4574, 7
        %v4576 = vsub.s32 7, %v4575
        %v4577 = vrot.slane %v2034, %v4576
        %v4578 = vlaneseq
        %v4579 = vshrl.u32 %v4578, 7
        %v4580 = vsub.s32 0, %v4579
        %v4581 = vrot.slane %v2048, %v4580
        %v4582 = vlaneseq
        %v4583 = vshrl.u32 %v4582, 7
        %v4584 = vsub.s32 1, %v4583
        %v4585 = vrot.slane %v2048, %v4584
        %v4586 = vlaneseq
        %v4587 = vshrl.u32 %v4586, 7
        %v4588 = vsub.s32 2, %v4587
        %v4589 = vrot.slane %v2048, %v4588
        %v4590 = vlaneseq
        %v4591 = vshrl.u32 %v4590, 7
        %v4592 = vsub.s32 3, %v4591
        %v4593 = vrot.slane %v2048, %v4592
        %v4594 = vlaneseq
        %v4595 = vshrl.u32 %v4594, 7
        %v4596 = vsub.s32 4, %v4595
        %v4597 = vrot.slane %v2048, %v4596
        %v4598 = vlaneseq
        %v4599 = vshrl.u32 %v4598, 7
        %v4600 = vsub.s32 5, %v4599
        %v4601 = vrot.slane %v2048, %v4600
        %v4602 = vlaneseq
        %v4603 = vshrl.u32 %v4602, 7
        %v4604 = vsub.s32 6, %v4603
        %v4605 = vrot.slane %v2048, %v4604
        %v4606 = vlaneseq
        %v4607 = vshrl.u32 %v4606, 7
        %v4608 = vsub.s32 7, %v4607
        %v4609 = vrot.slane %v2048, %v4608
        %v4610 = vlaneseq
        %v4611 = vshrl.u32 %v4610, 7
        %v4612 = vsub.s32 0, %v4611
        %v4613 = vrot.slane %v2062, %v4612
        %v4614 = vlaneseq
        %v4615 = vshrl.u32 %v4614, 7
        %v4616 = vsub.s32 1, %v4615
        %v4617 = vrot.slane %v2062, %v4616
        %v4618 = vlaneseq
        %v4619 = vshrl.u32 %v4618, 7
        %v4620 = vsub.s32 2, %v4619
        %v4621 = vrot.slane %v2062, %v4620
        %v4622 = vlaneseq
        %v4623 = vshrl.u32 %v4622, 7
        %v4624 = vsub.s32 3, %v4623
        %v4625 = vrot.slane %v2062, %v4624
        %v4626 = vlaneseq
        %v4627 = vshrl.u32 %v4626, 7
        %v4628 = vsub.s32 4, %v4627
        %v4629 = vrot.slane %v2062, %v4628
        %v4630 = vlaneseq
        %v4631 = vshrl.u32 %v4630, 7
        %v4632 = vsub.s32 5, %v4631
        %v4633 = vrot.slane %v2062, %v4632
        %v4634 = vlaneseq
        %v4635 = vshrl.u32 %v4634, 7
        %v4636 = vsub.s32 6, %v4635
        %v4637 = vrot.slane %v2062, %v4636
        %v4638 = vlaneseq
        %v4639 = vshrl.u32 %v4638, 7
        %v4640 = vsub.s32 7, %v4639
        %v4641 = vrot.slane %v2062, %v4640
        %v4642 = vlaneseq
        %v4643 = vshrl.u32 %v4642, 7
        %v4644 = vsub.s32 0, %v4643
        %v4645 = vrot.slane %v2076, %v4644
        %v4646 = vlaneseq
        %v4647 = vshrl.u32 %v4646, 7
        %v4648 = vsub.s32 1, %v4647
        %v4649 = vrot.slane %v2076, %v4648
        %v4650 = vlaneseq
        %v4651 = vshrl.u32 %v4650, 7
        %v4652 = vsub.s32 2, %v4651
        %v4653 = vrot.slane %v2076, %v4652
        %v4654 = vlaneseq
        %v4655 = vshrl.u32 %v4654, 7
        %v4656 = vsub.s32 3, %v4655
        %v4657 = vrot.slane %v2076, %v4656
        %v4658 = vlaneseq
        %v4659 = vshrl.u32 %v4658, 7
        %v4660 = vsub.s32 4, %v4659
        %v4661 = vrot.slane %v2076, %v4660
        %v4662 = vlaneseq
        %v4663 = vshrl.u32 %v4662, 7
        %v4664 = vsub.s32 5, %v4663
        %v4665 = vrot.slane %v2076, %v4664
        %v4666 = vlaneseq
        %v4667 = vshrl.u32 %v4666, 7
        %v4668 = vsub.s32 6, %v4667
        %v4669 = vrot.slane %v2076, %v4668
        %v4670 = vlaneseq
        %v4671 = vshrl.u32 %v4670, 7
        %v4672 = vsub.s32 7, %v4671
        %v4673 = vrot.slane %v2076, %v4672
        %v4674 = vlaneseq
        %v4675 = vshrl.u32 %v4674, 7
        %v4676 = vsub.s32 0, %v4675
        %v4677 = vrot.slane %v2090, %v4676
        %v4678 = vlaneseq
        %v4679 = vshrl.u32 %v4678, 7
        %v4680 = vsub.s32 1, %v4679
        %v4681 = vrot.slane %v2090, %v4680
        %v4682 = vlaneseq
        %v4683 = vshrl.u32 %v4682, 7
        %v4684 = vsub.s32 2, %v4683
        %v4685 = vrot.slane %v2090, %v4684
        %v4686 = vlaneseq
        %v4687 = vshrl.u32 %v4686, 7
        %v4688 = vsub.s32 3, %v4687
        %v4689 = vrot.slane %v2090, %v4688
        %v4690 = vlaneseq
        %v4691 = vshrl.u32 %v4690, 7
        %v4692 = vsub.s32 4, %v4691
        %v4693 = vrot.slane %v2090, %v4692
        %v4694 = vlaneseq
        %v4695 = vshrl.u32 %v4694, 7
        %v4696 = vsub.s32 5, %v4695
        %v4697 = vrot.slane %v2090, %v4696
        %v4698 = vlaneseq
        %v4699 = vshrl.u32 %v4698, 7
        %v4700 = vsub.s32 6, %v4699
        %v4701 = vrot.slane %v2090, %v4700
        %v4702 = vlaneseq
        %v4703 = vshrl.u32 %v4702, 7
        %v4704 = vsub.s32 7, %v4703
        %v4705 = vrot.slane %v2090, %v4704
        %v4706 = vlaneseq
        %v4707 = vshrl.u32 %v4706, 7
        %v4708 = vsub.s32 0, %v4707
        %v4709 = vrot.slane %v2104, %v4708
        %v4710 = vlaneseq
        %v4711 = vshrl.u32 %v4710, 7
        %v4712 = vsub.s32 1, %v4711
        %v4713 = vrot.slane %v2104, %v4712
        %v4714 = vlaneseq
        %v4715 = vshrl.u32 %v4714, 7
        %v4716 = vsub.s32 2, %v4715
        %v4717 = vrot.slane %v2104, %v4716
        %v4718 = vlaneseq
        %v4719 = vshrl.u32 %v4718, 7
        %v4720 = vsub.s32 3, %v4719
        %v4721 = vrot.slane %v2104, %v4720
        %v4722 = vlaneseq
        %v4723 = vshrl.u32 %v4722, 7
        %v4724 = vsub.s32 4, %v4723
        %v4725 = vrot.slane %v2104, %v4724
        %v4726 = vlaneseq
        %v4727 = vshrl.u32 %v4726, 7
        %v4728 = vsub.s32 5, %v4727
        %v4729 = vrot.slane %v2104, %v4728
        %v4730 = vlaneseq
        %v4731 = vshrl.u32 %v4730, 7
        %v4732 = vsub.s32 6, %v4731
        %v4733 = vrot.slane %v2104, %v4732
        %v4734 = vlaneseq
        %v4735 = vshrl.u32 %v4734, 7
        %v4736 = vsub.s32 7, %v4735
        %v4737 = vrot.slane %v2104, %v4736
        %v4738 = vlaneseq
        %v4739 = vshrl.u32 %v4738, 7
        %v4740 = vsub.s32 0, %v4739
        %v4741 = vrot.slane %v2118, %v4740
        %v4742 = vlaneseq
        %v4743 = vshrl.u32 %v4742, 7
        %v4744 = vsub.s32 1, %v4743
        %v4745 = vrot.slane %v2118, %v4744
        %v4746 = vlaneseq
        %v4747 = vshrl.u32 %v4746, 7
        %v4748 = vsub.s32 2, %v4747
        %v4749 = vrot.slane %v2118, %v4748
        %v4750 = vlaneseq
        %v4751 = vshrl.u32 %v4750, 7
        %v4752 = vsub.s32 3, %v4751
        %v4753 = vrot.slane %v2118, %v4752
        %v4754 = vlaneseq
        %v4755 = vshrl.u32 %v4754, 7
        %v4756 = vsub.s32 4, %v4755
        %v4757 = vrot.slane %v2118, %v4756
        %v4758 = vlaneseq
        %v4759 = vshrl.u32 %v4758, 7
        %v4760 = vsub.s32 5, %v4759
        %v4761 = vrot.slane %v2118, %v4760
        %v4762 = vlaneseq
        %v4763 = vshrl.u32 %v4762, 7
        %v4764 = vsub.s32 6, %v4763
        %v4765 = vrot.slane %v2118, %v4764
        %v4766 = vlaneseq
        %v4767 = vshrl.u32 %v4766, 7
        %v4768 = vsub.s32 7, %v4767
        %v4769 = vrot.slane %v2118, %v4768
        %v4770 = vlaneseq
        %v4771 = vshrl.u32 %v4770, 7
        %v4772 = vsub.s32 0, %v4771
        %v4773 = vrot.slane %v2132, %v4772
        %v4774 = vlaneseq
        %v4775 = vshrl.u32 %v4774, 7
        %v4776 = vsub.s32 1, %v4775
        %v4777 = vrot.slane %v2132, %v4776
        %v4778 = vlaneseq
        %v4779 = vshrl.u32 %v4778, 7
        %v4780 = vsub.s32 2, %v4779
        %v4781 = vrot.slane %v2132, %v4780
        %v4782 = vlaneseq
        %v4783 = vshrl.u32 %v4782, 7
        %v4784 = vsub.s32 3, %v4783
        %v4785 = vrot.slane %v2132, %v4784
        %v4786 = vlaneseq
        %v4787 = vshrl.u32 %v4786, 7
        %v4788 = vsub.s32 4, %v4787
        %v4789 = vrot.slane %v2132, %v4788
        %v4790 = vlaneseq
        %v4791 = vshrl.u32 %v4790, 7
        %v4792 = vsub.s32 5, %v4791
        %v4793 = vrot.slane %v2132, %v4792
        %v4794 = vlaneseq
        %v4795 = vshrl.u32 %v4794, 7
        %v4796 = vsub.s32 6, %v4795
        %v4797 = vrot.slane %v2132, %v4796
        %v4798 = vlaneseq
        %v4799 = vshrl.u32 %v4798, 7
        %v4800 = vsub.s32 7, %v4799
        %v4801 = vrot.slane %v2132, %v4800
        %v4802 = vlaneseq
        %v4803 = vshrl.u32 %v4802, 7
        %v4804 = vsub.s32 0, %v4803
        %v4805 = vrot.slane %v2146, %v4804
        %v4806 = vlaneseq
        %v4807 = vshrl.u32 %v4806, 7
        %v4808 = vsub.s32 1, %v4807
        %v4809 = vrot.slane %v2146, %v4808
        %v4810 = vlaneseq
        %v4811 = vshrl.u32 %v4810, 7
        %v4812 = vsub.s32 2, %v4811
        %v4813 = vrot.slane %v2146, %v4812
        %v4814 = vlaneseq
        %v4815 = vshrl.u32 %v4814, 7
        %v4816 = vsub.s32 3, %v4815
        %v4817 = vrot.slane %v2146, %v4816
        %v4818 = vlaneseq
        %v4819 = vshrl.u32 %v4818, 7
        %v4820 = vsub.s32 4, %v4819
        %v4821 = vrot.slane %v2146, %v4820
        %v4822 = vlaneseq
        %v4823 = vshrl.u32 %v4822, 7
        %v4824 = vsub.s32 5, %v4823
        %v4825 = vrot.slane %v2146, %v4824
        %v4826 = vlaneseq
        %v4827 = vshrl.u32 %v4826, 7
        %v4828 = vsub.s32 6, %v4827
        %v4829 = vrot.slane %v2146, %v4828
        %v4830 = vlaneseq
        %v4831 = vshrl.u32 %v4830, 7
        %v4832 = vsub.s32 7, %v4831
        %v4833 = vrot.slane %v2146, %v4832
        %v4834 = vlaneseq
        %v4835 = vshrl.u32 %v4834, 7
        %v4836 = vsub.s32 0, %v4835
        %v4837 = vrot.slane %v2160, %v4836
        %v4838 = vlaneseq
        %v4839 = vshrl.u32 %v4838, 7
        %v4840 = vsub.s32 1, %v4839
        %v4841 = vrot.slane %v2160, %v4840
        %v4842 = vlaneseq
        %v4843 = vshrl.u32 %v4842, 7
        %v4844 = vsub.s32 2, %v4843
        %v4845 = vrot.slane %v2160, %v4844
        %v4846 = vlaneseq
        %v4847 = vshrl.u32 %v4846, 7
        %v4848 = vsub.s32 3, %v4847
        %v4849 = vrot.slane %v2160, %v4848
        %v4850 = vlaneseq
        %v4851 = vshrl.u32 %v4850, 7
        %v4852 = vsub.s32 4, %v4851
        %v4853 = vrot.slane %v2160, %v4852
        %v4854 = vlaneseq
        %v4855 = vshrl.u32 %v4854, 7
        %v4856 = vsub.s32 5, %v4855
        %v4857 = vrot.slane %v2160, %v4856
        %v4858 = vlaneseq
        %v4859 = vshrl.u32 %v4858, 7
        %v4860 = vsub.s32 6, %v4859
        %v4861 = vrot.slane %v2160, %v4860
        %v4862 = vlaneseq
        %v4863 = vshrl.u32 %v4862, 7
        %v4864 = vsub.s32 7, %v4863
        %v4865 = vrot.slane %v2160, %v4864
        %v4866 = vlaneseq
        %v4867 = vshrl.u32 %v4866, 7
        %v4868 = vsub.s32 0, %v4867
        %v4869 = vrot.slane %v2174, %v4868
        %v4870 = vlaneseq
        %v4871 = vshrl.u32 %v4870, 7
        %v4872 = vsub.s32 1, %v4871
        %v4873 = vrot.slane %v2174, %v4872
        %v4874 = vlaneseq
        %v4875 = vshrl.u32 %v4874, 7
        %v4876 = vsub.s32 2, %v4875
        %v4877 = vrot.slane %v2174, %v4876
        %v4878 = vlaneseq
        %v4879 = vshrl.u32 %v4878, 7
        %v4880 = vsub.s32 3, %v4879
        %v4881 = vrot.slane %v2174, %v4880
        %v4882 = vlaneseq
        %v4883 = vshrl.u32 %v4882, 7
        %v4884 = vsub.s32 4, %v4883
        %v4885 = vrot.slane %v2174, %v4884
        %v4886 = vlaneseq
        %v4887 = vshrl.u32 %v4886, 7
        %v4888 = vsub.s32 5, %v4887
        %v4889 = vrot.slane %v2174, %v4888
        %v4890 = vlaneseq
        %v4891 = vshrl.u32 %v4890, 7
        %v4892 = vsub.s32 6, %v4891
        %v4893 = vrot.slane %v2174, %v4892
        %v4894 = vlaneseq
        %v4895 = vshrl.u32 %v4894, 7
        %v4896 = vsub.s32 7, %v4895
        %v4897 = vrot.slane %v2174, %v4896
        %v4898 = vlaneseq
        %v4899 = vshrl.u32 %v4898, 7
        %v4900 = vsub.s32 0, %v4899
        %v4901 = vrot.slane %v2188, %v4900
        %v4902 = vlaneseq
        %v4903 = vshrl.u32 %v4902, 7
        %v4904 = vsub.s32 1, %v4903
        %v4905 = vrot.slane %v2188, %v4904
        %v4906 = vlaneseq
        %v4907 = vshrl.u32 %v4906, 7
        %v4908 = vsub.s32 2, %v4907
        %v4909 = vrot.slane %v2188, %v4908
        %v4910 = vlaneseq
        %v4911 = vshrl.u32 %v4910, 7
        %v4912 = vsub.s32 3, %v4911
        %v4913 = vrot.slane %v2188, %v4912
        %v4914 = vlaneseq
        %v4915 = vshrl.u32 %v4914, 7
        %v4916 = vsub.s32 4, %v4915
        %v4917 = vrot.slane %v2188, %v4916
        %v4918 = vlaneseq
        %v4919 = vshrl.u32 %v4918, 7
        %v4920 = vsub.s32 5, %v4919
        %v4921 = vrot.slane %v2188, %v4920
        %v4922 = vlaneseq
        %v4923 = vshrl.u32 %v4922, 7
        %v4924 = vsub.s32 6, %v4923
        %v4925 = vrot.slane %v2188, %v4924
        %v4926 = vlaneseq
        %v4927 = vshrl.u32 %v4926, 7
        %v4928 = vsub.s32 7, %v4927
        %v4929 = vrot.slane %v2188, %v4928
        %v4930 = vlaneseq
        %v4931 = vshrl.u32 %v4930, 7
        %v4932 = vsub.s32 0, %v4931
        %v4933 = vrot.slane %v2202, %v4932
        %v4934 = vlaneseq
        %v4935 = vshrl.u32 %v4934, 7
        %v4936 = vsub.s32 1, %v4935
        %v4937 = vrot.slane %v2202, %v4936
        %v4938 = vlaneseq
        %v4939 = vshrl.u32 %v4938, 7
        %v4940 = vsub.s32 2, %v4939
        %v4941 = vrot.slane %v2202, %v4940
        %v4942 = vlaneseq
        %v4943 = vshrl.u32 %v4942, 7
        %v4944 = vsub.s32 3, %v4943
        %v4945 = vrot.slane %v2202, %v4944
        %v4946 = vlaneseq
        %v4947 = vshrl.u32 %v4946, 7
        %v4948 = vsub.s32 4, %v4947
        %v4949 = vrot.slane %v2202, %v4948
        %v4950 = vlaneseq
        %v4951 = vshrl.u32 %v4950, 7
        %v4952 = vsub.s32 5, %v4951
        %v4953 = vrot.slane %v2202, %v4952
        %v4954 = vlaneseq
        %v4955 = vshrl.u32 %v4954, 7
        %v4956 = vsub.s32 6, %v4955
        %v4957 = vrot.slane %v2202, %v4956
        %v4958 = vlaneseq
        %v4959 = vshrl.u32 %v4958, 7
        %v4960 = vsub.s32 7, %v4959
        %v4961 = vrot.slane %v2202, %v4960
        %v4962 = vlaneseq
        %v4963 = vshrl.u32 %v4962, 7
        %v4964 = vsub.s32 0, %v4963
        %v4965 = vrot.slane %v2216, %v4964
        %v4966 = vlaneseq
        %v4967 = vshrl.u32 %v4966, 7
        %v4968 = vsub.s32 1, %v4967
        %v4969 = vrot.slane %v2216, %v4968
        %v4970 = vlaneseq
        %v4971 = vshrl.u32 %v4970, 7
        %v4972 = vsub.s32 2, %v4971
        %v4973 = vrot.slane %v2216, %v4972
        %v4974 = vlaneseq
        %v4975 = vshrl.u32 %v4974, 7
        %v4976 = vsub.s32 3, %v4975
        %v4977 = vrot.slane %v2216, %v4976
        %v4978 = vlaneseq
        %v4979 = vshrl.u32 %v4978, 7
        %v4980 = vsub.s32 4, %v4979
        %v4981 = vrot.slane %v2216, %v4980
        %v4982 = vlaneseq
        %v4983 = vshrl.u32 %v4982, 7
        %v4984 = vsub.s32 5, %v4983
        %v4985 = vrot.slane %v2216, %v4984
        %v4986 = vlaneseq
        %v4987 = vshrl.u32 %v4986, 7
        %v4988 = vsub.s32 6, %v4987
        %v4989 = vrot.slane %v2216, %v4988
        %v4990 = vlaneseq
        %v4991 = vshrl.u32 %v4990, 7
        %v4992 = vsub.s32 7, %v4991
        %v4993 = vrot.slane %v2216, %v4992
        %v4994 = vlaneseq
        %v4995 = vshrl.u32 %v4994, 7
        %v4996 = vsub.s32 0, %v4995
        %v4997 = vrot.slane %v2230, %v4996
        %v4998 = vlaneseq
        %v4999 = vshrl.u32 %v4998, 7
        %v5000 = vsub.s32 1, %v4999
        %v5001 = vrot.slane %v2230, %v5000
        %v5002 = vlaneseq
        %v5003 = vshrl.u32 %v5002, 7
        %v5004 = vsub.s32 2, %v5003
        %v5005 = vrot.slane %v2230, %v5004
        %v5006 = vlaneseq
        %v5007 = vshrl.u32 %v5006, 7
        %v5008 = vsub.s32 3, %v5007
        %v5009 = vrot.slane %v2230, %v5008
        %v5010 = vlaneseq
        %v5011 = vshrl.u32 %v5010, 7
        %v5012 = vsub.s32 4, %v5011
        %v5013 = vrot.slane %v2230, %v5012
        %v5014 = vlaneseq
        %v5015 = vshrl.u32 %v5014, 7
        %v5016 = vsub.s32 5, %v5015
        %v5017 = vrot.slane %v2230, %v5016
        %v5018 = vlaneseq
        %v5019 = vshrl.u32 %v5018, 7
        %v5020 = vsub.s32 6, %v5019
        %v5021 = vrot.slane %v2230, %v5020
        %v5022 = vlaneseq
        %v5023 = vshrl.u32 %v5022, 7
        %v5024 = vsub.s32 7, %v5023
        %v5025 = vrot.slane %v2230, %v5024
        %v5026 = vlaneseq
        %v5027 = vshrl.u32 %v5026, 7
        %v5028 = vsub.s32 0, %v5027
        %v5029 = vrot.slane %v2244, %v5028
        %v5030 = vlaneseq
        %v5031 = vshrl.u32 %v5030, 7
        %v5032 = vsub.s32 1, %v5031
        %v5033 = vrot.slane %v2244, %v5032
        %v5034 = vlaneseq
        %v5035 = vshrl.u32 %v5034, 7
        %v5036 = vsub.s32 2, %v5035
        %v5037 = vrot.slane %v2244, %v5036
        %v5038 = vlaneseq
        %v5039 = vshrl.u32 %v5038, 7
        %v5040 = vsub.s32 3, %v5039
        %v5041 = vrot.slane %v2244, %v5040
        %v5042 = vlaneseq
        %v5043 = vshrl.u32 %v5042, 7
        %v5044 = vsub.s32 4, %v5043
        %v5045 = vrot.slane %v2244, %v5044
        %v5046 = vlaneseq
        %v5047 = vshrl.u32 %v5046, 7
        %v5048 = vsub.s32 5, %v5047
        %v5049 = vrot.slane %v2244, %v5048
        %v5050 = vlaneseq
        %v5051 = vshrl.u32 %v5050, 7
        %v5052 = vsub.s32 6, %v5051
        %v5053 = vrot.slane %v2244, %v5052
        %v5054 = vlaneseq
        %v5055 = vshrl.u32 %v5054, 7
        %v5056 = vsub.s32 7, %v5055
        %v5057 = vrot.slane %v2244, %v5056
        %v5058 = vlaneseq
        %v5059 = vshrl.u32 %v5058, 7
        %v5060 = vsub.s32 0, %v5059
        %v5061 = vrot.slane %v2258, %v5060
        %v5062 = vlaneseq
        %v5063 = vshrl.u32 %v5062, 7
        %v5064 = vsub.s32 1, %v5063
        %v5065 = vrot.slane %v2258, %v5064
        %v5066 = vlaneseq
        %v5067 = vshrl.u32 %v5066, 7
        %v5068 = vsub.s32 2, %v5067
        %v5069 = vrot.slane %v2258, %v5068
        %v5070 = vlaneseq
        %v5071 = vshrl.u32 %v5070, 7
        %v5072 = vsub.s32 3, %v5071
        %v5073 = vrot.slane %v2258, %v5072
        %v5074 = vlaneseq
        %v5075 = vshrl.u32 %v5074, 7
        %v5076 = vsub.s32 4, %v5075
        %v5077 = vrot.slane %v2258, %v5076
        %v5078 = vlaneseq
        %v5079 = vshrl.u32 %v5078, 7
        %v5080 = vsub.s32 5, %v5079
        %v5081 = vrot.slane %v2258, %v5080
        %v5082 = vlaneseq
        %v5083 = vshrl.u32 %v5082, 7
        %v5084 = vsub.s32 6, %v5083
        %v5085 = vrot.slane %v2258, %v5084
        %v5086 = vlaneseq
        %v5087 = vshrl.u32 %v5086, 7
        %v5088 = vsub.s32 7, %v5087
        %v5089 = vrot.slane %v2258, %v5088
        %v5090 = vlaneseq
        %v5091 = vshrl.u32 %v5090, 7
        %v5092 = vsub.s32 0, %v5091
        %v5093 = vrot.slane %v2272, %v5092
        %v5094 = vlaneseq
        %v5095 = vshrl.u32 %v5094, 7
        %v5096 = vsub.s32 1, %v5095
        %v5097 = vrot.slane %v2272, %v5096
        %v5098 = vlaneseq
        %v5099 = vshrl.u32 %v5098, 7
        %v5100 = vsub.s32 2, %v5099
        %v5101 = vrot.slane %v2272, %v5100
        %v5102 = vlaneseq
        %v5103 = vshrl.u32 %v5102, 7
        %v5104 = vsub.s32 3, %v5103
        %v5105 = vrot.slane %v2272, %v5104
        %v5106 = vlaneseq
        %v5107 = vshrl.u32 %v5106, 7
        %v5108 = vsub.s32 4, %v5107
        %v5109 = vrot.slane %v2272, %v5108
        %v5110 = vlaneseq
        %v5111 = vshrl.u32 %v5110, 7
        %v5112 = vsub.s32 5, %v5111
        %v5113 = vrot.slane %v2272, %v5112
        %v5114 = vlaneseq
        %v5115 = vshrl.u32 %v5114, 7
        %v5116 = vsub.s32 6, %v5115
        %v5117 = vrot.slane %v2272, %v5116
        %v5118 = vlaneseq
        %v5119 = vshrl.u32 %v5118, 7
        %v5120 = vsub.s32 7, %v5119
        %v5121 = vrot.slane %v2272, %v5120
        %v5122 = vlaneseq
        %v5123 = vshrl.u32 %v5122, 7
        %v5124 = vsub.s32 0, %v5123
        %v5125 = vrot.slane %v2286, %v5124
        %v5126 = vlaneseq
        %v5127 = vshrl.u32 %v5126, 7
        %v5128 = vsub.s32 1, %v5127
        %v5129 = vrot.slane %v2286, %v5128
        %v5130 = vlaneseq
        %v5131 = vshrl.u32 %v5130, 7
        %v5132 = vsub.s32 2, %v5131
        %v5133 = vrot.slane %v2286, %v5132
        %v5134 = vlaneseq
        %v5135 = vshrl.u32 %v5134, 7
        %v5136 = vsub.s32 3, %v5135
        %v5137 = vrot.slane %v2286, %v5136
        %v5138 = vlaneseq
        %v5139 = vshrl.u32 %v5138, 7
        %v5140 = vsub.s32 4, %v5139
        %v5141 = vrot.slane %v2286, %v5140
        %v5142 = vlaneseq
        %v5143 = vshrl.u32 %v5142, 7
        %v5144 = vsub.s32 5, %v5143
        %v5145 = vrot.slane %v2286, %v5144
        %v5146 = vlaneseq
        %v5147 = vshrl.u32 %v5146, 7
        %v5148 = vsub.s32 6, %v5147
        %v5149 = vrot.slane %v2286, %v5148
        %v5150 = vlaneseq
        %v5151 = vshrl.u32 %v5150, 7
        %v5152 = vsub.s32 7, %v5151
        %v5153 = vrot.slane %v2286, %v5152
        %v5154 = vlaneseq
        %v5155 = vshrl.u32 %v5154, 7
        %v5156 = vsub.s32 0, %v5155
        %v5157 = vrot.slane %v2300, %v5156
        %v5158 = vlaneseq
        %v5159 = vshrl.u32 %v5158, 7
        %v5160 = vsub.s32 1, %v5159
        %v5161 = vrot.slane %v2300, %v5160
        %v5162 = vlaneseq
        %v5163 = vshrl.u32 %v5162, 7
        %v5164 = vsub.s32 2, %v5163
        %v5165 = vrot.slane %v2300, %v5164
        %v5166 = vlaneseq
        %v5167 = vshrl.u32 %v5166, 7
        %v5168 = vsub.s32 3, %v5167
        %v5169 = vrot.slane %v2300, %v5168
        %v5170 = vlaneseq
        %v5171 = vshrl.u32 %v5170, 7
        %v5172 = vsub.s32 4, %v5171
        %v5173 = vrot.slane %v2300, %v5172
        %v5174 = vlaneseq
        %v5175 = vshrl.u32 %v5174, 7
        %v5176 = vsub.s32 5, %v5175
        %v5177 = vrot.slane %v2300, %v5176
        %v5178 = vlaneseq
        %v5179 = vshrl.u32 %v5178, 7
        %v5180 = vsub.s32 6, %v5179
        %v5181 = vrot.slane %v2300, %v5180
        %v5182 = vlaneseq
        %v5183 = vshrl.u32 %v5182, 7
        %v5184 = vsub.s32 7, %v5183
        %v5185 = vrot.slane %v2300, %v5184
        %v5186 = vcombine.low %v4165, %v4169
        %v5187 = vcombine.low %v4173, %v4177
        %v5188 = vcombine.low %v4181, %v4185
        %v5189 = vcombine.low %v4189, %v4193
        %v5191 = vunpack.c.l.s4 1966171168
        %v5192 = vunpack.c.0.s8 %v5191
        %v5193 = vlaneseq
        %v5194 = vshrl.u32 %v5193, 7
        %v5195 = vsub.s32 %v5192, %v5194
        %v5196 = vrot.slane %v5186, %v5195
        %v5198 = vunpack.c.l.s4 1966171168
        %v5199 = vunpack.c.0.s8 %v5198
        %v5200 = vlaneseq
        %v5201 = vshrl.u32 %v5200, 7
        %v5202 = vsub.s32 %v5199, %v5201
        %v5203 = vrot.slane %v5187, %v5202
        %v5205 = vunpack.c.l.s4 1966171168
        %v5206 = vunpack.c.0.s8 %v5205
        %v5207 = vlaneseq
        %v5208 = vshrl.u32 %v5207, 7
        %v5209 = vsub.s32 %v5206, %v5208
        %v5210 = vrot.slane %v5188, %v5209
        %v5212 = vunpack.c.l.s4 1966171168
        %v5213 = vunpack.c.0.s8 %v5212
        %v5214 = vlaneseq
        %v5215 = vshrl.u32 %v5214, 7
        %v5216 = vsub.s32 %v5213, %v5215
        %v5217 = vrot.slane %v5189, %v5216
        %v5218 = vcombine.low %v5196, %v5203
        %v5219 = vcombine.low %v5210, %v5217
        %v5221 = vunpack.c.l.s4 1966171168
        %v5222 = vunpack.c.0.s8 %v5221
        %v5223 = vlaneseq
        %v5224 = vshrl.u32 %v5223, 7
        %v5225 = vsub.s32 %v5222, %v5224
        %v5226 = vrot.slane %v5218, %v5225
        %v5228 = vunpack.c.l.s4 1966171168
        %v5229 = vunpack.c.0.s8 %v5228
        %v5230 = vlaneseq
        %v5231 = vshrl.u32 %v5230, 7
        %v5232 = vsub.s32 %v5229, %v5231
        %v5233 = vrot.slane %v5219, %v5232
        %v5234 = vcombine.low %v5226, %v5233
        %v5235 = vcombine.low %v4197, %v4201
        %v5236 = vcombine.low %v4205, %v4209
        %v5237 = vcombine.low %v4213, %v4217
        %v5238 = vcombine.low %v4221, %v4225
        %v5240 = vunpack.c.l.s4 1966171168
        %v5241 = vunpack.c.0.s8 %v5240
        %v5242 = vlaneseq
        %v5243 = vshrl.u32 %v5242, 7
        %v5244 = vsub.s32 %v5241, %v5243
        %v5245 = vrot.slane %v5235, %v5244
        %v5247 = vunpack.c.l.s4 1966171168
        %v5248 = vunpack.c.0.s8 %v5247
        %v5249 = vlaneseq
        %v5250 = vshrl.u32 %v5249, 7
        %v5251 = vsub.s32 %v5248, %v5250
        %v5252 = vrot.slane %v5236, %v5251
        %v5254 = vunpack.c.l.s4 1966171168
        %v5255 = vunpack.c.0.s8 %v5254
        %v5256 = vlaneseq
        %v5257 = vshrl.u32 %v5256, 7
        %v5258 = vsub.s32 %v5255, %v5257
        %v5259 = vrot.slane %v5237, %v5258
        %v5261 = vunpack.c.l.s4 1966171168
        %v5262 = vunpack.c.0.s8 %v5261
        %v5263 = vlaneseq
        %v5264 = vshrl.u32 %v5263, 7
        %v5265 = vsub.s32 %v5262, %v5264
        %v5266 = vrot.slane %v5238, %v5265
        %v5267 = vcombine.low %v5245, %v5252
        %v5268 = vcombine.low %v5259, %v5266
        %v5270 = vunpack.c.l.s4 1966171168
        %v5271 = vunpack.c.0.s8 %v5270
        %v5272 = vlaneseq
        %v5273 = vshrl.u32 %v5272, 7
        %v5274 = vsub.s32 %v5271, %v5273
        %v5275 = vrot.slane %v5267, %v5274
        %v5277 = vunpack.c.l.s4 1966171168
        %v5278 = vunpack.c.0.s8 %v5277
        %v5279 = vlaneseq
        %v5280 = vshrl.u32 %v5279, 7
        %v5281 = vsub.s32 %v5278, %v5280
        %v5282 = vrot.slane %v5268, %v5281
        %v5283 = vcombine.low %v5275, %v5282
        %v5284 = vcombine.low %v4229, %v4233
        %v5285 = vcombine.low %v4237, %v4241
        %v5286 = vcombine.low %v4245, %v4249
        %v5287 = vcombine.low %v4253, %v4257
        %v5289 = vunpack.c.l.s4 1966171168
        %v5290 = vunpack.c.0.s8 %v5289
        %v5291 = vlaneseq
        %v5292 = vshrl.u32 %v5291, 7
        %v5293 = vsub.s32 %v5290, %v5292
        %v5294 = vrot.slane %v5284, %v5293
        %v5296 = vunpack.c.l.s4 1966171168
        %v5297 = vunpack.c.0.s8 %v5296
        %v5298 = vlaneseq
        %v5299 = vshrl.u32 %v5298, 7
        %v5300 = vsub.s32 %v5297, %v5299
        %v5301 = vrot.slane %v5285, %v5300
        %v5303 = vunpack.c.l.s4 1966171168
        %v5304 = vunpack.c.0.s8 %v5303
        %v5305 = vlaneseq
        %v5306 = vshrl.u32 %v5305, 7
        %v5307 = vsub.s32 %v5304, %v5306
        %v5308 = vrot.slane %v5286, %v5307
        %v5310 = vunpack.c.l.s4 1966171168
        %v5311 = vunpack.c.0.s8 %v5310
        %v5312 = vlaneseq
        %v5313 = vshrl.u32 %v5312, 7
        %v5314 = vsub.s32 %v5311, %v5313
        %v5315 = vrot.slane %v5287, %v5314
        %v5316 = vcombine.low %v5294, %v5301
        %v5317 = vcombine.low %v5308, %v5315
        %v5319 = vunpack.c.l.s4 1966171168
        %v5320 = vunpack.c.0.s8 %v5319
        %v5321 = vlaneseq
        %v5322 = vshrl.u32 %v5321, 7
        %v5323 = vsub.s32 %v5320, %v5322
        %v5324 = vrot.slane %v5316, %v5323
        %v5326 = vunpack.c.l.s4 1966171168
        %v5327 = vunpack.c.0.s8 %v5326
        %v5328 = vlaneseq
        %v5329 = vshrl.u32 %v5328, 7
        %v5330 = vsub.s32 %v5327, %v5329
        %v5331 = vrot.slane %v5317, %v5330
        %v5332 = vcombine.low %v5324, %v5331
        %v5333 = vcombine.low %v4261, %v4265
        %v5334 = vcombine.low %v4269, %v4273
        %v5335 = vcombine.low %v4277, %v4281
        %v5336 = vcombine.low %v4285, %v4289
        %v5338 = vunpack.c.l.s4 1966171168
        %v5339 = vunpack.c.0.s8 %v5338
        %v5340 = vlaneseq
        %v5341 = vshrl.u32 %v5340, 7
        %v5342 = vsub.s32 %v5339, %v5341
        %v5343 = vrot.slane %v5333, %v5342
        %v5345 = vunpack.c.l.s4 1966171168
        %v5346 = vunpack.c.0.s8 %v5345
        %v5347 = vlaneseq
        %v5348 = vshrl.u32 %v5347, 7
        %v5349 = vsub.s32 %v5346, %v5348
        %v5350 = vrot.slane %v5334, %v5349
        %v5352 = vunpack.c.l.s4 1966171168
        %v5353 = vunpack.c.0.s8 %v5352
        %v5354 = vlaneseq
        %v5355 = vshrl.u32 %v5354, 7
        %v5356 = vsub.s32 %v5353, %v5355
        %v5357 = vrot.slane %v5335, %v5356
        %v5359 = vunpack.c.l.s4 1966171168
        %v5360 = vunpack.c.0.s8 %v5359
        %v5361 = vlaneseq
        %v5362 = vshrl.u32 %v5361, 7
        %v5363 = vsub.s32 %v5360, %v5362
        %v5364 = vrot.slane %v5336, %v5363
        %v5365 = vcombine.low %v5343, %v5350
        %v5366 = vcombine.low %v5357, %v5364
        %v5368 = vunpack.c.l.s4 1966171168
        %v5369 = vunpack.c.0.s8 %v5368
        %v5370 = vlaneseq
        %v5371 = vshrl.u32 %v5370, 7
        %v5372 = vsub.s32 %v5369, %v5371
        %v5373 = vrot.slane %v5365, %v5372
        %v5375 = vunpack.c.l.s4 1966171168
        %v5376 = vunpack.c.0.s8 %v5375
        %v5377 = vlaneseq
        %v5378 = vshrl.u32 %v5377, 7
        %v5379 = vsub.s32 %v5376, %v5378
        %v5380 = vrot.slane %v5366, %v5379
        %v5381 = vcombine.low %v5373, %v5380
        %v5382 = vcombine.low %v4293, %v4297
        %v5383 = vcombine.low %v4301, %v4305
        %v5384 = vcombine.low %v4309, %v4313
        %v5385 = vcombine.low %v4317, %v4321
        %v5387 = vunpack.c.l.s4 1966171168
        %v5388 = vunpack.c.0.s8 %v5387
        %v5389 = vlaneseq
        %v5390 = vshrl.u32 %v5389, 7
        %v5391 = vsub.s32 %v5388, %v5390
        %v5392 = vrot.slane %v5382, %v5391
        %v5394 = vunpack.c.l.s4 1966171168
        %v5395 = vunpack.c.0.s8 %v5394
        %v5396 = vlaneseq
        %v5397 = vshrl.u32 %v5396, 7
        %v5398 = vsub.s32 %v5395, %v5397
        %v5399 = vrot.slane %v5383, %v5398
        %v5401 = vunpack.c.l.s4 1966171168
        %v5402 = vunpack.c.0.s8 %v5401
        %v5403 = vlaneseq
        %v5404 = vshrl.u32 %v5403, 7
        %v5405 = vsub.s32 %v5402, %v5404
        %v5406 = vrot.slane %v5384, %v5405
        %v5408 = vunpack.c.l.s4 1966171168
        %v5409 = vunpack.c.0.s8 %v5408
        %v5410 = vlaneseq
        %v5411 = vshrl.u32 %v5410, 7
        %v5412 = vsub.s32 %v5409, %v5411
        %v5413 = vrot.slane %v5385, %v5412
        %v5414 = vcombine.low %v5392, %v5399
        %v5415 = vcombine.low %v5406, %v5413
        %v5417 = vunpack.c.l.s4 1966171168
        %v5418 = vunpack.c.0.s8 %v5417
        %v5419 = vlaneseq
        %v5420 = vshrl.u32 %v5419, 7
        %v5421 = vsub.s32 %v5418, %v5420
        %v5422 = vrot.slane %v5414, %v5421
        %v5424 = vunpack.c.l.s4 1966171168
        %v5425 = vunpack.c.0.s8 %v5424
        %v5426 = vlaneseq
        %v5427 = vshrl.u32 %v5426, 7
        %v5428 = vsub.s32 %v5425, %v5427
        %v5429 = vrot.slane %v5415, %v5428
        %v5430 = vcombine.low %v5422, %v5429
        %v5431 = vcombine.low %v4325, %v4329
        %v5432 = vcombine.low %v4333, %v4337
        %v5433 = vcombine.low %v4341, %v4345
        %v5434 = vcombine.low %v4349, %v4353
        %v5436 = vunpack.c.l.s4 1966171168
        %v5437 = vunpack.c.0.s8 %v5436
        %v5438 = vlaneseq
        %v5439 = vshrl.u32 %v5438, 7
        %v5440 = vsub.s32 %v5437, %v5439
        %v5441 = vrot.slane %v5431, %v5440
        %v5443 = vunpack.c.l.s4 1966171168
        %v5444 = vunpack.c.0.s8 %v5443
        %v5445 = vlaneseq
        %v5446 = vshrl.u32 %v5445, 7
        %v5447 = vsub.s32 %v5444, %v5446
        %v5448 = vrot.slane %v5432, %v5447
        %v5450 = vunpack.c.l.s4 1966171168
        %v5451 = vunpack.c.0.s8 %v5450
        %v5452 = vlaneseq
        %v5453 = vshrl.u32 %v5452, 7
        %v5454 = vsub.s32 %v5451, %v5453
        %v5455 = vrot.slane %v5433, %v5454
        %v5457 = vunpack.c.l.s4 1966171168
        %v5458 = vunpack.c.0.s8 %v5457
        %v5459 = vlaneseq
        %v5460 = vshrl.u32 %v5459, 7
        %v5461 = vsub.s32 %v5458, %v5460
        %v5462 = vrot.slane %v5434, %v5461
        %v5463 = vcombine.low %v5441, %v5448
        %v5464 = vcombine.low %v5455, %v5462
        %v5466 = vunpack.c.l.s4 1966171168
        %v5467 = vunpack.c.0.s8 %v5466
        %v5468 = vlaneseq
        %v5469 = vshrl.u32 %v5468, 7
        %v5470 = vsub.s32 %v5467, %v5469
        %v5471 = vrot.slane %v5463, %v5470
        %v5473 = vunpack.c.l.s4 1966171168
        %v5474 = vunpack.c.0.s8 %v5473
        %v5475 = vlaneseq
        %v5476 = vshrl.u32 %v5475, 7
        %v5477 = vsub.s32 %v5474, %v5476
        %v5478 = vrot.slane %v5464, %v5477
        %v5479 = vcombine.low %v5471, %v5478
        %v5480 = vcombine.low %v4357, %v4361
        %v5481 = vcombine.low %v4365, %v4369
        %v5482 = vcombine.low %v4373, %v4377
        %v5483 = vcombine.low %v4381, %v4385
        %v5485 = vunpack.c.l.s4 1966171168
        %v5486 = vunpack.c.0.s8 %v5485
        %v5487 = vlaneseq
        %v5488 = vshrl.u32 %v5487, 7
        %v5489 = vsub.s32 %v5486, %v5488
        %v5490 = vrot.slane %v5480, %v5489
        %v5492 = vunpack.c.l.s4 1966171168
        %v5493 = vunpack.c.0.s8 %v5492
        %v5494 = vlaneseq
        %v5495 = vshrl.u32 %v5494, 7
        %v5496 = vsub.s32 %v5493, %v5495
        %v5497 = vrot.slane %v5481, %v5496
        %v5499 = vunpack.c.l.s4 1966171168
        %v5500 = vunpack.c.0.s8 %v5499
        %v5501 = vlaneseq
        %v5502 = vshrl.u32 %v5501, 7
        %v5503 = vsub.s32 %v5500, %v5502
        %v5504 = vrot.slane %v5482, %v5503
        %v5506 = vunpack.c.l.s4 1966171168
        %v5507 = vunpack.c.0.s8 %v5506
        %v5508 = vlaneseq
        %v5509 = vshrl.u32 %v5508, 7
        %v5510 = vsub.s32 %v5507, %v5509
        %v5511 = vrot.slane %v5483, %v5510
        %v5512 = vcombine.low %v5490, %v5497
        %v5513 = vcombine.low %v5504, %v5511
        %v5515 = vunpack.c.l.s4 1966171168
        %v5516 = vunpack.c.0.s8 %v5515
        %v5517 = vlaneseq
        %v5518 = vshrl.u32 %v5517, 7
        %v5519 = vsub.s32 %v5516, %v5518
        %v5520 = vrot.slane %v5512, %v5519
        %v5522 = vunpack.c.l.s4 1966171168
        %v5523 = vunpack.c.0.s8 %v5522
        %v5524 = vlaneseq
        %v5525 = vshrl.u32 %v5524, 7
        %v5526 = vsub.s32 %v5523, %v5525
        %v5527 = vrot.slane %v5513, %v5526
        %v5528 = vcombine.low %v5520, %v5527
        %v5529 = vcombine.low %v4389, %v4393
        %v5530 = vcombine.low %v4397, %v4401
        %v5531 = vcombine.low %v4405, %v4409
        %v5532 = vcombine.low %v4413, %v4417
        %v5534 = vunpack.c.l.s4 1966171168
        %v5535 = vunpack.c.0.s8 %v5534
        %v5536 = vlaneseq
        %v5537 = vshrl.u32 %v5536, 7
        %v5538 = vsub.s32 %v5535, %v5537
        %v5539 = vrot.slane %v5529, %v5538
        %v5541 = vunpack.c.l.s4 1966171168
        %v5542 = vunpack.c.0.s8 %v5541
        %v5543 = vlaneseq
        %v5544 = vshrl.u32 %v5543, 7
        %v5545 = vsub.s32 %v5542, %v5544
        %v5546 = vrot.slane %v5530, %v5545
        %v5548 = vunpack.c.l.s4 1966171168
        %v5549 = vunpack.c.0.s8 %v5548
        %v5550 = vlaneseq
        %v5551 = vshrl.u32 %v5550, 7
        %v5552 = vsub.s32 %v5549, %v5551
        %v5553 = vrot.slane %v5531, %v5552
        %v5555 = vunpack.c.l.s4 1966171168
        %v5556 = vunpack.c.0.s8 %v5555
        %v5557 = vlaneseq
        %v5558 = vshrl.u32 %v5557, 7
        %v5559 = vsub.s32 %v5556, %v5558
        %v5560 = vrot.slane %v5532, %v5559
        %v5561 = vcombine.low %v5539, %v5546
        %v5562 = vcombine.low %v5553, %v5560
        %v5564 = vunpack.c.l.s4 1966171168
        %v5565 = vunpack.c.0.s8 %v5564
        %v5566 = vlaneseq
        %v5567 = vshrl.u32 %v5566, 7
        %v5568 = vsub.s32 %v5565, %v5567
        %v5569 = vrot.slane %v5561, %v5568
        %v5571 = vunpack.c.l.s4 1966171168
        %v5572 = vunpack.c.0.s8 %v5571
        %v5573 = vlaneseq
        %v5574 = vshrl.u32 %v5573, 7
        %v5575 = vsub.s32 %v5572, %v5574
        %v5576 = vrot.slane %v5562, %v5575
        %v5577 = vcombine.low %v5569, %v5576
        %v5578 = vcombine.low %v4421, %v4425
        %v5579 = vcombine.low %v4429, %v4433
        %v5580 = vcombine.low %v4437, %v4441
        %v5581 = vcombine.low %v4445, %v4449
        %v5583 = vunpack.c.l.s4 1966171168
        %v5584 = vunpack.c.0.s8 %v5583
        %v5585 = vlaneseq
        %v5586 = vshrl.u32 %v5585, 7
        %v5587 = vsub.s32 %v5584, %v5586
        %v5588 = vrot.slane %v5578, %v5587
        %v5590 = vunpack.c.l.s4 1966171168
        %v5591 = vunpack.c.0.s8 %v5590
        %v5592 = vlaneseq
        %v5593 = vshrl.u32 %v5592, 7
        %v5594 = vsub.s32 %v5591, %v5593
        %v5595 = vrot.slane %v5579, %v5594
        %v5597 = vunpack.c.l.s4 1966171168
        %v5598 = vunpack.c.0.s8 %v5597
        %v5599 = vlaneseq
        %v5600 = vshrl.u32 %v5599, 7
        %v5601 = vsub.s32 %v5598, %v5600
        %v5602 = vrot.slane %v5580, %v5601
        %v5604 = vunpack.c.l.s4 1966171168
        %v5605 = vunpack.c.0.s8 %v5604
        %v5606 = vlaneseq
        %v5607 = vshrl.u32 %v5606, 7
        %v5608 = vsub.s32 %v5605, %v5607
        %v5609 = vrot.slane %v5581, %v5608
        %v5610 = vcombine.low %v5588, %v5595
        %v5611 = vcombine.low %v5602, %v5609
        %v5613 = vunpack.c.l.s4 1966171168
        %v5614 = vunpack.c.0.s8 %v5613
        %v5615 = vlaneseq
        %v5616 = vshrl.u32 %v5615, 7
        %v5617 = vsub.s32 %v5614, %v5616
        %v5618 = vrot.slane %v5610, %v5617
        %v5620 = vunpack.c.l.s4 1966171168
        %v5621 = vunpack.c.0.s8 %v5620
        %v5622 = vlaneseq
        %v5623 = vshrl.u32 %v5622, 7
        %v5624 = vsub.s32 %v5621, %v5623
        %v5625 = vrot.slane %v5611, %v5624
        %v5626 = vcombine.low %v5618, %v5625
        %v5627 = vcombine.low %v4453, %v4457
        %v5628 = vcombine.low %v4461, %v4465
        %v5629 = vcombine.low %v4469, %v4473
        %v5630 = vcombine.low %v4477, %v4481
        %v5632 = vunpack.c.l.s4 1966171168
        %v5633 = vunpack.c.0.s8 %v5632
        %v5634 = vlaneseq
        %v5635 = vshrl.u32 %v5634, 7
        %v5636 = vsub.s32 %v5633, %v5635
        %v5637 = vrot.slane %v5627, %v5636
        %v5639 = vunpack.c.l.s4 1966171168
        %v5640 = vunpack.c.0.s8 %v5639
        %v5641 = vlaneseq
        %v5642 = vshrl.u32 %v5641, 7
        %v5643 = vsub.s32 %v5640, %v5642
        %v5644 = vrot.slane %v5628, %v5643
        %v5646 = vunpack.c.l.s4 1966171168
        %v5647 = vunpack.c.0.s8 %v5646
        %v5648 = vlaneseq
        %v5649 = vshrl.u32 %v5648, 7
        %v5650 = vsub.s32 %v5647, %v5649
        %v5651 = vrot.slane %v5629, %v5650
        %v5653 = vunpack.c.l.s4 1966171168
        %v5654 = vunpack.c.0.s8 %v5653
        %v5655 = vlaneseq
        %v5656 = vshrl.u32 %v5655, 7
        %v5657 = vsub.s32 %v5654, %v5656
        %v5658 = vrot.slane %v5630, %v5657
        %v5659 = vcombine.low %v5637, %v5644
        %v5660 = vcombine.low %v5651, %v5658
        %v5662 = vunpack.c.l.s4 1966171168
        %v5663 = vunpack.c.0.s8 %v5662
        %v5664 = vlaneseq
        %v5665 = vshrl.u32 %v5664, 7
        %v5666 = vsub.s32 %v5663, %v5665
        %v5667 = vrot.slane %v5659, %v5666
        %v5669 = vunpack.c.l.s4 1966171168
        %v5670 = vunpack.c.0.s8 %v5669
        %v5671 = vlaneseq
        %v5672 = vshrl.u32 %v5671, 7
        %v5673 = vsub.s32 %v5670, %v5672
        %v5674 = vrot.slane %v5660, %v5673
        %v5675 = vcombine.low %v5667, %v5674
        %v5676 = vcombine.low %v4485, %v4489
        %v5677 = vcombine.low %v4493, %v4497
        %v5678 = vcombine.low %v4501, %v4505
        %v5679 = vcombine.low %v4509, %v4513
        %v5681 = vunpack.c.l.s4 1966171168
        %v5682 = vunpack.c.0.s8 %v5681
        %v5683 = vlaneseq
        %v5684 = vshrl.u32 %v5683, 7
        %v5685 = vsub.s32 %v5682, %v5684
        %v5686 = vrot.slane %v5676, %v5685
        %v5688 = vunpack.c.l.s4 1966171168
        %v5689 = vunpack.c.0.s8 %v5688
        %v5690 = vlaneseq
        %v5691 = vshrl.u32 %v5690, 7
        %v5692 = vsub.s32 %v5689, %v5691
        %v5693 = vrot.slane %v5677, %v5692
        %v5695 = vunpack.c.l.s4 1966171168
        %v5696 = vunpack.c.0.s8 %v5695
        %v5697 = vlaneseq
        %v5698 = vshrl.u32 %v5697, 7
        %v5699 = vsub.s32 %v5696, %v5698
        %v5700 = vrot.slane %v5678, %v5699
        %v5702 = vunpack.c.l.s4 1966171168
        %v5703 = vunpack.c.0.s8 %v5702
        %v5704 = vlaneseq
        %v5705 = vshrl.u32 %v5704, 7
        %v5706 = vsub.s32 %v5703, %v5705
        %v5707 = vrot.slane %v5679, %v5706
        %v5708 = vcombine.low %v5686, %v5693
        %v5709 = vcombine.low %v5700, %v5707
        %v5711 = vunpack.c.l.s4 1966171168
        %v5712 = vunpack.c.0.s8 %v5711
        %v5713 = vlaneseq
        %v5714 = vshrl.u32 %v5713, 7
        %v5715 = vsub.s32 %v5712, %v5714
        %v5716 = vrot.slane %v5708, %v5715
        %v5718 = vunpack.c.l.s4 1966171168
        %v5719 = vunpack.c.0.s8 %v5718
        %v5720 = vlaneseq
        %v5721 = vshrl.u32 %v5720, 7
        %v5722 = vsub.s32 %v5719, %v5721
        %v5723 = vrot.slane %v5709, %v5722
        %v5724 = vcombine.low %v5716, %v5723
        %v5725 = vcombine.low %v4517, %v4521
        %v5726 = vcombine.low %v4525, %v4529
        %v5727 = vcombine.low %v4533, %v4537
        %v5728 = vcombine.low %v4541, %v4545
        %v5730 = vunpack.c.l.s4 1966171168
        %v5731 = vunpack.c.0.s8 %v5730
        %v5732 = vlaneseq
        %v5733 = vshrl.u32 %v5732, 7
        %v5734 = vsub.s32 %v5731, %v5733
        %v5735 = vrot.slane %v5725, %v5734
        %v5737 = vunpack.c.l.s4 1966171168
        %v5738 = vunpack.c.0.s8 %v5737
        %v5739 = vlaneseq
        %v5740 = vshrl.u32 %v5739, 7
        %v5741 = vsub.s32 %v5738, %v5740
        %v5742 = vrot.slane %v5726, %v5741
        %v5744 = vunpack.c.l.s4 1966171168
        %v5745 = vunpack.c.0.s8 %v5744
        %v5746 = vlaneseq
        %v5747 = vshrl.u32 %v5746, 7
        %v5748 = vsub.s32 %v5745, %v5747
        %v5749 = vrot.slane %v5727, %v5748
        %v5751 = vunpack.c.l.s4 1966171168
        %v5752 = vunpack.c.0.s8 %v5751
        %v5753 = vlaneseq
        %v5754 = vshrl.u32 %v5753, 7
        %v5755 = vsub.s32 %v5752, %v5754
        %v5756 = vrot.slane %v5728, %v5755
        %v5757 = vcombine.low %v5735, %v5742
        %v5758 = vcombine.low %v5749, %v5756
        %v5760 = vunpack.c.l.s4 1966171168
        %v5761 = vunpack.c.0.s8 %v5760
        %v5762 = vlaneseq
        %v5763 = vshrl.u32 %v5762, 7
        %v5764 = vsub.s32 %v5761, %v5763
        %v5765 = vrot.slane %v5757, %v5764
        %v5767 = vunpack.c.l.s4 1966171168
        %v5768 = vunpack.c.0.s8 %v5767
        %v5769 = vlaneseq
        %v5770 = vshrl.u32 %v5769, 7
        %v5771 = vsub.s32 %v5768, %v5770
        %v5772 = vrot.slane %v5758, %v5771
        %v5773 = vcombine.low %v5765, %v5772
        %v5774 = vcombine.low %v4549, %v4553
        %v5775 = vcombine.low %v4557, %v4561
        %v5776 = vcombine.low %v4565, %v4569
        %v5777 = vcombine.low %v4573, %v4577
        %v5779 = vunpack.c.l.s4 1966171168
        %v5780 = vunpack.c.0.s8 %v5779
        %v5781 = vlaneseq
        %v5782 = vshrl.u32 %v5781, 7
        %v5783 = vsub.s32 %v5780, %v5782
        %v5784 = vrot.slane %v5774, %v5783
        %v5786 = vunpack.c.l.s4 1966171168
        %v5787 = vunpack.c.0.s8 %v5786
        %v5788 = vlaneseq
        %v5789 = vshrl.u32 %v5788, 7
        %v5790 = vsub.s32 %v5787, %v5789
        %v5791 = vrot.slane %v5775, %v5790
        %v5793 = vunpack.c.l.s4 1966171168
        %v5794 = vunpack.c.0.s8 %v5793
        %v5795 = vlaneseq
        %v5796 = vshrl.u32 %v5795, 7
        %v5797 = vsub.s32 %v5794, %v5796
        %v5798 = vrot.slane %v5776, %v5797
        %v5800 = vunpack.c.l.s4 1966171168
        %v5801 = vunpack.c.0.s8 %v5800
        %v5802 = vlaneseq
        %v5803 = vshrl.u32 %v5802, 7
        %v5804 = vsub.s32 %v5801, %v5803
        %v5805 = vrot.slane %v5777, %v5804
        %v5806 = vcombine.low %v5784, %v5791
        %v5807 = vcombine.low %v5798, %v5805
        %v5809 = vunpack.c.l.s4 1966171168
        %v5810 = vunpack.c.0.s8 %v5809
        %v5811 = vlaneseq
        %v5812 = vshrl.u32 %v5811, 7
        %v5813 = vsub.s32 %v5810, %v5812
        %v5814 = vrot.slane %v5806, %v5813
        %v5816 = vunpack.c.l.s4 1966171168
        %v5817 = vunpack.c.0.s8 %v5816
        %v5818 = vlaneseq
        %v5819 = vshrl.u32 %v5818, 7
        %v5820 = vsub.s32 %v5817, %v5819
        %v5821 = vrot.slane %v5807, %v5820
        %v5822 = vcombine.low %v5814, %v5821
        %v5823 = vcombine.low %v4581, %v4585
        %v5824 = vcombine.low %v4589, %v4593
        %v5825 = vcombine.low %v4597, %v4601
        %v5826 = vcombine.low %v4605, %v4609
        %v5828 = vunpack.c.l.s4 1966171168
        %v5829 = vunpack.c.0.s8 %v5828
        %v5830 = vlaneseq
        %v5831 = vshrl.u32 %v5830, 7
        %v5832 = vsub.s32 %v5829, %v5831
        %v5833 = vrot.slane %v5823, %v5832
        %v5835 = vunpack.c.l.s4 1966171168
        %v5836 = vunpack.c.0.s8 %v5835
        %v5837 = vlaneseq
        %v5838 = vshrl.u32 %v5837, 7
        %v5839 = vsub.s32 %v5836, %v5838
        %v5840 = vrot.slane %v5824, %v5839
        %v5842 = vunpack.c.l.s4 1966171168
        %v5843 = vunpack.c.0.s8 %v5842
        %v5844 = vlaneseq
        %v5845 = vshrl.u32 %v5844, 7
        %v5846 = vsub.s32 %v5843, %v5845
        %v5847 = vrot.slane %v5825, %v5846
        %v5849 = vunpack.c.l.s4 1966171168
        %v5850 = vunpack.c.0.s8 %v5849
        %v5851 = vlaneseq
        %v5852 = vshrl.u32 %v5851, 7
        %v5853 = vsub.s32 %v5850, %v5852
        %v5854 = vrot.slane %v5826, %v5853
        %v5855 = vcombine.low %v5833, %v5840
        %v5856 = vcombine.low %v5847, %v5854
        %v5858 = vunpack.c.l.s4 1966171168
        %v5859 = vunpack.c.0.s8 %v5858
        %v5860 = vlaneseq
        %v5861 = vshrl.u32 %v5860, 7
        %v5862 = vsub.s32 %v5859, %v5861
        %v5863 = vrot.slane %v5855, %v5862
        %v5865 = vunpack.c.l.s4 1966171168
        %v5866 = vunpack.c.0.s8 %v5865
        %v5867 = vlaneseq
        %v5868 = vshrl.u32 %v5867, 7
        %v5869 = vsub.s32 %v5866, %v5868
        %v5870 = vrot.slane %v5856, %v5869
        %v5871 = vcombine.low %v5863, %v5870
        %v5872 = vcombine.low %v4613, %v4617
        %v5873 = vcombine.low %v4621, %v4625
        %v5874 = vcombine.low %v4629, %v4633
        %v5875 = vcombine.low %v4637, %v4641
        %v5877 = vunpack.c.l.s4 1966171168
        %v5878 = vunpack.c.0.s8 %v5877
        %v5879 = vlaneseq
        %v5880 = vshrl.u32 %v5879, 7
        %v5881 = vsub.s32 %v5878, %v5880
        %v5882 = vrot.slane %v5872, %v5881
        %v5884 = vunpack.c.l.s4 1966171168
        %v5885 = vunpack.c.0.s8 %v5884
        %v5886 = vlaneseq
        %v5887 = vshrl.u32 %v5886, 7
        %v5888 = vsub.s32 %v5885, %v5887
        %v5889 = vrot.slane %v5873, %v5888
        %v5891 = vunpack.c.l.s4 1966171168
        %v5892 = vunpack.c.0.s8 %v5891
        %v5893 = vlaneseq
        %v5894 = vshrl.u32 %v5893, 7
        %v5895 = vsub.s32 %v5892, %v5894
        %v5896 = vrot.slane %v5874, %v5895
        %v5898 = vunpack.c.l.s4 1966171168
        %v5899 = vunpack.c.0.s8 %v5898
        %v5900 = vlaneseq
        %v5901 = vshrl.u32 %v5900, 7
        %v5902 = vsub.s32 %v5899, %v5901
        %v5903 = vrot.slane %v5875, %v5902
        %v5904 = vcombine.low %v5882, %v5889
        %v5905 = vcombine.low %v5896, %v5903
        %v5907 = vunpack.c.l.s4 1966171168
        %v5908 = vunpack.c.0.s8 %v5907
        %v5909 = vlaneseq
        %v5910 = vshrl.u32 %v5909, 7
        %v5911 = vsub.s32 %v5908, %v5910
        %v5912 = vrot.slane %v5904, %v5911
        %v5914 = vunpack.c.l.s4 1966171168
        %v5915 = vunpack.c.0.s8 %v5914
        %v5916 = vlaneseq
        %v5917 = vshrl.u32 %v5916, 7
        %v5918 = vsub.s32 %v5915, %v5917
        %v5919 = vrot.slane %v5905, %v5918
        %v5920 = vcombine.low %v5912, %v5919
        %v5921 = vcombine.low %v4645, %v4649
        %v5922 = vcombine.low %v4653, %v4657
        %v5923 = vcombine.low %v4661, %v4665
        %v5924 = vcombine.low %v4669, %v4673
        %v5926 = vunpack.c.l.s4 1966171168
        %v5927 = vunpack.c.0.s8 %v5926
        %v5928 = vlaneseq
        %v5929 = vshrl.u32 %v5928, 7
        %v5930 = vsub.s32 %v5927, %v5929
        %v5931 = vrot.slane %v5921, %v5930
        %v5933 = vunpack.c.l.s4 1966171168
        %v5934 = vunpack.c.0.s8 %v5933
        %v5935 = vlaneseq
        %v5936 = vshrl.u32 %v5935, 7
        %v5937 = vsub.s32 %v5934, %v5936
        %v5938 = vrot.slane %v5922, %v5937
        %v5940 = vunpack.c.l.s4 1966171168
        %v5941 = vunpack.c.0.s8 %v5940
        %v5942 = vlaneseq
        %v5943 = vshrl.u32 %v5942, 7
        %v5944 = vsub.s32 %v5941, %v5943
        %v5945 = vrot.slane %v5923, %v5944
        %v5947 = vunpack.c.l.s4 1966171168
        %v5948 = vunpack.c.0.s8 %v5947
        %v5949 = vlaneseq
        %v5950 = vshrl.u32 %v5949, 7
        %v5951 = vsub.s32 %v5948, %v5950
        %v5952 = vrot.slane %v5924, %v5951
        %v5953 = vcombine.low %v5931, %v5938
        %v5954 = vcombine.low %v5945, %v5952
        %v5956 = vunpack.c.l.s4 1966171168
        %v5957 = vunpack.c.0.s8 %v5956
        %v5958 = vlaneseq
        %v5959 = vshrl.u32 %v5958, 7
        %v5960 = vsub.s32 %v5957, %v5959
        %v5961 = vrot.slane %v5953, %v5960
        %v5963 = vunpack.c.l.s4 1966171168
        %v5964 = vunpack.c.0.s8 %v5963
        %v5965 = vlaneseq
        %v5966 = vshrl.u32 %v5965, 7
        %v5967 = vsub.s32 %v5964, %v5966
        %v5968 = vrot.slane %v5954, %v5967
        %v5969 = vcombine.low %v5961, %v5968
        %v5970 = vcombine.low %v4677, %v4681
        %v5971 = vcombine.low %v4685, %v4689
        %v5972 = vcombine.low %v4693, %v4697
        %v5973 = vcombine.low %v4701, %v4705
        %v5975 = vunpack.c.l.s4 1966171168
        %v5976 = vunpack.c.0.s8 %v5975
        %v5977 = vlaneseq
        %v5978 = vshrl.u32 %v5977, 7
        %v5979 = vsub.s32 %v5976, %v5978
        %v5980 = vrot.slane %v5970, %v5979
        %v5982 = vunpack.c.l.s4 1966171168
        %v5983 = vunpack.c.0.s8 %v5982
        %v5984 = vlaneseq
        %v5985 = vshrl.u32 %v5984, 7
        %v5986 = vsub.s32 %v5983, %v5985
        %v5987 = vrot.slane %v5971, %v5986
        %v5989 = vunpack.c.l.s4 1966171168
        %v5990 = vunpack.c.0.s8 %v5989
        %v5991 = vlaneseq
        %v5992 = vshrl.u32 %v5991, 7
        %v5993 = vsub.s32 %v5990, %v5992
        %v5994 = vrot.slane %v5972, %v5993
        %v5996 = vunpack.c.l.s4 1966171168
        %v5997 = vunpack.c.0.s8 %v5996
        %v5998 = vlaneseq
        %v5999 = vshrl.u32 %v5998, 7
        %v6000 = vsub.s32 %v5997, %v5999
        %v6001 = vrot.slane %v5973, %v6000
        %v6002 = vcombine.low %v5980, %v5987
        %v6003 = vcombine.low %v5994, %v6001
        %v6005 = vunpack.c.l.s4 1966171168
        %v6006 = vunpack.c.0.s8 %v6005
        %v6007 = vlaneseq
        %v6008 = vshrl.u32 %v6007, 7
        %v6009 = vsub.s32 %v6006, %v6008
        %v6010 = vrot.slane %v6002, %v6009
        %v6012 = vunpack.c.l.s4 1966171168
        %v6013 = vunpack.c.0.s8 %v6012
        %v6014 = vlaneseq
        %v6015 = vshrl.u32 %v6014, 7
        %v6016 = vsub.s32 %v6013, %v6015
        %v6017 = vrot.slane %v6003, %v6016
        %v6018 = vcombine.low %v6010, %v6017
        %v6019 = vcombine.low %v4709, %v4713
        %v6020 = vcombine.low %v4717, %v4721
        %v6021 = vcombine.low %v4725, %v4729
        %v6022 = vcombine.low %v4733, %v4737
        %v6024 = vunpack.c.l.s4 1966171168
        %v6025 = vunpack.c.0.s8 %v6024
        %v6026 = vlaneseq
        %v6027 = vshrl.u32 %v6026, 7
        %v6028 = vsub.s32 %v6025, %v6027
        %v6029 = vrot.slane %v6019, %v6028
        %v6031 = vunpack.c.l.s4 1966171168
        %v6032 = vunpack.c.0.s8 %v6031
        %v6033 = vlaneseq
        %v6034 = vshrl.u32 %v6033, 7
        %v6035 = vsub.s32 %v6032, %v6034
        %v6036 = vrot.slane %v6020, %v6035
        %v6038 = vunpack.c.l.s4 1966171168
        %v6039 = vunpack.c.0.s8 %v6038
        %v6040 = vlaneseq
        %v6041 = vshrl.u32 %v6040, 7
        %v6042 = vsub.s32 %v6039, %v6041
        %v6043 = vrot.slane %v6021, %v6042
        %v6045 = vunpack.c.l.s4 1966171168
        %v6046 = vunpack.c.0.s8 %v6045
        %v6047 = vlaneseq
        %v6048 = vshrl.u32 %v6047, 7
        %v6049 = vsub.s32 %v6046, %v6048
        %v6050 = vrot.slane %v6022, %v6049
        %v6051 = vcombine.low %v6029, %v6036
        %v6052 = vcombine.low %v6043, %v6050
        %v6054 = vunpack.c.l.s4 1966171168
        %v6055 = vunpack.c.0.s8 %v6054
        %v6056 = vlaneseq
        %v6057 = vshrl.u32 %v6056, 7
        %v6058 = vsub.s32 %v6055, %v6057
        %v6059 = vrot.slane %v6051, %v6058
        %v6061 = vunpack.c.l.s4 1966171168
        %v6062 = vunpack.c.0.s8 %v6061
        %v6063 = vlaneseq
        %v6064 = vshrl.u32 %v6063, 7
        %v6065 = vsub.s32 %v6062, %v6064
        %v6066 = vrot.slane %v6052, %v6065
        %v6067 = vcombine.low %v6059, %v6066
        %v6068 = vcombine.low %v4741, %v4745
        %v6069 = vcombine.low %v4749, %v4753
        %v6070 = vcombine.low %v4757, %v4761
        %v6071 = vcombine.low %v4765, %v4769
        %v6073 = vunpack.c.l.s4 1966171168
        %v6074 = vunpack.c.0.s8 %v6073
        %v6075 = vlaneseq
        %v6076 = vshrl.u32 %v6075, 7
        %v6077 = vsub.s32 %v6074, %v6076
        %v6078 = vrot.slane %v6068, %v6077
        %v6080 = vunpack.c.l.s4 1966171168
        %v6081 = vunpack.c.0.s8 %v6080
        %v6082 = vlaneseq
        %v6083 = vshrl.u32 %v6082, 7
        %v6084 = vsub.s32 %v6081, %v6083
        %v6085 = vrot.slane %v6069, %v6084
        %v6087 = vunpack.c.l.s4 1966171168
        %v6088 = vunpack.c.0.s8 %v6087
        %v6089 = vlaneseq
        %v6090 = vshrl.u32 %v6089, 7
        %v6091 = vsub.s32 %v6088, %v6090
        %v6092 = vrot.slane %v6070, %v6091
        %v6094 = vunpack.c.l.s4 1966171168
        %v6095 = vunpack.c.0.s8 %v6094
        %v6096 = vlaneseq
        %v6097 = vshrl.u32 %v6096, 7
        %v6098 = vsub.s32 %v6095, %v6097
        %v6099 = vrot.slane %v6071, %v6098
        %v6100 = vcombine.low %v6078, %v6085
        %v6101 = vcombine.low %v6092, %v6099
        %v6103 = vunpack.c.l.s4 1966171168
        %v6104 = vunpack.c.0.s8 %v6103
        %v6105 = vlaneseq
        %v6106 = vshrl.u32 %v6105, 7
        %v6107 = vsub.s32 %v6104, %v6106
        %v6108 = vrot.slane %v6100, %v6107
        %v6110 = vunpack.c.l.s4 1966171168
        %v6111 = vunpack.c.0.s8 %v6110
        %v6112 = vlaneseq
        %v6113 = vshrl.u32 %v6112, 7
        %v6114 = vsub.s32 %v6111, %v6113
        %v6115 = vrot.slane %v6101, %v6114
        %v6116 = vcombine.low %v6108, %v6115
        %v6117 = vcombine.low %v4773, %v4777
        %v6118 = vcombine.low %v4781, %v4785
        %v6119 = vcombine.low %v4789, %v4793
        %v6120 = vcombine.low %v4797, %v4801
        %v6122 = vunpack.c.l.s4 1966171168
        %v6123 = vunpack.c.0.s8 %v6122
        %v6124 = vlaneseq
        %v6125 = vshrl.u32 %v6124, 7
        %v6126 = vsub.s32 %v6123, %v6125
        %v6127 = vrot.slane %v6117, %v6126
        %v6129 = vunpack.c.l.s4 1966171168
        %v6130 = vunpack.c.0.s8 %v6129
        %v6131 = vlaneseq
        %v6132 = vshrl.u32 %v6131, 7
        %v6133 = vsub.s32 %v6130, %v6132
        %v6134 = vrot.slane %v6118, %v6133
        %v6136 = vunpack.c.l.s4 1966171168
        %v6137 = vunpack.c.0.s8 %v6136
        %v6138 = vlaneseq
        %v6139 = vshrl.u32 %v6138, 7
        %v6140 = vsub.s32 %v6137, %v6139
        %v6141 = vrot.slane %v6119, %v6140
        %v6143 = vunpack.c.l.s4 1966171168
        %v6144 = vunpack.c.0.s8 %v6143
        %v6145 = vlaneseq
        %v6146 = vshrl.u32 %v6145, 7
        %v6147 = vsub.s32 %v6144, %v6146
        %v6148 = vrot.slane %v6120, %v6147
        %v6149 = vcombine.low %v6127, %v6134
        %v6150 = vcombine.low %v6141, %v6148
        %v6152 = vunpack.c.l.s4 1966171168
        %v6153 = vunpack.c.0.s8 %v6152
        %v6154 = vlaneseq
        %v6155 = vshrl.u32 %v6154, 7
        %v6156 = vsub.s32 %v6153, %v6155
        %v6157 = vrot.slane %v6149, %v6156
        %v6159 = vunpack.c.l.s4 1966171168
        %v6160 = vunpack.c.0.s8 %v6159
        %v6161 = vlaneseq
        %v6162 = vshrl.u32 %v6161, 7
        %v6163 = vsub.s32 %v6160, %v6162
        %v6164 = vrot.slane %v6150, %v6163
        %v6165 = vcombine.low %v6157, %v6164
        %v6166 = vcombine.low %v4805, %v4809
        %v6167 = vcombine.low %v4813, %v4817
        %v6168 = vcombine.low %v4821, %v4825
        %v6169 = vcombine.low %v4829, %v4833
        %v6171 = vunpack.c.l.s4 1966171168
        %v6172 = vunpack.c.0.s8 %v6171
        %v6173 = vlaneseq
        %v6174 = vshrl.u32 %v6173, 7
        %v6175 = vsub.s32 %v6172, %v6174
        %v6176 = vrot.slane %v6166, %v6175
        %v6178 = vunpack.c.l.s4 1966171168
        %v6179 = vunpack.c.0.s8 %v6178
        %v6180 = vlaneseq
        %v6181 = vshrl.u32 %v6180, 7
        %v6182 = vsub.s32 %v6179, %v6181
        %v6183 = vrot.slane %v6167, %v6182
        %v6185 = vunpack.c.l.s4 1966171168
        %v6186 = vunpack.c.0.s8 %v6185
        %v6187 = vlaneseq
        %v6188 = vshrl.u32 %v6187, 7
        %v6189 = vsub.s32 %v6186, %v6188
        %v6190 = vrot.slane %v6168, %v6189
        %v6192 = vunpack.c.l.s4 1966171168
        %v6193 = vunpack.c.0.s8 %v6192
        %v6194 = vlaneseq
        %v6195 = vshrl.u32 %v6194, 7
        %v6196 = vsub.s32 %v6193, %v6195
        %v6197 = vrot.slane %v6169, %v6196
        %v6198 = vcombine.low %v6176, %v6183
        %v6199 = vcombine.low %v6190, %v6197
        %v6201 = vunpack.c.l.s4 1966171168
        %v6202 = vunpack.c.0.s8 %v6201
        %v6203 = vlaneseq
        %v6204 = vshrl.u32 %v6203, 7
        %v6205 = vsub.s32 %v6202, %v6204
        %v6206 = vrot.slane %v6198, %v6205
        %v6208 = vunpack.c.l.s4 1966171168
        %v6209 = vunpack.c.0.s8 %v6208
        %v6210 = vlaneseq
        %v6211 = vshrl.u32 %v6210, 7
        %v6212 = vsub.s32 %v6209, %v6211
        %v6213 = vrot.slane %v6199, %v6212
        %v6214 = vcombine.low %v6206, %v6213
        %v6215 = vcombine.low %v4837, %v4841
        %v6216 = vcombine.low %v4845, %v4849
        %v6217 = vcombine.low %v4853, %v4857
        %v6218 = vcombine.low %v4861, %v4865
        %v6220 = vunpack.c.l.s4 1966171168
        %v6221 = vunpack.c.0.s8 %v6220
        %v6222 = vlaneseq
        %v6223 = vshrl.u32 %v6222, 7
        %v6224 = vsub.s32 %v6221, %v6223
        %v6225 = vrot.slane %v6215, %v6224
        %v6227 = vunpack.c.l.s4 1966171168
        %v6228 = vunpack.c.0.s8 %v6227
        %v6229 = vlaneseq
        %v6230 = vshrl.u32 %v6229, 7
        %v6231 = vsub.s32 %v6228, %v6230
        %v6232 = vrot.slane %v6216, %v6231
        %v6234 = vunpack.c.l.s4 1966171168
        %v6235 = vunpack.c.0.s8 %v6234
        %v6236 = vlaneseq
        %v6237 = vshrl.u32 %v6236, 7
        %v6238 = vsub.s32 %v6235, %v6237
        %v6239 = vrot.slane %v6217, %v6238
        %v6241 = vunpack.c.l.s4 1966171168
        %v6242 = vunpack.c.0.s8 %v6241
        %v6243 = vlaneseq
        %v6244 = vshrl.u32 %v6243, 7
        %v6245 = vsub.s32 %v6242, %v6244
        %v6246 = vrot.slane %v6218, %v6245
        %v6247 = vcombine.low %v6225, %v6232
        %v6248 = vcombine.low %v6239, %v6246
        %v6250 = vunpack.c.l.s4 1966171168
        %v6251 = vunpack.c.0.s8 %v6250
        %v6252 = vlaneseq
        %v6253 = vshrl.u32 %v6252, 7
        %v6254 = vsub.s32 %v6251, %v6253
        %v6255 = vrot.slane %v6247, %v6254
        %v6257 = vunpack.c.l.s4 1966171168
        %v6258 = vunpack.c.0.s8 %v6257
        %v6259 = vlaneseq
        %v6260 = vshrl.u32 %v6259, 7
        %v6261 = vsub.s32 %v6258, %v6260
        %v6262 = vrot.slane %v6248, %v6261
        %v6263 = vcombine.low %v6255, %v6262
        %v6264 = vcombine.low %v4869, %v4873
        %v6265 = vcombine.low %v4877, %v4881
        %v6266 = vcombine.low %v4885, %v4889
        %v6267 = vcombine.low %v4893, %v4897
        %v6269 = vunpack.c.l.s4 1966171168
        %v6270 = vunpack.c.0.s8 %v6269
        %v6271 = vlaneseq
        %v6272 = vshrl.u32 %v6271, 7
        %v6273 = vsub.s32 %v6270, %v6272
        %v6274 = vrot.slane %v6264, %v6273
        %v6276 = vunpack.c.l.s4 1966171168
        %v6277 = vunpack.c.0.s8 %v6276
        %v6278 = vlaneseq
        %v6279 = vshrl.u32 %v6278, 7
        %v6280 = vsub.s32 %v6277, %v6279
        %v6281 = vrot.slane %v6265, %v6280
        %v6283 = vunpack.c.l.s4 1966171168
        %v6284 = vunpack.c.0.s8 %v6283
        %v6285 = vlaneseq
        %v6286 = vshrl.u32 %v6285, 7
        %v6287 = vsub.s32 %v6284, %v6286
        %v6288 = vrot.slane %v6266, %v6287
        %v6290 = vunpack.c.l.s4 1966171168
        %v6291 = vunpack.c.0.s8 %v6290
        %v6292 = vlaneseq
        %v6293 = vshrl.u32 %v6292, 7
        %v6294 = vsub.s32 %v6291, %v6293
        %v6295 = vrot.slane %v6267, %v6294
        %v6296 = vcombine.low %v6274, %v6281
        %v6297 = vcombine.low %v6288, %v6295
        %v6299 = vunpack.c.l.s4 1966171168
        %v6300 = vunpack.c.0.s8 %v6299
        %v6301 = vlaneseq
        %v6302 = vshrl.u32 %v6301, 7
        %v6303 = vsub.s32 %v6300, %v6302
        %v6304 = vrot.slane %v6296, %v6303
        %v6306 = vunpack.c.l.s4 1966171168
        %v6307 = vunpack.c.0.s8 %v6306
        %v6308 = vlaneseq
        %v6309 = vshrl.u32 %v6308, 7
        %v6310 = vsub.s32 %v6307, %v6309
        %v6311 = vrot.slane %v6297, %v6310
        %v6312 = vcombine.low %v6304, %v6311
        %v6313 = vcombine.low %v4901, %v4905
        %v6314 = vcombine.low %v4909, %v4913
        %v6315 = vcombine.low %v4917, %v4921
        %v6316 = vcombine.low %v4925, %v4929
        %v6318 = vunpack.c.l.s4 1966171168
        %v6319 = vunpack.c.0.s8 %v6318
        %v6320 = vlaneseq
        %v6321 = vshrl.u32 %v6320, 7
        %v6322 = vsub.s32 %v6319, %v6321
        %v6323 = vrot.slane %v6313, %v6322
        %v6325 = vunpack.c.l.s4 1966171168
        %v6326 = vunpack.c.0.s8 %v6325
        %v6327 = vlaneseq
        %v6328 = vshrl.u32 %v6327, 7
        %v6329 = vsub.s32 %v6326, %v6328
        %v6330 = vrot.slane %v6314, %v6329
        %v6332 = vunpack.c.l.s4 1966171168
        %v6333 = vunpack.c.0.s8 %v6332
        %v6334 = vlaneseq
        %v6335 = vshrl.u32 %v6334, 7
        %v6336 = vsub.s32 %v6333, %v6335
        %v6337 = vrot.slane %v6315, %v6336
        %v6339 = vunpack.c.l.s4 1966171168
        %v6340 = vunpack.c.0.s8 %v6339
        %v6341 = vlaneseq
        %v6342 = vshrl.u32 %v6341, 7
        %v6343 = vsub.s32 %v6340, %v6342
        %v6344 = vrot.slane %v6316, %v6343
        %v6345 = vcombine.low %v6323, %v6330
        %v6346 = vcombine.low %v6337, %v6344
        %v6348 = vunpack.c.l.s4 1966171168
        %v6349 = vunpack.c.0.s8 %v6348
        %v6350 = vlaneseq
        %v6351 = vshrl.u32 %v6350, 7
        %v6352 = vsub.s32 %v6349, %v6351
        %v6353 = vrot.slane %v6345, %v6352
        %v6355 = vunpack.c.l.s4 1966171168
        %v6356 = vunpack.c.0.s8 %v6355
        %v6357 = vlaneseq
        %v6358 = vshrl.u32 %v6357, 7
        %v6359 = vsub.s32 %v6356, %v6358
        %v6360 = vrot.slane %v6346, %v6359
        %v6361 = vcombine.low %v6353, %v6360
        %v6362 = vcombine.low %v4933, %v4937
        %v6363 = vcombine.low %v4941, %v4945
        %v6364 = vcombine.low %v4949, %v4953
        %v6365 = vcombine.low %v4957, %v4961
        %v6367 = vunpack.c.l.s4 1966171168
        %v6368 = vunpack.c.0.s8 %v6367
        %v6369 = vlaneseq
        %v6370 = vshrl.u32 %v6369, 7
        %v6371 = vsub.s32 %v6368, %v6370
        %v6372 = vrot.slane %v6362, %v6371
        %v6374 = vunpack.c.l.s4 1966171168
        %v6375 = vunpack.c.0.s8 %v6374
        %v6376 = vlaneseq
        %v6377 = vshrl.u32 %v6376, 7
        %v6378 = vsub.s32 %v6375, %v6377
        %v6379 = vrot.slane %v6363, %v6378
        %v6381 = vunpack.c.l.s4 1966171168
        %v6382 = vunpack.c.0.s8 %v6381
        %v6383 = vlaneseq
        %v6384 = vshrl.u32 %v6383, 7
        %v6385 = vsub.s32 %v6382, %v6384
        %v6386 = vrot.slane %v6364, %v6385
        %v6388 = vunpack.c.l.s4 1966171168
        %v6389 = vunpack.c.0.s8 %v6388
        %v6390 = vlaneseq
        %v6391 = vshrl.u32 %v6390, 7
        %v6392 = vsub.s32 %v6389, %v6391
        %v6393 = vrot.slane %v6365, %v6392
        %v6394 = vcombine.low %v6372, %v6379
        %v6395 = vcombine.low %v6386, %v6393
        %v6397 = vunpack.c.l.s4 1966171168
        %v6398 = vunpack.c.0.s8 %v6397
        %v6399 = vlaneseq
        %v6400 = vshrl.u32 %v6399, 7
        %v6401 = vsub.s32 %v6398, %v6400
        %v6402 = vrot.slane %v6394, %v6401
        %v6404 = vunpack.c.l.s4 1966171168
        %v6405 = vunpack.c.0.s8 %v6404
        %v6406 = vlaneseq
        %v6407 = vshrl.u32 %v6406, 7
        %v6408 = vsub.s32 %v6405, %v6407
        %v6409 = vrot.slane %v6395, %v6408
        %v6410 = vcombine.low %v6402, %v6409
        %v6411 = vcombine.low %v4965, %v4969
        %v6412 = vcombine.low %v4973, %v4977
        %v6413 = vcombine.low %v4981, %v4985
        %v6414 = vcombine.low %v4989, %v4993
        %v6416 = vunpack.c.l.s4 1966171168
        %v6417 = vunpack.c.0.s8 %v6416
        %v6418 = vlaneseq
        %v6419 = vshrl.u32 %v6418, 7
        %v6420 = vsub.s32 %v6417, %v6419
        %v6421 = vrot.slane %v6411, %v6420
        %v6423 = vunpack.c.l.s4 1966171168
        %v6424 = vunpack.c.0.s8 %v6423
        %v6425 = vlaneseq
        %v6426 = vshrl.u32 %v6425, 7
        %v6427 = vsub.s32 %v6424, %v6426
        %v6428 = vrot.slane %v6412, %v6427
        %v6430 = vunpack.c.l.s4 1966171168
        %v6431 = vunpack.c.0.s8 %v6430
        %v6432 = vlaneseq
        %v6433 = vshrl.u32 %v6432, 7
        %v6434 = vsub.s32 %v6431, %v6433
        %v6435 = vrot.slane %v6413, %v6434
        %v6437 = vunpack.c.l.s4 1966171168
        %v6438 = vunpack.c.0.s8 %v6437
        %v6439 = vlaneseq
        %v6440 = vshrl.u32 %v6439, 7
        %v6441 = vsub.s32 %v6438, %v6440
        %v6442 = vrot.slane %v6414, %v6441
        %v6443 = vcombine.low %v6421, %v6428
        %v6444 = vcombine.low %v6435, %v6442
        %v6446 = vunpack.c.l.s4 1966171168
        %v6447 = vunpack.c.0.s8 %v6446
        %v6448 = vlaneseq
        %v6449 = vshrl.u32 %v6448, 7
        %v6450 = vsub.s32 %v6447, %v6449
        %v6451 = vrot.slane %v6443, %v6450
        %v6453 = vunpack.c.l.s4 1966171168
        %v6454 = vunpack.c.0.s8 %v6453
        %v6455 = vlaneseq
        %v6456 = vshrl.u32 %v6455, 7
        %v6457 = vsub.s32 %v6454, %v6456
        %v6458 = vrot.slane %v6444, %v6457
        %v6459 = vcombine.low %v6451, %v6458
        %v6460 = vcombine.low %v4997, %v5001
        %v6461 = vcombine.low %v5005, %v5009
        %v6462 = vcombine.low %v5013, %v5017
        %v6463 = vcombine.low %v5021, %v5025
        %v6465 = vunpack.c.l.s4 1966171168
        %v6466 = vunpack.c.0.s8 %v6465
        %v6467 = vlaneseq
        %v6468 = vshrl.u32 %v6467, 7
        %v6469 = vsub.s32 %v6466, %v6468
        %v6470 = vrot.slane %v6460, %v6469
        %v6472 = vunpack.c.l.s4 1966171168
        %v6473 = vunpack.c.0.s8 %v6472
        %v6474 = vlaneseq
        %v6475 = vshrl.u32 %v6474, 7
        %v6476 = vsub.s32 %v6473, %v6475
        %v6477 = vrot.slane %v6461, %v6476
        %v6479 = vunpack.c.l.s4 1966171168
        %v6480 = vunpack.c.0.s8 %v6479
        %v6481 = vlaneseq
        %v6482 = vshrl.u32 %v6481, 7
        %v6483 = vsub.s32 %v6480, %v6482
        %v6484 = vrot.slane %v6462, %v6483
        %v6486 = vunpack.c.l.s4 1966171168
        %v6487 = vunpack.c.0.s8 %v6486
        %v6488 = vlaneseq
        %v6489 = vshrl.u32 %v6488, 7
        %v6490 = vsub.s32 %v6487, %v6489
        %v6491 = vrot.slane %v6463, %v6490
        %v6492 = vcombine.low %v6470, %v6477
        %v6493 = vcombine.low %v6484, %v6491
        %v6495 = vunpack.c.l.s4 1966171168
        %v6496 = vunpack.c.0.s8 %v6495
        %v6497 = vlaneseq
        %v6498 = vshrl.u32 %v6497, 7
        %v6499 = vsub.s32 %v6496, %v6498
        %v6500 = vrot.slane %v6492, %v6499
        %v6502 = vunpack.c.l.s4 1966171168
        %v6503 = vunpack.c.0.s8 %v6502
        %v6504 = vlaneseq
        %v6505 = vshrl.u32 %v6504, 7
        %v6506 = vsub.s32 %v6503, %v6505
        %v6507 = vrot.slane %v6493, %v6506
        %v6508 = vcombine.low %v6500, %v6507
        %v6509 = vcombine.low %v5029, %v5033
        %v6510 = vcombine.low %v5037, %v5041
        %v6511 = vcombine.low %v5045, %v5049
        %v6512 = vcombine.low %v5053, %v5057
        %v6514 = vunpack.c.l.s4 1966171168
        %v6515 = vunpack.c.0.s8 %v6514
        %v6516 = vlaneseq
        %v6517 = vshrl.u32 %v6516, 7
        %v6518 = vsub.s32 %v6515, %v6517
        %v6519 = vrot.slane %v6509, %v6518
        %v6521 = vunpack.c.l.s4 1966171168
        %v6522 = vunpack.c.0.s8 %v6521
        %v6523 = vlaneseq
        %v6524 = vshrl.u32 %v6523, 7
        %v6525 = vsub.s32 %v6522, %v6524
        %v6526 = vrot.slane %v6510, %v6525
        %v6528 = vunpack.c.l.s4 1966171168
        %v6529 = vunpack.c.0.s8 %v6528
        %v6530 = vlaneseq
        %v6531 = vshrl.u32 %v6530, 7
        %v6532 = vsub.s32 %v6529, %v6531
        %v6533 = vrot.slane %v6511, %v6532
        %v6535 = vunpack.c.l.s4 1966171168
        %v6536 = vunpack.c.0.s8 %v6535
        %v6537 = vlaneseq
        %v6538 = vshrl.u32 %v6537, 7
        %v6539 = vsub.s32 %v6536, %v6538
        %v6540 = vrot.slane %v6512, %v6539
        %v6541 = vcombine.low %v6519, %v6526
        %v6542 = vcombine.low %v6533, %v6540
        %v6544 = vunpack.c.l.s4 1966171168
        %v6545 = vunpack.c.0.s8 %v6544
        %v6546 = vlaneseq
        %v6547 = vshrl.u32 %v6546, 7
        %v6548 = vsub.s32 %v6545, %v6547
        %v6549 = vrot.slane %v6541, %v6548
        %v6551 = vunpack.c.l.s4 1966171168
        %v6552 = vunpack.c.0.s8 %v6551
        %v6553 = vlaneseq
        %v6554 = vshrl.u32 %v6553, 7
        %v6555 = vsub.s32 %v6552, %v6554
        %v6556 = vrot.slane %v6542, %v6555
        %v6557 = vcombine.low %v6549, %v6556
        %v6558 = vcombine.low %v5061, %v5065
        %v6559 = vcombine.low %v5069, %v5073
        %v6560 = vcombine.low %v5077, %v5081
        %v6561 = vcombine.low %v5085, %v5089
        %v6563 = vunpack.c.l.s4 1966171168
        %v6564 = vunpack.c.0.s8 %v6563
        %v6565 = vlaneseq
        %v6566 = vshrl.u32 %v6565, 7
        %v6567 = vsub.s32 %v6564, %v6566
        %v6568 = vrot.slane %v6558, %v6567
        %v6570 = vunpack.c.l.s4 1966171168
        %v6571 = vunpack.c.0.s8 %v6570
        %v6572 = vlaneseq
        %v6573 = vshrl.u32 %v6572, 7
        %v6574 = vsub.s32 %v6571, %v6573
        %v6575 = vrot.slane %v6559, %v6574
        %v6577 = vunpack.c.l.s4 1966171168
        %v6578 = vunpack.c.0.s8 %v6577
        %v6579 = vlaneseq
        %v6580 = vshrl.u32 %v6579, 7
        %v6581 = vsub.s32 %v6578, %v6580
        %v6582 = vrot.slane %v6560, %v6581
        %v6584 = vunpack.c.l.s4 1966171168
        %v6585 = vunpack.c.0.s8 %v6584
        %v6586 = vlaneseq
        %v6587 = vshrl.u32 %v6586, 7
        %v6588 = vsub.s32 %v6585, %v6587
        %v6589 = vrot.slane %v6561, %v6588
        %v6590 = vcombine.low %v6568, %v6575
        %v6591 = vcombine.low %v6582, %v6589
        %v6593 = vunpack.c.l.s4 1966171168
        %v6594 = vunpack.c.0.s8 %v6593
        %v6595 = vlaneseq
        %v6596 = vshrl.u32 %v6595, 7
        %v6597 = vsub.s32 %v6594, %v6596
        %v6598 = vrot.slane %v6590, %v6597
        %v6600 = vunpack.c.l.s4 1966171168
        %v6601 = vunpack.c.0.s8 %v6600
        %v6602 = vlaneseq
        %v6603 = vshrl.u32 %v6602, 7
        %v6604 = vsub.s32 %v6601, %v6603
        %v6605 = vrot.slane %v6591, %v6604
        %v6606 = vcombine.low %v6598, %v6605
        %v6607 = vcombine.low %v5093, %v5097
        %v6608 = vcombine.low %v5101, %v5105
        %v6609 = vcombine.low %v5109, %v5113
        %v6610 = vcombine.low %v5117, %v5121
        %v6612 = vunpack.c.l.s4 1966171168
        %v6613 = vunpack.c.0.s8 %v6612
        %v6614 = vlaneseq
        %v6615 = vshrl.u32 %v6614, 7
        %v6616 = vsub.s32 %v6613, %v6615
        %v6617 = vrot.slane %v6607, %v6616
        %v6619 = vunpack.c.l.s4 1966171168
        %v6620 = vunpack.c.0.s8 %v6619
        %v6621 = vlaneseq
        %v6622 = vshrl.u32 %v6621, 7
        %v6623 = vsub.s32 %v6620, %v6622
        %v6624 = vrot.slane %v6608, %v6623
        %v6626 = vunpack.c.l.s4 1966171168
        %v6627 = vunpack.c.0.s8 %v6626
        %v6628 = vlaneseq
        %v6629 = vshrl.u32 %v6628, 7
        %v6630 = vsub.s32 %v6627, %v6629
        %v6631 = vrot.slane %v6609, %v6630
        %v6633 = vunpack.c.l.s4 1966171168
        %v6634 = vunpack.c.0.s8 %v6633
        %v6635 = vlaneseq
        %v6636 = vshrl.u32 %v6635, 7
        %v6637 = vsub.s32 %v6634, %v6636
        %v6638 = vrot.slane %v6610, %v6637
        %v6639 = vcombine.low %v6617, %v6624
        %v6640 = vcombine.low %v6631, %v6638
        %v6642 = vunpack.c.l.s4 1966171168
        %v6643 = vunpack.c.0.s8 %v6642
        %v6644 = vlaneseq
        %v6645 = vshrl.u32 %v6644, 7
        %v6646 = vsub.s32 %v6643, %v6645
        %v6647 = vrot.slane %v6639, %v6646
        %v6649 = vunpack.c.l.s4 1966171168
        %v6650 = vunpack.c.0.s8 %v6649
        %v6651 = vlaneseq
        %v6652 = vshrl.u32 %v6651, 7
        %v6653 = vsub.s32 %v6650, %v6652
        %v6654 = vrot.slane %v6640, %v6653
        %v6655 = vcombine.low %v6647, %v6654
        %v6656 = vcombine.low %v5125, %v5129
        %v6657 = vcombine.low %v5133, %v5137
        %v6658 = vcombine.low %v5141, %v5145
        %v6659 = vcombine.low %v5149, %v5153
        %v6661 = vunpack.c.l.s4 1966171168
        %v6662 = vunpack.c.0.s8 %v6661
        %v6663 = vlaneseq
        %v6664 = vshrl.u32 %v6663, 7
        %v6665 = vsub.s32 %v6662, %v6664
        %v6666 = vrot.slane %v6656, %v6665
        %v6668 = vunpack.c.l.s4 1966171168
        %v6669 = vunpack.c.0.s8 %v6668
        %v6670 = vlaneseq
        %v6671 = vshrl.u32 %v6670, 7
        %v6672 = vsub.s32 %v6669, %v6671
        %v6673 = vrot.slane %v6657, %v6672
        %v6675 = vunpack.c.l.s4 1966171168
        %v6676 = vunpack.c.0.s8 %v6675
        %v6677 = vlaneseq
        %v6678 = vshrl.u32 %v6677, 7
        %v6679 = vsub.s32 %v6676, %v6678
        %v6680 = vrot.slane %v6658, %v6679
        %v6682 = vunpack.c.l.s4 1966171168
        %v6683 = vunpack.c.0.s8 %v6682
        %v6684 = vlaneseq
        %v6685 = vshrl.u32 %v6684, 7
        %v6686 = vsub.s32 %v6683, %v6685
        %v6687 = vrot.slane %v6659, %v6686
        %v6688 = vcombine.low %v6666, %v6673
        %v6689 = vcombine.low %v6680, %v6687
        %v6691 = vunpack.c.l.s4 1966171168
        %v6692 = vunpack.c.0.s8 %v6691
        %v6693 = vlaneseq
        %v6694 = vshrl.u32 %v6693, 7
        %v6695 = vsub.s32 %v6692, %v6694
        %v6696 = vrot.slane %v6688, %v6695
        %v6698 = vunpack.c.l.s4 1966171168
        %v6699 = vunpack.c.0.s8 %v6698
        %v6700 = vlaneseq
        %v6701 = vshrl.u32 %v6700, 7
        %v6702 = vsub.s32 %v6699, %v6701
        %v6703 = vrot.slane %v6689, %v6702
        %v6704 = vcombine.low %v6696, %v6703
        %v6705 = vcombine.low %v5157, %v5161
        %v6706 = vcombine.low %v5165, %v5169
        %v6707 = vcombine.low %v5173, %v5177
        %v6708 = vcombine.low %v5181, %v5185
        %v6710 = vunpack.c.l.s4 1966171168
        %v6711 = vunpack.c.0.s8 %v6710
        %v6712 = vlaneseq
        %v6713 = vshrl.u32 %v6712, 7
        %v6714 = vsub.s32 %v6711, %v6713
        %v6715 = vrot.slane %v6705, %v6714
        %v6717 = vunpack.c.l.s4 1966171168
        %v6718 = vunpack.c.0.s8 %v6717
        %v6719 = vlaneseq
        %v6720 = vshrl.u32 %v6719, 7
        %v6721 = vsub.s32 %v6718, %v6720
        %v6722 = vrot.slane %v6706, %v6721
        %v6724 = vunpack.c.l.s4 1966171168
        %v6725 = vunpack.c.0.s8 %v6724
        %v6726 = vlaneseq
        %v6727 = vshrl.u32 %v6726, 7
        %v6728 = vsub.s32 %v6725, %v6727
        %v6729 = vrot.slane %v6707, %v6728
        %v6731 = vunpack.c.l.s4 1966171168
        %v6732 = vunpack.c.0.s8 %v6731
        %v6733 = vlaneseq
        %v6734 = vshrl.u32 %v6733, 7
        %v6735 = vsub.s32 %v6732, %v6734
        %v6736 = vrot.slane %v6708, %v6735
        %v6737 = vcombine.low %v6715, %v6722
        %v6738 = vcombine.low %v6729, %v6736
        %v6740 = vunpack.c.l.s4 1966171168
        %v6741 = vunpack.c.0.s8 %v6740
        %v6742 = vlaneseq
        %v6743 = vshrl.u32 %v6742, 7
        %v6744 = vsub.s32 %v6741, %v6743
        %v6745 = vrot.slane %v6737, %v6744
        %v6747 = vunpack.c.l.s4 1966171168
        %v6748 = vunpack.c.0.s8 %v6747
        %v6749 = vlaneseq
        %v6750 = vshrl.u32 %v6749, 7
        %v6751 = vsub.s32 %v6748, %v6750
        %v6752 = vrot.slane %v6738, %v6751
        %v6753 = vcombine.low %v6745, %v6752
        %6754 = vset.pattern.permute.xlu0 0
        %6755 = vperm.xlu0 %6754, %v5234
        %v6756 = vpop.permute.xlu0 %6755
        %6757 = vset.pattern.permute.xlu0 0
        %6758 = vperm.xlu0 %6757, %v5283
        %v6759 = vpop.permute.xlu0 %6758
        %6760 = vset.pattern.permute.xlu0 0
        %6761 = vperm.xlu0 %6760, %v5332
        %v6762 = vpop.permute.xlu0 %6761
        %6763 = vset.pattern.permute.xlu0 0
        %6764 = vperm.xlu0 %6763, %v5381
        %v6765 = vpop.permute.xlu0 %6764
        %6766 = vset.pattern.permute.xlu0 0
        %6767 = vperm.xlu0 %6766, %v5430
        %v6768 = vpop.permute.xlu0 %6767
        %6769 = vset.pattern.permute.xlu0 0
        %6770 = vperm.xlu0 %6769, %v5479
        %v6771 = vpop.permute.xlu0 %6770
        %6772 = vset.pattern.permute.xlu0 0
        %6773 = vperm.xlu0 %6772, %v5528
        %v6774 = vpop.permute.xlu0 %6773
        %6775 = vset.pattern.permute.xlu0 0
        %6776 = vperm.xlu0 %6775, %v5577
        %v6777 = vpop.permute.xlu0 %6776
        %6778 = vset.pattern.permute.xlu0 0
        %6779 = vperm.xlu0 %6778, %v5626
        %v6780 = vpop.permute.xlu0 %6779
        %6781 = vset.pattern.permute.xlu0 0
        %6782 = vperm.xlu0 %6781, %v5675
        %v6783 = vpop.permute.xlu0 %6782
        %6784 = vset.pattern.permute.xlu0 0
        %6785 = vperm.xlu0 %6784, %v5724
        %v6786 = vpop.permute.xlu0 %6785
        %6787 = vset.pattern.permute.xlu0 0
        %6788 = vperm.xlu0 %6787, %v5773
        %v6789 = vpop.permute.xlu0 %6788
        %6790 = vset.pattern.permute.xlu0 0
        %6791 = vperm.xlu0 %6790, %v5822
        %v6792 = vpop.permute.xlu0 %6791
        %6793 = vset.pattern.permute.xlu0 0
        %6794 = vperm.xlu0 %6793, %v5871
        %v6795 = vpop.permute.xlu0 %6794
        %6796 = vset.pattern.permute.xlu0 0
        %6797 = vperm.xlu0 %6796, %v5920
        %v6798 = vpop.permute.xlu0 %6797
        %6799 = vset.pattern.permute.xlu0 0
        %6800 = vperm.xlu0 %6799, %v5969
        %v6801 = vpop.permute.xlu0 %6800
        %6802 = vset.pattern.permute.xlu0 0
        %6803 = vperm.xlu0 %6802, %v6018
        %v6804 = vpop.permute.xlu0 %6803
        %6805 = vset.pattern.permute.xlu0 0
        %6806 = vperm.xlu0 %6805, %v6067
        %v6807 = vpop.permute.xlu0 %6806
        %6808 = vset.pattern.permute.xlu0 0
        %6809 = vperm.xlu0 %6808, %v6116
        %v6810 = vpop.permute.xlu0 %6809
        %6811 = vset.pattern.permute.xlu0 0
        %6812 = vperm.xlu0 %6811, %v6165
        %v6813 = vpop.permute.xlu0 %6812
        %6814 = vset.pattern.permute.xlu0 0
        %6815 = vperm.xlu0 %6814, %v6214
        %v6816 = vpop.permute.xlu0 %6815
        %6817 = vset.pattern.permute.xlu0 0
        %6818 = vperm.xlu0 %6817, %v6263
        %v6819 = vpop.permute.xlu0 %6818
        %6820 = vset.pattern.permute.xlu0 0
        %6821 = vperm.xlu0 %6820, %v6312
        %v6822 = vpop.permute.xlu0 %6821
        %6823 = vset.pattern.permute.xlu0 0
        %6824 = vperm.xlu0 %6823, %v6361
        %v6825 = vpop.permute.xlu0 %6824
        %6826 = vset.pattern.permute.xlu0 0
        %6827 = vperm.xlu0 %6826, %v6410
        %v6828 = vpop.permute.xlu0 %6827
        %6829 = vset.pattern.permute.xlu0 0
        %6830 = vperm.xlu0 %6829, %v6459
        %v6831 = vpop.permute.xlu0 %6830
        %6832 = vset.pattern.permute.xlu0 0
        %6833 = vperm.xlu0 %6832, %v6508
        %v6834 = vpop.permute.xlu0 %6833
        %6835 = vset.pattern.permute.xlu0 0
        %6836 = vperm.xlu0 %6835, %v6557
        %v6837 = vpop.permute.xlu0 %6836
        %6838 = vset.pattern.permute.xlu0 0
        %6839 = vperm.xlu0 %6838, %v6606
        %v6840 = vpop.permute.xlu0 %6839
        %6841 = vset.pattern.permute.xlu0 0
        %6842 = vperm.xlu0 %6841, %v6655
        %v6843 = vpop.permute.xlu0 %6842
        %6844 = vset.pattern.permute.xlu0 0
        %6845 = vperm.xlu0 %6844, %v6704
        %v6846 = vpop.permute.xlu0 %6845
        %6847 = vset.pattern.permute.xlu0 0
        %6848 = vperm.xlu0 %6847, %v6753
        %v6849 = vpop.permute.xlu0 %6848
        %v6850 = vlaneseq
        %v6851 = vshrl.u32 %v6850, 7
        %v6852 = vsub.s32 %v1596, %v6851
        %v6853 = vrot.slane %v6756, %v6852
        %v6854 = vadd.s32 %v1596, 4294967288
        %v6855 = vlaneseq
        %v6856 = vshrl.u32 %v6855, 7
        %v6857 = vsub.s32 %v6854, %v6856
        %v6858 = vrot.slane %v6759, %v6857
        %vm6859 = vcmask 130112
        %v6860 = vsel %vm6859, %v6858, %v6853
        %v6861 = vadd.s32 %v1596, 4294967280
        %v6862 = vlaneseq
        %v6863 = vshrl.u32 %v6862, 7
        %v6864 = vsub.s32 %v6861, %v6863
        %v6865 = vrot.slane %v6762, %v6864
        %vm6866 = vcmask 195712
        %v6867 = vsel %vm6866, %v6865, %v6860
        %v6868 = vadd.s32 %v1596, 4294967272
        %v6869 = vlaneseq
        %v6870 = vshrl.u32 %v6869, 7
        %v6871 = vsub.s32 %v6868, %v6870
        %v6872 = vrot.slane %v6765, %v6871
        %vm6873 = vcmask 261312
        %v6874 = vsel %vm6873, %v6872, %v6867
        %v6875 = vadd.s32 %v1596, 4294967264
        %v6876 = vlaneseq
        %v6877 = vshrl.u32 %v6876, 7
        %v6878 = vsub.s32 %v6875, %v6877
        %v6879 = vrot.slane %v6768, %v6878
        %vm6880 = vcmask 326912
        %v6881 = vsel %vm6880, %v6879, %v6874
        %v6882 = vadd.s32 %v1596, 4294967256
        %v6883 = vlaneseq
        %v6884 = vshrl.u32 %v6883, 7
        %v6885 = vsub.s32 %v6882, %v6884
        %v6886 = vrot.slane %v6771, %v6885
        %vm6887 = vcmask 392512
        %v6888 = vsel %vm6887, %v6886, %v6881
        %v6889 = vadd.s32 %v1596, 4294967248
        %v6890 = vlaneseq
        %v6891 = vshrl.u32 %v6890, 7
        %v6892 = vsub.s32 %v6889, %v6891
        %v6893 = vrot.slane %v6774, %v6892
        %vm6894 = vcmask 458112
        %v6895 = vsel %vm6894, %v6893, %v6888
        %v6896 = vadd.s32 %v1596, 4294967240
        %v6897 = vlaneseq
        %v6898 = vshrl.u32 %v6897, 7
        %v6899 = vsub.s32 %v6896, %v6898
        %v6900 = vrot.slane %v6777, %v6899
        %vm6901 = vcmask 523712
        %v6902 = vsel %vm6901, %v6900, %v6895
        %v6903 = vadd.s32 %v1596, 4294967232
        %v6904 = vlaneseq
        %v6905 = vshrl.u32 %v6904, 7
        %v6906 = vsub.s32 %v6903, %v6905
        %v6907 = vrot.slane %v6780, %v6906
        %vm6908 = vcmask 589312
        %v6909 = vsel %vm6908, %v6907, %v6902
        %v6910 = vadd.s32 %v1596, 4294967224
        %v6911 = vlaneseq
        %v6912 = vshrl.u32 %v6911, 7
        %v6913 = vsub.s32 %v6910, %v6912
        %v6914 = vrot.slane %v6783, %v6913
        %vm6915 = vcmask 654912
        %v6916 = vsel %vm6915, %v6914, %v6909
        %v6917 = vadd.s32 %v1596, 4294967216
        %v6918 = vlaneseq
        %v6919 = vshrl.u32 %v6918, 7
        %v6920 = vsub.s32 %v6917, %v6919
        %v6921 = vrot.slane %v6786, %v6920
        %vm6922 = vcmask 720512
        %v6923 = vsel %vm6922, %v6921, %v6916
        %v6924 = vadd.s32 %v1596, 4294967208
        %v6925 = vlaneseq
        %v6926 = vshrl.u32 %v6925, 7
        %v6927 = vsub.s32 %v6924, %v6926
        %v6928 = vrot.slane %v6789, %v6927
        %vm6929 = vcmask 786112
        %v6930 = vsel %vm6929, %v6928, %v6923
        %v6931 = vadd.s32 %v1596, 4294967200
        %v6932 = vlaneseq
        %v6933 = vshrl.u32 %v6932, 7
        %v6934 = vsub.s32 %v6931, %v6933
        %v6935 = vrot.slane %v6792, %v6934
        %vm6936 = vcmask 851712
        %v6937 = vsel %vm6936, %v6935, %v6930
        %v6938 = vadd.s32 %v1596, 4294967192
        %v6939 = vlaneseq
        %v6940 = vshrl.u32 %v6939, 7
        %v6941 = vsub.s32 %v6938, %v6940
        %v6942 = vrot.slane %v6795, %v6941
        %vm6943 = vcmask 917312
        %v6944 = vsel %vm6943, %v6942, %v6937
        %v6945 = vadd.s32 %v1596, 4294967184
        %v6946 = vlaneseq
        %v6947 = vshrl.u32 %v6946, 7
        %v6948 = vsub.s32 %v6945, %v6947
        %v6949 = vrot.slane %v6798, %v6948
        %vm6950 = vcmask 982912
        %v6951 = vsel %vm6950, %v6949, %v6944
        %v6952 = vadd.s32 %v1596, 4294967176
        %v6953 = vlaneseq
        %v6954 = vshrl.u32 %v6953, 7
        %v6955 = vsub.s32 %v6952, %v6954
        %v6956 = vrot.slane %v6801, %v6955
        %vm6957 = vcmask 1048512
        %v6958 = vsel %vm6957, %v6956, %v6951
        %v6959 = vlaneseq
        %v6960 = vshrl.u32 %v6959, 7
        %v6961 = vsub.s32 %v1596, %v6960
        %v6962 = vrot.slane %v6804, %v6961
        %v6963 = vlaneseq
        %v6964 = vshrl.u32 %v6963, 7
        %v6965 = vsub.s32 %v6854, %v6964
        %v6966 = vrot.slane %v6807, %v6965
        %v6967 = vsel %vm6859, %v6966, %v6962
        %v6968 = vlaneseq
        %v6969 = vshrl.u32 %v6968, 7
        %v6970 = vsub.s32 %v6861, %v6969
        %v6971 = vrot.slane %v6810, %v6970
        %v6972 = vsel %vm6866, %v6971, %v6967
        %v6973 = vlaneseq
        %v6974 = vshrl.u32 %v6973, 7
        %v6975 = vsub.s32 %v6868, %v6974
        %v6976 = vrot.slane %v6813, %v6975
        %v6977 = vsel %vm6873, %v6976, %v6972
        %v6978 = vlaneseq
        %v6979 = vshrl.u32 %v6978, 7
        %v6980 = vsub.s32 %v6875, %v6979
        %v6981 = vrot.slane %v6816, %v6980
        %v6982 = vsel %vm6880, %v6981, %v6977
        %v6983 = vlaneseq
        %v6984 = vshrl.u32 %v6983, 7
        %v6985 = vsub.s32 %v6882, %v6984
        %v6986 = vrot.slane %v6819, %v6985
        %v6987 = vsel %vm6887, %v6986, %v6982
        %v6988 = vlaneseq
        %v6989 = vshrl.u32 %v6988, 7
        %v6990 = vsub.s32 %v6889, %v6989
        %v6991 = vrot.slane %v6822, %v6990
        %v6992 = vsel %vm6894, %v6991, %v6987
        %v6993 = vlaneseq
        %v6994 = vshrl.u32 %v6993, 7
        %v6995 = vsub.s32 %v6896, %v6994
        %v6996 = vrot.slane %v6825, %v6995
        %v6997 = vsel %vm6901, %v6996, %v6992
        %v6998 = vlaneseq
        %v6999 = vshrl.u32 %v6998, 7
        %v7000 = vsub.s32 %v6903, %v6999
        %v7001 = vrot.slane %v6828, %v7000
        %v7002 = vsel %vm6908, %v7001, %v6997
        %v7003 = vlaneseq
        %v7004 = vshrl.u32 %v7003, 7
        %v7005 = vsub.s32 %v6910, %v7004
        %v7006 = vrot.slane %v6831, %v7005
        %v7007 = vsel %vm6915, %v7006, %v7002
        %v7008 = vlaneseq
        %v7009 = vshrl.u32 %v7008, 7
        %v7010 = vsub.s32 %v6917, %v7009
        %v7011 = vrot.slane %v6834, %v7010
        %v7012 = vsel %vm6922, %v7011, %v7007
        %v7013 = vlaneseq
        %v7014 = vshrl.u32 %v7013, 7
        %v7015 = vsub.s32 %v6924, %v7014
        %v7016 = vrot.slane %v6837, %v7015
        %v7017 = vsel %vm6929, %v7016, %v7012
        %v7018 = vlaneseq
        %v7019 = vshrl.u32 %v7018, 7
        %v7020 = vsub.s32 %v6931, %v7019
        %v7021 = vrot.slane %v6840, %v7020
        %v7022 = vsel %vm6936, %v7021, %v7017
        %v7023 = vlaneseq
        %v7024 = vshrl.u32 %v7023, 7
        %v7025 = vsub.s32 %v6938, %v7024
        %v7026 = vrot.slane %v6843, %v7025
        %v7027 = vsel %vm6943, %v7026, %v7022
        %v7028 = vlaneseq
        %v7029 = vshrl.u32 %v7028, 7
        %v7030 = vsub.s32 %v6945, %v7029
        %v7031 = vrot.slane %v6846, %v7030
        %v7032 = vsel %vm6950, %v7031, %v7027
        %v7033 = vlaneseq
        %v7034 = vshrl.u32 %v7033, 7
        %v7035 = vsub.s32 %v6952, %v7034
        %v7036 = vrot.slane %v6849, %v7035
        %v7037 = vsel %vm6957, %v7036, %v7032
        %v7038 = vcombine.low %v6958, %v7037
        %v7040 = vunpack.c.l.s4 1966171168
        %v7041 = vunpack.c.0.s8 %v7040
        %v7042 = vlaneseq
        %v7043 = vshrl.u32 %v7042, 7
        %v7044 = vsub.s32 %v7041, %v7043
        %v7045 = vrot.slane %v7038, %v7044
        %v7047 = vunpack.c.l.s4 1966171168
        %v7048 = vunpack.c.0.s8 %v7047
        %v7049 = vlaneseq
        %v7050 = vshrl.u32 %v7049, 7
        %v7051 = vsub.s32 %v7048, %v7050
        %v7052 = vrot.slane %v7045, %v7051
        %v7053 = vlaneseq
        %vm7054 = vcmp.ge.s32.totalorder %v7053, 0
        %vm7055 = vcmp.lt.s32.totalorder %v7053, 256
        %vm7056 = vmand %vm7054, %vm7055
        %7057 = vst.msk [vmem:[%s346] ss:$2 sm:$0x3] %vm7056, %v7052
        %v7058 = vlaneseq
        %v7059 = vshrl.u32 %v7058, 7
        %v7060 = vsub.s32 0, %v7059
        %v7061 = vrot.slane %v2314, %v7060
        %v7062 = vlaneseq
        %v7063 = vshrl.u32 %v7062, 7
        %v7064 = vsub.s32 1, %v7063
        %v7065 = vrot.slane %v2314, %v7064
        %v7066 = vlaneseq
        %v7067 = vshrl.u32 %v7066, 7
        %v7068 = vsub.s32 2, %v7067
        %v7069 = vrot.slane %v2314, %v7068
        %v7070 = vlaneseq
        %v7071 = vshrl.u32 %v7070, 7
        %v7072 = vsub.s32 3, %v7071
        %v7073 = vrot.slane %v2314, %v7072
        %v7074 = vlaneseq
        %v7075 = vshrl.u32 %v7074, 7
        %v7076 = vsub.s32 4, %v7075
        %v7077 = vrot.slane %v2314, %v7076
        %v7078 = vlaneseq
        %v7079 = vshrl.u32 %v7078, 7
        %v7080 = vsub.s32 5, %v7079
        %v7081 = vrot.slane %v2314, %v7080
        %v7082 = vlaneseq
        %v7083 = vshrl.u32 %v7082, 7
        %v7084 = vsub.s32 6, %v7083
        %v7085 = vrot.slane %v2314, %v7084
        %v7086 = vlaneseq
        %v7087 = vshrl.u32 %v7086, 7
        %v7088 = vsub.s32 7, %v7087
        %v7089 = vrot.slane %v2314, %v7088
        %v7090 = vlaneseq
        %v7091 = vshrl.u32 %v7090, 7
        %v7092 = vsub.s32 0, %v7091
        %v7093 = vrot.slane %v2328, %v7092
        %v7094 = vlaneseq
        %v7095 = vshrl.u32 %v7094, 7
        %v7096 = vsub.s32 1, %v7095
        %v7097 = vrot.slane %v2328, %v7096
        %v7098 = vlaneseq
        %v7099 = vshrl.u32 %v7098, 7
        %v7100 = vsub.s32 2, %v7099
        %v7101 = vrot.slane %v2328, %v7100
        %v7102 = vlaneseq
        %v7103 = vshrl.u32 %v7102, 7
        %v7104 = vsub.s32 3, %v7103
        %v7105 = vrot.slane %v2328, %v7104
        %v7106 = vlaneseq
        %v7107 = vshrl.u32 %v7106, 7
        %v7108 = vsub.s32 4, %v7107
        %v7109 = vrot.slane %v2328, %v7108
        %v7110 = vlaneseq
        %v7111 = vshrl.u32 %v7110, 7
        %v7112 = vsub.s32 5, %v7111
        %v7113 = vrot.slane %v2328, %v7112
        %v7114 = vlaneseq
        %v7115 = vshrl.u32 %v7114, 7
        %v7116 = vsub.s32 6, %v7115
        %v7117 = vrot.slane %v2328, %v7116
        %v7118 = vlaneseq
        %v7119 = vshrl.u32 %v7118, 7
        %v7120 = vsub.s32 7, %v7119
        %v7121 = vrot.slane %v2328, %v7120
        %v7122 = vlaneseq
        %v7123 = vshrl.u32 %v7122, 7
        %v7124 = vsub.s32 0, %v7123
        %v7125 = vrot.slane %v2342, %v7124
        %v7126 = vlaneseq
        %v7127 = vshrl.u32 %v7126, 7
        %v7128 = vsub.s32 1, %v7127
        %v7129 = vrot.slane %v2342, %v7128
        %v7130 = vlaneseq
        %v7131 = vshrl.u32 %v7130, 7
        %v7132 = vsub.s32 2, %v7131
        %v7133 = vrot.slane %v2342, %v7132
        %v7134 = vlaneseq
        %v7135 = vshrl.u32 %v7134, 7
        %v7136 = vsub.s32 3, %v7135
        %v7137 = vrot.slane %v2342, %v7136
        %v7138 = vlaneseq
        %v7139 = vshrl.u32 %v7138, 7
        %v7140 = vsub.s32 4, %v7139
        %v7141 = vrot.slane %v2342, %v7140
        %v7142 = vlaneseq
        %v7143 = vshrl.u32 %v7142, 7
        %v7144 = vsub.s32 5, %v7143
        %v7145 = vrot.slane %v2342, %v7144
        %v7146 = vlaneseq
        %v7147 = vshrl.u32 %v7146, 7
        %v7148 = vsub.s32 6, %v7147
        %v7149 = vrot.slane %v2342, %v7148
        %v7150 = vlaneseq
        %v7151 = vshrl.u32 %v7150, 7
        %v7152 = vsub.s32 7, %v7151
        %v7153 = vrot.slane %v2342, %v7152
        %v7154 = vlaneseq
        %v7155 = vshrl.u32 %v7154, 7
        %v7156 = vsub.s32 0, %v7155
        %v7157 = vrot.slane %v2356, %v7156
        %v7158 = vlaneseq
        %v7159 = vshrl.u32 %v7158, 7
        %v7160 = vsub.s32 1, %v7159
        %v7161 = vrot.slane %v2356, %v7160
        %v7162 = vlaneseq
        %v7163 = vshrl.u32 %v7162, 7
        %v7164 = vsub.s32 2, %v7163
        %v7165 = vrot.slane %v2356, %v7164
        %v7166 = vlaneseq
        %v7167 = vshrl.u32 %v7166, 7
        %v7168 = vsub.s32 3, %v7167
        %v7169 = vrot.slane %v2356, %v7168
        %v7170 = vlaneseq
        %v7171 = vshrl.u32 %v7170, 7
        %v7172 = vsub.s32 4, %v7171
        %v7173 = vrot.slane %v2356, %v7172
        %v7174 = vlaneseq
        %v7175 = vshrl.u32 %v7174, 7
        %v7176 = vsub.s32 5, %v7175
        %v7177 = vrot.slane %v2356, %v7176
        %v7178 = vlaneseq
        %v7179 = vshrl.u32 %v7178, 7
        %v7180 = vsub.s32 6, %v7179
        %v7181 = vrot.slane %v2356, %v7180
        %v7182 = vlaneseq
        %v7183 = vshrl.u32 %v7182, 7
        %v7184 = vsub.s32 7, %v7183
        %v7185 = vrot.slane %v2356, %v7184
        %v7186 = vlaneseq
        %v7187 = vshrl.u32 %v7186, 7
        %v7188 = vsub.s32 0, %v7187
        %v7189 = vrot.slane %v2370, %v7188
        %v7190 = vlaneseq
        %v7191 = vshrl.u32 %v7190, 7
        %v7192 = vsub.s32 1, %v7191
        %v7193 = vrot.slane %v2370, %v7192
        %v7194 = vlaneseq
        %v7195 = vshrl.u32 %v7194, 7
        %v7196 = vsub.s32 2, %v7195
        %v7197 = vrot.slane %v2370, %v7196
        %v7198 = vlaneseq
        %v7199 = vshrl.u32 %v7198, 7
        %v7200 = vsub.s32 3, %v7199
        %v7201 = vrot.slane %v2370, %v7200
        %v7202 = vlaneseq
        %v7203 = vshrl.u32 %v7202, 7
        %v7204 = vsub.s32 4, %v7203
        %v7205 = vrot.slane %v2370, %v7204
        %v7206 = vlaneseq
        %v7207 = vshrl.u32 %v7206, 7
        %v7208 = vsub.s32 5, %v7207
        %v7209 = vrot.slane %v2370, %v7208
        %v7210 = vlaneseq
        %v7211 = vshrl.u32 %v7210, 7
        %v7212 = vsub.s32 6, %v7211
        %v7213 = vrot.slane %v2370, %v7212
        %v7214 = vlaneseq
        %v7215 = vshrl.u32 %v7214, 7
        %v7216 = vsub.s32 7, %v7215
        %v7217 = vrot.slane %v2370, %v7216
        %v7218 = vlaneseq
        %v7219 = vshrl.u32 %v7218, 7
        %v7220 = vsub.s32 0, %v7219
        %v7221 = vrot.slane %v2384, %v7220
        %v7222 = vlaneseq
        %v7223 = vshrl.u32 %v7222, 7
        %v7224 = vsub.s32 1, %v7223
        %v7225 = vrot.slane %v2384, %v7224
        %v7226 = vlaneseq
        %v7227 = vshrl.u32 %v7226, 7
        %v7228 = vsub.s32 2, %v7227
        %v7229 = vrot.slane %v2384, %v7228
        %v7230 = vlaneseq
        %v7231 = vshrl.u32 %v7230, 7
        %v7232 = vsub.s32 3, %v7231
        %v7233 = vrot.slane %v2384, %v7232
        %v7234 = vlaneseq
        %v7235 = vshrl.u32 %v7234, 7
        %v7236 = vsub.s32 4, %v7235
        %v7237 = vrot.slane %v2384, %v7236
        %v7238 = vlaneseq
        %v7239 = vshrl.u32 %v7238, 7
        %v7240 = vsub.s32 5, %v7239
        %v7241 = vrot.slane %v2384, %v7240
        %v7242 = vlaneseq
        %v7243 = vshrl.u32 %v7242, 7
        %v7244 = vsub.s32 6, %v7243
        %v7245 = vrot.slane %v2384, %v7244
        %v7246 = vlaneseq
        %v7247 = vshrl.u32 %v7246, 7
        %v7248 = vsub.s32 7, %v7247
        %v7249 = vrot.slane %v2384, %v7248
        %v7250 = vlaneseq
        %v7251 = vshrl.u32 %v7250, 7
        %v7252 = vsub.s32 0, %v7251
        %v7253 = vrot.slane %v2398, %v7252
        %v7254 = vlaneseq
        %v7255 = vshrl.u32 %v7254, 7
        %v7256 = vsub.s32 1, %v7255
        %v7257 = vrot.slane %v2398, %v7256
        %v7258 = vlaneseq
        %v7259 = vshrl.u32 %v7258, 7
        %v7260 = vsub.s32 2, %v7259
        %v7261 = vrot.slane %v2398, %v7260
        %v7262 = vlaneseq
        %v7263 = vshrl.u32 %v7262, 7
        %v7264 = vsub.s32 3, %v7263
        %v7265 = vrot.slane %v2398, %v7264
        %v7266 = vlaneseq
        %v7267 = vshrl.u32 %v7266, 7
        %v7268 = vsub.s32 4, %v7267
        %v7269 = vrot.slane %v2398, %v7268
        %v7270 = vlaneseq
        %v7271 = vshrl.u32 %v7270, 7
        %v7272 = vsub.s32 5, %v7271
        %v7273 = vrot.slane %v2398, %v7272
        %v7274 = vlaneseq
        %v7275 = vshrl.u32 %v7274, 7
        %v7276 = vsub.s32 6, %v7275
        %v7277 = vrot.slane %v2398, %v7276
        %v7278 = vlaneseq
        %v7279 = vshrl.u32 %v7278, 7
        %v7280 = vsub.s32 7, %v7279
        %v7281 = vrot.slane %v2398, %v7280
        %v7282 = vlaneseq
        %v7283 = vshrl.u32 %v7282, 7
        %v7284 = vsub.s32 0, %v7283
        %v7285 = vrot.slane %v2412, %v7284
        %v7286 = vlaneseq
        %v7287 = vshrl.u32 %v7286, 7
        %v7288 = vsub.s32 1, %v7287
        %v7289 = vrot.slane %v2412, %v7288
        %v7290 = vlaneseq
        %v7291 = vshrl.u32 %v7290, 7
        %v7292 = vsub.s32 2, %v7291
        %v7293 = vrot.slane %v2412, %v7292
        %v7294 = vlaneseq
        %v7295 = vshrl.u32 %v7294, 7
        %v7296 = vsub.s32 3, %v7295
        %v7297 = vrot.slane %v2412, %v7296
        %v7298 = vlaneseq
        %v7299 = vshrl.u32 %v7298, 7
        %v7300 = vsub.s32 4, %v7299
        %v7301 = vrot.slane %v2412, %v7300
        %v7302 = vlaneseq
        %v7303 = vshrl.u32 %v7302, 7
        %v7304 = vsub.s32 5, %v7303
        %v7305 = vrot.slane %v2412, %v7304
        %v7306 = vlaneseq
        %v7307 = vshrl.u32 %v7306, 7
        %v7308 = vsub.s32 6, %v7307
        %v7309 = vrot.slane %v2412, %v7308
        %v7310 = vlaneseq
        %v7311 = vshrl.u32 %v7310, 7
        %v7312 = vsub.s32 7, %v7311
        %v7313 = vrot.slane %v2412, %v7312
        %v7314 = vlaneseq
        %v7315 = vshrl.u32 %v7314, 7
        %v7316 = vsub.s32 0, %v7315
        %v7317 = vrot.slane %v2426, %v7316
        %v7318 = vlaneseq
        %v7319 = vshrl.u32 %v7318, 7
        %v7320 = vsub.s32 1, %v7319
        %v7321 = vrot.slane %v2426, %v7320
        %v7322 = vlaneseq
        %v7323 = vshrl.u32 %v7322, 7
        %v7324 = vsub.s32 2, %v7323
        %v7325 = vrot.slane %v2426, %v7324
        %v7326 = vlaneseq
        %v7327 = vshrl.u32 %v7326, 7
        %v7328 = vsub.s32 3, %v7327
        %v7329 = vrot.slane %v2426, %v7328
        %v7330 = vlaneseq
        %v7331 = vshrl.u32 %v7330, 7
        %v7332 = vsub.s32 4, %v7331
        %v7333 = vrot.slane %v2426, %v7332
        %v7334 = vlaneseq
        %v7335 = vshrl.u32 %v7334, 7
        %v7336 = vsub.s32 5, %v7335
        %v7337 = vrot.slane %v2426, %v7336
        %v7338 = vlaneseq
        %v7339 = vshrl.u32 %v7338, 7
        %v7340 = vsub.s32 6, %v7339
        %v7341 = vrot.slane %v2426, %v7340
        %v7342 = vlaneseq
        %v7343 = vshrl.u32 %v7342, 7
        %v7344 = vsub.s32 7, %v7343
        %v7345 = vrot.slane %v2426, %v7344
        %v7346 = vlaneseq
        %v7347 = vshrl.u32 %v7346, 7
        %v7348 = vsub.s32 0, %v7347
        %v7349 = vrot.slane %v2440, %v7348
        %v7350 = vlaneseq
        %v7351 = vshrl.u32 %v7350, 7
        %v7352 = vsub.s32 1, %v7351
        %v7353 = vrot.slane %v2440, %v7352
        %v7354 = vlaneseq
        %v7355 = vshrl.u32 %v7354, 7
        %v7356 = vsub.s32 2, %v7355
        %v7357 = vrot.slane %v2440, %v7356
        %v7358 = vlaneseq
        %v7359 = vshrl.u32 %v7358, 7
        %v7360 = vsub.s32 3, %v7359
        %v7361 = vrot.slane %v2440, %v7360
        %v7362 = vlaneseq
        %v7363 = vshrl.u32 %v7362, 7
        %v7364 = vsub.s32 4, %v7363
        %v7365 = vrot.slane %v2440, %v7364
        %v7366 = vlaneseq
        %v7367 = vshrl.u32 %v7366, 7
        %v7368 = vsub.s32 5, %v7367
        %v7369 = vrot.slane %v2440, %v7368
        %v7370 = vlaneseq
        %v7371 = vshrl.u32 %v7370, 7
        %v7372 = vsub.s32 6, %v7371
        %v7373 = vrot.slane %v2440, %v7372
        %v7374 = vlaneseq
        %v7375 = vshrl.u32 %v7374, 7
        %v7376 = vsub.s32 7, %v7375
        %v7377 = vrot.slane %v2440, %v7376
        %v7378 = vlaneseq
        %v7379 = vshrl.u32 %v7378, 7
        %v7380 = vsub.s32 0, %v7379
        %v7381 = vrot.slane %v2454, %v7380
        %v7382 = vlaneseq
        %v7383 = vshrl.u32 %v7382, 7
        %v7384 = vsub.s32 1, %v7383
        %v7385 = vrot.slane %v2454, %v7384
        %v7386 = vlaneseq
        %v7387 = vshrl.u32 %v7386, 7
        %v7388 = vsub.s32 2, %v7387
        %v7389 = vrot.slane %v2454, %v7388
        %v7390 = vlaneseq
        %v7391 = vshrl.u32 %v7390, 7
        %v7392 = vsub.s32 3, %v7391
        %v7393 = vrot.slane %v2454, %v7392
        %v7394 = vlaneseq
        %v7395 = vshrl.u32 %v7394, 7
        %v7396 = vsub.s32 4, %v7395
        %v7397 = vrot.slane %v2454, %v7396
        %v7398 = vlaneseq
        %v7399 = vshrl.u32 %v7398, 7
        %v7400 = vsub.s32 5, %v7399
        %v7401 = vrot.slane %v2454, %v7400
        %v7402 = vlaneseq
        %v7403 = vshrl.u32 %v7402, 7
        %v7404 = vsub.s32 6, %v7403
        %v7405 = vrot.slane %v2454, %v7404
        %v7406 = vlaneseq
        %v7407 = vshrl.u32 %v7406, 7
        %v7408 = vsub.s32 7, %v7407
        %v7409 = vrot.slane %v2454, %v7408
        %v7410 = vlaneseq
        %v7411 = vshrl.u32 %v7410, 7
        %v7412 = vsub.s32 0, %v7411
        %v7413 = vrot.slane %v2468, %v7412
        %v7414 = vlaneseq
        %v7415 = vshrl.u32 %v7414, 7
        %v7416 = vsub.s32 1, %v7415
        %v7417 = vrot.slane %v2468, %v7416
        %v7418 = vlaneseq
        %v7419 = vshrl.u32 %v7418, 7
        %v7420 = vsub.s32 2, %v7419
        %v7421 = vrot.slane %v2468, %v7420
        %v7422 = vlaneseq
        %v7423 = vshrl.u32 %v7422, 7
        %v7424 = vsub.s32 3, %v7423
        %v7425 = vrot.slane %v2468, %v7424
        %v7426 = vlaneseq
        %v7427 = vshrl.u32 %v7426, 7
        %v7428 = vsub.s32 4, %v7427
        %v7429 = vrot.slane %v2468, %v7428
        %v7430 = vlaneseq
        %v7431 = vshrl.u32 %v7430, 7
        %v7432 = vsub.s32 5, %v7431
        %v7433 = vrot.slane %v2468, %v7432
        %v7434 = vlaneseq
        %v7435 = vshrl.u32 %v7434, 7
        %v7436 = vsub.s32 6, %v7435
        %v7437 = vrot.slane %v2468, %v7436
        %v7438 = vlaneseq
        %v7439 = vshrl.u32 %v7438, 7
        %v7440 = vsub.s32 7, %v7439
        %v7441 = vrot.slane %v2468, %v7440
        %v7442 = vlaneseq
        %v7443 = vshrl.u32 %v7442, 7
        %v7444 = vsub.s32 0, %v7443
        %v7445 = vrot.slane %v2482, %v7444
        %v7446 = vlaneseq
        %v7447 = vshrl.u32 %v7446, 7
        %v7448 = vsub.s32 1, %v7447
        %v7449 = vrot.slane %v2482, %v7448
        %v7450 = vlaneseq
        %v7451 = vshrl.u32 %v7450, 7
        %v7452 = vsub.s32 2, %v7451
        %v7453 = vrot.slane %v2482, %v7452
        %v7454 = vlaneseq
        %v7455 = vshrl.u32 %v7454, 7
        %v7456 = vsub.s32 3, %v7455
        %v7457 = vrot.slane %v2482, %v7456
        %v7458 = vlaneseq
        %v7459 = vshrl.u32 %v7458, 7
        %v7460 = vsub.s32 4, %v7459
        %v7461 = vrot.slane %v2482, %v7460
        %v7462 = vlaneseq
        %v7463 = vshrl.u32 %v7462, 7
        %v7464 = vsub.s32 5, %v7463
        %v7465 = vrot.slane %v2482, %v7464
        %v7466 = vlaneseq
        %v7467 = vshrl.u32 %v7466, 7
        %v7468 = vsub.s32 6, %v7467
        %v7469 = vrot.slane %v2482, %v7468
        %v7470 = vlaneseq
        %v7471 = vshrl.u32 %v7470, 7
        %v7472 = vsub.s32 7, %v7471
        %v7473 = vrot.slane %v2482, %v7472
        %v7474 = vlaneseq
        %v7475 = vshrl.u32 %v7474, 7
        %v7476 = vsub.s32 0, %v7475
        %v7477 = vrot.slane %v2496, %v7476
        %v7478 = vlaneseq
        %v7479 = vshrl.u32 %v7478, 7
        %v7480 = vsub.s32 1, %v7479
        %v7481 = vrot.slane %v2496, %v7480
        %v7482 = vlaneseq
        %v7483 = vshrl.u32 %v7482, 7
        %v7484 = vsub.s32 2, %v7483
        %v7485 = vrot.slane %v2496, %v7484
        %v7486 = vlaneseq
        %v7487 = vshrl.u32 %v7486, 7
        %v7488 = vsub.s32 3, %v7487
        %v7489 = vrot.slane %v2496, %v7488
        %v7490 = vlaneseq
        %v7491 = vshrl.u32 %v7490, 7
        %v7492 = vsub.s32 4, %v7491
        %v7493 = vrot.slane %v2496, %v7492
        %v7494 = vlaneseq
        %v7495 = vshrl.u32 %v7494, 7
        %v7496 = vsub.s32 5, %v7495
        %v7497 = vrot.slane %v2496, %v7496
        %v7498 = vlaneseq
        %v7499 = vshrl.u32 %v7498, 7
        %v7500 = vsub.s32 6, %v7499
        %v7501 = vrot.slane %v2496, %v7500
        %v7502 = vlaneseq
        %v7503 = vshrl.u32 %v7502, 7
        %v7504 = vsub.s32 7, %v7503
        %v7505 = vrot.slane %v2496, %v7504
        %v7506 = vlaneseq
        %v7507 = vshrl.u32 %v7506, 7
        %v7508 = vsub.s32 0, %v7507
        %v7509 = vrot.slane %v2510, %v7508
        %v7510 = vlaneseq
        %v7511 = vshrl.u32 %v7510, 7
        %v7512 = vsub.s32 1, %v7511
        %v7513 = vrot.slane %v2510, %v7512
        %v7514 = vlaneseq
        %v7515 = vshrl.u32 %v7514, 7
        %v7516 = vsub.s32 2, %v7515
        %v7517 = vrot.slane %v2510, %v7516
        %v7518 = vlaneseq
        %v7519 = vshrl.u32 %v7518, 7
        %v7520 = vsub.s32 3, %v7519
        %v7521 = vrot.slane %v2510, %v7520
        %v7522 = vlaneseq
        %v7523 = vshrl.u32 %v7522, 7
        %v7524 = vsub.s32 4, %v7523
        %v7525 = vrot.slane %v2510, %v7524
        %v7526 = vlaneseq
        %v7527 = vshrl.u32 %v7526, 7
        %v7528 = vsub.s32 5, %v7527
        %v7529 = vrot.slane %v2510, %v7528
        %v7530 = vlaneseq
        %v7531 = vshrl.u32 %v7530, 7
        %v7532 = vsub.s32 6, %v7531
        %v7533 = vrot.slane %v2510, %v7532
        %v7534 = vlaneseq
        %v7535 = vshrl.u32 %v7534, 7
        %v7536 = vsub.s32 7, %v7535
        %v7537 = vrot.slane %v2510, %v7536
        %v7538 = vlaneseq
        %v7539 = vshrl.u32 %v7538, 7
        %v7540 = vsub.s32 0, %v7539
        %v7541 = vrot.slane %v2524, %v7540
        %v7542 = vlaneseq
        %v7543 = vshrl.u32 %v7542, 7
        %v7544 = vsub.s32 1, %v7543
        %v7545 = vrot.slane %v2524, %v7544
        %v7546 = vlaneseq
        %v7547 = vshrl.u32 %v7546, 7
        %v7548 = vsub.s32 2, %v7547
        %v7549 = vrot.slane %v2524, %v7548
        %v7550 = vlaneseq
        %v7551 = vshrl.u32 %v7550, 7
        %v7552 = vsub.s32 3, %v7551
        %v7553 = vrot.slane %v2524, %v7552
        %v7554 = vlaneseq
        %v7555 = vshrl.u32 %v7554, 7
        %v7556 = vsub.s32 4, %v7555
        %v7557 = vrot.slane %v2524, %v7556
        %v7558 = vlaneseq
        %v7559 = vshrl.u32 %v7558, 7
        %v7560 = vsub.s32 5, %v7559
        %v7561 = vrot.slane %v2524, %v7560
        %v7562 = vlaneseq
        %v7563 = vshrl.u32 %v7562, 7
        %v7564 = vsub.s32 6, %v7563
        %v7565 = vrot.slane %v2524, %v7564
        %v7566 = vlaneseq
        %v7567 = vshrl.u32 %v7566, 7
        %v7568 = vsub.s32 7, %v7567
        %v7569 = vrot.slane %v2524, %v7568
        %v7570 = vlaneseq
        %v7571 = vshrl.u32 %v7570, 7
        %v7572 = vsub.s32 0, %v7571
        %v7573 = vrot.slane %v2538, %v7572
        %v7574 = vlaneseq
        %v7575 = vshrl.u32 %v7574, 7
        %v7576 = vsub.s32 1, %v7575
        %v7577 = vrot.slane %v2538, %v7576
        %v7578 = vlaneseq
        %v7579 = vshrl.u32 %v7578, 7
        %v7580 = vsub.s32 2, %v7579
        %v7581 = vrot.slane %v2538, %v7580
        %v7582 = vlaneseq
        %v7583 = vshrl.u32 %v7582, 7
        %v7584 = vsub.s32 3, %v7583
        %v7585 = vrot.slane %v2538, %v7584
        %v7586 = vlaneseq
        %v7587 = vshrl.u32 %v7586, 7
        %v7588 = vsub.s32 4, %v7587
        %v7589 = vrot.slane %v2538, %v7588
        %v7590 = vlaneseq
        %v7591 = vshrl.u32 %v7590, 7
        %v7592 = vsub.s32 5, %v7591
        %v7593 = vrot.slane %v2538, %v7592
        %v7594 = vlaneseq
        %v7595 = vshrl.u32 %v7594, 7
        %v7596 = vsub.s32 6, %v7595
        %v7597 = vrot.slane %v2538, %v7596
        %v7598 = vlaneseq
        %v7599 = vshrl.u32 %v7598, 7
        %v7600 = vsub.s32 7, %v7599
        %v7601 = vrot.slane %v2538, %v7600
        %v7602 = vlaneseq
        %v7603 = vshrl.u32 %v7602, 7
        %v7604 = vsub.s32 0, %v7603
        %v7605 = vrot.slane %v2552, %v7604
        %v7606 = vlaneseq
        %v7607 = vshrl.u32 %v7606, 7
        %v7608 = vsub.s32 1, %v7607
        %v7609 = vrot.slane %v2552, %v7608
        %v7610 = vlaneseq
        %v7611 = vshrl.u32 %v7610, 7
        %v7612 = vsub.s32 2, %v7611
        %v7613 = vrot.slane %v2552, %v7612
        %v7614 = vlaneseq
        %v7615 = vshrl.u32 %v7614, 7
        %v7616 = vsub.s32 3, %v7615
        %v7617 = vrot.slane %v2552, %v7616
        %v7618 = vlaneseq
        %v7619 = vshrl.u32 %v7618, 7
        %v7620 = vsub.s32 4, %v7619
        %v7621 = vrot.slane %v2552, %v7620
        %v7622 = vlaneseq
        %v7623 = vshrl.u32 %v7622, 7
        %v7624 = vsub.s32 5, %v7623
        %v7625 = vrot.slane %v2552, %v7624
        %v7626 = vlaneseq
        %v7627 = vshrl.u32 %v7626, 7
        %v7628 = vsub.s32 6, %v7627
        %v7629 = vrot.slane %v2552, %v7628
        %v7630 = vlaneseq
        %v7631 = vshrl.u32 %v7630, 7
        %v7632 = vsub.s32 7, %v7631
        %v7633 = vrot.slane %v2552, %v7632
        %v7634 = vlaneseq
        %v7635 = vshrl.u32 %v7634, 7
        %v7636 = vsub.s32 0, %v7635
        %v7637 = vrot.slane %v2566, %v7636
        %v7638 = vlaneseq
        %v7639 = vshrl.u32 %v7638, 7
        %v7640 = vsub.s32 1, %v7639
        %v7641 = vrot.slane %v2566, %v7640
        %v7642 = vlaneseq
        %v7643 = vshrl.u32 %v7642, 7
        %v7644 = vsub.s32 2, %v7643
        %v7645 = vrot.slane %v2566, %v7644
        %v7646 = vlaneseq
        %v7647 = vshrl.u32 %v7646, 7
        %v7648 = vsub.s32 3, %v7647
        %v7649 = vrot.slane %v2566, %v7648
        %v7650 = vlaneseq
        %v7651 = vshrl.u32 %v7650, 7
        %v7652 = vsub.s32 4, %v7651
        %v7653 = vrot.slane %v2566, %v7652
        %v7654 = vlaneseq
        %v7655 = vshrl.u32 %v7654, 7
        %v7656 = vsub.s32 5, %v7655
        %v7657 = vrot.slane %v2566, %v7656
        %v7658 = vlaneseq
        %v7659 = vshrl.u32 %v7658, 7
        %v7660 = vsub.s32 6, %v7659
        %v7661 = vrot.slane %v2566, %v7660
        %v7662 = vlaneseq
        %v7663 = vshrl.u32 %v7662, 7
        %v7664 = vsub.s32 7, %v7663
        %v7665 = vrot.slane %v2566, %v7664
        %v7666 = vlaneseq
        %v7667 = vshrl.u32 %v7666, 7
        %v7668 = vsub.s32 0, %v7667
        %v7669 = vrot.slane %v2580, %v7668
        %v7670 = vlaneseq
        %v7671 = vshrl.u32 %v7670, 7
        %v7672 = vsub.s32 1, %v7671
        %v7673 = vrot.slane %v2580, %v7672
        %v7674 = vlaneseq
        %v7675 = vshrl.u32 %v7674, 7
        %v7676 = vsub.s32 2, %v7675
        %v7677 = vrot.slane %v2580, %v7676
        %v7678 = vlaneseq
        %v7679 = vshrl.u32 %v7678, 7
        %v7680 = vsub.s32 3, %v7679
        %v7681 = vrot.slane %v2580, %v7680
        %v7682 = vlaneseq
        %v7683 = vshrl.u32 %v7682, 7
        %v7684 = vsub.s32 4, %v7683
        %v7685 = vrot.slane %v2580, %v7684
        %v7686 = vlaneseq
        %v7687 = vshrl.u32 %v7686, 7
        %v7688 = vsub.s32 5, %v7687
        %v7689 = vrot.slane %v2580, %v7688
        %v7690 = vlaneseq
        %v7691 = vshrl.u32 %v7690, 7
        %v7692 = vsub.s32 6, %v7691
        %v7693 = vrot.slane %v2580, %v7692
        %v7694 = vlaneseq
        %v7695 = vshrl.u32 %v7694, 7
        %v7696 = vsub.s32 7, %v7695
        %v7697 = vrot.slane %v2580, %v7696
        %v7698 = vlaneseq
        %v7699 = vshrl.u32 %v7698, 7
        %v7700 = vsub.s32 0, %v7699
        %v7701 = vrot.slane %v2594, %v7700
        %v7702 = vlaneseq
        %v7703 = vshrl.u32 %v7702, 7
        %v7704 = vsub.s32 1, %v7703
        %v7705 = vrot.slane %v2594, %v7704
        %v7706 = vlaneseq
        %v7707 = vshrl.u32 %v7706, 7
        %v7708 = vsub.s32 2, %v7707
        %v7709 = vrot.slane %v2594, %v7708
        %v7710 = vlaneseq
        %v7711 = vshrl.u32 %v7710, 7
        %v7712 = vsub.s32 3, %v7711
        %v7713 = vrot.slane %v2594, %v7712
        %v7714 = vlaneseq
        %v7715 = vshrl.u32 %v7714, 7
        %v7716 = vsub.s32 4, %v7715
        %v7717 = vrot.slane %v2594, %v7716
        %v7718 = vlaneseq
        %v7719 = vshrl.u32 %v7718, 7
        %v7720 = vsub.s32 5, %v7719
        %v7721 = vrot.slane %v2594, %v7720
        %v7722 = vlaneseq
        %v7723 = vshrl.u32 %v7722, 7
        %v7724 = vsub.s32 6, %v7723
        %v7725 = vrot.slane %v2594, %v7724
        %v7726 = vlaneseq
        %v7727 = vshrl.u32 %v7726, 7
        %v7728 = vsub.s32 7, %v7727
        %v7729 = vrot.slane %v2594, %v7728
        %v7730 = vlaneseq
        %v7731 = vshrl.u32 %v7730, 7
        %v7732 = vsub.s32 0, %v7731
        %v7733 = vrot.slane %v2608, %v7732
        %v7734 = vlaneseq
        %v7735 = vshrl.u32 %v7734, 7
        %v7736 = vsub.s32 1, %v7735
        %v7737 = vrot.slane %v2608, %v7736
        %v7738 = vlaneseq
        %v7739 = vshrl.u32 %v7738, 7
        %v7740 = vsub.s32 2, %v7739
        %v7741 = vrot.slane %v2608, %v7740
        %v7742 = vlaneseq
        %v7743 = vshrl.u32 %v7742, 7
        %v7744 = vsub.s32 3, %v7743
        %v7745 = vrot.slane %v2608, %v7744
        %v7746 = vlaneseq
        %v7747 = vshrl.u32 %v7746, 7
        %v7748 = vsub.s32 4, %v7747
        %v7749 = vrot.slane %v2608, %v7748
        %v7750 = vlaneseq
        %v7751 = vshrl.u32 %v7750, 7
        %v7752 = vsub.s32 5, %v7751
        %v7753 = vrot.slane %v2608, %v7752
        %v7754 = vlaneseq
        %v7755 = vshrl.u32 %v7754, 7
        %v7756 = vsub.s32 6, %v7755
        %v7757 = vrot.slane %v2608, %v7756
        %v7758 = vlaneseq
        %v7759 = vshrl.u32 %v7758, 7
        %v7760 = vsub.s32 7, %v7759
        %v7761 = vrot.slane %v2608, %v7760
        %v7762 = vlaneseq
        %v7763 = vshrl.u32 %v7762, 7
        %v7764 = vsub.s32 0, %v7763
        %v7765 = vrot.slane %v2622, %v7764
        %v7766 = vlaneseq
        %v7767 = vshrl.u32 %v7766, 7
        %v7768 = vsub.s32 1, %v7767
        %v7769 = vrot.slane %v2622, %v7768
        %v7770 = vlaneseq
        %v7771 = vshrl.u32 %v7770, 7
        %v7772 = vsub.s32 2, %v7771
        %v7773 = vrot.slane %v2622, %v7772
        %v7774 = vlaneseq
        %v7775 = vshrl.u32 %v7774, 7
        %v7776 = vsub.s32 3, %v7775
        %v7777 = vrot.slane %v2622, %v7776
        %v7778 = vlaneseq
        %v7779 = vshrl.u32 %v7778, 7
        %v7780 = vsub.s32 4, %v7779
        %v7781 = vrot.slane %v2622, %v7780
        %v7782 = vlaneseq
        %v7783 = vshrl.u32 %v7782, 7
        %v7784 = vsub.s32 5, %v7783
        %v7785 = vrot.slane %v2622, %v7784
        %v7786 = vlaneseq
        %v7787 = vshrl.u32 %v7786, 7
        %v7788 = vsub.s32 6, %v7787
        %v7789 = vrot.slane %v2622, %v7788
        %v7790 = vlaneseq
        %v7791 = vshrl.u32 %v7790, 7
        %v7792 = vsub.s32 7, %v7791
        %v7793 = vrot.slane %v2622, %v7792
        %v7794 = vlaneseq
        %v7795 = vshrl.u32 %v7794, 7
        %v7796 = vsub.s32 0, %v7795
        %v7797 = vrot.slane %v2636, %v7796
        %v7798 = vlaneseq
        %v7799 = vshrl.u32 %v7798, 7
        %v7800 = vsub.s32 1, %v7799
        %v7801 = vrot.slane %v2636, %v7800
        %v7802 = vlaneseq
        %v7803 = vshrl.u32 %v7802, 7
        %v7804 = vsub.s32 2, %v7803
        %v7805 = vrot.slane %v2636, %v7804
        %v7806 = vlaneseq
        %v7807 = vshrl.u32 %v7806, 7
        %v7808 = vsub.s32 3, %v7807
        %v7809 = vrot.slane %v2636, %v7808
        %v7810 = vlaneseq
        %v7811 = vshrl.u32 %v7810, 7
        %v7812 = vsub.s32 4, %v7811
        %v7813 = vrot.slane %v2636, %v7812
        %v7814 = vlaneseq
        %v7815 = vshrl.u32 %v7814, 7
        %v7816 = vsub.s32 5, %v7815
        %v7817 = vrot.slane %v2636, %v7816
        %v7818 = vlaneseq
        %v7819 = vshrl.u32 %v7818, 7
        %v7820 = vsub.s32 6, %v7819
        %v7821 = vrot.slane %v2636, %v7820
        %v7822 = vlaneseq
        %v7823 = vshrl.u32 %v7822, 7
        %v7824 = vsub.s32 7, %v7823
        %v7825 = vrot.slane %v2636, %v7824
        %v7826 = vlaneseq
        %v7827 = vshrl.u32 %v7826, 7
        %v7828 = vsub.s32 0, %v7827
        %v7829 = vrot.slane %v2650, %v7828
        %v7830 = vlaneseq
        %v7831 = vshrl.u32 %v7830, 7
        %v7832 = vsub.s32 1, %v7831
        %v7833 = vrot.slane %v2650, %v7832
        %v7834 = vlaneseq
        %v7835 = vshrl.u32 %v7834, 7
        %v7836 = vsub.s32 2, %v7835
        %v7837 = vrot.slane %v2650, %v7836
        %v7838 = vlaneseq
        %v7839 = vshrl.u32 %v7838, 7
        %v7840 = vsub.s32 3, %v7839
        %v7841 = vrot.slane %v2650, %v7840
        %v7842 = vlaneseq
        %v7843 = vshrl.u32 %v7842, 7
        %v7844 = vsub.s32 4, %v7843
        %v7845 = vrot.slane %v2650, %v7844
        %v7846 = vlaneseq
        %v7847 = vshrl.u32 %v7846, 7
        %v7848 = vsub.s32 5, %v7847
        %v7849 = vrot.slane %v2650, %v7848
        %v7850 = vlaneseq
        %v7851 = vshrl.u32 %v7850, 7
        %v7852 = vsub.s32 6, %v7851
        %v7853 = vrot.slane %v2650, %v7852
        %v7854 = vlaneseq
        %v7855 = vshrl.u32 %v7854, 7
        %v7856 = vsub.s32 7, %v7855
        %v7857 = vrot.slane %v2650, %v7856
        %v7858 = vlaneseq
        %v7859 = vshrl.u32 %v7858, 7
        %v7860 = vsub.s32 0, %v7859
        %v7861 = vrot.slane %v2664, %v7860
        %v7862 = vlaneseq
        %v7863 = vshrl.u32 %v7862, 7
        %v7864 = vsub.s32 1, %v7863
        %v7865 = vrot.slane %v2664, %v7864
        %v7866 = vlaneseq
        %v7867 = vshrl.u32 %v7866, 7
        %v7868 = vsub.s32 2, %v7867
        %v7869 = vrot.slane %v2664, %v7868
        %v7870 = vlaneseq
        %v7871 = vshrl.u32 %v7870, 7
        %v7872 = vsub.s32 3, %v7871
        %v7873 = vrot.slane %v2664, %v7872
        %v7874 = vlaneseq
        %v7875 = vshrl.u32 %v7874, 7
        %v7876 = vsub.s32 4, %v7875
        %v7877 = vrot.slane %v2664, %v7876
        %v7878 = vlaneseq
        %v7879 = vshrl.u32 %v7878, 7
        %v7880 = vsub.s32 5, %v7879
        %v7881 = vrot.slane %v2664, %v7880
        %v7882 = vlaneseq
        %v7883 = vshrl.u32 %v7882, 7
        %v7884 = vsub.s32 6, %v7883
        %v7885 = vrot.slane %v2664, %v7884
        %v7886 = vlaneseq
        %v7887 = vshrl.u32 %v7886, 7
        %v7888 = vsub.s32 7, %v7887
        %v7889 = vrot.slane %v2664, %v7888
        %v7890 = vlaneseq
        %v7891 = vshrl.u32 %v7890, 7
        %v7892 = vsub.s32 0, %v7891
        %v7893 = vrot.slane %v2678, %v7892
        %v7894 = vlaneseq
        %v7895 = vshrl.u32 %v7894, 7
        %v7896 = vsub.s32 1, %v7895
        %v7897 = vrot.slane %v2678, %v7896
        %v7898 = vlaneseq
        %v7899 = vshrl.u32 %v7898, 7
        %v7900 = vsub.s32 2, %v7899
        %v7901 = vrot.slane %v2678, %v7900
        %v7902 = vlaneseq
        %v7903 = vshrl.u32 %v7902, 7
        %v7904 = vsub.s32 3, %v7903
        %v7905 = vrot.slane %v2678, %v7904
        %v7906 = vlaneseq
        %v7907 = vshrl.u32 %v7906, 7
        %v7908 = vsub.s32 4, %v7907
        %v7909 = vrot.slane %v2678, %v7908
        %v7910 = vlaneseq
        %v7911 = vshrl.u32 %v7910, 7
        %v7912 = vsub.s32 5, %v7911
        %v7913 = vrot.slane %v2678, %v7912
        %v7914 = vlaneseq
        %v7915 = vshrl.u32 %v7914, 7
        %v7916 = vsub.s32 6, %v7915
        %v7917 = vrot.slane %v2678, %v7916
        %v7918 = vlaneseq
        %v7919 = vshrl.u32 %v7918, 7
        %v7920 = vsub.s32 7, %v7919
        %v7921 = vrot.slane %v2678, %v7920
        %v7922 = vlaneseq
        %v7923 = vshrl.u32 %v7922, 7
        %v7924 = vsub.s32 0, %v7923
        %v7925 = vrot.slane %v2692, %v7924
        %v7926 = vlaneseq
        %v7927 = vshrl.u32 %v7926, 7
        %v7928 = vsub.s32 1, %v7927
        %v7929 = vrot.slane %v2692, %v7928
        %v7930 = vlaneseq
        %v7931 = vshrl.u32 %v7930, 7
        %v7932 = vsub.s32 2, %v7931
        %v7933 = vrot.slane %v2692, %v7932
        %v7934 = vlaneseq
        %v7935 = vshrl.u32 %v7934, 7
        %v7936 = vsub.s32 3, %v7935
        %v7937 = vrot.slane %v2692, %v7936
        %v7938 = vlaneseq
        %v7939 = vshrl.u32 %v7938, 7
        %v7940 = vsub.s32 4, %v7939
        %v7941 = vrot.slane %v2692, %v7940
        %v7942 = vlaneseq
        %v7943 = vshrl.u32 %v7942, 7
        %v7944 = vsub.s32 5, %v7943
        %v7945 = vrot.slane %v2692, %v7944
        %v7946 = vlaneseq
        %v7947 = vshrl.u32 %v7946, 7
        %v7948 = vsub.s32 6, %v7947
        %v7949 = vrot.slane %v2692, %v7948
        %v7950 = vlaneseq
        %v7951 = vshrl.u32 %v7950, 7
        %v7952 = vsub.s32 7, %v7951
        %v7953 = vrot.slane %v2692, %v7952
        %v7954 = vlaneseq
        %v7955 = vshrl.u32 %v7954, 7
        %v7956 = vsub.s32 0, %v7955
        %v7957 = vrot.slane %v2706, %v7956
        %v7958 = vlaneseq
        %v7959 = vshrl.u32 %v7958, 7
        %v7960 = vsub.s32 1, %v7959
        %v7961 = vrot.slane %v2706, %v7960
        %v7962 = vlaneseq
        %v7963 = vshrl.u32 %v7962, 7
        %v7964 = vsub.s32 2, %v7963
        %v7965 = vrot.slane %v2706, %v7964
        %v7966 = vlaneseq
        %v7967 = vshrl.u32 %v7966, 7
        %v7968 = vsub.s32 3, %v7967
        %v7969 = vrot.slane %v2706, %v7968
        %v7970 = vlaneseq
        %v7971 = vshrl.u32 %v7970, 7
        %v7972 = vsub.s32 4, %v7971
        %v7973 = vrot.slane %v2706, %v7972
        %v7974 = vlaneseq
        %v7975 = vshrl.u32 %v7974, 7
        %v7976 = vsub.s32 5, %v7975
        %v7977 = vrot.slane %v2706, %v7976
        %v7978 = vlaneseq
        %v7979 = vshrl.u32 %v7978, 7
        %v7980 = vsub.s32 6, %v7979
        %v7981 = vrot.slane %v2706, %v7980
        %v7982 = vlaneseq
        %v7983 = vshrl.u32 %v7982, 7
        %v7984 = vsub.s32 7, %v7983
        %v7985 = vrot.slane %v2706, %v7984
        %v7986 = vlaneseq
        %v7987 = vshrl.u32 %v7986, 7
        %v7988 = vsub.s32 0, %v7987
        %v7989 = vrot.slane %v2720, %v7988
        %v7990 = vlaneseq
        %v7991 = vshrl.u32 %v7990, 7
        %v7992 = vsub.s32 1, %v7991
        %v7993 = vrot.slane %v2720, %v7992
        %v7994 = vlaneseq
        %v7995 = vshrl.u32 %v7994, 7
        %v7996 = vsub.s32 2, %v7995
        %v7997 = vrot.slane %v2720, %v7996
        %v7998 = vlaneseq
        %v7999 = vshrl.u32 %v7998, 7
        %v8000 = vsub.s32 3, %v7999
        %v8001 = vrot.slane %v2720, %v8000
        %v8002 = vlaneseq
        %v8003 = vshrl.u32 %v8002, 7
        %v8004 = vsub.s32 4, %v8003
        %v8005 = vrot.slane %v2720, %v8004
        %v8006 = vlaneseq
        %v8007 = vshrl.u32 %v8006, 7
        %v8008 = vsub.s32 5, %v8007
        %v8009 = vrot.slane %v2720, %v8008
        %v8010 = vlaneseq
        %v8011 = vshrl.u32 %v8010, 7
        %v8012 = vsub.s32 6, %v8011
        %v8013 = vrot.slane %v2720, %v8012
        %v8014 = vlaneseq
        %v8015 = vshrl.u32 %v8014, 7
        %v8016 = vsub.s32 7, %v8015
        %v8017 = vrot.slane %v2720, %v8016
        %v8018 = vlaneseq
        %v8019 = vshrl.u32 %v8018, 7
        %v8020 = vsub.s32 0, %v8019
        %v8021 = vrot.slane %v2734, %v8020
        %v8022 = vlaneseq
        %v8023 = vshrl.u32 %v8022, 7
        %v8024 = vsub.s32 1, %v8023
        %v8025 = vrot.slane %v2734, %v8024
        %v8026 = vlaneseq
        %v8027 = vshrl.u32 %v8026, 7
        %v8028 = vsub.s32 2, %v8027
        %v8029 = vrot.slane %v2734, %v8028
        %v8030 = vlaneseq
        %v8031 = vshrl.u32 %v8030, 7
        %v8032 = vsub.s32 3, %v8031
        %v8033 = vrot.slane %v2734, %v8032
        %v8034 = vlaneseq
        %v8035 = vshrl.u32 %v8034, 7
        %v8036 = vsub.s32 4, %v8035
        %v8037 = vrot.slane %v2734, %v8036
        %v8038 = vlaneseq
        %v8039 = vshrl.u32 %v8038, 7
        %v8040 = vsub.s32 5, %v8039
        %v8041 = vrot.slane %v2734, %v8040
        %v8042 = vlaneseq
        %v8043 = vshrl.u32 %v8042, 7
        %v8044 = vsub.s32 6, %v8043
        %v8045 = vrot.slane %v2734, %v8044
        %v8046 = vlaneseq
        %v8047 = vshrl.u32 %v8046, 7
        %v8048 = vsub.s32 7, %v8047
        %v8049 = vrot.slane %v2734, %v8048
        %v8050 = vlaneseq
        %v8051 = vshrl.u32 %v8050, 7
        %v8052 = vsub.s32 0, %v8051
        %v8053 = vrot.slane %v2748, %v8052
        %v8054 = vlaneseq
        %v8055 = vshrl.u32 %v8054, 7
        %v8056 = vsub.s32 1, %v8055
        %v8057 = vrot.slane %v2748, %v8056
        %v8058 = vlaneseq
        %v8059 = vshrl.u32 %v8058, 7
        %v8060 = vsub.s32 2, %v8059
        %v8061 = vrot.slane %v2748, %v8060
        %v8062 = vlaneseq
        %v8063 = vshrl.u32 %v8062, 7
        %v8064 = vsub.s32 3, %v8063
        %v8065 = vrot.slane %v2748, %v8064
        %v8066 = vlaneseq
        %v8067 = vshrl.u32 %v8066, 7
        %v8068 = vsub.s32 4, %v8067
        %v8069 = vrot.slane %v2748, %v8068
        %v8070 = vlaneseq
        %v8071 = vshrl.u32 %v8070, 7
        %v8072 = vsub.s32 5, %v8071
        %v8073 = vrot.slane %v2748, %v8072
        %v8074 = vlaneseq
        %v8075 = vshrl.u32 %v8074, 7
        %v8076 = vsub.s32 6, %v8075
        %v8077 = vrot.slane %v2748, %v8076
        %v8078 = vlaneseq
        %v8079 = vshrl.u32 %v8078, 7
        %v8080 = vsub.s32 7, %v8079
        %v8081 = vrot.slane %v2748, %v8080
        %v8082 = vcombine.low %v7061, %v7065
        %v8083 = vcombine.low %v7069, %v7073
        %v8084 = vcombine.low %v7077, %v7081
        %v8085 = vcombine.low %v7085, %v7089
        %v8087 = vunpack.c.l.s4 1966171168
        %v8088 = vunpack.c.0.s8 %v8087
        %v8089 = vlaneseq
        %v8090 = vshrl.u32 %v8089, 7
        %v8091 = vsub.s32 %v8088, %v8090
        %v8092 = vrot.slane %v8082, %v8091
        %v8094 = vunpack.c.l.s4 1966171168
        %v8095 = vunpack.c.0.s8 %v8094
        %v8096 = vlaneseq
        %v8097 = vshrl.u32 %v8096, 7
        %v8098 = vsub.s32 %v8095, %v8097
        %v8099 = vrot.slane %v8083, %v8098
        %v8101 = vunpack.c.l.s4 1966171168
        %v8102 = vunpack.c.0.s8 %v8101
        %v8103 = vlaneseq
        %v8104 = vshrl.u32 %v8103, 7
        %v8105 = vsub.s32 %v8102, %v8104
        %v8106 = vrot.slane %v8084, %v8105
        %v8108 = vunpack.c.l.s4 1966171168
        %v8109 = vunpack.c.0.s8 %v8108
        %v8110 = vlaneseq
        %v8111 = vshrl.u32 %v8110, 7
        %v8112 = vsub.s32 %v8109, %v8111
        %v8113 = vrot.slane %v8085, %v8112
        %v8114 = vcombine.low %v8092, %v8099
        %v8115 = vcombine.low %v8106, %v8113
        %v8117 = vunpack.c.l.s4 1966171168
        %v8118 = vunpack.c.0.s8 %v8117
        %v8119 = vlaneseq
        %v8120 = vshrl.u32 %v8119, 7
        %v8121 = vsub.s32 %v8118, %v8120
        %v8122 = vrot.slane %v8114, %v8121
        %v8124 = vunpack.c.l.s4 1966171168
        %v8125 = vunpack.c.0.s8 %v8124
        %v8126 = vlaneseq
        %v8127 = vshrl.u32 %v8126, 7
        %v8128 = vsub.s32 %v8125, %v8127
        %v8129 = vrot.slane %v8115, %v8128
        %v8130 = vcombine.low %v8122, %v8129
        %v8131 = vcombine.low %v7093, %v7097
        %v8132 = vcombine.low %v7101, %v7105
        %v8133 = vcombine.low %v7109, %v7113
        %v8134 = vcombine.low %v7117, %v7121
        %v8136 = vunpack.c.l.s4 1966171168
        %v8137 = vunpack.c.0.s8 %v8136
        %v8138 = vlaneseq
        %v8139 = vshrl.u32 %v8138, 7
        %v8140 = vsub.s32 %v8137, %v8139
        %v8141 = vrot.slane %v8131, %v8140
        %v8143 = vunpack.c.l.s4 1966171168
        %v8144 = vunpack.c.0.s8 %v8143
        %v8145 = vlaneseq
        %v8146 = vshrl.u32 %v8145, 7
        %v8147 = vsub.s32 %v8144, %v8146
        %v8148 = vrot.slane %v8132, %v8147
        %v8150 = vunpack.c.l.s4 1966171168
        %v8151 = vunpack.c.0.s8 %v8150
        %v8152 = vlaneseq
        %v8153 = vshrl.u32 %v8152, 7
        %v8154 = vsub.s32 %v8151, %v8153
        %v8155 = vrot.slane %v8133, %v8154
        %v8157 = vunpack.c.l.s4 1966171168
        %v8158 = vunpack.c.0.s8 %v8157
        %v8159 = vlaneseq
        %v8160 = vshrl.u32 %v8159, 7
        %v8161 = vsub.s32 %v8158, %v8160
        %v8162 = vrot.slane %v8134, %v8161
        %v8163 = vcombine.low %v8141, %v8148
        %v8164 = vcombine.low %v8155, %v8162
        %v8166 = vunpack.c.l.s4 1966171168
        %v8167 = vunpack.c.0.s8 %v8166
        %v8168 = vlaneseq
        %v8169 = vshrl.u32 %v8168, 7
        %v8170 = vsub.s32 %v8167, %v8169
        %v8171 = vrot.slane %v8163, %v8170
        %v8173 = vunpack.c.l.s4 1966171168
        %v8174 = vunpack.c.0.s8 %v8173
        %v8175 = vlaneseq
        %v8176 = vshrl.u32 %v8175, 7
        %v8177 = vsub.s32 %v8174, %v8176
        %v8178 = vrot.slane %v8164, %v8177
        %v8179 = vcombine.low %v8171, %v8178
        %v8180 = vcombine.low %v7125, %v7129
        %v8181 = vcombine.low %v7133, %v7137
        %v8182 = vcombine.low %v7141, %v7145
        %v8183 = vcombine.low %v7149, %v7153
        %v8185 = vunpack.c.l.s4 1966171168
        %v8186 = vunpack.c.0.s8 %v8185
        %v8187 = vlaneseq
        %v8188 = vshrl.u32 %v8187, 7
        %v8189 = vsub.s32 %v8186, %v8188
        %v8190 = vrot.slane %v8180, %v8189
        %v8192 = vunpack.c.l.s4 1966171168
        %v8193 = vunpack.c.0.s8 %v8192
        %v8194 = vlaneseq
        %v8195 = vshrl.u32 %v8194, 7
        %v8196 = vsub.s32 %v8193, %v8195
        %v8197 = vrot.slane %v8181, %v8196
        %v8199 = vunpack.c.l.s4 1966171168
        %v8200 = vunpack.c.0.s8 %v8199
        %v8201 = vlaneseq
        %v8202 = vshrl.u32 %v8201, 7
        %v8203 = vsub.s32 %v8200, %v8202
        %v8204 = vrot.slane %v8182, %v8203
        %v8206 = vunpack.c.l.s4 1966171168
        %v8207 = vunpack.c.0.s8 %v8206
        %v8208 = vlaneseq
        %v8209 = vshrl.u32 %v8208, 7
        %v8210 = vsub.s32 %v8207, %v8209
        %v8211 = vrot.slane %v8183, %v8210
        %v8212 = vcombine.low %v8190, %v8197
        %v8213 = vcombine.low %v8204, %v8211
        %v8215 = vunpack.c.l.s4 1966171168
        %v8216 = vunpack.c.0.s8 %v8215
        %v8217 = vlaneseq
        %v8218 = vshrl.u32 %v8217, 7
        %v8219 = vsub.s32 %v8216, %v8218
        %v8220 = vrot.slane %v8212, %v8219
        %v8222 = vunpack.c.l.s4 1966171168
        %v8223 = vunpack.c.0.s8 %v8222
        %v8224 = vlaneseq
        %v8225 = vshrl.u32 %v8224, 7
        %v8226 = vsub.s32 %v8223, %v8225
        %v8227 = vrot.slane %v8213, %v8226
        %v8228 = vcombine.low %v8220, %v8227
        %v8229 = vcombine.low %v7157, %v7161
        %v8230 = vcombine.low %v7165, %v7169
        %v8231 = vcombine.low %v7173, %v7177
        %v8232 = vcombine.low %v7181, %v7185
        %v8234 = vunpack.c.l.s4 1966171168
        %v8235 = vunpack.c.0.s8 %v8234
        %v8236 = vlaneseq
        %v8237 = vshrl.u32 %v8236, 7
        %v8238 = vsub.s32 %v8235, %v8237
        %v8239 = vrot.slane %v8229, %v8238
        %v8241 = vunpack.c.l.s4 1966171168
        %v8242 = vunpack.c.0.s8 %v8241
        %v8243 = vlaneseq
        %v8244 = vshrl.u32 %v8243, 7
        %v8245 = vsub.s32 %v8242, %v8244
        %v8246 = vrot.slane %v8230, %v8245
        %v8248 = vunpack.c.l.s4 1966171168
        %v8249 = vunpack.c.0.s8 %v8248
        %v8250 = vlaneseq
        %v8251 = vshrl.u32 %v8250, 7
        %v8252 = vsub.s32 %v8249, %v8251
        %v8253 = vrot.slane %v8231, %v8252
        %v8255 = vunpack.c.l.s4 1966171168
        %v8256 = vunpack.c.0.s8 %v8255
        %v8257 = vlaneseq
        %v8258 = vshrl.u32 %v8257, 7
        %v8259 = vsub.s32 %v8256, %v8258
        %v8260 = vrot.slane %v8232, %v8259
        %v8261 = vcombine.low %v8239, %v8246
        %v8262 = vcombine.low %v8253, %v8260
        %v8264 = vunpack.c.l.s4 1966171168
        %v8265 = vunpack.c.0.s8 %v8264
        %v8266 = vlaneseq
        %v8267 = vshrl.u32 %v8266, 7
        %v8268 = vsub.s32 %v8265, %v8267
        %v8269 = vrot.slane %v8261, %v8268
        %v8271 = vunpack.c.l.s4 1966171168
        %v8272 = vunpack.c.0.s8 %v8271
        %v8273 = vlaneseq
        %v8274 = vshrl.u32 %v8273, 7
        %v8275 = vsub.s32 %v8272, %v8274
        %v8276 = vrot.slane %v8262, %v8275
        %v8277 = vcombine.low %v8269, %v8276
        %v8278 = vcombine.low %v7189, %v7193
        %v8279 = vcombine.low %v7197, %v7201
        %v8280 = vcombine.low %v7205, %v7209
        %v8281 = vcombine.low %v7213, %v7217
        %v8283 = vunpack.c.l.s4 1966171168
        %v8284 = vunpack.c.0.s8 %v8283
        %v8285 = vlaneseq
        %v8286 = vshrl.u32 %v8285, 7
        %v8287 = vsub.s32 %v8284, %v8286
        %v8288 = vrot.slane %v8278, %v8287
        %v8290 = vunpack.c.l.s4 1966171168
        %v8291 = vunpack.c.0.s8 %v8290
        %v8292 = vlaneseq
        %v8293 = vshrl.u32 %v8292, 7
        %v8294 = vsub.s32 %v8291, %v8293
        %v8295 = vrot.slane %v8279, %v8294
        %v8297 = vunpack.c.l.s4 1966171168
        %v8298 = vunpack.c.0.s8 %v8297
        %v8299 = vlaneseq
        %v8300 = vshrl.u32 %v8299, 7
        %v8301 = vsub.s32 %v8298, %v8300
        %v8302 = vrot.slane %v8280, %v8301
        %v8304 = vunpack.c.l.s4 1966171168
        %v8305 = vunpack.c.0.s8 %v8304
        %v8306 = vlaneseq
        %v8307 = vshrl.u32 %v8306, 7
        %v8308 = vsub.s32 %v8305, %v8307
        %v8309 = vrot.slane %v8281, %v8308
        %v8310 = vcombine.low %v8288, %v8295
        %v8311 = vcombine.low %v8302, %v8309
        %v8313 = vunpack.c.l.s4 1966171168
        %v8314 = vunpack.c.0.s8 %v8313
        %v8315 = vlaneseq
        %v8316 = vshrl.u32 %v8315, 7
        %v8317 = vsub.s32 %v8314, %v8316
        %v8318 = vrot.slane %v8310, %v8317
        %v8320 = vunpack.c.l.s4 1966171168
        %v8321 = vunpack.c.0.s8 %v8320
        %v8322 = vlaneseq
        %v8323 = vshrl.u32 %v8322, 7
        %v8324 = vsub.s32 %v8321, %v8323
        %v8325 = vrot.slane %v8311, %v8324
        %v8326 = vcombine.low %v8318, %v8325
        %v8327 = vcombine.low %v7221, %v7225
        %v8328 = vcombine.low %v7229, %v7233
        %v8329 = vcombine.low %v7237, %v7241
        %v8330 = vcombine.low %v7245, %v7249
        %v8332 = vunpack.c.l.s4 1966171168
        %v8333 = vunpack.c.0.s8 %v8332
        %v8334 = vlaneseq
        %v8335 = vshrl.u32 %v8334, 7
        %v8336 = vsub.s32 %v8333, %v8335
        %v8337 = vrot.slane %v8327, %v8336
        %v8339 = vunpack.c.l.s4 1966171168
        %v8340 = vunpack.c.0.s8 %v8339
        %v8341 = vlaneseq
        %v8342 = vshrl.u32 %v8341, 7
        %v8343 = vsub.s32 %v8340, %v8342
        %v8344 = vrot.slane %v8328, %v8343
        %v8346 = vunpack.c.l.s4 1966171168
        %v8347 = vunpack.c.0.s8 %v8346
        %v8348 = vlaneseq
        %v8349 = vshrl.u32 %v8348, 7
        %v8350 = vsub.s32 %v8347, %v8349
        %v8351 = vrot.slane %v8329, %v8350
        %v8353 = vunpack.c.l.s4 1966171168
        %v8354 = vunpack.c.0.s8 %v8353
        %v8355 = vlaneseq
        %v8356 = vshrl.u32 %v8355, 7
        %v8357 = vsub.s32 %v8354, %v8356
        %v8358 = vrot.slane %v8330, %v8357
        %v8359 = vcombine.low %v8337, %v8344
        %v8360 = vcombine.low %v8351, %v8358
        %v8362 = vunpack.c.l.s4 1966171168
        %v8363 = vunpack.c.0.s8 %v8362
        %v8364 = vlaneseq
        %v8365 = vshrl.u32 %v8364, 7
        %v8366 = vsub.s32 %v8363, %v8365
        %v8367 = vrot.slane %v8359, %v8366
        %v8369 = vunpack.c.l.s4 1966171168
        %v8370 = vunpack.c.0.s8 %v8369
        %v8371 = vlaneseq
        %v8372 = vshrl.u32 %v8371, 7
        %v8373 = vsub.s32 %v8370, %v8372
        %v8374 = vrot.slane %v8360, %v8373
        %v8375 = vcombine.low %v8367, %v8374
        %v8376 = vcombine.low %v7253, %v7257
        %v8377 = vcombine.low %v7261, %v7265
        %v8378 = vcombine.low %v7269, %v7273
        %v8379 = vcombine.low %v7277, %v7281
        %v8381 = vunpack.c.l.s4 1966171168
        %v8382 = vunpack.c.0.s8 %v8381
        %v8383 = vlaneseq
        %v8384 = vshrl.u32 %v8383, 7
        %v8385 = vsub.s32 %v8382, %v8384
        %v8386 = vrot.slane %v8376, %v8385
        %v8388 = vunpack.c.l.s4 1966171168
        %v8389 = vunpack.c.0.s8 %v8388
        %v8390 = vlaneseq
        %v8391 = vshrl.u32 %v8390, 7
        %v8392 = vsub.s32 %v8389, %v8391
        %v8393 = vrot.slane %v8377, %v8392
        %v8395 = vunpack.c.l.s4 1966171168
        %v8396 = vunpack.c.0.s8 %v8395
        %v8397 = vlaneseq
        %v8398 = vshrl.u32 %v8397, 7
        %v8399 = vsub.s32 %v8396, %v8398
        %v8400 = vrot.slane %v8378, %v8399
        %v8402 = vunpack.c.l.s4 1966171168
        %v8403 = vunpack.c.0.s8 %v8402
        %v8404 = vlaneseq
        %v8405 = vshrl.u32 %v8404, 7
        %v8406 = vsub.s32 %v8403, %v8405
        %v8407 = vrot.slane %v8379, %v8406
        %v8408 = vcombine.low %v8386, %v8393
        %v8409 = vcombine.low %v8400, %v8407
        %v8411 = vunpack.c.l.s4 1966171168
        %v8412 = vunpack.c.0.s8 %v8411
        %v8413 = vlaneseq
        %v8414 = vshrl.u32 %v8413, 7
        %v8415 = vsub.s32 %v8412, %v8414
        %v8416 = vrot.slane %v8408, %v8415
        %v8418 = vunpack.c.l.s4 1966171168
        %v8419 = vunpack.c.0.s8 %v8418
        %v8420 = vlaneseq
        %v8421 = vshrl.u32 %v8420, 7
        %v8422 = vsub.s32 %v8419, %v8421
        %v8423 = vrot.slane %v8409, %v8422
        %v8424 = vcombine.low %v8416, %v8423
        %v8425 = vcombine.low %v7285, %v7289
        %v8426 = vcombine.low %v7293, %v7297
        %v8427 = vcombine.low %v7301, %v7305
        %v8428 = vcombine.low %v7309, %v7313
        %v8430 = vunpack.c.l.s4 1966171168
        %v8431 = vunpack.c.0.s8 %v8430
        %v8432 = vlaneseq
        %v8433 = vshrl.u32 %v8432, 7
        %v8434 = vsub.s32 %v8431, %v8433
        %v8435 = vrot.slane %v8425, %v8434
        %v8437 = vunpack.c.l.s4 1966171168
        %v8438 = vunpack.c.0.s8 %v8437
        %v8439 = vlaneseq
        %v8440 = vshrl.u32 %v8439, 7
        %v8441 = vsub.s32 %v8438, %v8440
        %v8442 = vrot.slane %v8426, %v8441
        %v8444 = vunpack.c.l.s4 1966171168
        %v8445 = vunpack.c.0.s8 %v8444
        %v8446 = vlaneseq
        %v8447 = vshrl.u32 %v8446, 7
        %v8448 = vsub.s32 %v8445, %v8447
        %v8449 = vrot.slane %v8427, %v8448
        %v8451 = vunpack.c.l.s4 1966171168
        %v8452 = vunpack.c.0.s8 %v8451
        %v8453 = vlaneseq
        %v8454 = vshrl.u32 %v8453, 7
        %v8455 = vsub.s32 %v8452, %v8454
        %v8456 = vrot.slane %v8428, %v8455
        %v8457 = vcombine.low %v8435, %v8442
        %v8458 = vcombine.low %v8449, %v8456
        %v8460 = vunpack.c.l.s4 1966171168
        %v8461 = vunpack.c.0.s8 %v8460
        %v8462 = vlaneseq
        %v8463 = vshrl.u32 %v8462, 7
        %v8464 = vsub.s32 %v8461, %v8463
        %v8465 = vrot.slane %v8457, %v8464
        %v8467 = vunpack.c.l.s4 1966171168
        %v8468 = vunpack.c.0.s8 %v8467
        %v8469 = vlaneseq
        %v8470 = vshrl.u32 %v8469, 7
        %v8471 = vsub.s32 %v8468, %v8470
        %v8472 = vrot.slane %v8458, %v8471
        %v8473 = vcombine.low %v8465, %v8472
        %v8474 = vcombine.low %v7317, %v7321
        %v8475 = vcombine.low %v7325, %v7329
        %v8476 = vcombine.low %v7333, %v7337
        %v8477 = vcombine.low %v7341, %v7345
        %v8479 = vunpack.c.l.s4 1966171168
        %v8480 = vunpack.c.0.s8 %v8479
        %v8481 = vlaneseq
        %v8482 = vshrl.u32 %v8481, 7
        %v8483 = vsub.s32 %v8480, %v8482
        %v8484 = vrot.slane %v8474, %v8483
        %v8486 = vunpack.c.l.s4 1966171168
        %v8487 = vunpack.c.0.s8 %v8486
        %v8488 = vlaneseq
        %v8489 = vshrl.u32 %v8488, 7
        %v8490 = vsub.s32 %v8487, %v8489
        %v8491 = vrot.slane %v8475, %v8490
        %v8493 = vunpack.c.l.s4 1966171168
        %v8494 = vunpack.c.0.s8 %v8493
        %v8495 = vlaneseq
        %v8496 = vshrl.u32 %v8495, 7
        %v8497 = vsub.s32 %v8494, %v8496
        %v8498 = vrot.slane %v8476, %v8497
        %v8500 = vunpack.c.l.s4 1966171168
        %v8501 = vunpack.c.0.s8 %v8500
        %v8502 = vlaneseq
        %v8503 = vshrl.u32 %v8502, 7
        %v8504 = vsub.s32 %v8501, %v8503
        %v8505 = vrot.slane %v8477, %v8504
        %v8506 = vcombine.low %v8484, %v8491
        %v8507 = vcombine.low %v8498, %v8505
        %v8509 = vunpack.c.l.s4 1966171168
        %v8510 = vunpack.c.0.s8 %v8509
        %v8511 = vlaneseq
        %v8512 = vshrl.u32 %v8511, 7
        %v8513 = vsub.s32 %v8510, %v8512
        %v8514 = vrot.slane %v8506, %v8513
        %v8516 = vunpack.c.l.s4 1966171168
        %v8517 = vunpack.c.0.s8 %v8516
        %v8518 = vlaneseq
        %v8519 = vshrl.u32 %v8518, 7
        %v8520 = vsub.s32 %v8517, %v8519
        %v8521 = vrot.slane %v8507, %v8520
        %v8522 = vcombine.low %v8514, %v8521
        %v8523 = vcombine.low %v7349, %v7353
        %v8524 = vcombine.low %v7357, %v7361
        %v8525 = vcombine.low %v7365, %v7369
        %v8526 = vcombine.low %v7373, %v7377
        %v8528 = vunpack.c.l.s4 1966171168
        %v8529 = vunpack.c.0.s8 %v8528
        %v8530 = vlaneseq
        %v8531 = vshrl.u32 %v8530, 7
        %v8532 = vsub.s32 %v8529, %v8531
        %v8533 = vrot.slane %v8523, %v8532
        %v8535 = vunpack.c.l.s4 1966171168
        %v8536 = vunpack.c.0.s8 %v8535
        %v8537 = vlaneseq
        %v8538 = vshrl.u32 %v8537, 7
        %v8539 = vsub.s32 %v8536, %v8538
        %v8540 = vrot.slane %v8524, %v8539
        %v8542 = vunpack.c.l.s4 1966171168
        %v8543 = vunpack.c.0.s8 %v8542
        %v8544 = vlaneseq
        %v8545 = vshrl.u32 %v8544, 7
        %v8546 = vsub.s32 %v8543, %v8545
        %v8547 = vrot.slane %v8525, %v8546
        %v8549 = vunpack.c.l.s4 1966171168
        %v8550 = vunpack.c.0.s8 %v8549
        %v8551 = vlaneseq
        %v8552 = vshrl.u32 %v8551, 7
        %v8553 = vsub.s32 %v8550, %v8552
        %v8554 = vrot.slane %v8526, %v8553
        %v8555 = vcombine.low %v8533, %v8540
        %v8556 = vcombine.low %v8547, %v8554
        %v8558 = vunpack.c.l.s4 1966171168
        %v8559 = vunpack.c.0.s8 %v8558
        %v8560 = vlaneseq
        %v8561 = vshrl.u32 %v8560, 7
        %v8562 = vsub.s32 %v8559, %v8561
        %v8563 = vrot.slane %v8555, %v8562
        %v8565 = vunpack.c.l.s4 1966171168
        %v8566 = vunpack.c.0.s8 %v8565
        %v8567 = vlaneseq
        %v8568 = vshrl.u32 %v8567, 7
        %v8569 = vsub.s32 %v8566, %v8568
        %v8570 = vrot.slane %v8556, %v8569
        %v8571 = vcombine.low %v8563, %v8570
        %v8572 = vcombine.low %v7381, %v7385
        %v8573 = vcombine.low %v7389, %v7393
        %v8574 = vcombine.low %v7397, %v7401
        %v8575 = vcombine.low %v7405, %v7409
        %v8577 = vunpack.c.l.s4 1966171168
        %v8578 = vunpack.c.0.s8 %v8577
        %v8579 = vlaneseq
        %v8580 = vshrl.u32 %v8579, 7
        %v8581 = vsub.s32 %v8578, %v8580
        %v8582 = vrot.slane %v8572, %v8581
        %v8584 = vunpack.c.l.s4 1966171168
        %v8585 = vunpack.c.0.s8 %v8584
        %v8586 = vlaneseq
        %v8587 = vshrl.u32 %v8586, 7
        %v8588 = vsub.s32 %v8585, %v8587
        %v8589 = vrot.slane %v8573, %v8588
        %v8591 = vunpack.c.l.s4 1966171168
        %v8592 = vunpack.c.0.s8 %v8591
        %v8593 = vlaneseq
        %v8594 = vshrl.u32 %v8593, 7
        %v8595 = vsub.s32 %v8592, %v8594
        %v8596 = vrot.slane %v8574, %v8595
        %v8598 = vunpack.c.l.s4 1966171168
        %v8599 = vunpack.c.0.s8 %v8598
        %v8600 = vlaneseq
        %v8601 = vshrl.u32 %v8600, 7
        %v8602 = vsub.s32 %v8599, %v8601
        %v8603 = vrot.slane %v8575, %v8602
        %v8604 = vcombine.low %v8582, %v8589
        %v8605 = vcombine.low %v8596, %v8603
        %v8607 = vunpack.c.l.s4 1966171168
        %v8608 = vunpack.c.0.s8 %v8607
        %v8609 = vlaneseq
        %v8610 = vshrl.u32 %v8609, 7
        %v8611 = vsub.s32 %v8608, %v8610
        %v8612 = vrot.slane %v8604, %v8611
        %v8614 = vunpack.c.l.s4 1966171168
        %v8615 = vunpack.c.0.s8 %v8614
        %v8616 = vlaneseq
        %v8617 = vshrl.u32 %v8616, 7
        %v8618 = vsub.s32 %v8615, %v8617
        %v8619 = vrot.slane %v8605, %v8618
        %v8620 = vcombine.low %v8612, %v8619
        %v8621 = vcombine.low %v7413, %v7417
        %v8622 = vcombine.low %v7421, %v7425
        %v8623 = vcombine.low %v7429, %v7433
        %v8624 = vcombine.low %v7437, %v7441
        %v8626 = vunpack.c.l.s4 1966171168
        %v8627 = vunpack.c.0.s8 %v8626
        %v8628 = vlaneseq
        %v8629 = vshrl.u32 %v8628, 7
        %v8630 = vsub.s32 %v8627, %v8629
        %v8631 = vrot.slane %v8621, %v8630
        %v8633 = vunpack.c.l.s4 1966171168
        %v8634 = vunpack.c.0.s8 %v8633
        %v8635 = vlaneseq
        %v8636 = vshrl.u32 %v8635, 7
        %v8637 = vsub.s32 %v8634, %v8636
        %v8638 = vrot.slane %v8622, %v8637
        %v8640 = vunpack.c.l.s4 1966171168
        %v8641 = vunpack.c.0.s8 %v8640
        %v8642 = vlaneseq
        %v8643 = vshrl.u32 %v8642, 7
        %v8644 = vsub.s32 %v8641, %v8643
        %v8645 = vrot.slane %v8623, %v8644
        %v8647 = vunpack.c.l.s4 1966171168
        %v8648 = vunpack.c.0.s8 %v8647
        %v8649 = vlaneseq
        %v8650 = vshrl.u32 %v8649, 7
        %v8651 = vsub.s32 %v8648, %v8650
        %v8652 = vrot.slane %v8624, %v8651
        %v8653 = vcombine.low %v8631, %v8638
        %v8654 = vcombine.low %v8645, %v8652
        %v8656 = vunpack.c.l.s4 1966171168
        %v8657 = vunpack.c.0.s8 %v8656
        %v8658 = vlaneseq
        %v8659 = vshrl.u32 %v8658, 7
        %v8660 = vsub.s32 %v8657, %v8659
        %v8661 = vrot.slane %v8653, %v8660
        %v8663 = vunpack.c.l.s4 1966171168
        %v8664 = vunpack.c.0.s8 %v8663
        %v8665 = vlaneseq
        %v8666 = vshrl.u32 %v8665, 7
        %v8667 = vsub.s32 %v8664, %v8666
        %v8668 = vrot.slane %v8654, %v8667
        %v8669 = vcombine.low %v8661, %v8668
        %v8670 = vcombine.low %v7445, %v7449
        %v8671 = vcombine.low %v7453, %v7457
        %v8672 = vcombine.low %v7461, %v7465
        %v8673 = vcombine.low %v7469, %v7473
        %v8675 = vunpack.c.l.s4 1966171168
        %v8676 = vunpack.c.0.s8 %v8675
        %v8677 = vlaneseq
        %v8678 = vshrl.u32 %v8677, 7
        %v8679 = vsub.s32 %v8676, %v8678
        %v8680 = vrot.slane %v8670, %v8679
        %v8682 = vunpack.c.l.s4 1966171168
        %v8683 = vunpack.c.0.s8 %v8682
        %v8684 = vlaneseq
        %v8685 = vshrl.u32 %v8684, 7
        %v8686 = vsub.s32 %v8683, %v8685
        %v8687 = vrot.slane %v8671, %v8686
        %v8689 = vunpack.c.l.s4 1966171168
        %v8690 = vunpack.c.0.s8 %v8689
        %v8691 = vlaneseq
        %v8692 = vshrl.u32 %v8691, 7
        %v8693 = vsub.s32 %v8690, %v8692
        %v8694 = vrot.slane %v8672, %v8693
        %v8696 = vunpack.c.l.s4 1966171168
        %v8697 = vunpack.c.0.s8 %v8696
        %v8698 = vlaneseq
        %v8699 = vshrl.u32 %v8698, 7
        %v8700 = vsub.s32 %v8697, %v8699
        %v8701 = vrot.slane %v8673, %v8700
        %v8702 = vcombine.low %v8680, %v8687
        %v8703 = vcombine.low %v8694, %v8701
        %v8705 = vunpack.c.l.s4 1966171168
        %v8706 = vunpack.c.0.s8 %v8705
        %v8707 = vlaneseq
        %v8708 = vshrl.u32 %v8707, 7
        %v8709 = vsub.s32 %v8706, %v8708
        %v8710 = vrot.slane %v8702, %v8709
        %v8712 = vunpack.c.l.s4 1966171168
        %v8713 = vunpack.c.0.s8 %v8712
        %v8714 = vlaneseq
        %v8715 = vshrl.u32 %v8714, 7
        %v8716 = vsub.s32 %v8713, %v8715
        %v8717 = vrot.slane %v8703, %v8716
        %v8718 = vcombine.low %v8710, %v8717
        %v8719 = vcombine.low %v7477, %v7481
        %v8720 = vcombine.low %v7485, %v7489
        %v8721 = vcombine.low %v7493, %v7497
        %v8722 = vcombine.low %v7501, %v7505
        %v8724 = vunpack.c.l.s4 1966171168
        %v8725 = vunpack.c.0.s8 %v8724
        %v8726 = vlaneseq
        %v8727 = vshrl.u32 %v8726, 7
        %v8728 = vsub.s32 %v8725, %v8727
        %v8729 = vrot.slane %v8719, %v8728
        %v8731 = vunpack.c.l.s4 1966171168
        %v8732 = vunpack.c.0.s8 %v8731
        %v8733 = vlaneseq
        %v8734 = vshrl.u32 %v8733, 7
        %v8735 = vsub.s32 %v8732, %v8734
        %v8736 = vrot.slane %v8720, %v8735
        %v8738 = vunpack.c.l.s4 1966171168
        %v8739 = vunpack.c.0.s8 %v8738
        %v8740 = vlaneseq
        %v8741 = vshrl.u32 %v8740, 7
        %v8742 = vsub.s32 %v8739, %v8741
        %v8743 = vrot.slane %v8721, %v8742
        %v8745 = vunpack.c.l.s4 1966171168
        %v8746 = vunpack.c.0.s8 %v8745
        %v8747 = vlaneseq
        %v8748 = vshrl.u32 %v8747, 7
        %v8749 = vsub.s32 %v8746, %v8748
        %v8750 = vrot.slane %v8722, %v8749
        %v8751 = vcombine.low %v8729, %v8736
        %v8752 = vcombine.low %v8743, %v8750
        %v8754 = vunpack.c.l.s4 1966171168
        %v8755 = vunpack.c.0.s8 %v8754
        %v8756 = vlaneseq
        %v8757 = vshrl.u32 %v8756, 7
        %v8758 = vsub.s32 %v8755, %v8757
        %v8759 = vrot.slane %v8751, %v8758
        %v8761 = vunpack.c.l.s4 1966171168
        %v8762 = vunpack.c.0.s8 %v8761
        %v8763 = vlaneseq
        %v8764 = vshrl.u32 %v8763, 7
        %v8765 = vsub.s32 %v8762, %v8764
        %v8766 = vrot.slane %v8752, %v8765
        %v8767 = vcombine.low %v8759, %v8766
        %v8768 = vcombine.low %v7509, %v7513
        %v8769 = vcombine.low %v7517, %v7521
        %v8770 = vcombine.low %v7525, %v7529
        %v8771 = vcombine.low %v7533, %v7537
        %v8773 = vunpack.c.l.s4 1966171168
        %v8774 = vunpack.c.0.s8 %v8773
        %v8775 = vlaneseq
        %v8776 = vshrl.u32 %v8775, 7
        %v8777 = vsub.s32 %v8774, %v8776
        %v8778 = vrot.slane %v8768, %v8777
        %v8780 = vunpack.c.l.s4 1966171168
        %v8781 = vunpack.c.0.s8 %v8780
        %v8782 = vlaneseq
        %v8783 = vshrl.u32 %v8782, 7
        %v8784 = vsub.s32 %v8781, %v8783
        %v8785 = vrot.slane %v8769, %v8784
        %v8787 = vunpack.c.l.s4 1966171168
        %v8788 = vunpack.c.0.s8 %v8787
        %v8789 = vlaneseq
        %v8790 = vshrl.u32 %v8789, 7
        %v8791 = vsub.s32 %v8788, %v8790
        %v8792 = vrot.slane %v8770, %v8791
        %v8794 = vunpack.c.l.s4 1966171168
        %v8795 = vunpack.c.0.s8 %v8794
        %v8796 = vlaneseq
        %v8797 = vshrl.u32 %v8796, 7
        %v8798 = vsub.s32 %v8795, %v8797
        %v8799 = vrot.slane %v8771, %v8798
        %v8800 = vcombine.low %v8778, %v8785
        %v8801 = vcombine.low %v8792, %v8799
        %v8803 = vunpack.c.l.s4 1966171168
        %v8804 = vunpack.c.0.s8 %v8803
        %v8805 = vlaneseq
        %v8806 = vshrl.u32 %v8805, 7
        %v8807 = vsub.s32 %v8804, %v8806
        %v8808 = vrot.slane %v8800, %v8807
        %v8810 = vunpack.c.l.s4 1966171168
        %v8811 = vunpack.c.0.s8 %v8810
        %v8812 = vlaneseq
        %v8813 = vshrl.u32 %v8812, 7
        %v8814 = vsub.s32 %v8811, %v8813
        %v8815 = vrot.slane %v8801, %v8814
        %v8816 = vcombine.low %v8808, %v8815
        %v8817 = vcombine.low %v7541, %v7545
        %v8818 = vcombine.low %v7549, %v7553
        %v8819 = vcombine.low %v7557, %v7561
        %v8820 = vcombine.low %v7565, %v7569
        %v8822 = vunpack.c.l.s4 1966171168
        %v8823 = vunpack.c.0.s8 %v8822
        %v8824 = vlaneseq
        %v8825 = vshrl.u32 %v8824, 7
        %v8826 = vsub.s32 %v8823, %v8825
        %v8827 = vrot.slane %v8817, %v8826
        %v8829 = vunpack.c.l.s4 1966171168
        %v8830 = vunpack.c.0.s8 %v8829
        %v8831 = vlaneseq
        %v8832 = vshrl.u32 %v8831, 7
        %v8833 = vsub.s32 %v8830, %v8832
        %v8834 = vrot.slane %v8818, %v8833
        %v8836 = vunpack.c.l.s4 1966171168
        %v8837 = vunpack.c.0.s8 %v8836
        %v8838 = vlaneseq
        %v8839 = vshrl.u32 %v8838, 7
        %v8840 = vsub.s32 %v8837, %v8839
        %v8841 = vrot.slane %v8819, %v8840
        %v8843 = vunpack.c.l.s4 1966171168
        %v8844 = vunpack.c.0.s8 %v8843
        %v8845 = vlaneseq
        %v8846 = vshrl.u32 %v8845, 7
        %v8847 = vsub.s32 %v8844, %v8846
        %v8848 = vrot.slane %v8820, %v8847
        %v8849 = vcombine.low %v8827, %v8834
        %v8850 = vcombine.low %v8841, %v8848
        %v8852 = vunpack.c.l.s4 1966171168
        %v8853 = vunpack.c.0.s8 %v8852
        %v8854 = vlaneseq
        %v8855 = vshrl.u32 %v8854, 7
        %v8856 = vsub.s32 %v8853, %v8855
        %v8857 = vrot.slane %v8849, %v8856
        %v8859 = vunpack.c.l.s4 1966171168
        %v8860 = vunpack.c.0.s8 %v8859
        %v8861 = vlaneseq
        %v8862 = vshrl.u32 %v8861, 7
        %v8863 = vsub.s32 %v8860, %v8862
        %v8864 = vrot.slane %v8850, %v8863
        %v8865 = vcombine.low %v8857, %v8864
        %v8866 = vcombine.low %v7573, %v7577
        %v8867 = vcombine.low %v7581, %v7585
        %v8868 = vcombine.low %v7589, %v7593
        %v8869 = vcombine.low %v7597, %v7601
        %v8871 = vunpack.c.l.s4 1966171168
        %v8872 = vunpack.c.0.s8 %v8871
        %v8873 = vlaneseq
        %v8874 = vshrl.u32 %v8873, 7
        %v8875 = vsub.s32 %v8872, %v8874
        %v8876 = vrot.slane %v8866, %v8875
        %v8878 = vunpack.c.l.s4 1966171168
        %v8879 = vunpack.c.0.s8 %v8878
        %v8880 = vlaneseq
        %v8881 = vshrl.u32 %v8880, 7
        %v8882 = vsub.s32 %v8879, %v8881
        %v8883 = vrot.slane %v8867, %v8882
        %v8885 = vunpack.c.l.s4 1966171168
        %v8886 = vunpack.c.0.s8 %v8885
        %v8887 = vlaneseq
        %v8888 = vshrl.u32 %v8887, 7
        %v8889 = vsub.s32 %v8886, %v8888
        %v8890 = vrot.slane %v8868, %v8889
        %v8892 = vunpack.c.l.s4 1966171168
        %v8893 = vunpack.c.0.s8 %v8892
        %v8894 = vlaneseq
        %v8895 = vshrl.u32 %v8894, 7
        %v8896 = vsub.s32 %v8893, %v8895
        %v8897 = vrot.slane %v8869, %v8896
        %v8898 = vcombine.low %v8876, %v8883
        %v8899 = vcombine.low %v8890, %v8897
        %v8901 = vunpack.c.l.s4 1966171168
        %v8902 = vunpack.c.0.s8 %v8901
        %v8903 = vlaneseq
        %v8904 = vshrl.u32 %v8903, 7
        %v8905 = vsub.s32 %v8902, %v8904
        %v8906 = vrot.slane %v8898, %v8905
        %v8908 = vunpack.c.l.s4 1966171168
        %v8909 = vunpack.c.0.s8 %v8908
        %v8910 = vlaneseq
        %v8911 = vshrl.u32 %v8910, 7
        %v8912 = vsub.s32 %v8909, %v8911
        %v8913 = vrot.slane %v8899, %v8912
        %v8914 = vcombine.low %v8906, %v8913
        %v8915 = vcombine.low %v7605, %v7609
        %v8916 = vcombine.low %v7613, %v7617
        %v8917 = vcombine.low %v7621, %v7625
        %v8918 = vcombine.low %v7629, %v7633
        %v8920 = vunpack.c.l.s4 1966171168
        %v8921 = vunpack.c.0.s8 %v8920
        %v8922 = vlaneseq
        %v8923 = vshrl.u32 %v8922, 7
        %v8924 = vsub.s32 %v8921, %v8923
        %v8925 = vrot.slane %v8915, %v8924
        %v8927 = vunpack.c.l.s4 1966171168
        %v8928 = vunpack.c.0.s8 %v8927
        %v8929 = vlaneseq
        %v8930 = vshrl.u32 %v8929, 7
        %v8931 = vsub.s32 %v8928, %v8930
        %v8932 = vrot.slane %v8916, %v8931
        %v8934 = vunpack.c.l.s4 1966171168
        %v8935 = vunpack.c.0.s8 %v8934
        %v8936 = vlaneseq
        %v8937 = vshrl.u32 %v8936, 7
        %v8938 = vsub.s32 %v8935, %v8937
        %v8939 = vrot.slane %v8917, %v8938
        %v8941 = vunpack.c.l.s4 1966171168
        %v8942 = vunpack.c.0.s8 %v8941
        %v8943 = vlaneseq
        %v8944 = vshrl.u32 %v8943, 7
        %v8945 = vsub.s32 %v8942, %v8944
        %v8946 = vrot.slane %v8918, %v8945
        %v8947 = vcombine.low %v8925, %v8932
        %v8948 = vcombine.low %v8939, %v8946
        %v8950 = vunpack.c.l.s4 1966171168
        %v8951 = vunpack.c.0.s8 %v8950
        %v8952 = vlaneseq
        %v8953 = vshrl.u32 %v8952, 7
        %v8954 = vsub.s32 %v8951, %v8953
        %v8955 = vrot.slane %v8947, %v8954
        %v8957 = vunpack.c.l.s4 1966171168
        %v8958 = vunpack.c.0.s8 %v8957
        %v8959 = vlaneseq
        %v8960 = vshrl.u32 %v8959, 7
        %v8961 = vsub.s32 %v8958, %v8960
        %v8962 = vrot.slane %v8948, %v8961
        %v8963 = vcombine.low %v8955, %v8962
        %v8964 = vcombine.low %v7637, %v7641
        %v8965 = vcombine.low %v7645, %v7649
        %v8966 = vcombine.low %v7653, %v7657
        %v8967 = vcombine.low %v7661, %v7665
        %v8969 = vunpack.c.l.s4 1966171168
        %v8970 = vunpack.c.0.s8 %v8969
        %v8971 = vlaneseq
        %v8972 = vshrl.u32 %v8971, 7
        %v8973 = vsub.s32 %v8970, %v8972
        %v8974 = vrot.slane %v8964, %v8973
        %v8976 = vunpack.c.l.s4 1966171168
        %v8977 = vunpack.c.0.s8 %v8976
        %v8978 = vlaneseq
        %v8979 = vshrl.u32 %v8978, 7
        %v8980 = vsub.s32 %v8977, %v8979
        %v8981 = vrot.slane %v8965, %v8980
        %v8983 = vunpack.c.l.s4 1966171168
        %v8984 = vunpack.c.0.s8 %v8983
        %v8985 = vlaneseq
        %v8986 = vshrl.u32 %v8985, 7
        %v8987 = vsub.s32 %v8984, %v8986
        %v8988 = vrot.slane %v8966, %v8987
        %v8990 = vunpack.c.l.s4 1966171168
        %v8991 = vunpack.c.0.s8 %v8990
        %v8992 = vlaneseq
        %v8993 = vshrl.u32 %v8992, 7
        %v8994 = vsub.s32 %v8991, %v8993
        %v8995 = vrot.slane %v8967, %v8994
        %v8996 = vcombine.low %v8974, %v8981
        %v8997 = vcombine.low %v8988, %v8995
        %v8999 = vunpack.c.l.s4 1966171168
        %v9000 = vunpack.c.0.s8 %v8999
        %v9001 = vlaneseq
        %v9002 = vshrl.u32 %v9001, 7
        %v9003 = vsub.s32 %v9000, %v9002
        %v9004 = vrot.slane %v8996, %v9003
        %v9006 = vunpack.c.l.s4 1966171168
        %v9007 = vunpack.c.0.s8 %v9006
        %v9008 = vlaneseq
        %v9009 = vshrl.u32 %v9008, 7
        %v9010 = vsub.s32 %v9007, %v9009
        %v9011 = vrot.slane %v8997, %v9010
        %v9012 = vcombine.low %v9004, %v9011
        %v9013 = vcombine.low %v7669, %v7673
        %v9014 = vcombine.low %v7677, %v7681
        %v9015 = vcombine.low %v7685, %v7689
        %v9016 = vcombine.low %v7693, %v7697
        %v9018 = vunpack.c.l.s4 1966171168
        %v9019 = vunpack.c.0.s8 %v9018
        %v9020 = vlaneseq
        %v9021 = vshrl.u32 %v9020, 7
        %v9022 = vsub.s32 %v9019, %v9021
        %v9023 = vrot.slane %v9013, %v9022
        %v9025 = vunpack.c.l.s4 1966171168
        %v9026 = vunpack.c.0.s8 %v9025
        %v9027 = vlaneseq
        %v9028 = vshrl.u32 %v9027, 7
        %v9029 = vsub.s32 %v9026, %v9028
        %v9030 = vrot.slane %v9014, %v9029
        %v9032 = vunpack.c.l.s4 1966171168
        %v9033 = vunpack.c.0.s8 %v9032
        %v9034 = vlaneseq
        %v9035 = vshrl.u32 %v9034, 7
        %v9036 = vsub.s32 %v9033, %v9035
        %v9037 = vrot.slane %v9015, %v9036
        %v9039 = vunpack.c.l.s4 1966171168
        %v9040 = vunpack.c.0.s8 %v9039
        %v9041 = vlaneseq
        %v9042 = vshrl.u32 %v9041, 7
        %v9043 = vsub.s32 %v9040, %v9042
        %v9044 = vrot.slane %v9016, %v9043
        %v9045 = vcombine.low %v9023, %v9030
        %v9046 = vcombine.low %v9037, %v9044
        %v9048 = vunpack.c.l.s4 1966171168
        %v9049 = vunpack.c.0.s8 %v9048
        %v9050 = vlaneseq
        %v9051 = vshrl.u32 %v9050, 7
        %v9052 = vsub.s32 %v9049, %v9051
        %v9053 = vrot.slane %v9045, %v9052
        %v9055 = vunpack.c.l.s4 1966171168
        %v9056 = vunpack.c.0.s8 %v9055
        %v9057 = vlaneseq
        %v9058 = vshrl.u32 %v9057, 7
        %v9059 = vsub.s32 %v9056, %v9058
        %v9060 = vrot.slane %v9046, %v9059
        %v9061 = vcombine.low %v9053, %v9060
        %v9062 = vcombine.low %v7701, %v7705
        %v9063 = vcombine.low %v7709, %v7713
        %v9064 = vcombine.low %v7717, %v7721
        %v9065 = vcombine.low %v7725, %v7729
        %v9067 = vunpack.c.l.s4 1966171168
        %v9068 = vunpack.c.0.s8 %v9067
        %v9069 = vlaneseq
        %v9070 = vshrl.u32 %v9069, 7
        %v9071 = vsub.s32 %v9068, %v9070
        %v9072 = vrot.slane %v9062, %v9071
        %v9074 = vunpack.c.l.s4 1966171168
        %v9075 = vunpack.c.0.s8 %v9074
        %v9076 = vlaneseq
        %v9077 = vshrl.u32 %v9076, 7
        %v9078 = vsub.s32 %v9075, %v9077
        %v9079 = vrot.slane %v9063, %v9078
        %v9081 = vunpack.c.l.s4 1966171168
        %v9082 = vunpack.c.0.s8 %v9081
        %v9083 = vlaneseq
        %v9084 = vshrl.u32 %v9083, 7
        %v9085 = vsub.s32 %v9082, %v9084
        %v9086 = vrot.slane %v9064, %v9085
        %v9088 = vunpack.c.l.s4 1966171168
        %v9089 = vunpack.c.0.s8 %v9088
        %v9090 = vlaneseq
        %v9091 = vshrl.u32 %v9090, 7
        %v9092 = vsub.s32 %v9089, %v9091
        %v9093 = vrot.slane %v9065, %v9092
        %v9094 = vcombine.low %v9072, %v9079
        %v9095 = vcombine.low %v9086, %v9093
        %v9097 = vunpack.c.l.s4 1966171168
        %v9098 = vunpack.c.0.s8 %v9097
        %v9099 = vlaneseq
        %v9100 = vshrl.u32 %v9099, 7
        %v9101 = vsub.s32 %v9098, %v9100
        %v9102 = vrot.slane %v9094, %v9101
        %v9104 = vunpack.c.l.s4 1966171168
        %v9105 = vunpack.c.0.s8 %v9104
        %v9106 = vlaneseq
        %v9107 = vshrl.u32 %v9106, 7
        %v9108 = vsub.s32 %v9105, %v9107
        %v9109 = vrot.slane %v9095, %v9108
        %v9110 = vcombine.low %v9102, %v9109
        %v9111 = vcombine.low %v7733, %v7737
        %v9112 = vcombine.low %v7741, %v7745
        %v9113 = vcombine.low %v7749, %v7753
        %v9114 = vcombine.low %v7757, %v7761
        %v9116 = vunpack.c.l.s4 1966171168
        %v9117 = vunpack.c.0.s8 %v9116
        %v9118 = vlaneseq
        %v9119 = vshrl.u32 %v9118, 7
        %v9120 = vsub.s32 %v9117, %v9119
        %v9121 = vrot.slane %v9111, %v9120
        %v9123 = vunpack.c.l.s4 1966171168
        %v9124 = vunpack.c.0.s8 %v9123
        %v9125 = vlaneseq
        %v9126 = vshrl.u32 %v9125, 7
        %v9127 = vsub.s32 %v9124, %v9126
        %v9128 = vrot.slane %v9112, %v9127
        %v9130 = vunpack.c.l.s4 1966171168
        %v9131 = vunpack.c.0.s8 %v9130
        %v9132 = vlaneseq
        %v9133 = vshrl.u32 %v9132, 7
        %v9134 = vsub.s32 %v9131, %v9133
        %v9135 = vrot.slane %v9113, %v9134
        %v9137 = vunpack.c.l.s4 1966171168
        %v9138 = vunpack.c.0.s8 %v9137
        %v9139 = vlaneseq
        %v9140 = vshrl.u32 %v9139, 7
        %v9141 = vsub.s32 %v9138, %v9140
        %v9142 = vrot.slane %v9114, %v9141
        %v9143 = vcombine.low %v9121, %v9128
        %v9144 = vcombine.low %v9135, %v9142
        %v9146 = vunpack.c.l.s4 1966171168
        %v9147 = vunpack.c.0.s8 %v9146
        %v9148 = vlaneseq
        %v9149 = vshrl.u32 %v9148, 7
        %v9150 = vsub.s32 %v9147, %v9149
        %v9151 = vrot.slane %v9143, %v9150
        %v9153 = vunpack.c.l.s4 1966171168
        %v9154 = vunpack.c.0.s8 %v9153
        %v9155 = vlaneseq
        %v9156 = vshrl.u32 %v9155, 7
        %v9157 = vsub.s32 %v9154, %v9156
        %v9158 = vrot.slane %v9144, %v9157
        %v9159 = vcombine.low %v9151, %v9158
        %v9160 = vcombine.low %v7765, %v7769
        %v9161 = vcombine.low %v7773, %v7777
        %v9162 = vcombine.low %v7781, %v7785
        %v9163 = vcombine.low %v7789, %v7793
        %v9165 = vunpack.c.l.s4 1966171168
        %v9166 = vunpack.c.0.s8 %v9165
        %v9167 = vlaneseq
        %v9168 = vshrl.u32 %v9167, 7
        %v9169 = vsub.s32 %v9166, %v9168
        %v9170 = vrot.slane %v9160, %v9169
        %v9172 = vunpack.c.l.s4 1966171168
        %v9173 = vunpack.c.0.s8 %v9172
        %v9174 = vlaneseq
        %v9175 = vshrl.u32 %v9174, 7
        %v9176 = vsub.s32 %v9173, %v9175
        %v9177 = vrot.slane %v9161, %v9176
        %v9179 = vunpack.c.l.s4 1966171168
        %v9180 = vunpack.c.0.s8 %v9179
        %v9181 = vlaneseq
        %v9182 = vshrl.u32 %v9181, 7
        %v9183 = vsub.s32 %v9180, %v9182
        %v9184 = vrot.slane %v9162, %v9183
        %v9186 = vunpack.c.l.s4 1966171168
        %v9187 = vunpack.c.0.s8 %v9186
        %v9188 = vlaneseq
        %v9189 = vshrl.u32 %v9188, 7
        %v9190 = vsub.s32 %v9187, %v9189
        %v9191 = vrot.slane %v9163, %v9190
        %v9192 = vcombine.low %v9170, %v9177
        %v9193 = vcombine.low %v9184, %v9191
        %v9195 = vunpack.c.l.s4 1966171168
        %v9196 = vunpack.c.0.s8 %v9195
        %v9197 = vlaneseq
        %v9198 = vshrl.u32 %v9197, 7
        %v9199 = vsub.s32 %v9196, %v9198
        %v9200 = vrot.slane %v9192, %v9199
        %v9202 = vunpack.c.l.s4 1966171168
        %v9203 = vunpack.c.0.s8 %v9202
        %v9204 = vlaneseq
        %v9205 = vshrl.u32 %v9204, 7
        %v9206 = vsub.s32 %v9203, %v9205
        %v9207 = vrot.slane %v9193, %v9206
        %v9208 = vcombine.low %v9200, %v9207
        %v9209 = vcombine.low %v7797, %v7801
        %v9210 = vcombine.low %v7805, %v7809
        %v9211 = vcombine.low %v7813, %v7817
        %v9212 = vcombine.low %v7821, %v7825
        %v9214 = vunpack.c.l.s4 1966171168
        %v9215 = vunpack.c.0.s8 %v9214
        %v9216 = vlaneseq
        %v9217 = vshrl.u32 %v9216, 7
        %v9218 = vsub.s32 %v9215, %v9217
        %v9219 = vrot.slane %v9209, %v9218
        %v9221 = vunpack.c.l.s4 1966171168
        %v9222 = vunpack.c.0.s8 %v9221
        %v9223 = vlaneseq
        %v9224 = vshrl.u32 %v9223, 7
        %v9225 = vsub.s32 %v9222, %v9224
        %v9226 = vrot.slane %v9210, %v9225
        %v9228 = vunpack.c.l.s4 1966171168
        %v9229 = vunpack.c.0.s8 %v9228
        %v9230 = vlaneseq
        %v9231 = vshrl.u32 %v9230, 7
        %v9232 = vsub.s32 %v9229, %v9231
        %v9233 = vrot.slane %v9211, %v9232
        %v9235 = vunpack.c.l.s4 1966171168
        %v9236 = vunpack.c.0.s8 %v9235
        %v9237 = vlaneseq
        %v9238 = vshrl.u32 %v9237, 7
        %v9239 = vsub.s32 %v9236, %v9238
        %v9240 = vrot.slane %v9212, %v9239
        %v9241 = vcombine.low %v9219, %v9226
        %v9242 = vcombine.low %v9233, %v9240
        %v9244 = vunpack.c.l.s4 1966171168
        %v9245 = vunpack.c.0.s8 %v9244
        %v9246 = vlaneseq
        %v9247 = vshrl.u32 %v9246, 7
        %v9248 = vsub.s32 %v9245, %v9247
        %v9249 = vrot.slane %v9241, %v9248
        %v9251 = vunpack.c.l.s4 1966171168
        %v9252 = vunpack.c.0.s8 %v9251
        %v9253 = vlaneseq
        %v9254 = vshrl.u32 %v9253, 7
        %v9255 = vsub.s32 %v9252, %v9254
        %v9256 = vrot.slane %v9242, %v9255
        %v9257 = vcombine.low %v9249, %v9256
        %v9258 = vcombine.low %v7829, %v7833
        %v9259 = vcombine.low %v7837, %v7841
        %v9260 = vcombine.low %v7845, %v7849
        %v9261 = vcombine.low %v7853, %v7857
        %v9263 = vunpack.c.l.s4 1966171168
        %v9264 = vunpack.c.0.s8 %v9263
        %v9265 = vlaneseq
        %v9266 = vshrl.u32 %v9265, 7
        %v9267 = vsub.s32 %v9264, %v9266
        %v9268 = vrot.slane %v9258, %v9267
        %v9270 = vunpack.c.l.s4 1966171168
        %v9271 = vunpack.c.0.s8 %v9270
        %v9272 = vlaneseq
        %v9273 = vshrl.u32 %v9272, 7
        %v9274 = vsub.s32 %v9271, %v9273
        %v9275 = vrot.slane %v9259, %v9274
        %v9277 = vunpack.c.l.s4 1966171168
        %v9278 = vunpack.c.0.s8 %v9277
        %v9279 = vlaneseq
        %v9280 = vshrl.u32 %v9279, 7
        %v9281 = vsub.s32 %v9278, %v9280
        %v9282 = vrot.slane %v9260, %v9281
        %v9284 = vunpack.c.l.s4 1966171168
        %v9285 = vunpack.c.0.s8 %v9284
        %v9286 = vlaneseq
        %v9287 = vshrl.u32 %v9286, 7
        %v9288 = vsub.s32 %v9285, %v9287
        %v9289 = vrot.slane %v9261, %v9288
        %v9290 = vcombine.low %v9268, %v9275
        %v9291 = vcombine.low %v9282, %v9289
        %v9293 = vunpack.c.l.s4 1966171168
        %v9294 = vunpack.c.0.s8 %v9293
        %v9295 = vlaneseq
        %v9296 = vshrl.u32 %v9295, 7
        %v9297 = vsub.s32 %v9294, %v9296
        %v9298 = vrot.slane %v9290, %v9297
        %v9300 = vunpack.c.l.s4 1966171168
        %v9301 = vunpack.c.0.s8 %v9300
        %v9302 = vlaneseq
        %v9303 = vshrl.u32 %v9302, 7
        %v9304 = vsub.s32 %v9301, %v9303
        %v9305 = vrot.slane %v9291, %v9304
        %v9306 = vcombine.low %v9298, %v9305
        %v9307 = vcombine.low %v7861, %v7865
        %v9308 = vcombine.low %v7869, %v7873
        %v9309 = vcombine.low %v7877, %v7881
        %v9310 = vcombine.low %v7885, %v7889
        %v9312 = vunpack.c.l.s4 1966171168
        %v9313 = vunpack.c.0.s8 %v9312
        %v9314 = vlaneseq
        %v9315 = vshrl.u32 %v9314, 7
        %v9316 = vsub.s32 %v9313, %v9315
        %v9317 = vrot.slane %v9307, %v9316
        %v9319 = vunpack.c.l.s4 1966171168
        %v9320 = vunpack.c.0.s8 %v9319
        %v9321 = vlaneseq
        %v9322 = vshrl.u32 %v9321, 7
        %v9323 = vsub.s32 %v9320, %v9322
        %v9324 = vrot.slane %v9308, %v9323
        %v9326 = vunpack.c.l.s4 1966171168
        %v9327 = vunpack.c.0.s8 %v9326
        %v9328 = vlaneseq
        %v9329 = vshrl.u32 %v9328, 7
        %v9330 = vsub.s32 %v9327, %v9329
        %v9331 = vrot.slane %v9309, %v9330
        %v9333 = vunpack.c.l.s4 1966171168
        %v9334 = vunpack.c.0.s8 %v9333
        %v9335 = vlaneseq
        %v9336 = vshrl.u32 %v9335, 7
        %v9337 = vsub.s32 %v9334, %v9336
        %v9338 = vrot.slane %v9310, %v9337
        %v9339 = vcombine.low %v9317, %v9324
        %v9340 = vcombine.low %v9331, %v9338
        %v9342 = vunpack.c.l.s4 1966171168
        %v9343 = vunpack.c.0.s8 %v9342
        %v9344 = vlaneseq
        %v9345 = vshrl.u32 %v9344, 7
        %v9346 = vsub.s32 %v9343, %v9345
        %v9347 = vrot.slane %v9339, %v9346
        %v9349 = vunpack.c.l.s4 1966171168
        %v9350 = vunpack.c.0.s8 %v9349
        %v9351 = vlaneseq
        %v9352 = vshrl.u32 %v9351, 7
        %v9353 = vsub.s32 %v9350, %v9352
        %v9354 = vrot.slane %v9340, %v9353
        %v9355 = vcombine.low %v9347, %v9354
        %v9356 = vcombine.low %v7893, %v7897
        %v9357 = vcombine.low %v7901, %v7905
        %v9358 = vcombine.low %v7909, %v7913
        %v9359 = vcombine.low %v7917, %v7921
        %v9361 = vunpack.c.l.s4 1966171168
        %v9362 = vunpack.c.0.s8 %v9361
        %v9363 = vlaneseq
        %v9364 = vshrl.u32 %v9363, 7
        %v9365 = vsub.s32 %v9362, %v9364
        %v9366 = vrot.slane %v9356, %v9365
        %v9368 = vunpack.c.l.s4 1966171168
        %v9369 = vunpack.c.0.s8 %v9368
        %v9370 = vlaneseq
        %v9371 = vshrl.u32 %v9370, 7
        %v9372 = vsub.s32 %v9369, %v9371
        %v9373 = vrot.slane %v9357, %v9372
        %v9375 = vunpack.c.l.s4 1966171168
        %v9376 = vunpack.c.0.s8 %v9375
        %v9377 = vlaneseq
        %v9378 = vshrl.u32 %v9377, 7
        %v9379 = vsub.s32 %v9376, %v9378
        %v9380 = vrot.slane %v9358, %v9379
        %v9382 = vunpack.c.l.s4 1966171168
        %v9383 = vunpack.c.0.s8 %v9382
        %v9384 = vlaneseq
        %v9385 = vshrl.u32 %v9384, 7
        %v9386 = vsub.s32 %v9383, %v9385
        %v9387 = vrot.slane %v9359, %v9386
        %v9388 = vcombine.low %v9366, %v9373
        %v9389 = vcombine.low %v9380, %v9387
        %v9391 = vunpack.c.l.s4 1966171168
        %v9392 = vunpack.c.0.s8 %v9391
        %v9393 = vlaneseq
        %v9394 = vshrl.u32 %v9393, 7
        %v9395 = vsub.s32 %v9392, %v9394
        %v9396 = vrot.slane %v9388, %v9395
        %v9398 = vunpack.c.l.s4 1966171168
        %v9399 = vunpack.c.0.s8 %v9398
        %v9400 = vlaneseq
        %v9401 = vshrl.u32 %v9400, 7
        %v9402 = vsub.s32 %v9399, %v9401
        %v9403 = vrot.slane %v9389, %v9402
        %v9404 = vcombine.low %v9396, %v9403
        %v9405 = vcombine.low %v7925, %v7929
        %v9406 = vcombine.low %v7933, %v7937
        %v9407 = vcombine.low %v7941, %v7945
        %v9408 = vcombine.low %v7949, %v7953
        %v9410 = vunpack.c.l.s4 1966171168
        %v9411 = vunpack.c.0.s8 %v9410
        %v9412 = vlaneseq
        %v9413 = vshrl.u32 %v9412, 7
        %v9414 = vsub.s32 %v9411, %v9413
        %v9415 = vrot.slane %v9405, %v9414
        %v9417 = vunpack.c.l.s4 1966171168
        %v9418 = vunpack.c.0.s8 %v9417
        %v9419 = vlaneseq
        %v9420 = vshrl.u32 %v9419, 7
        %v9421 = vsub.s32 %v9418, %v9420
        %v9422 = vrot.slane %v9406, %v9421
        %v9424 = vunpack.c.l.s4 1966171168
        %v9425 = vunpack.c.0.s8 %v9424
        %v9426 = vlaneseq
        %v9427 = vshrl.u32 %v9426, 7
        %v9428 = vsub.s32 %v9425, %v9427
        %v9429 = vrot.slane %v9407, %v9428
        %v9431 = vunpack.c.l.s4 1966171168
        %v9432 = vunpack.c.0.s8 %v9431
        %v9433 = vlaneseq
        %v9434 = vshrl.u32 %v9433, 7
        %v9435 = vsub.s32 %v9432, %v9434
        %v9436 = vrot.slane %v9408, %v9435
        %v9437 = vcombine.low %v9415, %v9422
        %v9438 = vcombine.low %v9429, %v9436
        %v9440 = vunpack.c.l.s4 1966171168
        %v9441 = vunpack.c.0.s8 %v9440
        %v9442 = vlaneseq
        %v9443 = vshrl.u32 %v9442, 7
        %v9444 = vsub.s32 %v9441, %v9443
        %v9445 = vrot.slane %v9437, %v9444
        %v9447 = vunpack.c.l.s4 1966171168
        %v9448 = vunpack.c.0.s8 %v9447
        %v9449 = vlaneseq
        %v9450 = vshrl.u32 %v9449, 7
        %v9451 = vsub.s32 %v9448, %v9450
        %v9452 = vrot.slane %v9438, %v9451
        %v9453 = vcombine.low %v9445, %v9452
        %v9454 = vcombine.low %v7957, %v7961
        %v9455 = vcombine.low %v7965, %v7969
        %v9456 = vcombine.low %v7973, %v7977
        %v9457 = vcombine.low %v7981, %v7985
        %v9459 = vunpack.c.l.s4 1966171168
        %v9460 = vunpack.c.0.s8 %v9459
        %v9461 = vlaneseq
        %v9462 = vshrl.u32 %v9461, 7
        %v9463 = vsub.s32 %v9460, %v9462
        %v9464 = vrot.slane %v9454, %v9463
        %v9466 = vunpack.c.l.s4 1966171168
        %v9467 = vunpack.c.0.s8 %v9466
        %v9468 = vlaneseq
        %v9469 = vshrl.u32 %v9468, 7
        %v9470 = vsub.s32 %v9467, %v9469
        %v9471 = vrot.slane %v9455, %v9470
        %v9473 = vunpack.c.l.s4 1966171168
        %v9474 = vunpack.c.0.s8 %v9473
        %v9475 = vlaneseq
        %v9476 = vshrl.u32 %v9475, 7
        %v9477 = vsub.s32 %v9474, %v9476
        %v9478 = vrot.slane %v9456, %v9477
        %v9480 = vunpack.c.l.s4 1966171168
        %v9481 = vunpack.c.0.s8 %v9480
        %v9482 = vlaneseq
        %v9483 = vshrl.u32 %v9482, 7
        %v9484 = vsub.s32 %v9481, %v9483
        %v9485 = vrot.slane %v9457, %v9484
        %v9486 = vcombine.low %v9464, %v9471
        %v9487 = vcombine.low %v9478, %v9485
        %v9489 = vunpack.c.l.s4 1966171168
        %v9490 = vunpack.c.0.s8 %v9489
        %v9491 = vlaneseq
        %v9492 = vshrl.u32 %v9491, 7
        %v9493 = vsub.s32 %v9490, %v9492
        %v9494 = vrot.slane %v9486, %v9493
        %v9496 = vunpack.c.l.s4 1966171168
        %v9497 = vunpack.c.0.s8 %v9496
        %v9498 = vlaneseq
        %v9499 = vshrl.u32 %v9498, 7
        %v9500 = vsub.s32 %v9497, %v9499
        %v9501 = vrot.slane %v9487, %v9500
        %v9502 = vcombine.low %v9494, %v9501
        %v9503 = vcombine.low %v7989, %v7993
        %v9504 = vcombine.low %v7997, %v8001
        %v9505 = vcombine.low %v8005, %v8009
        %v9506 = vcombine.low %v8013, %v8017
        %v9508 = vunpack.c.l.s4 1966171168
        %v9509 = vunpack.c.0.s8 %v9508
        %v9510 = vlaneseq
        %v9511 = vshrl.u32 %v9510, 7
        %v9512 = vsub.s32 %v9509, %v9511
        %v9513 = vrot.slane %v9503, %v9512
        %v9515 = vunpack.c.l.s4 1966171168
        %v9516 = vunpack.c.0.s8 %v9515
        %v9517 = vlaneseq
        %v9518 = vshrl.u32 %v9517, 7
        %v9519 = vsub.s32 %v9516, %v9518
        %v9520 = vrot.slane %v9504, %v9519
        %v9522 = vunpack.c.l.s4 1966171168
        %v9523 = vunpack.c.0.s8 %v9522
        %v9524 = vlaneseq
        %v9525 = vshrl.u32 %v9524, 7
        %v9526 = vsub.s32 %v9523, %v9525
        %v9527 = vrot.slane %v9505, %v9526
        %v9529 = vunpack.c.l.s4 1966171168
        %v9530 = vunpack.c.0.s8 %v9529
        %v9531 = vlaneseq
        %v9532 = vshrl.u32 %v9531, 7
        %v9533 = vsub.s32 %v9530, %v9532
        %v9534 = vrot.slane %v9506, %v9533
        %v9535 = vcombine.low %v9513, %v9520
        %v9536 = vcombine.low %v9527, %v9534
        %v9538 = vunpack.c.l.s4 1966171168
        %v9539 = vunpack.c.0.s8 %v9538
        %v9540 = vlaneseq
        %v9541 = vshrl.u32 %v9540, 7
        %v9542 = vsub.s32 %v9539, %v9541
        %v9543 = vrot.slane %v9535, %v9542
        %v9545 = vunpack.c.l.s4 1966171168
        %v9546 = vunpack.c.0.s8 %v9545
        %v9547 = vlaneseq
        %v9548 = vshrl.u32 %v9547, 7
        %v9549 = vsub.s32 %v9546, %v9548
        %v9550 = vrot.slane %v9536, %v9549
        %v9551 = vcombine.low %v9543, %v9550
        %v9552 = vcombine.low %v8021, %v8025
        %v9553 = vcombine.low %v8029, %v8033
        %v9554 = vcombine.low %v8037, %v8041
        %v9555 = vcombine.low %v8045, %v8049
        %v9557 = vunpack.c.l.s4 1966171168
        %v9558 = vunpack.c.0.s8 %v9557
        %v9559 = vlaneseq
        %v9560 = vshrl.u32 %v9559, 7
        %v9561 = vsub.s32 %v9558, %v9560
        %v9562 = vrot.slane %v9552, %v9561
        %v9564 = vunpack.c.l.s4 1966171168
        %v9565 = vunpack.c.0.s8 %v9564
        %v9566 = vlaneseq
        %v9567 = vshrl.u32 %v9566, 7
        %v9568 = vsub.s32 %v9565, %v9567
        %v9569 = vrot.slane %v9553, %v9568
        %v9571 = vunpack.c.l.s4 1966171168
        %v9572 = vunpack.c.0.s8 %v9571
        %v9573 = vlaneseq
        %v9574 = vshrl.u32 %v9573, 7
        %v9575 = vsub.s32 %v9572, %v9574
        %v9576 = vrot.slane %v9554, %v9575
        %v9578 = vunpack.c.l.s4 1966171168
        %v9579 = vunpack.c.0.s8 %v9578
        %v9580 = vlaneseq
        %v9581 = vshrl.u32 %v9580, 7
        %v9582 = vsub.s32 %v9579, %v9581
        %v9583 = vrot.slane %v9555, %v9582
        %v9584 = vcombine.low %v9562, %v9569
        %v9585 = vcombine.low %v9576, %v9583
        %v9587 = vunpack.c.l.s4 1966171168
        %v9588 = vunpack.c.0.s8 %v9587
        %v9589 = vlaneseq
        %v9590 = vshrl.u32 %v9589, 7
        %v9591 = vsub.s32 %v9588, %v9590
        %v9592 = vrot.slane %v9584, %v9591
        %v9594 = vunpack.c.l.s4 1966171168
        %v9595 = vunpack.c.0.s8 %v9594
        %v9596 = vlaneseq
        %v9597 = vshrl.u32 %v9596, 7
        %v9598 = vsub.s32 %v9595, %v9597
        %v9599 = vrot.slane %v9585, %v9598
        %v9600 = vcombine.low %v9592, %v9599
        %v9601 = vcombine.low %v8053, %v8057
        %v9602 = vcombine.low %v8061, %v8065
        %v9603 = vcombine.low %v8069, %v8073
        %v9604 = vcombine.low %v8077, %v8081
        %v9606 = vunpack.c.l.s4 1966171168
        %v9607 = vunpack.c.0.s8 %v9606
        %v9608 = vlaneseq
        %v9609 = vshrl.u32 %v9608, 7
        %v9610 = vsub.s32 %v9607, %v9609
        %v9611 = vrot.slane %v9601, %v9610
        %v9613 = vunpack.c.l.s4 1966171168
        %v9614 = vunpack.c.0.s8 %v9613
        %v9615 = vlaneseq
        %v9616 = vshrl.u32 %v9615, 7
        %v9617 = vsub.s32 %v9614, %v9616
        %v9618 = vrot.slane %v9602, %v9617
        %v9620 = vunpack.c.l.s4 1966171168
        %v9621 = vunpack.c.0.s8 %v9620
        %v9622 = vlaneseq
        %v9623 = vshrl.u32 %v9622, 7
        %v9624 = vsub.s32 %v9621, %v9623
        %v9625 = vrot.slane %v9603, %v9624
        %v9627 = vunpack.c.l.s4 1966171168
        %v9628 = vunpack.c.0.s8 %v9627
        %v9629 = vlaneseq
        %v9630 = vshrl.u32 %v9629, 7
        %v9631 = vsub.s32 %v9628, %v9630
        %v9632 = vrot.slane %v9604, %v9631
        %v9633 = vcombine.low %v9611, %v9618
        %v9634 = vcombine.low %v9625, %v9632
        %v9636 = vunpack.c.l.s4 1966171168
        %v9637 = vunpack.c.0.s8 %v9636
        %v9638 = vlaneseq
        %v9639 = vshrl.u32 %v9638, 7
        %v9640 = vsub.s32 %v9637, %v9639
        %v9641 = vrot.slane %v9633, %v9640
        %v9643 = vunpack.c.l.s4 1966171168
        %v9644 = vunpack.c.0.s8 %v9643
        %v9645 = vlaneseq
        %v9646 = vshrl.u32 %v9645, 7
        %v9647 = vsub.s32 %v9644, %v9646
        %v9648 = vrot.slane %v9634, %v9647
        %v9649 = vcombine.low %v9641, %v9648
        %9650 = vset.pattern.permute.xlu0 0
        %9651 = vperm.xlu0 %9650, %v8130
        %v9652 = vpop.permute.xlu0 %9651
        %9653 = vset.pattern.permute.xlu0 0
        %9654 = vperm.xlu0 %9653, %v8179
        %v9655 = vpop.permute.xlu0 %9654
        %9656 = vset.pattern.permute.xlu0 0
        %9657 = vperm.xlu0 %9656, %v8228
        %v9658 = vpop.permute.xlu0 %9657
        %9659 = vset.pattern.permute.xlu0 0
        %9660 = vperm.xlu0 %9659, %v8277
        %v9661 = vpop.permute.xlu0 %9660
        %9662 = vset.pattern.permute.xlu0 0
        %9663 = vperm.xlu0 %9662, %v8326
        %v9664 = vpop.permute.xlu0 %9663
        %9665 = vset.pattern.permute.xlu0 0
        %9666 = vperm.xlu0 %9665, %v8375
        %v9667 = vpop.permute.xlu0 %9666
        %9668 = vset.pattern.permute.xlu0 0
        %9669 = vperm.xlu0 %9668, %v8424
        %v9670 = vpop.permute.xlu0 %9669
        %9671 = vset.pattern.permute.xlu0 0
        %9672 = vperm.xlu0 %9671, %v8473
        %v9673 = vpop.permute.xlu0 %9672
        %9674 = vset.pattern.permute.xlu0 0
        %9675 = vperm.xlu0 %9674, %v8522
        %v9676 = vpop.permute.xlu0 %9675
        %9677 = vset.pattern.permute.xlu0 0
        %9678 = vperm.xlu0 %9677, %v8571
        %v9679 = vpop.permute.xlu0 %9678
        %9680 = vset.pattern.permute.xlu0 0
        %9681 = vperm.xlu0 %9680, %v8620
        %v9682 = vpop.permute.xlu0 %9681
        %9683 = vset.pattern.permute.xlu0 0
        %9684 = vperm.xlu0 %9683, %v8669
        %v9685 = vpop.permute.xlu0 %9684
        %9686 = vset.pattern.permute.xlu0 0
        %9687 = vperm.xlu0 %9686, %v8718
        %v9688 = vpop.permute.xlu0 %9687
        %9689 = vset.pattern.permute.xlu0 0
        %9690 = vperm.xlu0 %9689, %v8767
        %v9691 = vpop.permute.xlu0 %9690
        %9692 = vset.pattern.permute.xlu0 0
        %9693 = vperm.xlu0 %9692, %v8816
        %v9694 = vpop.permute.xlu0 %9693
        %9695 = vset.pattern.permute.xlu0 0
        %9696 = vperm.xlu0 %9695, %v8865
        %v9697 = vpop.permute.xlu0 %9696
        %9698 = vset.pattern.permute.xlu0 0
        %9699 = vperm.xlu0 %9698, %v8914
        %v9700 = vpop.permute.xlu0 %9699
        %9701 = vset.pattern.permute.xlu0 0
        %9702 = vperm.xlu0 %9701, %v8963
        %v9703 = vpop.permute.xlu0 %9702
        %9704 = vset.pattern.permute.xlu0 0
        %9705 = vperm.xlu0 %9704, %v9012
        %v9706 = vpop.permute.xlu0 %9705
        %9707 = vset.pattern.permute.xlu0 0
        %9708 = vperm.xlu0 %9707, %v9061
        %v9709 = vpop.permute.xlu0 %9708
        %9710 = vset.pattern.permute.xlu0 0
        %9711 = vperm.xlu0 %9710, %v9110
        %v9712 = vpop.permute.xlu0 %9711
        %9713 = vset.pattern.permute.xlu0 0
        %9714 = vperm.xlu0 %9713, %v9159
        %v9715 = vpop.permute.xlu0 %9714
        %9716 = vset.pattern.permute.xlu0 0
        %9717 = vperm.xlu0 %9716, %v9208
        %v9718 = vpop.permute.xlu0 %9717
        %9719 = vset.pattern.permute.xlu0 0
        %9720 = vperm.xlu0 %9719, %v9257
        %v9721 = vpop.permute.xlu0 %9720
        %9722 = vset.pattern.permute.xlu0 0
        %9723 = vperm.xlu0 %9722, %v9306
        %v9724 = vpop.permute.xlu0 %9723
        %9725 = vset.pattern.permute.xlu0 0
        %9726 = vperm.xlu0 %9725, %v9355
        %v9727 = vpop.permute.xlu0 %9726
        %9728 = vset.pattern.permute.xlu0 0
        %9729 = vperm.xlu0 %9728, %v9404
        %v9730 = vpop.permute.xlu0 %9729
        %9731 = vset.pattern.permute.xlu0 0
        %9732 = vperm.xlu0 %9731, %v9453
        %v9733 = vpop.permute.xlu0 %9732
        %9734 = vset.pattern.permute.xlu0 0
        %9735 = vperm.xlu0 %9734, %v9502
        %v9736 = vpop.permute.xlu0 %9735
        %9737 = vset.pattern.permute.xlu0 0
        %9738 = vperm.xlu0 %9737, %v9551
        %v9739 = vpop.permute.xlu0 %9738
        %9740 = vset.pattern.permute.xlu0 0
        %9741 = vperm.xlu0 %9740, %v9600
        %v9742 = vpop.permute.xlu0 %9741
        %9743 = vset.pattern.permute.xlu0 0
        %9744 = vperm.xlu0 %9743, %v9649
        %v9745 = vpop.permute.xlu0 %9744
        %v9746 = vlaneseq
        %v9747 = vshrl.u32 %v9746, 7
        %v9748 = vsub.s32 %v1596, %v9747
        %v9749 = vrot.slane %v9652, %v9748
        %v9750 = vlaneseq
        %v9751 = vshrl.u32 %v9750, 7
        %v9752 = vsub.s32 %v6854, %v9751
        %v9753 = vrot.slane %v9655, %v9752
        %v9754 = vsel %vm6859, %v9753, %v9749
        %v9755 = vlaneseq
        %v9756 = vshrl.u32 %v9755, 7
        %v9757 = vsub.s32 %v6861, %v9756
        %v9758 = vrot.slane %v9658, %v9757
        %v9759 = vsel %vm6866, %v9758, %v9754
        %v9760 = vlaneseq
        %v9761 = vshrl.u32 %v9760, 7
        %v9762 = vsub.s32 %v6868, %v9761
        %v9763 = vrot.slane %v9661, %v9762
        %v9764 = vsel %vm6873, %v9763, %v9759
        %v9765 = vlaneseq
        %v9766 = vshrl.u32 %v9765, 7
        %v9767 = vsub.s32 %v6875, %v9766
        %v9768 = vrot.slane %v9664, %v9767
        %v9769 = vsel %vm6880, %v9768, %v9764
        %v9770 = vlaneseq
        %v9771 = vshrl.u32 %v9770, 7
        %v9772 = vsub.s32 %v6882, %v9771
        %v9773 = vrot.slane %v9667, %v9772
        %v9774 = vsel %vm6887, %v9773, %v9769
        %v9775 = vlaneseq
        %v9776 = vshrl.u32 %v9775, 7
        %v9777 = vsub.s32 %v6889, %v9776
        %v9778 = vrot.slane %v9670, %v9777
        %v9779 = vsel %vm6894, %v9778, %v9774
        %v9780 = vlaneseq
        %v9781 = vshrl.u32 %v9780, 7
        %v9782 = vsub.s32 %v6896, %v9781
        %v9783 = vrot.slane %v9673, %v9782
        %v9784 = vsel %vm6901, %v9783, %v9779
        %v9785 = vlaneseq
        %v9786 = vshrl.u32 %v9785, 7
        %v9787 = vsub.s32 %v6903, %v9786
        %v9788 = vrot.slane %v9676, %v9787
        %v9789 = vsel %vm6908, %v9788, %v9784
        %v9790 = vlaneseq
        %v9791 = vshrl.u32 %v9790, 7
        %v9792 = vsub.s32 %v6910, %v9791
        %v9793 = vrot.slane %v9679, %v9792
        %v9794 = vsel %vm6915, %v9793, %v9789
        %v9795 = vlaneseq
        %v9796 = vshrl.u32 %v9795, 7
        %v9797 = vsub.s32 %v6917, %v9796
        %v9798 = vrot.slane %v9682, %v9797
        %v9799 = vsel %vm6922, %v9798, %v9794
        %v9800 = vlaneseq
        %v9801 = vshrl.u32 %v9800, 7
        %v9802 = vsub.s32 %v6924, %v9801
        %v9803 = vrot.slane %v9685, %v9802
        %v9804 = vsel %vm6929, %v9803, %v9799
        %v9805 = vlaneseq
        %v9806 = vshrl.u32 %v9805, 7
        %v9807 = vsub.s32 %v6931, %v9806
        %v9808 = vrot.slane %v9688, %v9807
        %v9809 = vsel %vm6936, %v9808, %v9804
        %v9810 = vlaneseq
        %v9811 = vshrl.u32 %v9810, 7
        %v9812 = vsub.s32 %v6938, %v9811
        %v9813 = vrot.slane %v9691, %v9812
        %v9814 = vsel %vm6943, %v9813, %v9809
        %v9815 = vlaneseq
        %v9816 = vshrl.u32 %v9815, 7
        %v9817 = vsub.s32 %v6945, %v9816
        %v9818 = vrot.slane %v9694, %v9817
        %v9819 = vsel %vm6950, %v9818, %v9814
        %v9820 = vlaneseq
        %v9821 = vshrl.u32 %v9820, 7
        %v9822 = vsub.s32 %v6952, %v9821
        %v9823 = vrot.slane %v9697, %v9822
        %v9824 = vsel %vm6957, %v9823, %v9819
        %v9825 = vlaneseq
        %v9826 = vshrl.u32 %v9825, 7
        %v9827 = vsub.s32 %v1596, %v9826
        %v9828 = vrot.slane %v9700, %v9827
        %v9829 = vlaneseq
        %v9830 = vshrl.u32 %v9829, 7
        %v9831 = vsub.s32 %v6854, %v9830
        %v9832 = vrot.slane %v9703, %v9831
        %v9833 = vsel %vm6859, %v9832, %v9828
        %v9834 = vlaneseq
        %v9835 = vshrl.u32 %v9834, 7
        %v9836 = vsub.s32 %v6861, %v9835
        %v9837 = vrot.slane %v9706, %v9836
        %v9838 = vsel %vm6866, %v9837, %v9833
        %v9839 = vlaneseq
        %v9840 = vshrl.u32 %v9839, 7
        %v9841 = vsub.s32 %v6868, %v9840
        %v9842 = vrot.slane %v9709, %v9841
        %v9843 = vsel %vm6873, %v9842, %v9838
        %v9844 = vlaneseq
        %v9845 = vshrl.u32 %v9844, 7
        %v9846 = vsub.s32 %v6875, %v9845
        %v9847 = vrot.slane %v9712, %v9846
        %v9848 = vsel %vm6880, %v9847, %v9843
        %v9849 = vlaneseq
        %v9850 = vshrl.u32 %v9849, 7
        %v9851 = vsub.s32 %v6882, %v9850
        %v9852 = vrot.slane %v9715, %v9851
        %v9853 = vsel %vm6887, %v9852, %v9848
        %v9854 = vlaneseq
        %v9855 = vshrl.u32 %v9854, 7
        %v9856 = vsub.s32 %v6889, %v9855
        %v9857 = vrot.slane %v9718, %v9856
        %v9858 = vsel %vm6894, %v9857, %v9853
        %v9859 = vlaneseq
        %v9860 = vshrl.u32 %v9859, 7
        %v9861 = vsub.s32 %v6896, %v9860
        %v9862 = vrot.slane %v9721, %v9861
        %v9863 = vsel %vm6901, %v9862, %v9858
        %v9864 = vlaneseq
        %v9865 = vshrl.u32 %v9864, 7
        %v9866 = vsub.s32 %v6903, %v9865
        %v9867 = vrot.slane %v9724, %v9866
        %v9868 = vsel %vm6908, %v9867, %v9863
        %v9869 = vlaneseq
        %v9870 = vshrl.u32 %v9869, 7
        %v9871 = vsub.s32 %v6910, %v9870
        %v9872 = vrot.slane %v9727, %v9871
        %v9873 = vsel %vm6915, %v9872, %v9868
        %v9874 = vlaneseq
        %v9875 = vshrl.u32 %v9874, 7
        %v9876 = vsub.s32 %v6917, %v9875
        %v9877 = vrot.slane %v9730, %v9876
        %v9878 = vsel %vm6922, %v9877, %v9873
        %v9879 = vlaneseq
        %v9880 = vshrl.u32 %v9879, 7
        %v9881 = vsub.s32 %v6924, %v9880
        %v9882 = vrot.slane %v9733, %v9881
        %v9883 = vsel %vm6929, %v9882, %v9878
        %v9884 = vlaneseq
        %v9885 = vshrl.u32 %v9884, 7
        %v9886 = vsub.s32 %v6931, %v9885
        %v9887 = vrot.slane %v9736, %v9886
        %v9888 = vsel %vm6936, %v9887, %v9883
        %v9889 = vlaneseq
        %v9890 = vshrl.u32 %v9889, 7
        %v9891 = vsub.s32 %v6938, %v9890
        %v9892 = vrot.slane %v9739, %v9891
        %v9893 = vsel %vm6943, %v9892, %v9888
        %v9894 = vlaneseq
        %v9895 = vshrl.u32 %v9894, 7
        %v9896 = vsub.s32 %v6945, %v9895
        %v9897 = vrot.slane %v9742, %v9896
        %v9898 = vsel %vm6950, %v9897, %v9893
        %v9899 = vlaneseq
        %v9900 = vshrl.u32 %v9899, 7
        %v9901 = vsub.s32 %v6952, %v9900
        %v9902 = vrot.slane %v9745, %v9901
        %v9903 = vsel %vm6957, %v9902, %v9898
        %v9904 = vcombine.low %v9824, %v9903
        %v9906 = vunpack.c.l.s4 1966171168
        %v9907 = vunpack.c.0.s8 %v9906
        %v9908 = vlaneseq
        %v9909 = vshrl.u32 %v9908, 7
        %v9910 = vsub.s32 %v9907, %v9909
        %v9911 = vrot.slane %v9904, %v9910
        %v9913 = vunpack.c.l.s4 1966171168
        %v9914 = vunpack.c.0.s8 %v9913
        %v9915 = vlaneseq
        %v9916 = vshrl.u32 %v9915, 7
        %v9917 = vsub.s32 %v9914, %v9916
        %v9918 = vrot.slane %v9911, %v9917
        %s9919 = scalar_lea.vmem %s346, 1 [#allocation7]
        %9920 = vst.msk [vmem:[%s9919] ss:$2 sm:$0x3] %vm7056, %v9918
        %v9921 = vsub.f32 %v3712, %v403
        %v9922 = vsub.f32 %v3717, %v404
        %v9923 = vsub.f32 %v3722, %v405
        %v9924 = vsub.f32 %v3727, %v406
        %v9925 = vsub.f32 %v3732, %v407
        %v9926 = vsub.f32 %v3737, %v408
        %v9927 = vsub.f32 %v3742, %v409
        %v9928 = vsub.f32 %v3747, %v410
        %v9929 = vsub.f32 %v3752, %v411
        %v9930 = vsub.f32 %v3757, %v412
        %v9931 = vsub.f32 %v3762, %v413
        %v9932 = vsub.f32 %v3767, %v414
        %v9933 = vsub.f32 %v3772, %v415
        %v9934 = vsub.f32 %v3777, %v416
        %v9935 = vsub.f32 %v3782, %v417
        %v9936 = vsub.f32 %v3787, %v418
        %v9937 = vsub.f32 %v3792, %v435
        %v9938 = vsub.f32 %v3797, %v436
        %v9939 = vsub.f32 %v3802, %v437
        %v9940 = vsub.f32 %v3807, %v438
        %v9941 = vsub.f32 %v3812, %v439
        %v9942 = vsub.f32 %v3817, %v440
        %v9943 = vsub.f32 %v3822, %v441
        %v9944 = vsub.f32 %v3827, %v442
        %v9945 = vsub.f32 %v3832, %v443
        %v9946 = vsub.f32 %v3837, %v444
        %v9947 = vsub.f32 %v3842, %v445
        %v9948 = vsub.f32 %v3847, %v446
        %v9949 = vsub.f32 %v3852, %v447
        %v9950 = vsub.f32 %v3857, %v448
        %v9951 = vsub.f32 %v3862, %v449
        %v9952 = vsub.f32 %v3867, %v450
        %v9953 = vsub.f32 %v3872, %v467
        %v9954 = vsub.f32 %v3877, %v468
        %v9955 = vsub.f32 %v3882, %v469
        %v9956 = vsub.f32 %v3887, %v470
        %v9957 = vsub.f32 %v3892, %v471
        %v9958 = vsub.f32 %v3897, %v472
        %v9959 = vsub.f32 %v3902, %v473
        %v9960 = vsub.f32 %v3907, %v474
        %v9961 = vsub.f32 %v3912, %v475
        %v9962 = vsub.f32 %v3917, %v476
        %v9963 = vsub.f32 %v3922, %v477
        %v9964 = vsub.f32 %v3927, %v478
        %v9965 = vsub.f32 %v3932, %v479
        %v9966 = vsub.f32 %v3937, %v480
        %v9967 = vsub.f32 %v3942, %v481
        %v9968 = vsub.f32 %v3947, %v482
        %v9969 = vsub.f32 %v3952, %v499
        %v9970 = vsub.f32 %v3957, %v500
        %v9971 = vsub.f32 %v3962, %v501
        %v9972 = vsub.f32 %v3967, %v502
        %v9973 = vsub.f32 %v3972, %v503
        %v9974 = vsub.f32 %v3977, %v504
        %v9975 = vsub.f32 %v3982, %v505
        %v9976 = vsub.f32 %v3987, %v506
        %v9977 = vsub.f32 %v3992, %v507
        %v9978 = vsub.f32 %v3997, %v508
        %v9979 = vsub.f32 %v4002, %v509
        %v9980 = vsub.f32 %v4007, %v510
        %v9981 = vsub.f32 %v4012, %v511
        %v9982 = vsub.f32 %v4017, %v512
        %v9983 = vsub.f32 %v4022, %v513
        %v9984 = vsub.f32 %v4027, %v514
        %v9985 = vmul.f32 %v9921, %v9921
        %v9986 = vmul.f32 %v9922, %v9922
        %v9987 = vmul.f32 %v9923, %v9923
        %v9988 = vmul.f32 %v9924, %v9924
        %v9989 = vmul.f32 %v9925, %v9925
        %v9990 = vmul.f32 %v9926, %v9926
        %v9991 = vmul.f32 %v9927, %v9927
        %v9992 = vmul.f32 %v9928, %v9928
        %v9993 = vmul.f32 %v9929, %v9929
        %v9994 = vmul.f32 %v9930, %v9930
        %v9995 = vmul.f32 %v9931, %v9931
        %v9996 = vmul.f32 %v9932, %v9932
        %v9997 = vmul.f32 %v9933, %v9933
        %v9998 = vmul.f32 %v9934, %v9934
        %v9999 = vmul.f32 %v9935, %v9935
        %v10000 = vmul.f32 %v9936, %v9936
        %v10001 = vmul.f32 %v9937, %v9937
        %v10002 = vmul.f32 %v9938, %v9938
        %v10003 = vmul.f32 %v9939, %v9939
        %v10004 = vmul.f32 %v9940, %v9940
        %v10005 = vmul.f32 %v9941, %v9941
        %v10006 = vmul.f32 %v9942, %v9942
        %v10007 = vmul.f32 %v9943, %v9943
        %v10008 = vmul.f32 %v9944, %v9944
        %v10009 = vmul.f32 %v9945, %v9945
        %v10010 = vmul.f32 %v9946, %v9946
        %v10011 = vmul.f32 %v9947, %v9947
        %v10012 = vmul.f32 %v9948, %v9948
        %v10013 = vmul.f32 %v9949, %v9949
        %v10014 = vmul.f32 %v9950, %v9950
        %v10015 = vmul.f32 %v9951, %v9951
        %v10016 = vmul.f32 %v9952, %v9952
        %v10017 = vmul.f32 %v9953, %v9953
        %v10018 = vmul.f32 %v9954, %v9954
        %v10019 = vmul.f32 %v9955, %v9955
        %v10020 = vmul.f32 %v9956, %v9956
        %v10021 = vmul.f32 %v9957, %v9957
        %v10022 = vmul.f32 %v9958, %v9958
        %v10023 = vmul.f32 %v9959, %v9959
        %v10024 = vmul.f32 %v9960, %v9960
        %v10025 = vmul.f32 %v9961, %v9961
        %v10026 = vmul.f32 %v9962, %v9962
        %v10027 = vmul.f32 %v9963, %v9963
        %v10028 = vmul.f32 %v9964, %v9964
        %v10029 = vmul.f32 %v9965, %v9965
        %v10030 = vmul.f32 %v9966, %v9966
        %v10031 = vmul.f32 %v9967, %v9967
        %v10032 = vmul.f32 %v9968, %v9968
        %v10033 = vmul.f32 %v9969, %v9969
        %v10034 = vmul.f32 %v9970, %v9970
        %v10035 = vmul.f32 %v9971, %v9971
        %v10036 = vmul.f32 %v9972, %v9972
        %v10037 = vmul.f32 %v9973, %v9973
        %v10038 = vmul.f32 %v9974, %v9974
        %v10039 = vmul.f32 %v9975, %v9975
        %v10040 = vmul.f32 %v9976, %v9976
        %v10041 = vmul.f32 %v9977, %v9977
        %v10042 = vmul.f32 %v9978, %v9978
        %v10043 = vmul.f32 %v9979, %v9979
        %v10044 = vmul.f32 %v9980, %v9980
        %v10045 = vmul.f32 %v9981, %v9981
        %v10046 = vmul.f32 %v9982, %v9982
        %v10047 = vmul.f32 %v9983, %v9983
        %v10048 = vmul.f32 %v9984, %v9984
        %v10049 = vsel %vm579, %v9985, 0.0
        %v10050 = vsel %vm579, %v9986, 0.0
        %v10051 = vadd.f32 %v10049, %v10050
        %v10052 = vsel %vm579, %v9987, 0.0
        %v10053 = vadd.f32 %v10051, %v10052
        %v10054 = vsel %vm579, %v9988, 0.0
        %v10055 = vadd.f32 %v10053, %v10054
        %v10056 = vsel %vm579, %v9989, 0.0
        %v10057 = vadd.f32 %v10055, %v10056
        %v10058 = vsel %vm579, %v9990, 0.0
        %v10059 = vadd.f32 %v10057, %v10058
        %v10060 = vsel %vm579, %v9991, 0.0
        %v10061 = vadd.f32 %v10059, %v10060
        %v10062 = vsel %vm579, %v9992, 0.0
        %v10063 = vadd.f32 %v10061, %v10062
        %v10064 = vsel %vm579, %v9993, 0.0
        %v10065 = vadd.f32 %v10063, %v10064
        %v10066 = vsel %vm579, %v9994, 0.0
        %v10067 = vadd.f32 %v10065, %v10066
        %v10068 = vsel %vm579, %v9995, 0.0
        %v10069 = vadd.f32 %v10067, %v10068
        %v10070 = vsel %vm579, %v9996, 0.0
        %v10071 = vadd.f32 %v10069, %v10070
        %v10072 = vsel %vm579, %v9997, 0.0
        %v10073 = vadd.f32 %v10071, %v10072
        %v10074 = vsel %vm579, %v9998, 0.0
        %v10075 = vadd.f32 %v10073, %v10074
        %v10076 = vsel %vm579, %v9999, 0.0
        %v10077 = vadd.f32 %v10075, %v10076
        %v10078 = vsel %vm579, %v10000, 0.0
        %v10079 = vadd.f32 %v10077, %v10078
        %v10080 = vsel %vm579, %v10001, 0.0
        %v10081 = vadd.f32 %v10079, %v10080
        %v10082 = vsel %vm579, %v10002, 0.0
        %v10083 = vadd.f32 %v10081, %v10082
        %v10084 = vsel %vm579, %v10003, 0.0
        %v10085 = vadd.f32 %v10083, %v10084
        %v10086 = vsel %vm579, %v10004, 0.0
        %v10087 = vadd.f32 %v10085, %v10086
        %v10088 = vsel %vm579, %v10005, 0.0
        %v10089 = vadd.f32 %v10087, %v10088
        %v10090 = vsel %vm579, %v10006, 0.0
        %v10091 = vadd.f32 %v10089, %v10090
        %v10092 = vsel %vm579, %v10007, 0.0
        %v10093 = vadd.f32 %v10091, %v10092
        %v10094 = vsel %vm579, %v10008, 0.0
        %v10095 = vadd.f32 %v10093, %v10094
        %v10096 = vsel %vm579, %v10009, 0.0
        %v10097 = vadd.f32 %v10095, %v10096
        %v10098 = vsel %vm579, %v10010, 0.0
        %v10099 = vadd.f32 %v10097, %v10098
        %v10100 = vsel %vm579, %v10011, 0.0
        %v10101 = vadd.f32 %v10099, %v10100
        %v10102 = vsel %vm579, %v10012, 0.0
        %v10103 = vadd.f32 %v10101, %v10102
        %v10104 = vsel %vm579, %v10013, 0.0
        %v10105 = vadd.f32 %v10103, %v10104
        %v10106 = vsel %vm579, %v10014, 0.0
        %v10107 = vadd.f32 %v10105, %v10106
        %v10108 = vsel %vm579, %v10015, 0.0
        %v10109 = vadd.f32 %v10107, %v10108
        %v10110 = vsel %vm579, %v10016, 0.0
        %v10111 = vadd.f32 %v10109, %v10110
        %v10112 = vsel %vm579, %v10017, 0.0
        %v10113 = vadd.f32 %v10111, %v10112
        %v10114 = vsel %vm579, %v10018, 0.0
        %v10115 = vadd.f32 %v10113, %v10114
        %v10116 = vsel %vm579, %v10019, 0.0
        %v10117 = vadd.f32 %v10115, %v10116
        %v10118 = vsel %vm579, %v10020, 0.0
        %v10119 = vadd.f32 %v10117, %v10118
        %v10120 = vsel %vm579, %v10021, 0.0
        %v10121 = vadd.f32 %v10119, %v10120
        %v10122 = vsel %vm579, %v10022, 0.0
        %v10123 = vadd.f32 %v10121, %v10122
        %v10124 = vsel %vm579, %v10023, 0.0
        %v10125 = vadd.f32 %v10123, %v10124
        %v10126 = vsel %vm579, %v10024, 0.0
        %v10127 = vadd.f32 %v10125, %v10126
        %v10128 = vsel %vm579, %v10025, 0.0
        %v10129 = vadd.f32 %v10127, %v10128
        %v10130 = vsel %vm579, %v10026, 0.0
        %v10131 = vadd.f32 %v10129, %v10130
        %v10132 = vsel %vm579, %v10027, 0.0
        %v10133 = vadd.f32 %v10131, %v10132
        %v10134 = vsel %vm579, %v10028, 0.0
        %v10135 = vadd.f32 %v10133, %v10134
        %v10136 = vsel %vm579, %v10029, 0.0
        %v10137 = vadd.f32 %v10135, %v10136
        %v10138 = vsel %vm579, %v10030, 0.0
        %v10139 = vadd.f32 %v10137, %v10138
        %v10140 = vsel %vm579, %v10031, 0.0
        %v10141 = vadd.f32 %v10139, %v10140
        %v10142 = vsel %vm579, %v10032, 0.0
        %v10143 = vadd.f32 %v10141, %v10142
        %v10144 = vsel %vm579, %v10033, 0.0
        %v10145 = vadd.f32 %v10143, %v10144
        %v10146 = vsel %vm579, %v10034, 0.0
        %v10147 = vadd.f32 %v10145, %v10146
        %v10148 = vsel %vm579, %v10035, 0.0
        %v10149 = vadd.f32 %v10147, %v10148
        %v10150 = vsel %vm579, %v10036, 0.0
        %v10151 = vadd.f32 %v10149, %v10150
        %v10152 = vsel %vm579, %v10037, 0.0
        %v10153 = vadd.f32 %v10151, %v10152
        %v10154 = vsel %vm579, %v10038, 0.0
        %v10155 = vadd.f32 %v10153, %v10154
        %v10156 = vsel %vm579, %v10039, 0.0
        %v10157 = vadd.f32 %v10155, %v10156
        %v10158 = vsel %vm579, %v10040, 0.0
        %v10159 = vadd.f32 %v10157, %v10158
        %v10160 = vsel %vm579, %v10041, 0.0
        %v10161 = vadd.f32 %v10159, %v10160
        %v10162 = vsel %vm579, %v10042, 0.0
        %v10163 = vadd.f32 %v10161, %v10162
        %v10164 = vsel %vm579, %v10043, 0.0
        %v10165 = vadd.f32 %v10163, %v10164
        %v10166 = vsel %vm579, %v10044, 0.0
        %v10167 = vadd.f32 %v10165, %v10166
        %v10168 = vsel %vm579, %v10045, 0.0
        %v10169 = vadd.f32 %v10167, %v10168
        %v10170 = vsel %vm579, %v10046, 0.0
        %v10171 = vadd.f32 %v10169, %v10170
        %v10172 = vsel %vm579, %v10047, 0.0
        %v10173 = vadd.f32 %v10171, %v10172
        %v10174 = vsel %vm579, %v10048, 0.0
        %v10175 = vadd.f32 %v10173, %v10174
        %10176 = vadd.xlane.f32.xlu0 %v10175
        %v10177 = vpop.xlane.xlu0 %10176
        %v10178 = vrot.slane %v10177, 4
        %v10179 = vadd.f32 %v10177, %v10178
        %v10180 = vrot.slane %v10179, 2
        %v10181 = vadd.f32 %v10179, %v10180
        %v10182 = vrot.slane %v10181, 1
        %v10183 = vadd.f32 %v10181, %v10182
        %s10184 = vtos %v10183
        %v10185 = vstv %s10184
        %v10186 = vadd.f32 %v10185, 0.0
        %10187 = vst [vmem:[%s353] sm:$0xff] %v10186
        %s10188 = sand.u32 %s129, 1
        %s10189 = scalar_lea.sflag [#allocation4], %s10188
        %s10190 = sand.u32 %s129, 1
        %s10191 = smul.addr %s10190, 32
        %s10192 = scalar_lea.vmem [#allocation3], %s10191
        %s10193 = sand.u32 %s27, 1
        %s10194 = scalar_lea.sflag [#allocation6], %s10193
        %s10195 = sand.u32 %s157, 1
        %s10196 = smul.addr %s10195, 512
        %s10197 = scalar_lea.vmem [#allocation5], %s10196
        %s10198 = sand.u32 %s27, 1
        %s10199 = scalar_lea.sflag [#allocation6], %s10198
        %s10200 = sand.u32 %s185, 1
        %s10201 = smul.addr %s10200, 4
        %s10202 = scalar_lea.vmem [#allocation7], %s10201
        %s10203 = sand.u32 %s213, 1
        %s10204 = scalar_lea.sflag [#allocation9], %s10203
        %s10205 = sand.u32 %s213, 1
        %s10206 = smul.addr %s10205, 8
        %s10207 = scalar_lea.vmem [#allocation8], %s10206
        // Predicated region
        $region56: #{tpu_custom_call.1} parent=50 // pred_check
          %p10208 = pneg %p139
        $region57: #{tpu_custom_call.1} parent=50 // pred_check_branch
          %10210 = sbr.rel (%p10208) target = $region59
        $region58: #{tpu_custom_call.1} parent=50 // pred_region
          %s10211 = smul.u32 2, %s32
          %s10213 = ssub.s32 512, 512
          %10214 = vsyncadd %s10189, %s10213
          %s10215 = smul.addr %s31, 2
          %s10216 = sadd.s32 %s10211, %s10215
          %s10217 = smul.addr %s10216, 128
          %s10218 = scalar_lea.hbm %s3, %s10217
          %s10219 = sshll.u32 %s10192, 4
          %s10220 = int_to_ptr.vmem [resolvable:$true] %s10219
          %10225 = dma.vmem_to_hbm [thread:$0]  %s10220, 512, %s10218, %s10189, 256, 1024, 16
        $region59: #{tpu_custom_call.1} parent=50 // pred_fallthru
          _
        // Predicated region
        $region60: #{tpu_custom_call.1} parent=50 // pred_check
          %p10226 = pneg %p167
        $region61: #{tpu_custom_call.1} parent=50 // pred_check_branch
          %10228 = sbr.rel (%p10226) target = $region63
        $region62: #{tpu_custom_call.1} parent=50 // pred_region
          %s10229 = smul.u32 32, %s32
          %s10231 = ssub.s32 8192, 8192
          %10232 = vsyncadd %s10194, %s10231
          %s10233 = smul.addr %s10229, 4
          %s10234 = sadd.s32 %s31, %s10233
          %s10235 = smul.addr %s10234, 128
          %s10236 = scalar_lea.hbm %s4, %s10235
          %s10237 = sshll.u32 %s10197, 4
          %s10238 = int_to_ptr.vmem [resolvable:$true] %s10237
          %10243 = dma.vmem_to_hbm [thread:$0]  %s10238, 8192, %s10236, %s10194, 128, 512, 8
        $region63: #{tpu_custom_call.1} parent=50 // pred_fallthru
          _
        // Predicated region
        $region64: #{tpu_custom_call.1} parent=50 // pred_check
          %p10244 = pneg %p195
        $region65: #{tpu_custom_call.1} parent=50 // pred_check_branch
          %10246 = sbr.rel (%p10244) target = $region67
        $region66: #{tpu_custom_call.1} parent=50 // pred_region
          %s10247 = smul.u32 2, %s32
          %s10249 = ssub.s32 64, 64
          %10250 = vsyncadd %s10199, %s10249
          %s10251 = smul.addr %s31, 2
          %s10252 = sadd.s32 %s10247, %s10251
          %s10253 = smul.addr %s10252, 32
          %s10254 = scalar_lea.hbm %s5, %s10253
          %s10256 = sshll.u32 %s10202, 4
          %s10257 = int_to_ptr.vmem [resolvable:$true] %s10256
          %10259 = dma.vmem_to_hbm [thread:$0]  %s10257, 64, %s10254, %s10199
        $region67: #{tpu_custom_call.1} parent=50 // pred_fallthru
          _
        // Predicated region
        $region68: #{tpu_custom_call.1} parent=50 // pred_check
          %p10260 = pneg %p223
        $region69: #{tpu_custom_call.1} parent=50 // pred_check_branch
          %10262 = sbr.rel (%p10260) target = $region71
        $region70: #{tpu_custom_call.1} parent=50 // pred_region
          %s10264 = ssub.s32 128, 128
          %10265 = vsyncadd %s10204, %s10264
          %s10266 = sadd.s32 %s32, %s31
          %s10267 = smul.addr %s10266, 128
          %s10268 = scalar_lea.hbm %s6, %s10267
          %s10270 = sshll.u32 %s10207, 4
          %s10271 = int_to_ptr.vmem [resolvable:$true] %s10270
          %10273 = dma.vmem_to_hbm [thread:$0]  %s10271, 128, %s10268, %s10204
        $region71: #{tpu_custom_call.1} parent=50 // pred_fallthru
          _
      $region51: #{tpu_custom_call.1} parent=5 // pred_fallthru
        _
      %p10274 = scmp.le.s32.totalorder 2, %s22
      // Predicated region
      $region72: #{tpu_custom_call.1} parent=5 // pred_check
        %p10275 = pneg %p10274
      $region73: #{tpu_custom_call.1} parent=5 // pred_check_branch
        %10277 = sbr.rel (%p10275) target = $region75
      $region74: #{tpu_custom_call.1} parent=5 // pred_region
        %s10278 = ssub.s32 %s22, 2
        // Predicated region
        $region76: #{tpu_custom_call.1} parent=74 // pred_check
          %p10279 = pneg %p145
        $region77: #{tpu_custom_call.1} parent=74 // pred_check_branch
          %10281 = sbr.rel (%p10279) target = $region79
        $region78: #{tpu_custom_call.1} parent=74 // pred_region
          %s10282 = sand.u32 %s130, 1
          %s10283 = scalar_lea.sflag [#allocation4], %s10282
          %s10284 = sand.u32 %s130, 1
          %s10285 = smul.addr %s10284, 32
          %s10286 = scalar_lea.vmem [#allocation3], %s10285
          %10287 = dma.done %s10283, 512
        $region79: #{tpu_custom_call.1} parent=74 // pred_fallthru
          _
        // Predicated region
        $region80: #{tpu_custom_call.1} parent=74 // pred_check
          %p10288 = pneg %p173
        $region81: #{tpu_custom_call.1} parent=74 // pred_check_branch
          %10290 = sbr.rel (%p10288) target = $region83
        $region82: #{tpu_custom_call.1} parent=74 // pred_region
          %s10291 = sand.u32 %s28, 1
          %s10292 = scalar_lea.sflag [#allocation6], %s10291
          %s10293 = sand.u32 %s158, 1
          %s10294 = smul.addr %s10293, 512
          %s10295 = scalar_lea.vmem [#allocation5], %s10294
          %10296 = dma.done %s10292, 8192
        $region83: #{tpu_custom_call.1} parent=74 // pred_fallthru
          _
        // Predicated region
        $region84: #{tpu_custom_call.1} parent=74 // pred_check
          %p10297 = pneg %p201
        $region85: #{tpu_custom_call.1} parent=74 // pred_check_branch
          %10299 = sbr.rel (%p10297) target = $region87
        $region86: #{tpu_custom_call.1} parent=74 // pred_region
          %s10300 = sand.u32 %s28, 1
          %s10301 = scalar_lea.sflag [#allocation6], %s10300
          %s10302 = sand.u32 %s186, 1
          %s10303 = smul.addr %s10302, 4
          %s10304 = scalar_lea.vmem [#allocation7], %s10303
          %10305 = dma.done %s10301, 64
        $region87: #{tpu_custom_call.1} parent=74 // pred_fallthru
          _
        // Predicated region
        $region88: #{tpu_custom_call.1} parent=74 // pred_check
          %p10306 = pneg %p229
        $region89: #{tpu_custom_call.1} parent=74 // pred_check_branch
          %10308 = sbr.rel (%p10306) target = $region91
        $region90: #{tpu_custom_call.1} parent=74 // pred_region
          %s10309 = sand.u32 %s214, 1
          %s10310 = scalar_lea.sflag [#allocation9], %s10309
          %s10311 = sand.u32 %s214, 1
          %s10312 = smul.addr %s10311, 8
          %s10313 = scalar_lea.vmem [#allocation8], %s10312
          %10314 = dma.done %s10310, 128
        $region91: #{tpu_custom_call.1} parent=74 // pred_fallthru
          _
      $region75: #{tpu_custom_call.1} parent=5 // pred_fallthru
        _
    $region6: #{tpu_custom_call.1} parent=1 // loop_footer
      %s26 = sadd.s32 1, %s22
    $region7: #{tpu_custom_call.1} parent=1 // loop_footer_branch
      %21 = sbr.rel target = $region3
    $region8: #{tpu_custom_call.1} parent=1 // loop_exit
      _
    %10315 = vsyncpa [#allocation4], 1
    %s10316 = scalar_lea.sflag [#allocation4], 1
    %10317 = vsyncpa %s10316, 1
    %10318 = vsyncpa [#allocation6], 1
    %s10319 = scalar_lea.sflag [#allocation6], 1
    %10320 = vsyncpa %s10319, 1
    %10321 = vsyncpa [#allocation9], 1
    %s10322 = scalar_lea.sflag [#allocation9], 1
    %10323 = vsyncpa %s10322, 1

</llo_original>
